<compile_context>
chip_gen: v5e
topology: v5e:2x2
jax: 0.10.0
libtpu: 0.0.40
codegen_flags: <defaults>
</compile_context>

<pallas_src>
import functools

import jax
import jax.numpy as jnp
from jax.experimental import pallas as pl
from jax.experimental.pallas import tpu as pltpu

_SQRT1_2 = 0.7071067811865476
_ERF_P = 0.3275911
_ERF_A1 = 0.254829592
_ERF_A2 = -0.284496736
_ERF_A3 = 1.421413741
_ERF_A4 = -1.453152027
_ERF_A5 = 1.061405429


def _gelu_exact(x):
    # nn.GELU() default (approximate='none'): 0.5*x*(1+erf(x/sqrt(2))).
    # erf via Abramowitz & Stegun 7.1.26 (|err| < 1.5e-7); the divide goes through the
    # EUP approximate reciprocal so the VPU is not burned on divides over (rows, 4C).
    z = x * _SQRT1_2
    az = jnp.abs(z)
    t = pl.reciprocal(1.0 + _ERF_P * az, approx=True)
    poly = ((((_ERF_A5 * t + _ERF_A4) * t + _ERF_A3) * t + _ERF_A2) * t + _ERF_A1) * t
    erf_abs = 1.0 - poly * jnp.exp(-az * az)
    erf = jnp.where(z >= 0.0, erf_abs, -erf_abs)
    return 0.5 * x * (1.0 + erf)


def _acl_kernel(xs_ref, wdw_ref, bdw_ref, w1_ref, b1_ref, w2_ref, b2_ref, o_ref,
                *, eps, rc):
    # xs_ref:  (1, S+6, W+6, C)  one zero-padded stripe (6-row / 6-col halo included)
    # wdw_ref: (7, 7, C)         depthwise weights (7x1 / 1x7 folded into the 7x7)
    # bdw_ref: (1, C)            combined depthwise bias
    # w1_ref:  (C, 4C)  bf16     pwconv1 weights, LayerNorm affine folded in
    # b1_ref:  (1, 4C)  f32
    # w2_ref:  (4C, C)  bf16     pwconv2 weights, gamma (layer scale) folded in
    # b2_ref:  (1, C)   f32
    # o_ref:   (1, S*W, C)       output stripe (flattened spatial), residual fused
    _, sp6, wp6, C = xs_ref.shape
    S, W = sp6 - 6, wp6 - 6
    n_chunks = S // rc

    w_all = wdw_ref[...]          # (7, 7, C): loaded once per stripe
    b_dw = bdw_ref[...]           # (1, C)
    b1 = b1_ref[...]              # (1, 4C)
    b2 = b2_ref[...]              # (1, C)

    # Small static unroll (<= ~4 chunks per stripe); each chunk is independent and ends
    # in its own output store, so live ranges stay bounded.
    for ci in range(n_chunks):
        r0 = ci * rc

        # ---- depthwise 7x7 (asymmetric taps folded), bounded (rc, W, C) f32 acc ----
        acc = jnp.zeros((rc, W, C), jnp.float32)
        for kj in range(7):                      # W (sublane) shift handled by the read
            for ki in range(7):                  # H shift = free leading-axis offset
                acc = acc + (xs_ref[0, r0 + ki:r0 + ki + rc, kj:kj + W, :]
                             * w_all[ki, kj:kj + 1, :])
        d = (acc + b_dw).reshape(rc * W, C)      # W % 8 == 0 -> layout-free reshape

        # ---- LayerNorm over channels (affine folded into w1/b1) ----
        u = jnp.mean(d, axis=-1, keepdims=True)
        cc = d - u
        var = jnp.mean(cc * cc, axis=-1, keepdims=True)
        xn = cc * jax.lax.rsqrt(var + eps)

        # ---- pwconv1 -> GELU -> pwconv2 (gamma folded), bf16 MXU + f32 accum ----
        h1 = jnp.dot(xn.astype(jnp.bfloat16), w1_ref[...],
                     preferred_element_type=jnp.float32) + b1
        h1 = _gelu_exact(h1)
        y = jnp.dot(h1.astype(jnp.bfloat16), w2_ref[...],
                    preferred_element_type=jnp.float32) + b2

        # ---- residual straight from the stripe interior; single fused store ----
        res = xs_ref[0, r0 + 3:r0 + 3 + rc, 3:3 + W, :].reshape(rc * W, C)
        o_ref[0, r0 * W:(r0 + rc) * W, :] = res + y


def _pick_tiles(H, W, C):
    """Chunk rows RC (~256 pixels per MXU chunk, f32 acc <= ~192 KiB) and stripe rows S
    (a small multiple of RC that divides H)."""
    RC = max(1, min(H, 256 // max(W, 1)))
    while RC > 1 and (H % RC != 0 or RC * W * C * 4 > 192 * 1024):
        RC -= 1
    S = RC
    for m in (4, 2):
        if RC * m <= H and H % (RC * m) == 0:
            S = RC * m
            break
    return S, RC


# ------------------------------------ wrapper -------------------------------------------
@jax.jit
def acl_v1_forward(x_nchw, params):
    x = jnp.transpose(x_nchw, (0, 2, 3, 1)).astype(jnp.float32)   # NHWC
    N, H, W, C = x.shape
    assert W % 8 == 0, "W must be a multiple of 8 (sublane tile) for the in-kernel flatten"
    # TODO(synk): support W % 8 != 0 by padding W host-side to the next multiple of 8.

    S, RC = _pick_tiles(H, W, C)
    n_stripes = H // S

    # ---- host-side constant folding (numerically exact, free at runtime) ----
    # Fold 7x1 / 1x7 depthwise kernels into column 3 / row 3 of the 7x7 kernel.
    w_dw = params["wsq"].at[:, 3, :].add(params["wver"]).at[3, :, :].add(params["whor"])
    b_dw = (params["bsq"] + params["bver"] + params["bhor"]).reshape(1, C)
    # Fold the LayerNorm affine into pwconv1 and gamma (layer scale) into pwconv2.
    w1, b1 = params["w1"], params["b1"]
    w2, b2 = params["w2"], params["b2"]
    lnw, lnb, gamma = params["ln_w"], params["ln_b"], params["gamma"]
    w1f = (lnw[:, None] * w1).astype(jnp.bfloat16)                 # bf16 MXU operand
    b1f = (b1 + lnb @ w1).reshape(1, 4 * C).astype(jnp.float32)
    w2f = (w2 * gamma[None, :]).astype(jnp.bfloat16)               # bf16 MXU operand
    b2f = (b2 * gamma).reshape(1, C).astype(jnp.float32)

    # Zero-padded, halo-expanded stripes: (N*n_stripes, S+6, W+6, C).  The ordinary
    # BlockSpec pipeline double-buffers each stripe (no manual halo DMA, no kernel-side
    # zeroing) at the cost of a (S+6)/S duplication of the input read.
    xpad = jnp.pad(x, ((0, 0), (3, 3), (3, 3), (0, 0)))
    xs = jnp.stack([xpad[:, s * S:s * S + S + 6] for s in range(n_stripes)], axis=1)
    xs = xs.reshape(N * n_stripes, S + 6, W + 6, C)

    # Explicit VMEM budget: double-buffered stripe in/out blocks + resident weights +
    # per-chunk intermediates, plus headroom for compiler-internal scratch.
    xs_block = (S + 6) * (W + 6) * C * 4
    out_block = S * W * C * 4
    weights = (49 * C + C) * 4 + (C * 4 * C + 4 * C * C) * 2 + (4 * C + C) * 4
    chunk = RC * W * (4 * C) * 4 * 3 + RC * W * C * 4 * 4
    vmem_limit = int(min(2 * (xs_block + out_block) + 2 * weights + chunk + (8 << 20),
                         64 << 20))

    out_flat = pl.pallas_call(
        functools.partial(_acl_kernel, eps=1e-6, rc=RC),
        out_shape=jax.ShapeDtypeStruct((N, H * W, C), jnp.float32),
        grid=(N, n_stripes),
        in_specs=[
            pl.BlockSpec((1, S + 6, W + 6, C),
                         lambda n, s: (n * n_stripes + s, 0, 0, 0)),
            pl.BlockSpec((7, 7, C), lambda n, s: (0, 0, 0)),
            pl.BlockSpec((1, C), lambda n, s: (0, 0)),
            pl.BlockSpec((C, 4 * C), lambda n, s: (0, 0)),
            pl.BlockSpec((1, 4 * C), lambda n, s: (0, 0)),
            pl.BlockSpec((4 * C, C), lambda n, s: (0, 0)),
            pl.BlockSpec((1, C), lambda n, s: (0, 0)),
        ],
        out_specs=pl.BlockSpec((1, S * W, C), lambda n, s: (n, s, 0)),
        compiler_params=pltpu.CompilerParams(
            dimension_semantics=("parallel", "parallel"),
            vmem_limit_bytes=vmem_limit),
    )(xs, w_dw, b_dw, w1f, b1f, w2f, b2f)

    out = out_flat.reshape(N, H, W, C)
    return jnp.transpose(out, (0, 3, 1, 2))                        # back to NCHW


# --------------------------- pure-JAX reference (for checking) --------------------------
def reference(x_nchw, params):
    x = jnp.transpose(x_nchw, (0, 2, 3, 1)).astype(jnp.float32)
    N, H, W, C = x.shape

    def dwconv(w4, pad):
        dn = jax.lax.conv_dimension_numbers(x.shape, w4.shape, ("NHWC", "HWIO", "NHWC"))
        return jax.lax.conv_general_dilated(
            x, w4, (1, 1), pad, dimension_numbers=dn, feature_group_count=C)

    sq = dwconv(params["wsq"][:, :, None, :], [(3, 3), (3, 3)]) + params["bsq"]
    ver = dwconv(params["wver"][:, None, None, :], [(3, 3), (0, 0)]) + params["bver"]
    hor = dwconv(params["whor"][None, :, None, :], [(0, 0), (3, 3)]) + params["bhor"]
    d = sq + ver + hor

    u = d.mean(-1, keepdims=True)
    var = ((d - u) ** 2).mean(-1, keepdims=True)
    xn = (d - u) / jnp.sqrt(var + 1e-6)
    xn = xn * params["ln_w"] + params["ln_b"]

    h = jnp.einsum("nhwc,cf->nhwf", xn, params["w1"]) + params["b1"]
    h = 0.5 * h * (1.0 + jax.scipy.special.erf(h * _SQRT1_2))
    h = jnp.einsum("nhwf,fc->nhwc", h, params["w2"]) + params["b2"]
    h = h * params["gamma"]
    out = x + h
    return jnp.transpose(out, (0, 3, 1, 2))


# ------------------------------ deterministic params ------------------------------------
def init_params(key, dim):
    ks = jax.random.split(key, 10)
    s = 0.1
    return {
        # ACBlock (deploy=False, norm='no'): depthwise 7x7 + 7x1 + 1x7, each with bias
        "wsq": s * jax.random.normal(ks[0], (7, 7, dim), jnp.float32),
        "bsq": s * jax.random.normal(ks[1], (dim,), jnp.float32),
        "wver": s * jax.random.normal(ks[2], (7, dim), jnp.float32),
        "bver": s * jax.random.normal(ks[3], (dim,), jnp.float32),
        "whor": s * jax.random.normal(ks[4], (7, dim), jnp.float32),
        "bhor": s * jax.random.normal(ks[5], (dim,), jnp.float32),
        # LayerNorm init: ones / zeros
        "ln_w": jnp.ones((dim,), jnp.float32),
        "ln_b": jnp.zeros((dim,), jnp.float32),
        # pwconv1 / pwconv2 (1x1 convs as matmuls, channels-last)
        "w1": s * jax.random.normal(ks[6], (dim, 4 * dim), jnp.float32),
        "b1": s * jax.random.normal(ks[7], (4 * dim,), jnp.float32),
        "w2": s * jax.random.normal(ks[8], (4 * dim, dim), jnp.float32),
        "b2": s * jax.random.normal(ks[9], (dim,), jnp.float32),
        # layer scale init: 1e-6 * ones(dim)
        "gamma": 1e-6 * jnp.ones((dim,), jnp.float32),
    }


if __name__ == "__main__":
    key = jax.random.PRNGKey(0)
    kx, kp = jax.random.split(key)
    N, C, H, W = 2, 4, 16, 16        # dim = 4
    x = jax.random.normal(kx, (N, C, H, W), jnp.float32)
    params = init_params(kp, C)

    out = jax.block_until_ready(acl_v1_forward(x, params))
    assert out.shape == (N, C, H, W)

    ref = reference(x, params)
    err = float(jnp.max(jnp.abs(out - ref)))
    assert err < 1e-3, f"max abs err vs reference: {err}"

    # gamma=1 check so the MLP path is exercised meaningfully; looser tolerance accounts
    # for bf16 MXU operands + EUP approximate reciprocal in the erf polynomial.
    params2 = dict(params, gamma=jnp.ones((C,), jnp.float32))
    out2 = jax.block_until_ready(acl_v1_forward(x, params2))
    err2 = float(jnp.max(jnp.abs(out2 - reference(x, params2))))
    assert err2 < 1e-2, f"max abs err (gamma=1) vs reference: {err2}"

    print("KERNEL_OK")
</pallas_src>

<mosaic_0001>
module attributes {stable_mosaic.version = 11 : i64} {
  func.func @_acl_kernel(%arg0: i32, %arg1: i32, %arg2: memref<1x22x22x4xf32, #tpu.memory_space<vmem>>, %arg3: memref<7x7x4xf32, #tpu.memory_space<vmem>>, %arg4: memref<1x4xf32, #tpu.memory_space<vmem>>, %arg5: memref<4x16xbf16, #tpu.memory_space<vmem>>, %arg6: memref<1x16xf32, #tpu.memory_space<vmem>>, %arg7: memref<16x4xbf16, #tpu.memory_space<vmem>>, %arg8: memref<1x4xf32, #tpu.memory_space<vmem>>, %arg9: memref<1x256x4xf32, #tpu.memory_space<vmem>>) attributes {dimension_semantics = [#tpu.dimension_semantics<parallel>, #tpu.dimension_semantics<parallel>], iteration_bounds = array<i64: 2, 1>, scalar_prefetch = 0 : i64, scratch_operands = 0 : i64, tpu.core_type = #tpu.core_type<tc>, window_params = [{transform_indices = @transform_0, window_bounds = array<i64: 1, 22, 22, 4>}, {pipeline_mode = #tpu.pipeline_mode<synchronous>, transform_indices = @transform_1, window_bounds = array<i64: 7, 7, 4>}, {pipeline_mode = #tpu.pipeline_mode<synchronous>, transform_indices = @transform_2, window_bounds = array<i64: 1, 4>}, {pipeline_mode = #tpu.pipeline_mode<synchronous>, transform_indices = @transform_3, window_bounds = array<i64: 4, 16>}, {pipeline_mode = #tpu.pipeline_mode<synchronous>, transform_indices = @transform_4, window_bounds = array<i64: 1, 16>}, {pipeline_mode = #tpu.pipeline_mode<synchronous>, transform_indices = @transform_5, window_bounds = array<i64: 16, 4>}, {pipeline_mode = #tpu.pipeline_mode<synchronous>, transform_indices = @transform_6, window_bounds = array<i64: 1, 4>}, {transform_indices = @transform_7, window_bounds = array<i64: 1, 256, 4>}]} {
    %c0 = arith.constant 0 : index
    %c0_0 = arith.constant 0 : index
    %c0_1 = arith.constant 0 : index
    %0 = vector.load %arg3[%c0, %c0_0, %c0_1] : memref<7x7x4xf32, #tpu.memory_space<vmem>>, vector<7x7x4xf32>
    %c0_2 = arith.constant 0 : index
    %c0_3 = arith.constant 0 : index
    %1 = vector.load %arg4[%c0_2, %c0_3] : memref<1x4xf32, #tpu.memory_space<vmem>>, vector<1x4xf32>
    %c0_4 = arith.constant 0 : index
    %c0_5 = arith.constant 0 : index
    %2 = vector.load %arg6[%c0_4, %c0_5] : memref<1x16xf32, #tpu.memory_space<vmem>>, vector<1x16xf32>
    %c0_6 = arith.constant 0 : index
    %c0_7 = arith.constant 0 : index
    %3 = vector.load %arg8[%c0_6, %c0_7] : memref<1x4xf32, #tpu.memory_space<vmem>>, vector<1x4xf32>
    %cst = arith.constant 0.000000e+00 : f32
    %4 = vector.broadcast %cst : f32 to vector<16x16x4xf32>
    %c0_8 = arith.constant 0 : index
    %c0_9 = arith.constant 0 : index
    %c0_10 = arith.constant 0 : index
    %c0_11 = arith.constant 0 : index
    %5 = vector.load %arg2[%c0_8, %c0_9, %c0_10, %c0_11] : memref<1x22x22x4xf32, #tpu.memory_space<vmem>>, vector<1x16x16x4xf32>
    %6 = vector.shape_cast %5 : vector<1x16x16x4xf32> to vector<16x16x4xf32>
    %7 = vector.extract_strided_slice %0 {offsets = [0, 0, 0], sizes = [1, 1, 4], strides = [1, 1, 1]} : vector<7x7x4xf32> to vector<1x1x4xf32>
    %8 = vector.shape_cast %7 : vector<1x1x4xf32> to vector<1x4xf32>
    %9 = vector.shape_cast %8 : vector<1x4xf32> to vector<1x1x4xf32>
    %10 = vector.broadcast %9 : vector<1x1x4xf32> to vector<16x16x4xf32>
    %11 = arith.mulf %6, %10 : vector<16x16x4xf32>
    %12 = arith.addf %4, %11 : vector<16x16x4xf32>
    %c0_12 = arith.constant 0 : index
    %c1 = arith.constant 1 : index
    %c0_13 = arith.constant 0 : index
    %c0_14 = arith.constant 0 : index
    %13 = vector.load %arg2[%c0_12, %c1, %c0_13, %c0_14] : memref<1x22x22x4xf32, #tpu.memory_space<vmem>>, vector<1x16x16x4xf32>
    %14 = vector.shape_cast %13 : vector<1x16x16x4xf32> to vector<16x16x4xf32>
    %15 = vector.extract_strided_slice %0 {offsets = [1, 0, 0], sizes = [1, 1, 4], strides = [1, 1, 1]} : vector<7x7x4xf32> to vector<1x1x4xf32>
    %16 = vector.shape_cast %15 : vector<1x1x4xf32> to vector<1x4xf32>
    %17 = vector.shape_cast %16 : vector<1x4xf32> to vector<1x1x4xf32>
    %18 = vector.broadcast %17 : vector<1x1x4xf32> to vector<16x16x4xf32>
    %19 = arith.mulf %14, %18 : vector<16x16x4xf32>
    %20 = arith.addf %12, %19 : vector<16x16x4xf32>
    %c0_15 = arith.constant 0 : index
    %c2 = arith.constant 2 : index
    %c0_16 = arith.constant 0 : index
    %c0_17 = arith.constant 0 : index
    %21 = vector.load %arg2[%c0_15, %c2, %c0_16, %c0_17] : memref<1x22x22x4xf32, #tpu.memory_space<vmem>>, vector<1x16x16x4xf32>
    %22 = vector.shape_cast %21 : vector<1x16x16x4xf32> to vector<16x16x4xf32>
    %23 = vector.extract_strided_slice %0 {offsets = [2, 0, 0], sizes = [1, 1, 4], strides = [1, 1, 1]} : vector<7x7x4xf32> to vector<1x1x4xf32>
    %24 = vector.shape_cast %23 : vector<1x1x4xf32> to vector<1x4xf32>
    %25 = vector.shape_cast %24 : vector<1x4xf32> to vector<1x1x4xf32>
    %26 = vector.broadcast %25 : vector<1x1x4xf32> to vector<16x16x4xf32>
    %27 = arith.mulf %22, %26 : vector<16x16x4xf32>
    %28 = arith.addf %20, %27 : vector<16x16x4xf32>
    %c0_18 = arith.constant 0 : index
    %c3 = arith.constant 3 : index
    %c0_19 = arith.constant 0 : index
    %c0_20 = arith.constant 0 : index
    %29 = vector.load %arg2[%c0_18, %c3, %c0_19, %c0_20] : memref<1x22x22x4xf32, #tpu.memory_space<vmem>>, vector<1x16x16x4xf32>
    %30 = vector.shape_cast %29 : vector<1x16x16x4xf32> to vector<16x16x4xf32>
    %31 = vector.extract_strided_slice %0 {offsets = [3, 0, 0], sizes = [1, 1, 4], strides = [1, 1, 1]} : vector<7x7x4xf32> to vector<1x1x4xf32>
    %32 = vector.shape_cast %31 : vector<1x1x4xf32> to vector<1x4xf32>
    %33 = vector.shape_cast %32 : vector<1x4xf32> to vector<1x1x4xf32>
    %34 = vector.broadcast %33 : vector<1x1x4xf32> to vector<16x16x4xf32>
    %35 = arith.mulf %30, %34 : vector<16x16x4xf32>
    %36 = arith.addf %28, %35 : vector<16x16x4xf32>
    %c0_21 = arith.constant 0 : index
    %c4 = arith.constant 4 : index
    %c0_22 = arith.constant 0 : index
    %c0_23 = arith.constant 0 : index
    %37 = vector.load %arg2[%c0_21, %c4, %c0_22, %c0_23] : memref<1x22x22x4xf32, #tpu.memory_space<vmem>>, vector<1x16x16x4xf32>
    %38 = vector.shape_cast %37 : vector<1x16x16x4xf32> to vector<16x16x4xf32>
    %39 = vector.extract_strided_slice %0 {offsets = [4, 0, 0], sizes = [1, 1, 4], strides = [1, 1, 1]} : vector<7x7x4xf32> to vector<1x1x4xf32>
    %40 = vector.shape_cast %39 : vector<1x1x4xf32> to vector<1x4xf32>
    %41 = vector.shape_cast %40 : vector<1x4xf32> to vector<1x1x4xf32>
    %42 = vector.broadcast %41 : vector<1x1x4xf32> to vector<16x16x4xf32>
    %43 = arith.mulf %38, %42 : vector<16x16x4xf32>
    %44 = arith.addf %36, %43 : vector<16x16x4xf32>
    %c0_24 = arith.constant 0 : index
    %c5 = arith.constant 5 : index
    %c0_25 = arith.constant 0 : index
    %c0_26 = arith.constant 0 : index
    %45 = vector.load %arg2[%c0_24, %c5, %c0_25, %c0_26] : memref<1x22x22x4xf32, #tpu.memory_space<vmem>>, vector<1x16x16x4xf32>
    %46 = vector.shape_cast %45 : vector<1x16x16x4xf32> to vector<16x16x4xf32>
    %47 = vector.extract_strided_slice %0 {offsets = [5, 0, 0], sizes = [1, 1, 4], strides = [1, 1, 1]} : vector<7x7x4xf32> to vector<1x1x4xf32>
    %48 = vector.shape_cast %47 : vector<1x1x4xf32> to vector<1x4xf32>
    %49 = vector.shape_cast %48 : vector<1x4xf32> to vector<1x1x4xf32>
    %50 = vector.broadcast %49 : vector<1x1x4xf32> to vector<16x16x4xf32>
    %51 = arith.mulf %46, %50 : vector<16x16x4xf32>
    %52 = arith.addf %44, %51 : vector<16x16x4xf32>
    %c0_27 = arith.constant 0 : index
    %c6 = arith.constant 6 : index
    %c0_28 = arith.constant 0 : index
    %c0_29 = arith.constant 0 : index
    %53 = vector.load %arg2[%c0_27, %c6, %c0_28, %c0_29] : memref<1x22x22x4xf32, #tpu.memory_space<vmem>>, vector<1x16x16x4xf32>
    %54 = vector.shape_cast %53 : vector<1x16x16x4xf32> to vector<16x16x4xf32>
    %55 = vector.extract_strided_slice %0 {offsets = [6, 0, 0], sizes = [1, 1, 4], strides = [1, 1, 1]} : vector<7x7x4xf32> to vector<1x1x4xf32>
    %56 = vector.shape_cast %55 : vector<1x1x4xf32> to vector<1x4xf32>
    %57 = vector.shape_cast %56 : vector<1x4xf32> to vector<1x1x4xf32>
    %58 = vector.broadcast %57 : vector<1x1x4xf32> to vector<16x16x4xf32>
    %59 = arith.mulf %54, %58 : vector<16x16x4xf32>
    %60 = arith.addf %52, %59 : vector<16x16x4xf32>
    %c0_30 = arith.constant 0 : index
    %c0_31 = arith.constant 0 : index
    %c1_32 = arith.constant 1 : index
    %c0_33 = arith.constant 0 : index
    %61 = vector.load %arg2[%c0_30, %c0_31, %c1_32, %c0_33] : memref<1x22x22x4xf32, #tpu.memory_space<vmem>>, vector<1x16x16x4xf32>
    %62 = vector.shape_cast %61 : vector<1x16x16x4xf32> to vector<16x16x4xf32>
    %63 = vector.extract_strided_slice %0 {offsets = [0, 1, 0], sizes = [1, 1, 4], strides = [1, 1, 1]} : vector<7x7x4xf32> to vector<1x1x4xf32>
    %64 = vector.shape_cast %63 : vector<1x1x4xf32> to vector<1x4xf32>
    %65 = vector.shape_cast %64 : vector<1x4xf32> to vector<1x1x4xf32>
    %66 = vector.broadcast %65 : vector<1x1x4xf32> to vector<16x16x4xf32>
    %67 = arith.mulf %62, %66 : vector<16x16x4xf32>
    %68 = arith.addf %60, %67 : vector<16x16x4xf32>
    %c0_34 = arith.constant 0 : index
    %c1_35 = arith.constant 1 : index
    %c1_36 = arith.constant 1 : index
    %c0_37 = arith.constant 0 : index
    %69 = vector.load %arg2[%c0_34, %c1_35, %c1_36, %c0_37] : memref<1x22x22x4xf32, #tpu.memory_space<vmem>>, vector<1x16x16x4xf32>
    %70 = vector.shape_cast %69 : vector<1x16x16x4xf32> to vector<16x16x4xf32>
    %71 = vector.extract_strided_slice %0 {offsets = [1, 1, 0], sizes = [1, 1, 4], strides = [1, 1, 1]} : vector<7x7x4xf32> to vector<1x1x4xf32>
    %72 = vector.shape_cast %71 : vector<1x1x4xf32> to vector<1x4xf32>
    %73 = vector.shape_cast %72 : vector<1x4xf32> to vector<1x1x4xf32>
    %74 = vector.broadcast %73 : vector<1x1x4xf32> to vector<16x16x4xf32>
    %75 = arith.mulf %70, %74 : vector<16x16x4xf32>
    %76 = arith.addf %68, %75 : vector<16x16x4xf32>
    %c0_38 = arith.constant 0 : index
    %c2_39 = arith.constant 2 : index
    %c1_40 = arith.constant 1 : index
    %c0_41 = arith.constant 0 : index
    %77 = vector.load %arg2[%c0_38, %c2_39, %c1_40, %c0_41] : memref<1x22x22x4xf32, #tpu.memory_space<vmem>>, vector<1x16x16x4xf32>
    %78 = vector.shape_cast %77 : vector<1x16x16x4xf32> to vector<16x16x4xf32>
    %79 = vector.extract_strided_slice %0 {offsets = [2, 1, 0], sizes = [1, 1, 4], strides = [1, 1, 1]} : vector<7x7x4xf32> to vector<1x1x4xf32>
    %80 = vector.shape_cast %79 : vector<1x1x4xf32> to vector<1x4xf32>
    %81 = vector.shape_cast %80 : vector<1x4xf32> to vector<1x1x4xf32>
    %82 = vector.broadcast %81 : vector<1x1x4xf32> to vector<16x16x4xf32>
    %83 = arith.mulf %78, %82 : vector<16x16x4xf32>
    %84 = arith.addf %76, %83 : vector<16x16x4xf32>
    %c0_42 = arith.constant 0 : index
    %c3_43 = arith.constant 3 : index
    %c1_44 = arith.constant 1 : index
    %c0_45 = arith.constant 0 : index
    %85 = vector.load %arg2[%c0_42, %c3_43, %c1_44, %c0_45] : memref<1x22x22x4xf32, #tpu.memory_space<vmem>>, vector<1x16x16x4xf32>
    %86 = vector.shape_cast %85 : vector<1x16x16x4xf32> to vector<16x16x4xf32>
    %87 = vector.extract_strided_slice %0 {offsets = [3, 1, 0], sizes = [1, 1, 4], strides = [1, 1, 1]} : vector<7x7x4xf32> to vector<1x1x4xf32>
    %88 = vector.shape_cast %87 : vector<1x1x4xf32> to vector<1x4xf32>
    %89 = vector.shape_cast %88 : vector<1x4xf32> to vector<1x1x4xf32>
    %90 = vector.broadcast %89 : vector<1x1x4xf32> to vector<16x16x4xf32>
    %91 = arith.mulf %86, %90 : vector<16x16x4xf32>
    %92 = arith.addf %84, %91 : vector<16x16x4xf32>
    %c0_46 = arith.constant 0 : index
    %c4_47 = arith.constant 4 : index
    %c1_48 = arith.constant 1 : index
    %c0_49 = arith.constant 0 : index
    %93 = vector.load %arg2[%c0_46, %c4_47, %c1_48, %c0_49] : memref<1x22x22x4xf32, #tpu.memory_space<vmem>>, vector<1x16x16x4xf32>
    %94 = vector.shape_cast %93 : vector<1x16x16x4xf32> to vector<16x16x4xf32>
    %95 = vector.extract_strided_slice %0 {offsets = [4, 1, 0], sizes = [1, 1, 4], strides = [1, 1, 1]} : vector<7x7x4xf32> to vector<1x1x4xf32>
    %96 = vector.shape_cast %95 : vector<1x1x4xf32> to vector<1x4xf32>
    %97 = vector.shape_cast %96 : vector<1x4xf32> to vector<1x1x4xf32>
    %98 = vector.broadcast %97 : vector<1x1x4xf32> to vector<16x16x4xf32>
    %99 = arith.mulf %94, %98 : vector<16x16x4xf32>
    %100 = arith.addf %92, %99 : vector<16x16x4xf32>
    %c0_50 = arith.constant 0 : index
    %c5_51 = arith.constant 5 : index
    %c1_52 = arith.constant 1 : index
    %c0_53 = arith.constant 0 : index
    %101 = vector.load %arg2[%c0_50, %c5_51, %c1_52, %c0_53] : memref<1x22x22x4xf32, #tpu.memory_space<vmem>>, vector<1x16x16x4xf32>
    %102 = vector.shape_cast %101 : vector<1x16x16x4xf32> to vector<16x16x4xf32>
    %103 = vector.extract_strided_slice %0 {offsets = [5, 1, 0], sizes = [1, 1, 4], strides = [1, 1, 1]} : vector<7x7x4xf32> to vector<1x1x4xf32>
    %104 = vector.shape_cast %103 : vector<1x1x4xf32> to vector<1x4xf32>
    %105 = vector.shape_cast %104 : vector<1x4xf32> to vector<1x1x4xf32>
    %106 = vector.broadcast %105 : vector<1x1x4xf32> to vector<16x16x4xf32>
    %107 = arith.mulf %102, %106 : vector<16x16x4xf32>
    %108 = arith.addf %100, %107 : vector<16x16x4xf32>
    %c0_54 = arith.constant 0 : index
    %c6_55 = arith.constant 6 : index
    %c1_56 = arith.constant 1 : index
    %c0_57 = arith.constant 0 : index
    %109 = vector.load %arg2[%c0_54, %c6_55, %c1_56, %c0_57] : memref<1x22x22x4xf32, #tpu.memory_space<vmem>>, vector<1x16x16x4xf32>
    %110 = vector.shape_cast %109 : vector<1x16x16x4xf32> to vector<16x16x4xf32>
    %111 = vector.extract_strided_slice %0 {offsets = [6, 1, 0], sizes = [1, 1, 4], strides = [1, 1, 1]} : vector<7x7x4xf32> to vector<1x1x4xf32>
    %112 = vector.shape_cast %111 : vector<1x1x4xf32> to vector<1x4xf32>
    %113 = vector.shape_cast %112 : vector<1x4xf32> to vector<1x1x4xf32>
    %114 = vector.broadcast %113 : vector<1x1x4xf32> to vector<16x16x4xf32>
    %115 = arith.mulf %110, %114 : vector<16x16x4xf32>
    %116 = arith.addf %108, %115 : vector<16x16x4xf32>
    %c0_58 = arith.constant 0 : index
    %c0_59 = arith.constant 0 : index
    %c2_60 = arith.constant 2 : index
    %c0_61 = arith.constant 0 : index
    %117 = vector.load %arg2[%c0_58, %c0_59, %c2_60, %c0_61] : memref<1x22x22x4xf32, #tpu.memory_space<vmem>>, vector<1x16x16x4xf32>
    %118 = vector.shape_cast %117 : vector<1x16x16x4xf32> to vector<16x16x4xf32>
    %119 = vector.extract_strided_slice %0 {offsets = [0, 2, 0], sizes = [1, 1, 4], strides = [1, 1, 1]} : vector<7x7x4xf32> to vector<1x1x4xf32>
    %120 = vector.shape_cast %119 : vector<1x1x4xf32> to vector<1x4xf32>
    %121 = vector.shape_cast %120 : vector<1x4xf32> to vector<1x1x4xf32>
    %122 = vector.broadcast %121 : vector<1x1x4xf32> to vector<16x16x4xf32>
    %123 = arith.mulf %118, %122 : vector<16x16x4xf32>
    %124 = arith.addf %116, %123 : vector<16x16x4xf32>
    %c0_62 = arith.constant 0 : index
    %c1_63 = arith.constant 1 : index
    %c2_64 = arith.constant 2 : index
    %c0_65 = arith.constant 0 : index
    %125 = vector.load %arg2[%c0_62, %c1_63, %c2_64, %c0_65] : memref<1x22x22x4xf32, #tpu.memory_space<vmem>>, vector<1x16x16x4xf32>
    %126 = vector.shape_cast %125 : vector<1x16x16x4xf32> to vector<16x16x4xf32>
    %127 = vector.extract_strided_slice %0 {offsets = [1, 2, 0], sizes = [1, 1, 4], strides = [1, 1, 1]} : vector<7x7x4xf32> to vector<1x1x4xf32>
    %128 = vector.shape_cast %127 : vector<1x1x4xf32> to vector<1x4xf32>
    %129 = vector.shape_cast %128 : vector<1x4xf32> to vector<1x1x4xf32>
    %130 = vector.broadcast %129 : vector<1x1x4xf32> to vector<16x16x4xf32>
    %131 = arith.mulf %126, %130 : vector<16x16x4xf32>
    %132 = arith.addf %124, %131 : vector<16x16x4xf32>
    %c0_66 = arith.constant 0 : index
    %c2_67 = arith.constant 2 : index
    %c2_68 = arith.constant 2 : index
    %c0_69 = arith.constant 0 : index
    %133 = vector.load %arg2[%c0_66, %c2_67, %c2_68, %c0_69] : memref<1x22x22x4xf32, #tpu.memory_space<vmem>>, vector<1x16x16x4xf32>
    %134 = vector.shape_cast %133 : vector<1x16x16x4xf32> to vector<16x16x4xf32>
    %135 = vector.extract_strided_slice %0 {offsets = [2, 2, 0], sizes = [1, 1, 4], strides = [1, 1, 1]} : vector<7x7x4xf32> to vector<1x1x4xf32>
    %136 = vector.shape_cast %135 : vector<1x1x4xf32> to vector<1x4xf32>
    %137 = vector.shape_cast %136 : vector<1x4xf32> to vector<1x1x4xf32>
    %138 = vector.broadcast %137 : vector<1x1x4xf32> to vector<16x16x4xf32>
    %139 = arith.mulf %134, %138 : vector<16x16x4xf32>
    %140 = arith.addf %132, %139 : vector<16x16x4xf32>
    %c0_70 = arith.constant 0 : index
    %c3_71 = arith.constant 3 : index
    %c2_72 = arith.constant 2 : index
    %c0_73 = arith.constant 0 : index
    %141 = vector.load %arg2[%c0_70, %c3_71, %c2_72, %c0_73] : memref<1x22x22x4xf32, #tpu.memory_space<vmem>>, vector<1x16x16x4xf32>
    %142 = vector.shape_cast %141 : vector<1x16x16x4xf32> to vector<16x16x4xf32>
    %143 = vector.extract_strided_slice %0 {offsets = [3, 2, 0], sizes = [1, 1, 4], strides = [1, 1, 1]} : vector<7x7x4xf32> to vector<1x1x4xf32>
    %144 = vector.shape_cast %143 : vector<1x1x4xf32> to vector<1x4xf32>
    %145 = vector.shape_cast %144 : vector<1x4xf32> to vector<1x1x4xf32>
    %146 = vector.broadcast %145 : vector<1x1x4xf32> to vector<16x16x4xf32>
    %147 = arith.mulf %142, %146 : vector<16x16x4xf32>
    %148 = arith.addf %140, %147 : vector<16x16x4xf32>
    %c0_74 = arith.constant 0 : index
    %c4_75 = arith.constant 4 : index
    %c2_76 = arith.constant 2 : index
    %c0_77 = arith.constant 0 : index
    %149 = vector.load %arg2[%c0_74, %c4_75, %c2_76, %c0_77] : memref<1x22x22x4xf32, #tpu.memory_space<vmem>>, vector<1x16x16x4xf32>
    %150 = vector.shape_cast %149 : vector<1x16x16x4xf32> to vector<16x16x4xf32>
    %151 = vector.extract_strided_slice %0 {offsets = [4, 2, 0], sizes = [1, 1, 4], strides = [1, 1, 1]} : vector<7x7x4xf32> to vector<1x1x4xf32>
    %152 = vector.shape_cast %151 : vector<1x1x4xf32> to vector<1x4xf32>
    %153 = vector.shape_cast %152 : vector<1x4xf32> to vector<1x1x4xf32>
    %154 = vector.broadcast %153 : vector<1x1x4xf32> to vector<16x16x4xf32>
    %155 = arith.mulf %150, %154 : vector<16x16x4xf32>
    %156 = arith.addf %148, %155 : vector<16x16x4xf32>
    %c0_78 = arith.constant 0 : index
    %c5_79 = arith.constant 5 : index
    %c2_80 = arith.constant 2 : index
    %c0_81 = arith.constant 0 : index
    %157 = vector.load %arg2[%c0_78, %c5_79, %c2_80, %c0_81] : memref<1x22x22x4xf32, #tpu.memory_space<vmem>>, vector<1x16x16x4xf32>
    %158 = vector.shape_cast %157 : vector<1x16x16x4xf32> to vector<16x16x4xf32>
    %159 = vector.extract_strided_slice %0 {offsets = [5, 2, 0], sizes = [1, 1, 4], strides = [1, 1, 1]} : vector<7x7x4xf32> to vector<1x1x4xf32>
    %160 = vector.shape_cast %159 : vector<1x1x4xf32> to vector<1x4xf32>
    %161 = vector.shape_cast %160 : vector<1x4xf32> to vector<1x1x4xf32>
    %162 = vector.broadcast %161 : vector<1x1x4xf32> to vector<16x16x4xf32>
    %163 = arith.mulf %158, %162 : vector<16x16x4xf32>
    %164 = arith.addf %156, %163 : vector<16x16x4xf32>
    %c0_82 = arith.constant 0 : index
    %c6_83 = arith.constant 6 : index
    %c2_84 = arith.constant 2 : index
    %c0_85 = arith.constant 0 : index
    %165 = vector.load %arg2[%c0_82, %c6_83, %c2_84, %c0_85] : memref<1x22x22x4xf32, #tpu.memory_space<vmem>>, vector<1x16x16x4xf32>
    %166 = vector.shape_cast %165 : vector<1x16x16x4xf32> to vector<16x16x4xf32>
    %167 = vector.extract_strided_slice %0 {offsets = [6, 2, 0], sizes = [1, 1, 4], strides = [1, 1, 1]} : vector<7x7x4xf32> to vector<1x1x4xf32>
    %168 = vector.shape_cast %167 : vector<1x1x4xf32> to vector<1x4xf32>
    %169 = vector.shape_cast %168 : vector<1x4xf32> to vector<1x1x4xf32>
    %170 = vector.broadcast %169 : vector<1x1x4xf32> to vector<16x16x4xf32>
    %171 = arith.mulf %166, %170 : vector<16x16x4xf32>
    %172 = arith.addf %164, %171 : vector<16x16x4xf32>
    %c0_86 = arith.constant 0 : index
    %c0_87 = arith.constant 0 : index
    %c3_88 = arith.constant 3 : index
    %c0_89 = arith.constant 0 : index
    %173 = vector.load %arg2[%c0_86, %c0_87, %c3_88, %c0_89] : memref<1x22x22x4xf32, #tpu.memory_space<vmem>>, vector<1x16x16x4xf32>
    %174 = vector.shape_cast %173 : vector<1x16x16x4xf32> to vector<16x16x4xf32>
    %175 = vector.extract_strided_slice %0 {offsets = [0, 3, 0], sizes = [1, 1, 4], strides = [1, 1, 1]} : vector<7x7x4xf32> to vector<1x1x4xf32>
    %176 = vector.shape_cast %175 : vector<1x1x4xf32> to vector<1x4xf32>
    %177 = vector.shape_cast %176 : vector<1x4xf32> to vector<1x1x4xf32>
    %178 = vector.broadcast %177 : vector<1x1x4xf32> to vector<16x16x4xf32>
    %179 = arith.mulf %174, %178 : vector<16x16x4xf32>
    %180 = arith.addf %172, %179 : vector<16x16x4xf32>
    %c0_90 = arith.constant 0 : index
    %c1_91 = arith.constant 1 : index
    %c3_92 = arith.constant 3 : index
    %c0_93 = arith.constant 0 : index
    %181 = vector.load %arg2[%c0_90, %c1_91, %c3_92, %c0_93] : memref<1x22x22x4xf32, #tpu.memory_space<vmem>>, vector<1x16x16x4xf32>
    %182 = vector.shape_cast %181 : vector<1x16x16x4xf32> to vector<16x16x4xf32>
    %183 = vector.extract_strided_slice %0 {offsets = [1, 3, 0], sizes = [1, 1, 4], strides = [1, 1, 1]} : vector<7x7x4xf32> to vector<1x1x4xf32>
    %184 = vector.shape_cast %183 : vector<1x1x4xf32> to vector<1x4xf32>
    %185 = vector.shape_cast %184 : vector<1x4xf32> to vector<1x1x4xf32>
    %186 = vector.broadcast %185 : vector<1x1x4xf32> to vector<16x16x4xf32>
    %187 = arith.mulf %182, %186 : vector<16x16x4xf32>
    %188 = arith.addf %180, %187 : vector<16x16x4xf32>
    %c0_94 = arith.constant 0 : index
    %c2_95 = arith.constant 2 : index
    %c3_96 = arith.constant 3 : index
    %c0_97 = arith.constant 0 : index
    %189 = vector.load %arg2[%c0_94, %c2_95, %c3_96, %c0_97] : memref<1x22x22x4xf32, #tpu.memory_space<vmem>>, vector<1x16x16x4xf32>
    %190 = vector.shape_cast %189 : vector<1x16x16x4xf32> to vector<16x16x4xf32>
    %191 = vector.extract_strided_slice %0 {offsets = [2, 3, 0], sizes = [1, 1, 4], strides = [1, 1, 1]} : vector<7x7x4xf32> to vector<1x1x4xf32>
    %192 = vector.shape_cast %191 : vector<1x1x4xf32> to vector<1x4xf32>
    %193 = vector.shape_cast %192 : vector<1x4xf32> to vector<1x1x4xf32>
    %194 = vector.broadcast %193 : vector<1x1x4xf32> to vector<16x16x4xf32>
    %195 = arith.mulf %190, %194 : vector<16x16x4xf32>
    %196 = arith.addf %188, %195 : vector<16x16x4xf32>
    %c0_98 = arith.constant 0 : index
    %c3_99 = arith.constant 3 : index
    %c3_100 = arith.constant 3 : index
    %c0_101 = arith.constant 0 : index
    %197 = vector.load %arg2[%c0_98, %c3_99, %c3_100, %c0_101] : memref<1x22x22x4xf32, #tpu.memory_space<vmem>>, vector<1x16x16x4xf32>
    %198 = vector.shape_cast %197 : vector<1x16x16x4xf32> to vector<16x16x4xf32>
    %199 = vector.extract_strided_slice %0 {offsets = [3, 3, 0], sizes = [1, 1, 4], strides = [1, 1, 1]} : vector<7x7x4xf32> to vector<1x1x4xf32>
    %200 = vector.shape_cast %199 : vector<1x1x4xf32> to vector<1x4xf32>
    %201 = vector.shape_cast %200 : vector<1x4xf32> to vector<1x1x4xf32>
    %202 = vector.broadcast %201 : vector<1x1x4xf32> to vector<16x16x4xf32>
    %203 = arith.mulf %198, %202 : vector<16x16x4xf32>
    %204 = arith.addf %196, %203 : vector<16x16x4xf32>
    %c0_102 = arith.constant 0 : index
    %c4_103 = arith.constant 4 : index
    %c3_104 = arith.constant 3 : index
    %c0_105 = arith.constant 0 : index
    %205 = vector.load %arg2[%c0_102, %c4_103, %c3_104, %c0_105] : memref<1x22x22x4xf32, #tpu.memory_space<vmem>>, vector<1x16x16x4xf32>
    %206 = vector.shape_cast %205 : vector<1x16x16x4xf32> to vector<16x16x4xf32>
    %207 = vector.extract_strided_slice %0 {offsets = [4, 3, 0], sizes = [1, 1, 4], strides = [1, 1, 1]} : vector<7x7x4xf32> to vector<1x1x4xf32>
    %208 = vector.shape_cast %207 : vector<1x1x4xf32> to vector<1x4xf32>
    %209 = vector.shape_cast %208 : vector<1x4xf32> to vector<1x1x4xf32>
    %210 = vector.broadcast %209 : vector<1x1x4xf32> to vector<16x16x4xf32>
    %211 = arith.mulf %206, %210 : vector<16x16x4xf32>
    %212 = arith.addf %204, %211 : vector<16x16x4xf32>
    %c0_106 = arith.constant 0 : index
    %c5_107 = arith.constant 5 : index
    %c3_108 = arith.constant 3 : index
    %c0_109 = arith.constant 0 : index
    %213 = vector.load %arg2[%c0_106, %c5_107, %c3_108, %c0_109] : memref<1x22x22x4xf32, #tpu.memory_space<vmem>>, vector<1x16x16x4xf32>
    %214 = vector.shape_cast %213 : vector<1x16x16x4xf32> to vector<16x16x4xf32>
    %215 = vector.extract_strided_slice %0 {offsets = [5, 3, 0], sizes = [1, 1, 4], strides = [1, 1, 1]} : vector<7x7x4xf32> to vector<1x1x4xf32>
    %216 = vector.shape_cast %215 : vector<1x1x4xf32> to vector<1x4xf32>
    %217 = vector.shape_cast %216 : vector<1x4xf32> to vector<1x1x4xf32>
    %218 = vector.broadcast %217 : vector<1x1x4xf32> to vector<16x16x4xf32>
    %219 = arith.mulf %214, %218 : vector<16x16x4xf32>
    %220 = arith.addf %212, %219 : vector<16x16x4xf32>
    %c0_110 = arith.constant 0 : index
    %c6_111 = arith.constant 6 : index
    %c3_112 = arith.constant 3 : index
    %c0_113 = arith.constant 0 : index
    %221 = vector.load %arg2[%c0_110, %c6_111, %c3_112, %c0_113] : memref<1x22x22x4xf32, #tpu.memory_space<vmem>>, vector<1x16x16x4xf32>
    %222 = vector.shape_cast %221 : vector<1x16x16x4xf32> to vector<16x16x4xf32>
    %223 = vector.extract_strided_slice %0 {offsets = [6, 3, 0], sizes = [1, 1, 4], strides = [1, 1, 1]} : vector<7x7x4xf32> to vector<1x1x4xf32>
    %224 = vector.shape_cast %223 : vector<1x1x4xf32> to vector<1x4xf32>
    %225 = vector.shape_cast %224 : vector<1x4xf32> to vector<1x1x4xf32>
    %226 = vector.broadcast %225 : vector<1x1x4xf32> to vector<16x16x4xf32>
    %227 = arith.mulf %222, %226 : vector<16x16x4xf32>
    %228 = arith.addf %220, %227 : vector<16x16x4xf32>
    %c0_114 = arith.constant 0 : index
    %c0_115 = arith.constant 0 : index
    %c4_116 = arith.constant 4 : index
    %c0_117 = arith.constant 0 : index
    %229 = vector.load %arg2[%c0_114, %c0_115, %c4_116, %c0_117] : memref<1x22x22x4xf32, #tpu.memory_space<vmem>>, vector<1x16x16x4xf32>
    %230 = vector.shape_cast %229 : vector<1x16x16x4xf32> to vector<16x16x4xf32>
    %231 = vector.extract_strided_slice %0 {offsets = [0, 4, 0], sizes = [1, 1, 4], strides = [1, 1, 1]} : vector<7x7x4xf32> to vector<1x1x4xf32>
    %232 = vector.shape_cast %231 : vector<1x1x4xf32> to vector<1x4xf32>
    %233 = vector.shape_cast %232 : vector<1x4xf32> to vector<1x1x4xf32>
    %234 = vector.broadcast %233 : vector<1x1x4xf32> to vector<16x16x4xf32>
    %235 = arith.mulf %230, %234 : vector<16x16x4xf32>
    %236 = arith.addf %228, %235 : vector<16x16x4xf32>
    %c0_118 = arith.constant 0 : index
    %c1_119 = arith.constant 1 : index
    %c4_120 = arith.constant 4 : index
    %c0_121 = arith.constant 0 : index
    %237 = vector.load %arg2[%c0_118, %c1_119, %c4_120, %c0_121] : memref<1x22x22x4xf32, #tpu.memory_space<vmem>>, vector<1x16x16x4xf32>
    %238 = vector.shape_cast %237 : vector<1x16x16x4xf32> to vector<16x16x4xf32>
    %239 = vector.extract_strided_slice %0 {offsets = [1, 4, 0], sizes = [1, 1, 4], strides = [1, 1, 1]} : vector<7x7x4xf32> to vector<1x1x4xf32>
    %240 = vector.shape_cast %239 : vector<1x1x4xf32> to vector<1x4xf32>
    %241 = vector.shape_cast %240 : vector<1x4xf32> to vector<1x1x4xf32>
    %242 = vector.broadcast %241 : vector<1x1x4xf32> to vector<16x16x4xf32>
    %243 = arith.mulf %238, %242 : vector<16x16x4xf32>
    %244 = arith.addf %236, %243 : vector<16x16x4xf32>
    %c0_122 = arith.constant 0 : index
    %c2_123 = arith.constant 2 : index
    %c4_124 = arith.constant 4 : index
    %c0_125 = arith.constant 0 : index
    %245 = vector.load %arg2[%c0_122, %c2_123, %c4_124, %c0_125] : memref<1x22x22x4xf32, #tpu.memory_space<vmem>>, vector<1x16x16x4xf32>
    %246 = vector.shape_cast %245 : vector<1x16x16x4xf32> to vector<16x16x4xf32>
    %247 = vector.extract_strided_slice %0 {offsets = [2, 4, 0], sizes = [1, 1, 4], strides = [1, 1, 1]} : vector<7x7x4xf32> to vector<1x1x4xf32>
    %248 = vector.shape_cast %247 : vector<1x1x4xf32> to vector<1x4xf32>
    %249 = vector.shape_cast %248 : vector<1x4xf32> to vector<1x1x4xf32>
    %250 = vector.broadcast %249 : vector<1x1x4xf32> to vector<16x16x4xf32>
    %251 = arith.mulf %246, %250 : vector<16x16x4xf32>
    %252 = arith.addf %244, %251 : vector<16x16x4xf32>
    %c0_126 = arith.constant 0 : index
    %c3_127 = arith.constant 3 : index
    %c4_128 = arith.constant 4 : index
    %c0_129 = arith.constant 0 : index
    %253 = vector.load %arg2[%c0_126, %c3_127, %c4_128, %c0_129] : memref<1x22x22x4xf32, #tpu.memory_space<vmem>>, vector<1x16x16x4xf32>
    %254 = vector.shape_cast %253 : vector<1x16x16x4xf32> to vector<16x16x4xf32>
    %255 = vector.extract_strided_slice %0 {offsets = [3, 4, 0], sizes = [1, 1, 4], strides = [1, 1, 1]} : vector<7x7x4xf32> to vector<1x1x4xf32>
    %256 = vector.shape_cast %255 : vector<1x1x4xf32> to vector<1x4xf32>
    %257 = vector.shape_cast %256 : vector<1x4xf32> to vector<1x1x4xf32>
    %258 = vector.broadcast %257 : vector<1x1x4xf32> to vector<16x16x4xf32>
    %259 = arith.mulf %254, %258 : vector<16x16x4xf32>
    %260 = arith.addf %252, %259 : vector<16x16x4xf32>
    %c0_130 = arith.constant 0 : index
    %c4_131 = arith.constant 4 : index
    %c4_132 = arith.constant 4 : index
    %c0_133 = arith.constant 0 : index
    %261 = vector.load %arg2[%c0_130, %c4_131, %c4_132, %c0_133] : memref<1x22x22x4xf32, #tpu.memory_space<vmem>>, vector<1x16x16x4xf32>
    %262 = vector.shape_cast %261 : vector<1x16x16x4xf32> to vector<16x16x4xf32>
    %263 = vector.extract_strided_slice %0 {offsets = [4, 4, 0], sizes = [1, 1, 4], strides = [1, 1, 1]} : vector<7x7x4xf32> to vector<1x1x4xf32>
    %264 = vector.shape_cast %263 : vector<1x1x4xf32> to vector<1x4xf32>
    %265 = vector.shape_cast %264 : vector<1x4xf32> to vector<1x1x4xf32>
    %266 = vector.broadcast %265 : vector<1x1x4xf32> to vector<16x16x4xf32>
    %267 = arith.mulf %262, %266 : vector<16x16x4xf32>
    %268 = arith.addf %260, %267 : vector<16x16x4xf32>
    %c0_134 = arith.constant 0 : index
    %c5_135 = arith.constant 5 : index
    %c4_136 = arith.constant 4 : index
    %c0_137 = arith.constant 0 : index
    %269 = vector.load %arg2[%c0_134, %c5_135, %c4_136, %c0_137] : memref<1x22x22x4xf32, #tpu.memory_space<vmem>>, vector<1x16x16x4xf32>
    %270 = vector.shape_cast %269 : vector<1x16x16x4xf32> to vector<16x16x4xf32>
    %271 = vector.extract_strided_slice %0 {offsets = [5, 4, 0], sizes = [1, 1, 4], strides = [1, 1, 1]} : vector<7x7x4xf32> to vector<1x1x4xf32>
    %272 = vector.shape_cast %271 : vector<1x1x4xf32> to vector<1x4xf32>
    %273 = vector.shape_cast %272 : vector<1x4xf32> to vector<1x1x4xf32>
    %274 = vector.broadcast %273 : vector<1x1x4xf32> to vector<16x16x4xf32>
    %275 = arith.mulf %270, %274 : vector<16x16x4xf32>
    %276 = arith.addf %268, %275 : vector<16x16x4xf32>
    %c0_138 = arith.constant 0 : index
    %c6_139 = arith.constant 6 : index
    %c4_140 = arith.constant 4 : index
    %c0_141 = arith.constant 0 : index
    %277 = vector.load %arg2[%c0_138, %c6_139, %c4_140, %c0_141] : memref<1x22x22x4xf32, #tpu.memory_space<vmem>>, vector<1x16x16x4xf32>
    %278 = vector.shape_cast %277 : vector<1x16x16x4xf32> to vector<16x16x4xf32>
    %279 = vector.extract_strided_slice %0 {offsets = [6, 4, 0], sizes = [1, 1, 4], strides = [1, 1, 1]} : vector<7x7x4xf32> to vector<1x1x4xf32>
    %280 = vector.shape_cast %279 : vector<1x1x4xf32> to vector<1x4xf32>
    %281 = vector.shape_cast %280 : vector<1x4xf32> to vector<1x1x4xf32>
    %282 = vector.broadcast %281 : vector<1x1x4xf32> to vector<16x16x4xf32>
    %283 = arith.mulf %278, %282 : vector<16x16x4xf32>
    %284 = arith.addf %276, %283 : vector<16x16x4xf32>
    %c0_142 = arith.constant 0 : index
    %c0_143 = arith.constant 0 : index
    %c5_144 = arith.constant 5 : index
    %c0_145 = arith.constant 0 : index
    %285 = vector.load %arg2[%c0_142, %c0_143, %c5_144, %c0_145] : memref<1x22x22x4xf32, #tpu.memory_space<vmem>>, vector<1x16x16x4xf32>
    %286 = vector.shape_cast %285 : vector<1x16x16x4xf32> to vector<16x16x4xf32>
    %287 = vector.extract_strided_slice %0 {offsets = [0, 5, 0], sizes = [1, 1, 4], strides = [1, 1, 1]} : vector<7x7x4xf32> to vector<1x1x4xf32>
    %288 = vector.shape_cast %287 : vector<1x1x4xf32> to vector<1x4xf32>
    %289 = vector.shape_cast %288 : vector<1x4xf32> to vector<1x1x4xf32>
    %290 = vector.broadcast %289 : vector<1x1x4xf32> to vector<16x16x4xf32>
    %291 = arith.mulf %286, %290 : vector<16x16x4xf32>
    %292 = arith.addf %284, %291 : vector<16x16x4xf32>
    %c0_146 = arith.constant 0 : index
    %c1_147 = arith.constant 1 : index
    %c5_148 = arith.constant 5 : index
    %c0_149 = arith.constant 0 : index
    %293 = vector.load %arg2[%c0_146, %c1_147, %c5_148, %c0_149] : memref<1x22x22x4xf32, #tpu.memory_space<vmem>>, vector<1x16x16x4xf32>
    %294 = vector.shape_cast %293 : vector<1x16x16x4xf32> to vector<16x16x4xf32>
    %295 = vector.extract_strided_slice %0 {offsets = [1, 5, 0], sizes = [1, 1, 4], strides = [1, 1, 1]} : vector<7x7x4xf32> to vector<1x1x4xf32>
    %296 = vector.shape_cast %295 : vector<1x1x4xf32> to vector<1x4xf32>
    %297 = vector.shape_cast %296 : vector<1x4xf32> to vector<1x1x4xf32>
    %298 = vector.broadcast %297 : vector<1x1x4xf32> to vector<16x16x4xf32>
    %299 = arith.mulf %294, %298 : vector<16x16x4xf32>
    %300 = arith.addf %292, %299 : vector<16x16x4xf32>
    %c0_150 = arith.constant 0 : index
    %c2_151 = arith.constant 2 : index
    %c5_152 = arith.constant 5 : index
    %c0_153 = arith.constant 0 : index
    %301 = vector.load %arg2[%c0_150, %c2_151, %c5_152, %c0_153] : memref<1x22x22x4xf32, #tpu.memory_space<vmem>>, vector<1x16x16x4xf32>
    %302 = vector.shape_cast %301 : vector<1x16x16x4xf32> to vector<16x16x4xf32>
    %303 = vector.extract_strided_slice %0 {offsets = [2, 5, 0], sizes = [1, 1, 4], strides = [1, 1, 1]} : vector<7x7x4xf32> to vector<1x1x4xf32>
    %304 = vector.shape_cast %303 : vector<1x1x4xf32> to vector<1x4xf32>
    %305 = vector.shape_cast %304 : vector<1x4xf32> to vector<1x1x4xf32>
    %306 = vector.broadcast %305 : vector<1x1x4xf32> to vector<16x16x4xf32>
    %307 = arith.mulf %302, %306 : vector<16x16x4xf32>
    %308 = arith.addf %300, %307 : vector<16x16x4xf32>
    %c0_154 = arith.constant 0 : index
    %c3_155 = arith.constant 3 : index
    %c5_156 = arith.constant 5 : index
    %c0_157 = arith.constant 0 : index
    %309 = vector.load %arg2[%c0_154, %c3_155, %c5_156, %c0_157] : memref<1x22x22x4xf32, #tpu.memory_space<vmem>>, vector<1x16x16x4xf32>
    %310 = vector.shape_cast %309 : vector<1x16x16x4xf32> to vector<16x16x4xf32>
    %311 = vector.extract_strided_slice %0 {offsets = [3, 5, 0], sizes = [1, 1, 4], strides = [1, 1, 1]} : vector<7x7x4xf32> to vector<1x1x4xf32>
    %312 = vector.shape_cast %311 : vector<1x1x4xf32> to vector<1x4xf32>
    %313 = vector.shape_cast %312 : vector<1x4xf32> to vector<1x1x4xf32>
    %314 = vector.broadcast %313 : vector<1x1x4xf32> to vector<16x16x4xf32>
    %315 = arith.mulf %310, %314 : vector<16x16x4xf32>
    %316 = arith.addf %308, %315 : vector<16x16x4xf32>
    %c0_158 = arith.constant 0 : index
    %c4_159 = arith.constant 4 : index
    %c5_160 = arith.constant 5 : index
    %c0_161 = arith.constant 0 : index
    %317 = vector.load %arg2[%c0_158, %c4_159, %c5_160, %c0_161] : memref<1x22x22x4xf32, #tpu.memory_space<vmem>>, vector<1x16x16x4xf32>
    %318 = vector.shape_cast %317 : vector<1x16x16x4xf32> to vector<16x16x4xf32>
    %319 = vector.extract_strided_slice %0 {offsets = [4, 5, 0], sizes = [1, 1, 4], strides = [1, 1, 1]} : vector<7x7x4xf32> to vector<1x1x4xf32>
    %320 = vector.shape_cast %319 : vector<1x1x4xf32> to vector<1x4xf32>
    %321 = vector.shape_cast %320 : vector<1x4xf32> to vector<1x1x4xf32>
    %322 = vector.broadcast %321 : vector<1x1x4xf32> to vector<16x16x4xf32>
    %323 = arith.mulf %318, %322 : vector<16x16x4xf32>
    %324 = arith.addf %316, %323 : vector<16x16x4xf32>
    %c0_162 = arith.constant 0 : index
    %c5_163 = arith.constant 5 : index
    %c5_164 = arith.constant 5 : index
    %c0_165 = arith.constant 0 : index
    %325 = vector.load %arg2[%c0_162, %c5_163, %c5_164, %c0_165] : memref<1x22x22x4xf32, #tpu.memory_space<vmem>>, vector<1x16x16x4xf32>
    %326 = vector.shape_cast %325 : vector<1x16x16x4xf32> to vector<16x16x4xf32>
    %327 = vector.extract_strided_slice %0 {offsets = [5, 5, 0], sizes = [1, 1, 4], strides = [1, 1, 1]} : vector<7x7x4xf32> to vector<1x1x4xf32>
    %328 = vector.shape_cast %327 : vector<1x1x4xf32> to vector<1x4xf32>
    %329 = vector.shape_cast %328 : vector<1x4xf32> to vector<1x1x4xf32>
    %330 = vector.broadcast %329 : vector<1x1x4xf32> to vector<16x16x4xf32>
    %331 = arith.mulf %326, %330 : vector<16x16x4xf32>
    %332 = arith.addf %324, %331 : vector<16x16x4xf32>
    %c0_166 = arith.constant 0 : index
    %c6_167 = arith.constant 6 : index
    %c5_168 = arith.constant 5 : index
    %c0_169 = arith.constant 0 : index
    %333 = vector.load %arg2[%c0_166, %c6_167, %c5_168, %c0_169] : memref<1x22x22x4xf32, #tpu.memory_space<vmem>>, vector<1x16x16x4xf32>
    %334 = vector.shape_cast %333 : vector<1x16x16x4xf32> to vector<16x16x4xf32>
    %335 = vector.extract_strided_slice %0 {offsets = [6, 5, 0], sizes = [1, 1, 4], strides = [1, 1, 1]} : vector<7x7x4xf32> to vector<1x1x4xf32>
    %336 = vector.shape_cast %335 : vector<1x1x4xf32> to vector<1x4xf32>
    %337 = vector.shape_cast %336 : vector<1x4xf32> to vector<1x1x4xf32>
    %338 = vector.broadcast %337 : vector<1x1x4xf32> to vector<16x16x4xf32>
    %339 = arith.mulf %334, %338 : vector<16x16x4xf32>
    %340 = arith.addf %332, %339 : vector<16x16x4xf32>
    %c0_170 = arith.constant 0 : index
    %c0_171 = arith.constant 0 : index
    %c6_172 = arith.constant 6 : index
    %c0_173 = arith.constant 0 : index
    %341 = vector.load %arg2[%c0_170, %c0_171, %c6_172, %c0_173] : memref<1x22x22x4xf32, #tpu.memory_space<vmem>>, vector<1x16x16x4xf32>
    %342 = vector.shape_cast %341 : vector<1x16x16x4xf32> to vector<16x16x4xf32>
    %343 = vector.extract_strided_slice %0 {offsets = [0, 6, 0], sizes = [1, 1, 4], strides = [1, 1, 1]} : vector<7x7x4xf32> to vector<1x1x4xf32>
    %344 = vector.shape_cast %343 : vector<1x1x4xf32> to vector<1x4xf32>
    %345 = vector.shape_cast %344 : vector<1x4xf32> to vector<1x1x4xf32>
    %346 = vector.broadcast %345 : vector<1x1x4xf32> to vector<16x16x4xf32>
    %347 = arith.mulf %342, %346 : vector<16x16x4xf32>
    %348 = arith.addf %340, %347 : vector<16x16x4xf32>
    %c0_174 = arith.constant 0 : index
    %c1_175 = arith.constant 1 : index
    %c6_176 = arith.constant 6 : index
    %c0_177 = arith.constant 0 : index
    %349 = vector.load %arg2[%c0_174, %c1_175, %c6_176, %c0_177] : memref<1x22x22x4xf32, #tpu.memory_space<vmem>>, vector<1x16x16x4xf32>
    %350 = vector.shape_cast %349 : vector<1x16x16x4xf32> to vector<16x16x4xf32>
    %351 = vector.extract_strided_slice %0 {offsets = [1, 6, 0], sizes = [1, 1, 4], strides = [1, 1, 1]} : vector<7x7x4xf32> to vector<1x1x4xf32>
    %352 = vector.shape_cast %351 : vector<1x1x4xf32> to vector<1x4xf32>
    %353 = vector.shape_cast %352 : vector<1x4xf32> to vector<1x1x4xf32>
    %354 = vector.broadcast %353 : vector<1x1x4xf32> to vector<16x16x4xf32>
    %355 = arith.mulf %350, %354 : vector<16x16x4xf32>
    %356 = arith.addf %348, %355 : vector<16x16x4xf32>
    %c0_178 = arith.constant 0 : index
    %c2_179 = arith.constant 2 : index
    %c6_180 = arith.constant 6 : index
    %c0_181 = arith.constant 0 : index
    %357 = vector.load %arg2[%c0_178, %c2_179, %c6_180, %c0_181] : memref<1x22x22x4xf32, #tpu.memory_space<vmem>>, vector<1x16x16x4xf32>
    %358 = vector.shape_cast %357 : vector<1x16x16x4xf32> to vector<16x16x4xf32>
    %359 = vector.extract_strided_slice %0 {offsets = [2, 6, 0], sizes = [1, 1, 4], strides = [1, 1, 1]} : vector<7x7x4xf32> to vector<1x1x4xf32>
    %360 = vector.shape_cast %359 : vector<1x1x4xf32> to vector<1x4xf32>
    %361 = vector.shape_cast %360 : vector<1x4xf32> to vector<1x1x4xf32>
    %362 = vector.broadcast %361 : vector<1x1x4xf32> to vector<16x16x4xf32>
    %363 = arith.mulf %358, %362 : vector<16x16x4xf32>
    %364 = arith.addf %356, %363 : vector<16x16x4xf32>
    %c0_182 = arith.constant 0 : index
    %c3_183 = arith.constant 3 : index
    %c6_184 = arith.constant 6 : index
    %c0_185 = arith.constant 0 : index
    %365 = vector.load %arg2[%c0_182, %c3_183, %c6_184, %c0_185] : memref<1x22x22x4xf32, #tpu.memory_space<vmem>>, vector<1x16x16x4xf32>
    %366 = vector.shape_cast %365 : vector<1x16x16x4xf32> to vector<16x16x4xf32>
    %367 = vector.extract_strided_slice %0 {offsets = [3, 6, 0], sizes = [1, 1, 4], strides = [1, 1, 1]} : vector<7x7x4xf32> to vector<1x1x4xf32>
    %368 = vector.shape_cast %367 : vector<1x1x4xf32> to vector<1x4xf32>
    %369 = vector.shape_cast %368 : vector<1x4xf32> to vector<1x1x4xf32>
    %370 = vector.broadcast %369 : vector<1x1x4xf32> to vector<16x16x4xf32>
    %371 = arith.mulf %366, %370 : vector<16x16x4xf32>
    %372 = arith.addf %364, %371 : vector<16x16x4xf32>
    %c0_186 = arith.constant 0 : index
    %c4_187 = arith.constant 4 : index
    %c6_188 = arith.constant 6 : index
    %c0_189 = arith.constant 0 : index
    %373 = vector.load %arg2[%c0_186, %c4_187, %c6_188, %c0_189] : memref<1x22x22x4xf32, #tpu.memory_space<vmem>>, vector<1x16x16x4xf32>
    %374 = vector.shape_cast %373 : vector<1x16x16x4xf32> to vector<16x16x4xf32>
    %375 = vector.extract_strided_slice %0 {offsets = [4, 6, 0], sizes = [1, 1, 4], strides = [1, 1, 1]} : vector<7x7x4xf32> to vector<1x1x4xf32>
    %376 = vector.shape_cast %375 : vector<1x1x4xf32> to vector<1x4xf32>
    %377 = vector.shape_cast %376 : vector<1x4xf32> to vector<1x1x4xf32>
    %378 = vector.broadcast %377 : vector<1x1x4xf32> to vector<16x16x4xf32>
    %379 = arith.mulf %374, %378 : vector<16x16x4xf32>
    %380 = arith.addf %372, %379 : vector<16x16x4xf32>
    %c0_190 = arith.constant 0 : index
    %c5_191 = arith.constant 5 : index
    %c6_192 = arith.constant 6 : index
    %c0_193 = arith.constant 0 : index
    %381 = vector.load %arg2[%c0_190, %c5_191, %c6_192, %c0_193] : memref<1x22x22x4xf32, #tpu.memory_space<vmem>>, vector<1x16x16x4xf32>
    %382 = vector.shape_cast %381 : vector<1x16x16x4xf32> to vector<16x16x4xf32>
    %383 = vector.extract_strided_slice %0 {offsets = [5, 6, 0], sizes = [1, 1, 4], strides = [1, 1, 1]} : vector<7x7x4xf32> to vector<1x1x4xf32>
    %384 = vector.shape_cast %383 : vector<1x1x4xf32> to vector<1x4xf32>
    %385 = vector.shape_cast %384 : vector<1x4xf32> to vector<1x1x4xf32>
    %386 = vector.broadcast %385 : vector<1x1x4xf32> to vector<16x16x4xf32>
    %387 = arith.mulf %382, %386 : vector<16x16x4xf32>
    %388 = arith.addf %380, %387 : vector<16x16x4xf32>
    %c0_194 = arith.constant 0 : index
    %c6_195 = arith.constant 6 : index
    %c6_196 = arith.constant 6 : index
    %c0_197 = arith.constant 0 : index
    %389 = vector.load %arg2[%c0_194, %c6_195, %c6_196, %c0_197] : memref<1x22x22x4xf32, #tpu.memory_space<vmem>>, vector<1x16x16x4xf32>
    %390 = vector.shape_cast %389 : vector<1x16x16x4xf32> to vector<16x16x4xf32>
    %391 = vector.extract_strided_slice %0 {offsets = [6, 6, 0], sizes = [1, 1, 4], strides = [1, 1, 1]} : vector<7x7x4xf32> to vector<1x1x4xf32>
    %392 = vector.shape_cast %391 : vector<1x1x4xf32> to vector<1x4xf32>
    %393 = vector.shape_cast %392 : vector<1x4xf32> to vector<1x1x4xf32>
    %394 = vector.broadcast %393 : vector<1x1x4xf32> to vector<16x16x4xf32>
    %395 = arith.mulf %390, %394 : vector<16x16x4xf32>
    %396 = arith.addf %388, %395 : vector<16x16x4xf32>
    %397 = vector.shape_cast %1 : vector<1x4xf32> to vector<1x1x4xf32>
    %398 = vector.broadcast %397 : vector<1x1x4xf32> to vector<16x16x4xf32>
    %399 = arith.addf %396, %398 : vector<16x16x4xf32>
    %400 = vector.shape_cast %399 : vector<16x16x4xf32> to vector<256x4xf32>
    %cst_198 = arith.constant dense<0.000000e+00> : vector<256xf32>
    %401 = vector.multi_reduction <add>, %400, %cst_198 [1] : vector<256x4xf32> to vector<256xf32>
    %402 = vector.shape_cast %401 : vector<256xf32> to vector<256x1xf32>
    %cst_199 = arith.constant 4.000000e+00 : f32
    %403 = vector.broadcast %cst_199 : f32 to vector<256x1xf32>
    %404 = arith.divf %402, %403 : vector<256x1xf32>
    %405 = vector.broadcast %404 : vector<256x1xf32> to vector<256x4xf32>
    %406 = arith.subf %400, %405 : vector<256x4xf32>
    %407 = arith.mulf %406, %406 : vector<256x4xf32>
    %cst_200 = arith.constant dense<0.000000e+00> : vector<256xf32>
    %408 = vector.multi_reduction <add>, %407, %cst_200 [1] : vector<256x4xf32> to vector<256xf32>
    %409 = vector.shape_cast %408 : vector<256xf32> to vector<256x1xf32>
    %cst_201 = arith.constant 4.000000e+00 : f32
    %410 = vector.broadcast %cst_201 : f32 to vector<256x1xf32>
    %411 = arith.divf %409, %410 : vector<256x1xf32>
    %cst_202 = arith.constant 9.99999997E-7 : f32
    %412 = vector.broadcast %cst_202 : f32 to vector<256x1xf32>
    %413 = arith.addf %411, %412 : vector<256x1xf32>
    %414 = math.rsqrt %413 : vector<256x1xf32>
    %415 = vector.broadcast %414 : vector<256x1xf32> to vector<256x4xf32>
    %416 = arith.mulf %406, %415 : vector<256x4xf32>
    %417 = arith.truncf %416 : vector<256x4xf32> to vector<256x4xbf16>
    %c0_203 = arith.constant 0 : index
    %c0_204 = arith.constant 0 : index
    %418 = vector.load %arg5[%c0_203, %c0_204] : memref<4x16xbf16, #tpu.memory_space<vmem>>, vector<4x16xbf16>
    %cst_205 = arith.constant dense<0.000000e+00> : vector<256x16xf32>
    %419 = tpu.matmul %417, %418, %cst_205 {dimension_numbers = #tpu.dot_dimension_numbers<[1], [0], [0], [1], [0, 0, 1, 1], [], []>} : vector<256x4xbf16>, vector<4x16xbf16>, vector<256x16xf32> -> vector<256x16xf32>
    %420 = vector.broadcast %2 : vector<1x16xf32> to vector<256x16xf32>
    %421 = arith.addf %419, %420 : vector<256x16xf32>
    %cst_206 = arith.constant 0.707106769 : f32
    %422 = vector.broadcast %cst_206 : f32 to vector<256x16xf32>
    %423 = arith.mulf %421, %422 : vector<256x16xf32>
    %424 = math.absf %423 : vector<256x16xf32>
    %cst_207 = arith.constant 0.327591091 : f32
    %425 = vector.broadcast %cst_207 : f32 to vector<256x16xf32>
    %426 = arith.mulf %425, %424 : vector<256x16xf32>
    %cst_208 = arith.constant 1.000000e+00 : f32
    %427 = vector.broadcast %cst_208 : f32 to vector<256x16xf32>
    %428 = arith.addf %427, %426 : vector<256x16xf32>
    %429 = tpu.reciprocal %428 {approx = true} : vector<256x16xf32> -> vector<256x16xf32>
    %cst_209 = arith.constant 1.06140542 : f32
    %430 = vector.broadcast %cst_209 : f32 to vector<256x16xf32>
    %431 = arith.mulf %430, %429 : vector<256x16xf32>
    %cst_210 = arith.constant -1.45315206 : f32
    %432 = vector.broadcast %cst_210 : f32 to vector<256x16xf32>
    %433 = arith.addf %431, %432 : vector<256x16xf32>
    %434 = arith.mulf %433, %429 : vector<256x16xf32>
    %cst_211 = arith.constant 1.42141378 : f32
    %435 = vector.broadcast %cst_211 : f32 to vector<256x16xf32>
    %436 = arith.addf %434, %435 : vector<256x16xf32>
    %437 = arith.mulf %436, %429 : vector<256x16xf32>
    %cst_212 = arith.constant -0.284496725 : f32
    %438 = vector.broadcast %cst_212 : f32 to vector<256x16xf32>
    %439 = arith.addf %437, %438 : vector<256x16xf32>
    %440 = arith.mulf %439, %429 : vector<256x16xf32>
    %cst_213 = arith.constant 0.254829586 : f32
    %441 = vector.broadcast %cst_213 : f32 to vector<256x16xf32>
    %442 = arith.addf %440, %441 : vector<256x16xf32>
    %443 = arith.mulf %442, %429 : vector<256x16xf32>
    %cst_214 = arith.constant 0.000000e+00 : f32
    %444 = vector.broadcast %cst_214 : f32 to vector<256x16xf32>
    %445 = arith.subf %444, %424 : vector<256x16xf32>
    %446 = arith.mulf %445, %424 : vector<256x16xf32>
    %447 = math.exp %446 : vector<256x16xf32>
    %448 = arith.mulf %443, %447 : vector<256x16xf32>
    %cst_215 = arith.constant 1.000000e+00 : f32
    %449 = vector.broadcast %cst_215 : f32 to vector<256x16xf32>
    %450 = arith.subf %449, %448 : vector<256x16xf32>
    %cst_216 = arith.constant 0.000000e+00 : f32
    %451 = vector.broadcast %cst_216 : f32 to vector<256x16xf32>
    %452 = arith.cmpf oge, %423, %451 : vector<256x16xf32>
    %cst_217 = arith.constant 0.000000e+00 : f32
    %453 = vector.broadcast %cst_217 : f32 to vector<256x16xf32>
    %454 = arith.subf %453, %450 : vector<256x16xf32>
    %455 = arith.select %452, %450, %454 : vector<256x16xi1>, vector<256x16xf32>
    %cst_218 = arith.constant 5.000000e-01 : f32
    %456 = vector.broadcast %cst_218 : f32 to vector<256x16xf32>
    %457 = arith.mulf %456, %421 : vector<256x16xf32>
    %cst_219 = arith.constant 1.000000e+00 : f32
    %458 = vector.broadcast %cst_219 : f32 to vector<256x16xf32>
    %459 = arith.addf %458, %455 : vector<256x16xf32>
    %460 = arith.mulf %457, %459 : vector<256x16xf32>
    %461 = arith.truncf %460 : vector<256x16xf32> to vector<256x16xbf16>
    %c0_220 = arith.constant 0 : index
    %c0_221 = arith.constant 0 : index
    %462 = vector.load %arg7[%c0_220, %c0_221] : memref<16x4xbf16, #tpu.memory_space<vmem>>, vector<16x4xbf16>
    %cst_222 = arith.constant dense<0.000000e+00> : vector<256x4xf32>
    %463 = tpu.matmul %461, %462, %cst_222 {dimension_numbers = #tpu.dot_dimension_numbers<[1], [0], [0], [1], [0, 0, 1, 1], [], []>} : vector<256x16xbf16>, vector<16x4xbf16>, vector<256x4xf32> -> vector<256x4xf32>
    %464 = vector.broadcast %3 : vector<1x4xf32> to vector<256x4xf32>
    %465 = arith.addf %463, %464 : vector<256x4xf32>
    %c0_223 = arith.constant 0 : index
    %c3_224 = arith.constant 3 : index
    %c3_225 = arith.constant 3 : index
    %c0_226 = arith.constant 0 : index
    %466 = vector.load %arg2[%c0_223, %c3_224, %c3_225, %c0_226] : memref<1x22x22x4xf32, #tpu.memory_space<vmem>>, vector<1x16x16x4xf32>
    %467 = vector.shape_cast %466 : vector<1x16x16x4xf32> to vector<16x16x4xf32>
    %468 = vector.shape_cast %467 : vector<16x16x4xf32> to vector<256x4xf32>
    %469 = arith.addf %468, %465 : vector<256x4xf32>
    %c0_227 = arith.constant 0 : index
    %c0_228 = arith.constant 0 : index
    %c0_229 = arith.constant 0 : index
    %470 = vector.load %arg9[%c0_227, %c0_228, %c0_229] : memref<1x256x4xf32, #tpu.memory_space<vmem>>, vector<1x256x4xf32>
    %471 = vector.shape_cast %470 : vector<1x256x4xf32> to vector<256x4xf32>
    %472 = vector.shape_cast %469 : vector<256x4xf32> to vector<1x256x4xf32>
    tpu.vector_store %arg9[%c0_227, %c0_228, %c0_229], %472 {strides = array<i32>} : memref<1x256x4xf32, #tpu.memory_space<vmem>>, vector<1x256x4xf32>,
    return
  }
  func.func @transform_0(%arg0: i32, %arg1: i32) -> (i32, i32, i32, i32) {
    %c1_i32 = arith.constant 1 : i32
    %0 = arith.muli %arg0, %c1_i32 : i32
    %1 = arith.addi %0, %arg1 : i32
    %c0_i32 = arith.constant 0 : i32
    %c0_i32_0 = arith.constant 0 : i32
    %c0_i32_1 = arith.constant 0 : i32
    %c0_i32_2 = arith.constant 0 : i32
    return %1, %c0_i32, %c0_i32_0, %c0_i32_1 : i32, i32, i32, i32
  }
  func.func @transform_1(%arg0: i32, %arg1: i32) -> (i32, i32, i32) {
    %c0_i32 = arith.constant 0 : i32
    %c0_i32_0 = arith.constant 0 : i32
    %c0_i32_1 = arith.constant 0 : i32
    %c0_i32_2 = arith.constant 0 : i32
    return %c0_i32, %c0_i32_0, %c0_i32_1 : i32, i32, i32
  }
  func.func @transform_2(%arg0: i32, %arg1: i32) -> (i32, i32) {
    %c0_i32 = arith.constant 0 : i32
    %c0_i32_0 = arith.constant 0 : i32
    %c0_i32_1 = arith.constant 0 : i32
    return %c0_i32, %c0_i32_0 : i32, i32
  }
  func.func @transform_3(%arg0: i32, %arg1: i32) -> (i32, i32) {
    %c0_i32 = arith.constant 0 : i32
    %c0_i32_0 = arith.constant 0 : i32
    %c0_i32_1 = arith.constant 0 : i32
    return %c0_i32, %c0_i32_0 : i32, i32
  }
  func.func @transform_4(%arg0: i32, %arg1: i32) -> (i32, i32) {
    %c0_i32 = arith.constant 0 : i32
    %c0_i32_0 = arith.constant 0 : i32
    %c0_i32_1 = arith.constant 0 : i32
    return %c0_i32, %c0_i32_0 : i32, i32
  }
  func.func @transform_5(%arg0: i32, %arg1: i32) -> (i32, i32) {
    %c0_i32 = arith.constant 0 : i32
    %c0_i32_0 = arith.constant 0 : i32
    %c0_i32_1 = arith.constant 0 : i32
    return %c0_i32, %c0_i32_0 : i32, i32
  }
  func.func @transform_6(%arg0: i32, %arg1: i32) -> (i32, i32) {
    %c0_i32 = arith.constant 0 : i32
    %c0_i32_0 = arith.constant 0 : i32
    %c0_i32_1 = arith.constant 0 : i32
    return %c0_i32, %c0_i32_0 : i32, i32
  }
  func.func @transform_7(%arg0: i32, %arg1: i32) -> (i32, i32, i32) {
    %c0_i32 = arith.constant 0 : i32
    %c0_i32_0 = arith.constant 0 : i32
    return %arg0, %arg1, %c0_i32 : i32, i32, i32
  }
}

</mosaic_0001>

<llo_original>
// kernel: acl_v1_forward.1
$region0: #{acl_v1_forward.1}
  #allocation0 [shape = 'u32[]', space=smem, size = 0x4, offset = 0x4, fixed_abs, tag = 'smem constant byte address 0x4 - core index']
  #allocation1 [shape = 'u32[72,128]{1,0:T(1,128)}', space=vmem, size = 0x9000, scoped, tag = 'internal scratch']
  %s0 = inlined_call_operand.vmem [shape: f32[2,22,22,4], index: 0, kind: input, shape index: {}]
  %s1 = inlined_call_operand.vmem [shape: f32[7,7,4], index: 1, kind: input, shape index: {}]
  %s2 = inlined_call_operand.vmem [shape: f32[1,4], index: 2, kind: input, shape index: {}]
  %s3 = inlined_call_operand.vmem [shape: bf16[4,16], index: 3, kind: input, shape index: {}]
  %s4 = inlined_call_operand.vmem [shape: f32[1,16], index: 4, kind: input, shape index: {}]
  %s5 = inlined_call_operand.vmem [shape: bf16[16,4], index: 5, kind: input, shape index: {}]
  %s6 = inlined_call_operand.vmem [shape: f32[1,4], index: 6, kind: input, shape index: {}]
  %s7 = inlined_call_operand.vmem [shape: f32[2,256,4], index: 7, kind: output, shape index: {}]
  %s8 = sld [smem:[#allocation0]]
  $region61: #{acl_v1_forward.1} parent=0
    _
  %s10 = ssub.s32 1, %s8
  %s11 = scalar_select 0, %s10, %s8
  loop: start=0, step=1, limit=4
  $region2: #{acl_v1_forward.1} parent=0 // loop_pre_header
    _
  $region3: #{acl_v1_forward.1} parent=0 // loop_header
    %s13 = sphi 0, %s17
    %p14 = scmp.ge.s32.totalorder %s13, 4
    %s20 = sphi 0, %s32
    %s21 = sphi 0, %s28
    %s22 = sphi 0, %s20
    %s23 = sphi 0, %s21
    %s24 = sphi 0, %s22
    %s25 = sphi 0, %s23
    %s37 = sphi 0, %s39
    %s40 = sphi 0, %s37
    %s41 = sphi 0, %s40
    %s57 = sphi 0, %s41
    %s61 = sphi 0, %s61
    %s63 = sphi 0, %s61
    %s64 = sphi 0, %s63
    %s78 = sphi 0, %s64
    %s82 = sphi 0, %s82
    %s84 = sphi 0, %s82
    %s85 = sphi 0, %s84
    %s99 = sphi 0, %s85
    %s103 = sphi 0, %s103
    %s105 = sphi 0, %s103
    %s106 = sphi 0, %s105
    %s120 = sphi 0, %s106
    %s124 = sphi 0, %s124
    %s126 = sphi 0, %s124
    %s127 = sphi 0, %s126
    %s141 = sphi 0, %s127
    %s145 = sphi 0, %s145
    %s147 = sphi 0, %s145
    %s148 = sphi 0, %s147
    %s162 = sphi 0, %s148
    %s166 = sphi 0, %s166
    %s168 = sphi 0, %s166
    %s169 = sphi 0, %s168
    %s183 = sphi 0, %s169
    %s191 = sphi 0, %s193
    %s194 = sphi 0, %s191
    %s195 = sphi 0, %s194
    %s211 = sphi 0, %s195
  $region4: #{acl_v1_forward.1} parent=0 // loop_header_branch
    %16 = sbr.rel (%p14) target = $region8
  $region5: #{acl_v1_forward.1} parent=0 // loop_body
    %s18 = ssub.s32 %s13, 1
    %s19 = ssub.s32 %s13, 2
    %s26 = sadd.s32 1, %s21
    %p27 = scmp.ge.s32.totalorder %s26, 1
    %s28 = scalar_select %p27, 0, %s26
    %s29 = sadd.s32 1, %s20
    %s30 = scalar_select %p27, %s29, %s20
    %p31 = scmp.ge.s32.totalorder %s30, 2
    %s32 = scalar_select %p31, 0, %s30
    %s33 = sadd.s32 %s20, %s21
    %s34 = sadd.s32 %s32, %s28
    %s35 = ssub.s32 %s33, %s34
    %p36 = scmp.eq.s32.totalorder %s35, 0
    %s38 = sadd.s32 %s37, 1
    %s39 = scalar_select %p36, %s37, %s38
    %p42 = pneg %p36
    %p43 = scmp.eq.s32.totalorder %s13, 1
    %p44 = por %p42, %p43
    %p45 = scmp.ne.s32.totalorder %s37, %s40
    %p46 = scmp.eq.s32.totalorder %s13, 0
    %p47 = por %p45, %p46
    %p48 = scmp.ne.s32.totalorder %s37, %s40
    %p49 = scmp.eq.s32.totalorder %s18, 1
    %p50 = por %p48, %p49
    %p51 = scmp.ne.s32.totalorder %s40, %s41
    %p52 = scmp.eq.s32.totalorder %s18, 0
    %p53 = por %p51, %p52
    %p54 = scmp.ne.s32.totalorder %s40, %s41
    %p55 = scmp.eq.s32.totalorder %s19, 1
    %p56 = por %p54, %p55
    %p58 = scmp.ne.s32.totalorder %s41, %s57
    %p59 = scmp.eq.s32.totalorder %s19, 0
    %p60 = por %p58, %p59
    %s62 = sadd.s32 %s61, 1
    %p65 = scmp.eq.s32.totalorder %s13, 1
    %p66 = scmp.ne.s32.totalorder %s61, %s63
    %p67 = scmp.eq.s32.totalorder %s13, 0
    %p68 = por %p66, %p67
    %p69 = scmp.ne.s32.totalorder %s61, %s63
    %p70 = scmp.eq.s32.totalorder %s18, 1
    %p71 = por %p69, %p70
    %p72 = scmp.ne.s32.totalorder %s63, %s64
    %p73 = scmp.eq.s32.totalorder %s18, 0
    %p74 = por %p72, %p73
    %p75 = scmp.ne.s32.totalorder %s63, %s64
    %p76 = scmp.eq.s32.totalorder %s19, 1
    %p77 = por %p75, %p76
    %p79 = scmp.ne.s32.totalorder %s64, %s78
    %p80 = scmp.eq.s32.totalorder %s19, 0
    %p81 = por %p79, %p80
    %s83 = sadd.s32 %s82, 1
    %p86 = scmp.eq.s32.totalorder %s13, 1
    %p87 = scmp.ne.s32.totalorder %s82, %s84
    %p88 = scmp.eq.s32.totalorder %s13, 0
    %p89 = por %p87, %p88
    %p90 = scmp.ne.s32.totalorder %s82, %s84
    %p91 = scmp.eq.s32.totalorder %s18, 1
    %p92 = por %p90, %p91
    %p93 = scmp.ne.s32.totalorder %s84, %s85
    %p94 = scmp.eq.s32.totalorder %s18, 0
    %p95 = por %p93, %p94
    %p96 = scmp.ne.s32.totalorder %s84, %s85
    %p97 = scmp.eq.s32.totalorder %s19, 1
    %p98 = por %p96, %p97
    %p100 = scmp.ne.s32.totalorder %s85, %s99
    %p101 = scmp.eq.s32.totalorder %s19, 0
    %p102 = por %p100, %p101
    %s104 = sadd.s32 %s103, 1
    %p107 = scmp.eq.s32.totalorder %s13, 1
    %p108 = scmp.ne.s32.totalorder %s103, %s105
    %p109 = scmp.eq.s32.totalorder %s13, 0
    %p110 = por %p108, %p109
    %p111 = scmp.ne.s32.totalorder %s103, %s105
    %p112 = scmp.eq.s32.totalorder %s18, 1
    %p113 = por %p111, %p112
    %p114 = scmp.ne.s32.totalorder %s105, %s106
    %p115 = scmp.eq.s32.totalorder %s18, 0
    %p116 = por %p114, %p115
    %p117 = scmp.ne.s32.totalorder %s105, %s106
    %p118 = scmp.eq.s32.totalorder %s19, 1
    %p119 = por %p117, %p118
    %p121 = scmp.ne.s32.totalorder %s106, %s120
    %p122 = scmp.eq.s32.totalorder %s19, 0
    %p123 = por %p121, %p122
    %s125 = sadd.s32 %s124, 1
    %p128 = scmp.eq.s32.totalorder %s13, 1
    %p129 = scmp.ne.s32.totalorder %s124, %s126
    %p130 = scmp.eq.s32.totalorder %s13, 0
    %p131 = por %p129, %p130
    %p132 = scmp.ne.s32.totalorder %s124, %s126
    %p133 = scmp.eq.s32.totalorder %s18, 1
    %p134 = por %p132, %p133
    %p135 = scmp.ne.s32.totalorder %s126, %s127
    %p136 = scmp.eq.s32.totalorder %s18, 0
    %p137 = por %p135, %p136
    %p138 = scmp.ne.s32.totalorder %s126, %s127
    %p139 = scmp.eq.s32.totalorder %s19, 1
    %p140 = por %p138, %p139
    %p142 = scmp.ne.s32.totalorder %s127, %s141
    %p143 = scmp.eq.s32.totalorder %s19, 0
    %p144 = por %p142, %p143
    %s146 = sadd.s32 %s145, 1
    %p149 = scmp.eq.s32.totalorder %s13, 1
    %p150 = scmp.ne.s32.totalorder %s145, %s147
    %p151 = scmp.eq.s32.totalorder %s13, 0
    %p152 = por %p150, %p151
    %p153 = scmp.ne.s32.totalorder %s145, %s147
    %p154 = scmp.eq.s32.totalorder %s18, 1
    %p155 = por %p153, %p154
    %p156 = scmp.ne.s32.totalorder %s147, %s148
    %p157 = scmp.eq.s32.totalorder %s18, 0
    %p158 = por %p156, %p157
    %p159 = scmp.ne.s32.totalorder %s147, %s148
    %p160 = scmp.eq.s32.totalorder %s19, 1
    %p161 = por %p159, %p160
    %p163 = scmp.ne.s32.totalorder %s148, %s162
    %p164 = scmp.eq.s32.totalorder %s19, 0
    %p165 = por %p163, %p164
    %s167 = sadd.s32 %s166, 1
    %p170 = scmp.eq.s32.totalorder %s13, 1
    %p171 = scmp.ne.s32.totalorder %s166, %s168
    %p172 = scmp.eq.s32.totalorder %s13, 0
    %p173 = por %p171, %p172
    %p174 = scmp.ne.s32.totalorder %s166, %s168
    %p175 = scmp.eq.s32.totalorder %s18, 1
    %p176 = por %p174, %p175
    %p177 = scmp.ne.s32.totalorder %s168, %s169
    %p178 = scmp.eq.s32.totalorder %s18, 0
    %p179 = por %p177, %p178
    %p180 = scmp.ne.s32.totalorder %s168, %s169
    %p181 = scmp.eq.s32.totalorder %s19, 1
    %p182 = por %p180, %p181
    %p184 = scmp.ne.s32.totalorder %s169, %s183
    %p185 = scmp.eq.s32.totalorder %s19, 0
    %p186 = por %p184, %p185
    %s187 = ssub.s32 %s20, %s32
    %s188 = ssub.s32 %s21, %s28
    %s189 = sor.u32 %s187, %s188
    %p190 = scmp.eq.s32.totalorder %s189, 0
    %s192 = sadd.s32 %s191, 1
    %s193 = scalar_select %p190, %s191, %s192
    %p196 = pneg %p190
    %p197 = scmp.eq.s32.totalorder %s13, 1
    %p198 = por %p196, %p197
    %p199 = scmp.ne.s32.totalorder %s191, %s194
    %p200 = scmp.eq.s32.totalorder %s13, 0
    %p201 = por %p199, %p200
    %p202 = scmp.ne.s32.totalorder %s191, %s194
    %p203 = scmp.eq.s32.totalorder %s18, 1
    %p204 = por %p202, %p203
    %p205 = scmp.ne.s32.totalorder %s194, %s195
    %p206 = scmp.eq.s32.totalorder %s18, 0
    %p207 = por %p205, %p206
    %p208 = scmp.ne.s32.totalorder %s194, %s195
    %p209 = scmp.eq.s32.totalorder %s19, 1
    %p210 = por %p208, %p209
    %p212 = scmp.ne.s32.totalorder %s195, %s211
    %p213 = scmp.eq.s32.totalorder %s19, 0
    %p214 = por %p212, %p213
    %p215 = scmp.le.s32.totalorder 1, %s13
    %p216 = scmp.lt.s32.totalorder %s13, 3
    %p217 = pnand %p215, %p216
    %p218 = pneg %p217
    // Predicated region
    $region9: #{acl_v1_forward.1} parent=5 // pred_check
      _
    $region10: #{acl_v1_forward.1} parent=5 // pred_check_branch
      %220 = sbr.rel (%p217) target = $region12
    $region11: #{acl_v1_forward.1} parent=5 // pred_region
      %s221 = ssub.s32 %s13, 1
      // Predicated region
      $region13: #{acl_v1_forward.1} parent=11 // pred_check
        %p222 = pneg %p74
      $region14: #{acl_v1_forward.1} parent=11 // pred_check_branch
        %224 = sbr.rel (%p222) target = $region16
      $region15: #{acl_v1_forward.1} parent=11 // pred_region
        _
      $region16: #{acl_v1_forward.1} parent=11 // pred_fallthru
        _
      // Predicated region
      $region17: #{acl_v1_forward.1} parent=11 // pred_check
        %p225 = pneg %p95
      $region18: #{acl_v1_forward.1} parent=11 // pred_check_branch
        %227 = sbr.rel (%p225) target = $region20
      $region19: #{acl_v1_forward.1} parent=11 // pred_region
        _
      $region20: #{acl_v1_forward.1} parent=11 // pred_fallthru
        _
      // Predicated region
      $region21: #{acl_v1_forward.1} parent=11 // pred_check
        %p228 = pneg %p116
      $region22: #{acl_v1_forward.1} parent=11 // pred_check_branch
        %230 = sbr.rel (%p228) target = $region24
      $region23: #{acl_v1_forward.1} parent=11 // pred_region
        _
      $region24: #{acl_v1_forward.1} parent=11 // pred_fallthru
        _
      // Predicated region
      $region25: #{acl_v1_forward.1} parent=11 // pred_check
        %p231 = pneg %p137
      $region26: #{acl_v1_forward.1} parent=11 // pred_check_branch
        %233 = sbr.rel (%p231) target = $region28
      $region27: #{acl_v1_forward.1} parent=11 // pred_region
        _
      $region28: #{acl_v1_forward.1} parent=11 // pred_fallthru
        _
      // Predicated region
      $region29: #{acl_v1_forward.1} parent=11 // pred_check
        %p234 = pneg %p158
      $region30: #{acl_v1_forward.1} parent=11 // pred_check_branch
        %236 = sbr.rel (%p234) target = $region32
      $region31: #{acl_v1_forward.1} parent=11 // pred_region
        _
      $region32: #{acl_v1_forward.1} parent=11 // pred_fallthru
        _
      // Predicated region
      $region33: #{acl_v1_forward.1} parent=11 // pred_check
        %p237 = pneg %p179
      $region34: #{acl_v1_forward.1} parent=11 // pred_check_branch
        %239 = sbr.rel (%p237) target = $region36
      $region35: #{acl_v1_forward.1} parent=11 // pred_region
        _
      $region36: #{acl_v1_forward.1} parent=11 // pred_fallthru
        _
    $region12: #{acl_v1_forward.1} parent=5 // pred_fallthru
      _
    %p240 = scmp.lt.s32.totalorder %s13, 2
    // Predicated region
    $region37: #{acl_v1_forward.1} parent=5 // pred_check
      %p241 = pneg %p240
    $region38: #{acl_v1_forward.1} parent=5 // pred_check_branch
      %243 = sbr.rel (%p241) target = $region40
    $region39: #{acl_v1_forward.1} parent=5 // pred_region
      // Predicated region
      $region41: #{acl_v1_forward.1} parent=39 // pred_check
        %p244 = pneg %p47
      $region42: #{acl_v1_forward.1} parent=39 // pred_check_branch
        %246 = sbr.rel (%p244) target = $region44
      $region43: #{acl_v1_forward.1} parent=39 // pred_region
        %s247 = sadd.s32 %s20, %s21
        %p248 = scmp.lt.s32.totalorder %s247, 1
        %s249 = scalar_select %p248, %s247, 1
        %s250 = smul.addr %s249, 66
        %s251 = smul.addr %s250, 8
        %s252 = scalar_lea.vmem %s0, %s251
        %s253 = sadd.s32 %s20, %s21
      $region44: #{acl_v1_forward.1} parent=39 // pred_fallthru
        _
    $region40: #{acl_v1_forward.1} parent=5 // pred_fallthru
      _
    %p254 = scmp.le.s32.totalorder 1, %s13
    %p255 = scmp.lt.s32.totalorder %s13, 3
    %p256 = pnand %p254, %p255
    %p257 = pneg %p256
    // Predicated region
    $region45: #{acl_v1_forward.1} parent=5 // pred_check
      _
    $region46: #{acl_v1_forward.1} parent=5 // pred_check_branch
      %259 = sbr.rel (%p256) target = $region48
    $region47: #{acl_v1_forward.1} parent=5 // pred_region
      %s260 = ssub.s32 %s13, 1
      %s261 = sadd.s32 %s22, %s23
      %p262 = scmp.lt.s32.totalorder %s261, 1
      %s263 = scalar_select %p262, %s261, 1
      %s264 = smul.addr %s263, 66
      %s265 = smul.addr %s264, 8
      %s266 = scalar_lea.vmem %s0, %s265
      %p267 = pneg %p53
      %p268 = pneg %p50
      %p269 = pneg %p74
      %p270 = pneg %p71
      %p271 = pneg %p95
      %p272 = pneg %p92
      %p273 = pneg %p116
      %p274 = pneg %p113
      %p275 = pneg %p137
      %p276 = pneg %p134
      %p277 = pneg %p158
      %p278 = pneg %p155
      %p279 = pneg %p179
      %p280 = pneg %p176
      %p281 = pneg %p207
      %p282 = pneg %p204
      %s283 = smul.u32 32, %s23
      %p284 = scmp.lt.s32.totalorder %s22, 1
      %s285 = scalar_select %p284, %s22, 1
      %p286 = scmp.lt.s32.totalorder %s283, 31
      %s287 = scalar_select %p286, %s283, 31
      %s288 = smul.addr %s285, 32
      %s289 = sadd.s32 %s287, %s288
      %s290 = smul.addr %s289, 8
      %s291 = scalar_lea.vmem %s7, %s290
      %s292 = sadd.s32 %s22, %s23
      %p293 = scmp.lt.s32.totalorder %s292, 1
      %s294 = scalar_select %p293, %s292, 1
      %s295 = smul.addr %s294, 66
      %s296 = smul.addr %s295, 8
      %s297 = scalar_lea.vmem %s0, %s296
      %s298 = sadd.s32 %s22, %s23
      %s299 = smul.u32 32, %s23
      %p300 = scmp.lt.s32.totalorder %s22, 1
      %s301 = scalar_select %p300, %s22, 1
      %p302 = scmp.lt.s32.totalorder %s299, 31
      %s303 = scalar_select %p302, %s299, 31
      %s304 = smul.addr %s301, 32
      %s305 = sadd.s32 %s303, %s304
      %s306 = smul.addr %s305, 8
      %s307 = scalar_lea.vmem %s7, %s306
      %s308 = smul.u32 32, %s23
      %v310 = vld [vmem:[%s1] sm:$0x7f]
      %v311 = vld [vmem:[%s1 + $0x8] sm:$0x7f]
      %v312 = vld [vmem:[%s1 + $0x10] sm:$0x7f]
      %v313 = vld [vmem:[%s1 + $0x18] sm:$0x7f]
      %v314 = vld [vmem:[%s1 + $0x20] sm:$0x7f]
      %v315 = vld [vmem:[%s1 + $0x28] sm:$0x7f]
      %v316 = vld [vmem:[%s1 + $0x30] sm:$0x7f]
      %v317 = vld [vmem:[%s2] sm:$0x1]
      %v318 = vld [vmem:[%s4] sm:$0x1]
      %v319 = vld [vmem:[%s6] sm:$0x1]
      %v320 = vld [vmem:[%s297] sm:$0xff]
      %v321 = vld [vmem:[%s297 + $0x8] sm:$0xff]
      %v322 = vld [vmem:[%s297 + $0x18] sm:$0xff]
      %v323 = vld [vmem:[%s297 + $0x20] sm:$0xff]
      %v324 = vld [vmem:[%s297 + $0x30] sm:$0xff]
      %v325 = vld [vmem:[%s297 + $0x38] sm:$0xff]
      %v326 = vld [vmem:[%s297 + $0x48] sm:$0xff]
      %v327 = vld [vmem:[%s297 + $0x50] sm:$0xff]
      %v328 = vld [vmem:[%s297 + $0x60] sm:$0xff]
      %v329 = vld [vmem:[%s297 + $0x68] sm:$0xff]
      %v330 = vld [vmem:[%s297 + $0x78] sm:$0xff]
      %v331 = vld [vmem:[%s297 + $0x80] sm:$0xff]
      %v332 = vld [vmem:[%s297 + $0x90] sm:$0xff]
      %v333 = vld [vmem:[%s297 + $0x98] sm:$0xff]
      %v334 = vld [vmem:[%s297 + $0xa8] sm:$0xff]
      %v335 = vld [vmem:[%s297 + $0xb0] sm:$0xff]
      %v336 = vld [vmem:[%s297 + $0xc0] sm:$0xff]
      %v337 = vld [vmem:[%s297 + $0xc8] sm:$0xff]
      %v338 = vld [vmem:[%s297 + $0xd8] sm:$0xff]
      %v339 = vld [vmem:[%s297 + $0xe0] sm:$0xff]
      %v340 = vld [vmem:[%s297 + $0xf0] sm:$0xff]
      %v341 = vld [vmem:[%s297 + $0xf8] sm:$0xff]
      %v342 = vld [vmem:[%s297 + $0x108] sm:$0xff]
      %v343 = vld [vmem:[%s297 + $0x110] sm:$0xff]
      %v344 = vld [vmem:[%s297 + $0x120] sm:$0xff]
      %v345 = vld [vmem:[%s297 + $0x128] sm:$0xff]
      %v346 = vld [vmem:[%s297 + $0x138] sm:$0xff]
      %v347 = vld [vmem:[%s297 + $0x140] sm:$0xff]
      %v348 = vld [vmem:[%s297 + $0x150] sm:$0xff]
      %v349 = vld [vmem:[%s297 + $0x158] sm:$0xff]
      %v350 = vld [vmem:[%s297 + $0x168] sm:$0xff]
      %v351 = vld [vmem:[%s297 + $0x170] sm:$0xff]
      %v352 = vperm.slane %v310, 0
      %v353 = vmul.f32 %v320, %v352
      %v354 = vmul.f32 %v321, %v352
      %v355 = vmul.f32 %v322, %v352
      %v356 = vmul.f32 %v323, %v352
      %v357 = vmul.f32 %v324, %v352
      %v358 = vmul.f32 %v325, %v352
      %v359 = vmul.f32 %v326, %v352
      %v360 = vmul.f32 %v327, %v352
      %v361 = vmul.f32 %v328, %v352
      %v362 = vmul.f32 %v329, %v352
      %v363 = vmul.f32 %v330, %v352
      %v364 = vmul.f32 %v331, %v352
      %v365 = vmul.f32 %v332, %v352
      %v366 = vmul.f32 %v333, %v352
      %v367 = vmul.f32 %v334, %v352
      %v368 = vmul.f32 %v335, %v352
      %v369 = vmul.f32 %v336, %v352
      %v370 = vmul.f32 %v337, %v352
      %v371 = vmul.f32 %v338, %v352
      %v372 = vmul.f32 %v339, %v352
      %v373 = vmul.f32 %v340, %v352
      %v374 = vmul.f32 %v341, %v352
      %v375 = vmul.f32 %v342, %v352
      %v376 = vmul.f32 %v343, %v352
      %v377 = vmul.f32 %v344, %v352
      %v378 = vmul.f32 %v345, %v352
      %v379 = vmul.f32 %v346, %v352
      %v380 = vmul.f32 %v347, %v352
      %v381 = vmul.f32 %v348, %v352
      %v382 = vmul.f32 %v349, %v352
      %v383 = vmul.f32 %v350, %v352
      %v384 = vmul.f32 %v351, %v352
      %v385 = vadd.f32 %v353, 0.0
      %v386 = vadd.f32 %v354, 0.0
      %v387 = vadd.f32 %v355, 0.0
      %v388 = vadd.f32 %v356, 0.0
      %v389 = vadd.f32 %v357, 0.0
      %v390 = vadd.f32 %v358, 0.0
      %v391 = vadd.f32 %v359, 0.0
      %v392 = vadd.f32 %v360, 0.0
      %v393 = vadd.f32 %v361, 0.0
      %v394 = vadd.f32 %v362, 0.0
      %v395 = vadd.f32 %v363, 0.0
      %v396 = vadd.f32 %v364, 0.0
      %v397 = vadd.f32 %v365, 0.0
      %v398 = vadd.f32 %v366, 0.0
      %v399 = vadd.f32 %v367, 0.0
      %v400 = vadd.f32 %v368, 0.0
      %v401 = vadd.f32 %v369, 0.0
      %v402 = vadd.f32 %v370, 0.0
      %v403 = vadd.f32 %v371, 0.0
      %v404 = vadd.f32 %v372, 0.0
      %v405 = vadd.f32 %v373, 0.0
      %v406 = vadd.f32 %v374, 0.0
      %v407 = vadd.f32 %v375, 0.0
      %v408 = vadd.f32 %v376, 0.0
      %v409 = vadd.f32 %v377, 0.0
      %v410 = vadd.f32 %v378, 0.0
      %v411 = vadd.f32 %v379, 0.0
      %v412 = vadd.f32 %v380, 0.0
      %v413 = vadd.f32 %v381, 0.0
      %v414 = vadd.f32 %v382, 0.0
      %v415 = vadd.f32 %v383, 0.0
      %v416 = vadd.f32 %v384, 0.0
      %s417 = scalar_lea.vmem %s297, 24
      %v418 = vld [vmem:[%s417] sm:$0xff]
      %v419 = vld [vmem:[%s417 + $0x8] sm:$0xff]
      %v420 = vld [vmem:[%s417 + $0x18] sm:$0xff]
      %v421 = vld [vmem:[%s417 + $0x20] sm:$0xff]
      %v422 = vld [vmem:[%s417 + $0x30] sm:$0xff]
      %v423 = vld [vmem:[%s417 + $0x38] sm:$0xff]
      %v424 = vld [vmem:[%s417 + $0x48] sm:$0xff]
      %v425 = vld [vmem:[%s417 + $0x50] sm:$0xff]
      %v426 = vld [vmem:[%s417 + $0x60] sm:$0xff]
      %v427 = vld [vmem:[%s417 + $0x68] sm:$0xff]
      %v428 = vld [vmem:[%s417 + $0x78] sm:$0xff]
      %v429 = vld [vmem:[%s417 + $0x80] sm:$0xff]
      %v430 = vld [vmem:[%s417 + $0x90] sm:$0xff]
      %v431 = vld [vmem:[%s417 + $0x98] sm:$0xff]
      %v432 = vld [vmem:[%s417 + $0xa8] sm:$0xff]
      %v433 = vld [vmem:[%s417 + $0xb0] sm:$0xff]
      %v434 = vld [vmem:[%s417 + $0xc0] sm:$0xff]
      %v435 = vld [vmem:[%s417 + $0xc8] sm:$0xff]
      %v436 = vld [vmem:[%s417 + $0xd8] sm:$0xff]
      %v437 = vld [vmem:[%s417 + $0xe0] sm:$0xff]
      %v438 = vld [vmem:[%s417 + $0xf0] sm:$0xff]
      %v439 = vld [vmem:[%s417 + $0xf8] sm:$0xff]
      %v440 = vld [vmem:[%s417 + $0x108] sm:$0xff]
      %v441 = vld [vmem:[%s417 + $0x110] sm:$0xff]
      %v442 = vld [vmem:[%s417 + $0x120] sm:$0xff]
      %v443 = vld [vmem:[%s417 + $0x128] sm:$0xff]
      %v444 = vld [vmem:[%s417 + $0x138] sm:$0xff]
      %v445 = vld [vmem:[%s417 + $0x140] sm:$0xff]
      %v446 = vld [vmem:[%s417 + $0x150] sm:$0xff]
      %v447 = vld [vmem:[%s417 + $0x158] sm:$0xff]
      %v448 = vld [vmem:[%s417 + $0x168] sm:$0xff]
      %v449 = vld [vmem:[%s417 + $0x170] sm:$0xff]
      %v450 = vperm.slane %v311, 0
      %v451 = vmul.f32 %v418, %v450
      %v452 = vmul.f32 %v419, %v450
      %v453 = vmul.f32 %v420, %v450
      %v454 = vmul.f32 %v421, %v450
      %v455 = vmul.f32 %v422, %v450
      %v456 = vmul.f32 %v423, %v450
      %v457 = vmul.f32 %v424, %v450
      %v458 = vmul.f32 %v425, %v450
      %v459 = vmul.f32 %v426, %v450
      %v460 = vmul.f32 %v427, %v450
      %v461 = vmul.f32 %v428, %v450
      %v462 = vmul.f32 %v429, %v450
      %v463 = vmul.f32 %v430, %v450
      %v464 = vmul.f32 %v431, %v450
      %v465 = vmul.f32 %v432, %v450
      %v466 = vmul.f32 %v433, %v450
      %v467 = vmul.f32 %v434, %v450
      %v468 = vmul.f32 %v435, %v450
      %v469 = vmul.f32 %v436, %v450
      %v470 = vmul.f32 %v437, %v450
      %v471 = vmul.f32 %v438, %v450
      %v472 = vmul.f32 %v439, %v450
      %v473 = vmul.f32 %v440, %v450
      %v474 = vmul.f32 %v441, %v450
      %v475 = vmul.f32 %v442, %v450
      %v476 = vmul.f32 %v443, %v450
      %v477 = vmul.f32 %v444, %v450
      %v478 = vmul.f32 %v445, %v450
      %v479 = vmul.f32 %v446, %v450
      %v480 = vmul.f32 %v447, %v450
      %v481 = vmul.f32 %v448, %v450
      %v482 = vmul.f32 %v449, %v450
      %v483 = vadd.f32 %v385, %v451
      %v484 = vadd.f32 %v386, %v452
      %v485 = vadd.f32 %v387, %v453
      %v486 = vadd.f32 %v388, %v454
      %v487 = vadd.f32 %v389, %v455
      %v488 = vadd.f32 %v390, %v456
      %v489 = vadd.f32 %v391, %v457
      %v490 = vadd.f32 %v392, %v458
      %v491 = vadd.f32 %v393, %v459
      %v492 = vadd.f32 %v394, %v460
      %v493 = vadd.f32 %v395, %v461
      %v494 = vadd.f32 %v396, %v462
      %v495 = vadd.f32 %v397, %v463
      %v496 = vadd.f32 %v398, %v464
      %v497 = vadd.f32 %v399, %v465
      %v498 = vadd.f32 %v400, %v466
      %v499 = vadd.f32 %v401, %v467
      %v500 = vadd.f32 %v402, %v468
      %v501 = vadd.f32 %v403, %v469
      %v502 = vadd.f32 %v404, %v470
      %v503 = vadd.f32 %v405, %v471
      %v504 = vadd.f32 %v406, %v472
      %v505 = vadd.f32 %v407, %v473
      %v506 = vadd.f32 %v408, %v474
      %v507 = vadd.f32 %v409, %v475
      %v508 = vadd.f32 %v410, %v476
      %v509 = vadd.f32 %v411, %v477
      %v510 = vadd.f32 %v412, %v478
      %v511 = vadd.f32 %v413, %v479
      %v512 = vadd.f32 %v414, %v480
      %v513 = vadd.f32 %v415, %v481
      %v514 = vadd.f32 %v416, %v482
      %s515 = scalar_lea.vmem %s297, 48
      %v516 = vld [vmem:[%s515] sm:$0xff]
      %v517 = vld [vmem:[%s515 + $0x8] sm:$0xff]
      %v518 = vld [vmem:[%s515 + $0x18] sm:$0xff]
      %v519 = vld [vmem:[%s515 + $0x20] sm:$0xff]
      %v520 = vld [vmem:[%s515 + $0x30] sm:$0xff]
      %v521 = vld [vmem:[%s515 + $0x38] sm:$0xff]
      %v522 = vld [vmem:[%s515 + $0x48] sm:$0xff]
      %v523 = vld [vmem:[%s515 + $0x50] sm:$0xff]
      %v524 = vld [vmem:[%s515 + $0x60] sm:$0xff]
      %v525 = vld [vmem:[%s515 + $0x68] sm:$0xff]
      %v526 = vld [vmem:[%s515 + $0x78] sm:$0xff]
      %v527 = vld [vmem:[%s515 + $0x80] sm:$0xff]
      %v528 = vld [vmem:[%s515 + $0x90] sm:$0xff]
      %v529 = vld [vmem:[%s515 + $0x98] sm:$0xff]
      %v530 = vld [vmem:[%s515 + $0xa8] sm:$0xff]
      %v531 = vld [vmem:[%s515 + $0xb0] sm:$0xff]
      %v532 = vld [vmem:[%s515 + $0xc0] sm:$0xff]
      %v533 = vld [vmem:[%s515 + $0xc8] sm:$0xff]
      %v534 = vld [vmem:[%s515 + $0xd8] sm:$0xff]
      %v535 = vld [vmem:[%s515 + $0xe0] sm:$0xff]
      %v536 = vld [vmem:[%s515 + $0xf0] sm:$0xff]
      %v537 = vld [vmem:[%s515 + $0xf8] sm:$0xff]
      %v538 = vld [vmem:[%s515 + $0x108] sm:$0xff]
      %v539 = vld [vmem:[%s515 + $0x110] sm:$0xff]
      %v540 = vld [vmem:[%s515 + $0x120] sm:$0xff]
      %v541 = vld [vmem:[%s515 + $0x128] sm:$0xff]
      %v542 = vld [vmem:[%s515 + $0x138] sm:$0xff]
      %v543 = vld [vmem:[%s515 + $0x140] sm:$0xff]
      %v544 = vld [vmem:[%s515 + $0x150] sm:$0xff]
      %v545 = vld [vmem:[%s515 + $0x158] sm:$0xff]
      %v546 = vld [vmem:[%s515 + $0x168] sm:$0xff]
      %v547 = vld [vmem:[%s515 + $0x170] sm:$0xff]
      %v548 = vperm.slane %v312, 0
      %v549 = vmul.f32 %v516, %v548
      %v550 = vmul.f32 %v517, %v548
      %v551 = vmul.f32 %v518, %v548
      %v552 = vmul.f32 %v519, %v548
      %v553 = vmul.f32 %v520, %v548
      %v554 = vmul.f32 %v521, %v548
      %v555 = vmul.f32 %v522, %v548
      %v556 = vmul.f32 %v523, %v548
      %v557 = vmul.f32 %v524, %v548
      %v558 = vmul.f32 %v525, %v548
      %v559 = vmul.f32 %v526, %v548
      %v560 = vmul.f32 %v527, %v548
      %v561 = vmul.f32 %v528, %v548
      %v562 = vmul.f32 %v529, %v548
      %v563 = vmul.f32 %v530, %v548
      %v564 = vmul.f32 %v531, %v548
      %v565 = vmul.f32 %v532, %v548
      %v566 = vmul.f32 %v533, %v548
      %v567 = vmul.f32 %v534, %v548
      %v568 = vmul.f32 %v535, %v548
      %v569 = vmul.f32 %v536, %v548
      %v570 = vmul.f32 %v537, %v548
      %v571 = vmul.f32 %v538, %v548
      %v572 = vmul.f32 %v539, %v548
      %v573 = vmul.f32 %v540, %v548
      %v574 = vmul.f32 %v541, %v548
      %v575 = vmul.f32 %v542, %v548
      %v576 = vmul.f32 %v543, %v548
      %v577 = vmul.f32 %v544, %v548
      %v578 = vmul.f32 %v545, %v548
      %v579 = vmul.f32 %v546, %v548
      %v580 = vmul.f32 %v547, %v548
      %v581 = vadd.f32 %v483, %v549
      %v582 = vadd.f32 %v484, %v550
      %v583 = vadd.f32 %v485, %v551
      %v584 = vadd.f32 %v486, %v552
      %v585 = vadd.f32 %v487, %v553
      %v586 = vadd.f32 %v488, %v554
      %v587 = vadd.f32 %v489, %v555
      %v588 = vadd.f32 %v490, %v556
      %v589 = vadd.f32 %v491, %v557
      %v590 = vadd.f32 %v492, %v558
      %v591 = vadd.f32 %v493, %v559
      %v592 = vadd.f32 %v494, %v560
      %v593 = vadd.f32 %v495, %v561
      %v594 = vadd.f32 %v496, %v562
      %v595 = vadd.f32 %v497, %v563
      %v596 = vadd.f32 %v498, %v564
      %v597 = vadd.f32 %v499, %v565
      %v598 = vadd.f32 %v500, %v566
      %v599 = vadd.f32 %v501, %v567
      %v600 = vadd.f32 %v502, %v568
      %v601 = vadd.f32 %v503, %v569
      %v602 = vadd.f32 %v504, %v570
      %v603 = vadd.f32 %v505, %v571
      %v604 = vadd.f32 %v506, %v572
      %v605 = vadd.f32 %v507, %v573
      %v606 = vadd.f32 %v508, %v574
      %v607 = vadd.f32 %v509, %v575
      %v608 = vadd.f32 %v510, %v576
      %v609 = vadd.f32 %v511, %v577
      %v610 = vadd.f32 %v512, %v578
      %v611 = vadd.f32 %v513, %v579
      %v612 = vadd.f32 %v514, %v580
      %s613 = scalar_lea.vmem %s297, 72
      %v614 = vld [vmem:[%s613] sm:$0xff]
      %v615 = vld [vmem:[%s613 + $0x8] sm:$0xff]
      %v616 = vld [vmem:[%s613 + $0x18] sm:$0xff]
      %v617 = vld [vmem:[%s613 + $0x20] sm:$0xff]
      %v618 = vld [vmem:[%s613 + $0x30] sm:$0xff]
      %v619 = vld [vmem:[%s613 + $0x38] sm:$0xff]
      %v620 = vld [vmem:[%s613 + $0x48] sm:$0xff]
      %v621 = vld [vmem:[%s613 + $0x50] sm:$0xff]
      %v622 = vld [vmem:[%s613 + $0x60] sm:$0xff]
      %v623 = vld [vmem:[%s613 + $0x68] sm:$0xff]
      %v624 = vld [vmem:[%s613 + $0x78] sm:$0xff]
      %v625 = vld [vmem:[%s613 + $0x80] sm:$0xff]
      %v626 = vld [vmem:[%s613 + $0x90] sm:$0xff]
      %v627 = vld [vmem:[%s613 + $0x98] sm:$0xff]
      %v628 = vld [vmem:[%s613 + $0xa8] sm:$0xff]
      %v629 = vld [vmem:[%s613 + $0xb0] sm:$0xff]
      %v630 = vld [vmem:[%s613 + $0xc0] sm:$0xff]
      %v631 = vld [vmem:[%s613 + $0xc8] sm:$0xff]
      %v632 = vld [vmem:[%s613 + $0xd8] sm:$0xff]
      %v633 = vld [vmem:[%s613 + $0xe0] sm:$0xff]
      %v634 = vld [vmem:[%s613 + $0xf0] sm:$0xff]
      %v635 = vld [vmem:[%s613 + $0xf8] sm:$0xff]
      %v636 = vld [vmem:[%s613 + $0x108] sm:$0xff]
      %v637 = vld [vmem:[%s613 + $0x110] sm:$0xff]
      %v638 = vld [vmem:[%s613 + $0x120] sm:$0xff]
      %v639 = vld [vmem:[%s613 + $0x128] sm:$0xff]
      %v640 = vld [vmem:[%s613 + $0x138] sm:$0xff]
      %v641 = vld [vmem:[%s613 + $0x140] sm:$0xff]
      %v642 = vld [vmem:[%s613 + $0x150] sm:$0xff]
      %v643 = vld [vmem:[%s613 + $0x158] sm:$0xff]
      %v644 = vld [vmem:[%s613 + $0x168] sm:$0xff]
      %v645 = vld [vmem:[%s613 + $0x170] sm:$0xff]
      %v646 = vperm.slane %v313, 0
      %v647 = vmul.f32 %v614, %v646
      %v648 = vmul.f32 %v615, %v646
      %v649 = vmul.f32 %v616, %v646
      %v650 = vmul.f32 %v617, %v646
      %v651 = vmul.f32 %v618, %v646
      %v652 = vmul.f32 %v619, %v646
      %v653 = vmul.f32 %v620, %v646
      %v654 = vmul.f32 %v621, %v646
      %v655 = vmul.f32 %v622, %v646
      %v656 = vmul.f32 %v623, %v646
      %v657 = vmul.f32 %v624, %v646
      %v658 = vmul.f32 %v625, %v646
      %v659 = vmul.f32 %v626, %v646
      %v660 = vmul.f32 %v627, %v646
      %v661 = vmul.f32 %v628, %v646
      %v662 = vmul.f32 %v629, %v646
      %v663 = vmul.f32 %v630, %v646
      %v664 = vmul.f32 %v631, %v646
      %v665 = vmul.f32 %v632, %v646
      %v666 = vmul.f32 %v633, %v646
      %v667 = vmul.f32 %v634, %v646
      %v668 = vmul.f32 %v635, %v646
      %v669 = vmul.f32 %v636, %v646
      %v670 = vmul.f32 %v637, %v646
      %v671 = vmul.f32 %v638, %v646
      %v672 = vmul.f32 %v639, %v646
      %v673 = vmul.f32 %v640, %v646
      %v674 = vmul.f32 %v641, %v646
      %v675 = vmul.f32 %v642, %v646
      %v676 = vmul.f32 %v643, %v646
      %v677 = vmul.f32 %v644, %v646
      %v678 = vmul.f32 %v645, %v646
      %v679 = vadd.f32 %v581, %v647
      %v680 = vadd.f32 %v582, %v648
      %v681 = vadd.f32 %v583, %v649
      %v682 = vadd.f32 %v584, %v650
      %v683 = vadd.f32 %v585, %v651
      %v684 = vadd.f32 %v586, %v652
      %v685 = vadd.f32 %v587, %v653
      %v686 = vadd.f32 %v588, %v654
      %v687 = vadd.f32 %v589, %v655
      %v688 = vadd.f32 %v590, %v656
      %v689 = vadd.f32 %v591, %v657
      %v690 = vadd.f32 %v592, %v658
      %v691 = vadd.f32 %v593, %v659
      %v692 = vadd.f32 %v594, %v660
      %v693 = vadd.f32 %v595, %v661
      %v694 = vadd.f32 %v596, %v662
      %v695 = vadd.f32 %v597, %v663
      %v696 = vadd.f32 %v598, %v664
      %v697 = vadd.f32 %v599, %v665
      %v698 = vadd.f32 %v600, %v666
      %v699 = vadd.f32 %v601, %v667
      %v700 = vadd.f32 %v602, %v668
      %v701 = vadd.f32 %v603, %v669
      %v702 = vadd.f32 %v604, %v670
      %v703 = vadd.f32 %v605, %v671
      %v704 = vadd.f32 %v606, %v672
      %v705 = vadd.f32 %v607, %v673
      %v706 = vadd.f32 %v608, %v674
      %v707 = vadd.f32 %v609, %v675
      %v708 = vadd.f32 %v610, %v676
      %v709 = vadd.f32 %v611, %v677
      %v710 = vadd.f32 %v612, %v678
      %s711 = scalar_lea.vmem %s297, 96
      %v712 = vld [vmem:[%s711] sm:$0xff]
      %v713 = vld [vmem:[%s711 + $0x8] sm:$0xff]
      %v714 = vld [vmem:[%s711 + $0x18] sm:$0xff]
      %v715 = vld [vmem:[%s711 + $0x20] sm:$0xff]
      %v716 = vld [vmem:[%s711 + $0x30] sm:$0xff]
      %v717 = vld [vmem:[%s711 + $0x38] sm:$0xff]
      %v718 = vld [vmem:[%s711 + $0x48] sm:$0xff]
      %v719 = vld [vmem:[%s711 + $0x50] sm:$0xff]
      %v720 = vld [vmem:[%s711 + $0x60] sm:$0xff]
      %v721 = vld [vmem:[%s711 + $0x68] sm:$0xff]
      %v722 = vld [vmem:[%s711 + $0x78] sm:$0xff]
      %v723 = vld [vmem:[%s711 + $0x80] sm:$0xff]
      %v724 = vld [vmem:[%s711 + $0x90] sm:$0xff]
      %v725 = vld [vmem:[%s711 + $0x98] sm:$0xff]
      %v726 = vld [vmem:[%s711 + $0xa8] sm:$0xff]
      %v727 = vld [vmem:[%s711 + $0xb0] sm:$0xff]
      %v728 = vld [vmem:[%s711 + $0xc0] sm:$0xff]
      %v729 = vld [vmem:[%s711 + $0xc8] sm:$0xff]
      %v730 = vld [vmem:[%s711 + $0xd8] sm:$0xff]
      %v731 = vld [vmem:[%s711 + $0xe0] sm:$0xff]
      %v732 = vld [vmem:[%s711 + $0xf0] sm:$0xff]
      %v733 = vld [vmem:[%s711 + $0xf8] sm:$0xff]
      %v734 = vld [vmem:[%s711 + $0x108] sm:$0xff]
      %v735 = vld [vmem:[%s711 + $0x110] sm:$0xff]
      %v736 = vld [vmem:[%s711 + $0x120] sm:$0xff]
      %v737 = vld [vmem:[%s711 + $0x128] sm:$0xff]
      %v738 = vld [vmem:[%s711 + $0x138] sm:$0xff]
      %v739 = vld [vmem:[%s711 + $0x140] sm:$0xff]
      %v740 = vld [vmem:[%s711 + $0x150] sm:$0xff]
      %v741 = vld [vmem:[%s711 + $0x158] sm:$0xff]
      %v742 = vld [vmem:[%s711 + $0x168] sm:$0xff]
      %v743 = vld [vmem:[%s711 + $0x170] sm:$0xff]
      %v744 = vperm.slane %v314, 0
      %v745 = vmul.f32 %v712, %v744
      %v746 = vmul.f32 %v713, %v744
      %v747 = vmul.f32 %v714, %v744
      %v748 = vmul.f32 %v715, %v744
      %v749 = vmul.f32 %v716, %v744
      %v750 = vmul.f32 %v717, %v744
      %v751 = vmul.f32 %v718, %v744
      %v752 = vmul.f32 %v719, %v744
      %v753 = vmul.f32 %v720, %v744
      %v754 = vmul.f32 %v721, %v744
      %v755 = vmul.f32 %v722, %v744
      %v756 = vmul.f32 %v723, %v744
      %v757 = vmul.f32 %v724, %v744
      %v758 = vmul.f32 %v725, %v744
      %v759 = vmul.f32 %v726, %v744
      %v760 = vmul.f32 %v727, %v744
      %v761 = vmul.f32 %v728, %v744
      %v762 = vmul.f32 %v729, %v744
      %v763 = vmul.f32 %v730, %v744
      %v764 = vmul.f32 %v731, %v744
      %v765 = vmul.f32 %v732, %v744
      %v766 = vmul.f32 %v733, %v744
      %v767 = vmul.f32 %v734, %v744
      %v768 = vmul.f32 %v735, %v744
      %v769 = vmul.f32 %v736, %v744
      %v770 = vmul.f32 %v737, %v744
      %v771 = vmul.f32 %v738, %v744
      %v772 = vmul.f32 %v739, %v744
      %v773 = vmul.f32 %v740, %v744
      %v774 = vmul.f32 %v741, %v744
      %v775 = vmul.f32 %v742, %v744
      %v776 = vmul.f32 %v743, %v744
      %v777 = vadd.f32 %v679, %v745
      %v778 = vadd.f32 %v680, %v746
      %v779 = vadd.f32 %v681, %v747
      %v780 = vadd.f32 %v682, %v748
      %v781 = vadd.f32 %v683, %v749
      %v782 = vadd.f32 %v684, %v750
      %v783 = vadd.f32 %v685, %v751
      %v784 = vadd.f32 %v686, %v752
      %v785 = vadd.f32 %v687, %v753
      %v786 = vadd.f32 %v688, %v754
      %v787 = vadd.f32 %v689, %v755
      %v788 = vadd.f32 %v690, %v756
      %v789 = vadd.f32 %v691, %v757
      %v790 = vadd.f32 %v692, %v758
      %v791 = vadd.f32 %v693, %v759
      %v792 = vadd.f32 %v694, %v760
      %v793 = vadd.f32 %v695, %v761
      %v794 = vadd.f32 %v696, %v762
      %v795 = vadd.f32 %v697, %v763
      %v796 = vadd.f32 %v698, %v764
      %v797 = vadd.f32 %v699, %v765
      %v798 = vadd.f32 %v700, %v766
      %v799 = vadd.f32 %v701, %v767
      %v800 = vadd.f32 %v702, %v768
      %v801 = vadd.f32 %v703, %v769
      %v802 = vadd.f32 %v704, %v770
      %v803 = vadd.f32 %v705, %v771
      %v804 = vadd.f32 %v706, %v772
      %v805 = vadd.f32 %v707, %v773
      %v806 = vadd.f32 %v708, %v774
      %v807 = vadd.f32 %v709, %v775
      %v808 = vadd.f32 %v710, %v776
      %s809 = scalar_lea.vmem %s297, 120
      %v810 = vld [vmem:[%s809] sm:$0xff]
      %v811 = vld [vmem:[%s809 + $0x8] sm:$0xff]
      %v812 = vld [vmem:[%s809 + $0x18] sm:$0xff]
      %v813 = vld [vmem:[%s809 + $0x20] sm:$0xff]
      %v814 = vld [vmem:[%s809 + $0x30] sm:$0xff]
      %v815 = vld [vmem:[%s809 + $0x38] sm:$0xff]
      %v816 = vld [vmem:[%s809 + $0x48] sm:$0xff]
      %v817 = vld [vmem:[%s809 + $0x50] sm:$0xff]
      %v818 = vld [vmem:[%s809 + $0x60] sm:$0xff]
      %v819 = vld [vmem:[%s809 + $0x68] sm:$0xff]
      %v820 = vld [vmem:[%s809 + $0x78] sm:$0xff]
      %v821 = vld [vmem:[%s809 + $0x80] sm:$0xff]
      %v822 = vld [vmem:[%s809 + $0x90] sm:$0xff]
      %v823 = vld [vmem:[%s809 + $0x98] sm:$0xff]
      %v824 = vld [vmem:[%s809 + $0xa8] sm:$0xff]
      %v825 = vld [vmem:[%s809 + $0xb0] sm:$0xff]
      %v826 = vld [vmem:[%s809 + $0xc0] sm:$0xff]
      %v827 = vld [vmem:[%s809 + $0xc8] sm:$0xff]
      %v828 = vld [vmem:[%s809 + $0xd8] sm:$0xff]
      %v829 = vld [vmem:[%s809 + $0xe0] sm:$0xff]
      %v830 = vld [vmem:[%s809 + $0xf0] sm:$0xff]
      %v831 = vld [vmem:[%s809 + $0xf8] sm:$0xff]
      %v832 = vld [vmem:[%s809 + $0x108] sm:$0xff]
      %v833 = vld [vmem:[%s809 + $0x110] sm:$0xff]
      %v834 = vld [vmem:[%s809 + $0x120] sm:$0xff]
      %v835 = vld [vmem:[%s809 + $0x128] sm:$0xff]
      %v836 = vld [vmem:[%s809 + $0x138] sm:$0xff]
      %v837 = vld [vmem:[%s809 + $0x140] sm:$0xff]
      %v838 = vld [vmem:[%s809 + $0x150] sm:$0xff]
      %v839 = vld [vmem:[%s809 + $0x158] sm:$0xff]
      %v840 = vld [vmem:[%s809 + $0x168] sm:$0xff]
      %v841 = vld [vmem:[%s809 + $0x170] sm:$0xff]
      %v842 = vperm.slane %v315, 0
      %v843 = vmul.f32 %v810, %v842
      %v844 = vmul.f32 %v811, %v842
      %v845 = vmul.f32 %v812, %v842
      %v846 = vmul.f32 %v813, %v842
      %v847 = vmul.f32 %v814, %v842
      %v848 = vmul.f32 %v815, %v842
      %v849 = vmul.f32 %v816, %v842
      %v850 = vmul.f32 %v817, %v842
      %v851 = vmul.f32 %v818, %v842
      %v852 = vmul.f32 %v819, %v842
      %v853 = vmul.f32 %v820, %v842
      %v854 = vmul.f32 %v821, %v842
      %v855 = vmul.f32 %v822, %v842
      %v856 = vmul.f32 %v823, %v842
      %v857 = vmul.f32 %v824, %v842
      %v858 = vmul.f32 %v825, %v842
      %v859 = vmul.f32 %v826, %v842
      %v860 = vmul.f32 %v827, %v842
      %v861 = vmul.f32 %v828, %v842
      %v862 = vmul.f32 %v829, %v842
      %v863 = vmul.f32 %v830, %v842
      %v864 = vmul.f32 %v831, %v842
      %v865 = vmul.f32 %v832, %v842
      %v866 = vmul.f32 %v833, %v842
      %v867 = vmul.f32 %v834, %v842
      %v868 = vmul.f32 %v835, %v842
      %v869 = vmul.f32 %v836, %v842
      %v870 = vmul.f32 %v837, %v842
      %v871 = vmul.f32 %v838, %v842
      %v872 = vmul.f32 %v839, %v842
      %v873 = vmul.f32 %v840, %v842
      %v874 = vmul.f32 %v841, %v842
      %v875 = vadd.f32 %v777, %v843
      %v876 = vadd.f32 %v778, %v844
      %v877 = vadd.f32 %v779, %v845
      %v878 = vadd.f32 %v780, %v846
      %v879 = vadd.f32 %v781, %v847
      %v880 = vadd.f32 %v782, %v848
      %v881 = vadd.f32 %v783, %v849
      %v882 = vadd.f32 %v784, %v850
      %v883 = vadd.f32 %v785, %v851
      %v884 = vadd.f32 %v786, %v852
      %v885 = vadd.f32 %v787, %v853
      %v886 = vadd.f32 %v788, %v854
      %v887 = vadd.f32 %v789, %v855
      %v888 = vadd.f32 %v790, %v856
      %v889 = vadd.f32 %v791, %v857
      %v890 = vadd.f32 %v792, %v858
      %v891 = vadd.f32 %v793, %v859
      %v892 = vadd.f32 %v794, %v860
      %v893 = vadd.f32 %v795, %v861
      %v894 = vadd.f32 %v796, %v862
      %v895 = vadd.f32 %v797, %v863
      %v896 = vadd.f32 %v798, %v864
      %v897 = vadd.f32 %v799, %v865
      %v898 = vadd.f32 %v800, %v866
      %v899 = vadd.f32 %v801, %v867
      %v900 = vadd.f32 %v802, %v868
      %v901 = vadd.f32 %v803, %v869
      %v902 = vadd.f32 %v804, %v870
      %v903 = vadd.f32 %v805, %v871
      %v904 = vadd.f32 %v806, %v872
      %v905 = vadd.f32 %v807, %v873
      %v906 = vadd.f32 %v808, %v874
      %s907 = scalar_lea.vmem %s297, 144
      %v908 = vld [vmem:[%s907] sm:$0xff]
      %v909 = vld [vmem:[%s907 + $0x8] sm:$0xff]
      %v910 = vld [vmem:[%s907 + $0x18] sm:$0xff]
      %v911 = vld [vmem:[%s907 + $0x20] sm:$0xff]
      %v912 = vld [vmem:[%s907 + $0x30] sm:$0xff]
      %v913 = vld [vmem:[%s907 + $0x38] sm:$0xff]
      %v914 = vld [vmem:[%s907 + $0x48] sm:$0xff]
      %v915 = vld [vmem:[%s907 + $0x50] sm:$0xff]
      %v916 = vld [vmem:[%s907 + $0x60] sm:$0xff]
      %v917 = vld [vmem:[%s907 + $0x68] sm:$0xff]
      %v918 = vld [vmem:[%s907 + $0x78] sm:$0xff]
      %v919 = vld [vmem:[%s907 + $0x80] sm:$0xff]
      %v920 = vld [vmem:[%s907 + $0x90] sm:$0xff]
      %v921 = vld [vmem:[%s907 + $0x98] sm:$0xff]
      %v922 = vld [vmem:[%s907 + $0xa8] sm:$0xff]
      %v923 = vld [vmem:[%s907 + $0xb0] sm:$0xff]
      %v924 = vld [vmem:[%s907 + $0xc0] sm:$0xff]
      %v925 = vld [vmem:[%s907 + $0xc8] sm:$0xff]
      %v926 = vld [vmem:[%s907 + $0xd8] sm:$0xff]
      %v927 = vld [vmem:[%s907 + $0xe0] sm:$0xff]
      %v928 = vld [vmem:[%s907 + $0xf0] sm:$0xff]
      %v929 = vld [vmem:[%s907 + $0xf8] sm:$0xff]
      %v930 = vld [vmem:[%s907 + $0x108] sm:$0xff]
      %v931 = vld [vmem:[%s907 + $0x110] sm:$0xff]
      %v932 = vld [vmem:[%s907 + $0x120] sm:$0xff]
      %v933 = vld [vmem:[%s907 + $0x128] sm:$0xff]
      %v934 = vld [vmem:[%s907 + $0x138] sm:$0xff]
      %v935 = vld [vmem:[%s907 + $0x140] sm:$0xff]
      %v936 = vld [vmem:[%s907 + $0x150] sm:$0xff]
      %v937 = vld [vmem:[%s907 + $0x158] sm:$0xff]
      %v938 = vld [vmem:[%s907 + $0x168] sm:$0xff]
      %v939 = vld [vmem:[%s907 + $0x170] sm:$0xff]
      %v940 = vperm.slane %v316, 0
      %v941 = vmul.f32 %v908, %v940
      %v942 = vmul.f32 %v909, %v940
      %v943 = vmul.f32 %v910, %v940
      %v944 = vmul.f32 %v911, %v940
      %v945 = vmul.f32 %v912, %v940
      %v946 = vmul.f32 %v913, %v940
      %v947 = vmul.f32 %v914, %v940
      %v948 = vmul.f32 %v915, %v940
      %v949 = vmul.f32 %v916, %v940
      %v950 = vmul.f32 %v917, %v940
      %v951 = vmul.f32 %v918, %v940
      %v952 = vmul.f32 %v919, %v940
      %v953 = vmul.f32 %v920, %v940
      %v954 = vmul.f32 %v921, %v940
      %v955 = vmul.f32 %v922, %v940
      %v956 = vmul.f32 %v923, %v940
      %v957 = vmul.f32 %v924, %v940
      %v958 = vmul.f32 %v925, %v940
      %v959 = vmul.f32 %v926, %v940
      %v960 = vmul.f32 %v927, %v940
      %v961 = vmul.f32 %v928, %v940
      %v962 = vmul.f32 %v929, %v940
      %v963 = vmul.f32 %v930, %v940
      %v964 = vmul.f32 %v931, %v940
      %v965 = vmul.f32 %v932, %v940
      %v966 = vmul.f32 %v933, %v940
      %v967 = vmul.f32 %v934, %v940
      %v968 = vmul.f32 %v935, %v940
      %v969 = vmul.f32 %v936, %v940
      %v970 = vmul.f32 %v937, %v940
      %v971 = vmul.f32 %v938, %v940
      %v972 = vmul.f32 %v939, %v940
      %v973 = vadd.f32 %v875, %v941
      %v974 = vadd.f32 %v876, %v942
      %v975 = vadd.f32 %v877, %v943
      %v976 = vadd.f32 %v878, %v944
      %v977 = vadd.f32 %v879, %v945
      %v978 = vadd.f32 %v880, %v946
      %v979 = vadd.f32 %v881, %v947
      %v980 = vadd.f32 %v882, %v948
      %v981 = vadd.f32 %v883, %v949
      %v982 = vadd.f32 %v884, %v950
      %v983 = vadd.f32 %v885, %v951
      %v984 = vadd.f32 %v886, %v952
      %v985 = vadd.f32 %v887, %v953
      %v986 = vadd.f32 %v888, %v954
      %v987 = vadd.f32 %v889, %v955
      %v988 = vadd.f32 %v890, %v956
      %v989 = vadd.f32 %v891, %v957
      %v990 = vadd.f32 %v892, %v958
      %v991 = vadd.f32 %v893, %v959
      %v992 = vadd.f32 %v894, %v960
      %v993 = vadd.f32 %v895, %v961
      %v994 = vadd.f32 %v896, %v962
      %v995 = vadd.f32 %v897, %v963
      %v996 = vadd.f32 %v898, %v964
      %v997 = vadd.f32 %v899, %v965
      %v998 = vadd.f32 %v900, %v966
      %v999 = vadd.f32 %v901, %v967
      %v1000 = vadd.f32 %v902, %v968
      %v1001 = vadd.f32 %v903, %v969
      %v1002 = vadd.f32 %v904, %v970
      %v1003 = vadd.f32 %v905, %v971
      %v1004 = vadd.f32 %v906, %v972
      %v1005 = vld [vmem:[%s297 + $0x1] sm:$0xff]
      %v1006 = vld [vmem:[%s297 + $0x9] sm:$0xff]
      %v1007 = vld [vmem:[%s297 + $0x19] sm:$0xff]
      %v1008 = vld [vmem:[%s297 + $0x21] sm:$0xff]
      %v1009 = vld [vmem:[%s297 + $0x31] sm:$0xff]
      %v1010 = vld [vmem:[%s297 + $0x39] sm:$0xff]
      %v1011 = vld [vmem:[%s297 + $0x49] sm:$0xff]
      %v1012 = vld [vmem:[%s297 + $0x51] sm:$0xff]
      %v1013 = vld [vmem:[%s297 + $0x61] sm:$0xff]
      %v1014 = vld [vmem:[%s297 + $0x69] sm:$0xff]
      %v1015 = vld [vmem:[%s297 + $0x79] sm:$0xff]
      %v1016 = vld [vmem:[%s297 + $0x81] sm:$0xff]
      %v1017 = vld [vmem:[%s297 + $0x91] sm:$0xff]
      %v1018 = vld [vmem:[%s297 + $0x99] sm:$0xff]
      %v1019 = vld [vmem:[%s297 + $0xa9] sm:$0xff]
      %v1020 = vld [vmem:[%s297 + $0xb1] sm:$0xff]
      %v1021 = vld [vmem:[%s297 + $0xc1] sm:$0xff]
      %v1022 = vld [vmem:[%s297 + $0xc9] sm:$0xff]
      %v1023 = vld [vmem:[%s297 + $0xd9] sm:$0xff]
      %v1024 = vld [vmem:[%s297 + $0xe1] sm:$0xff]
      %v1025 = vld [vmem:[%s297 + $0xf1] sm:$0xff]
      %v1026 = vld [vmem:[%s297 + $0xf9] sm:$0xff]
      %v1027 = vld [vmem:[%s297 + $0x109] sm:$0xff]
      %v1028 = vld [vmem:[%s297 + $0x111] sm:$0xff]
      %v1029 = vld [vmem:[%s297 + $0x121] sm:$0xff]
      %v1030 = vld [vmem:[%s297 + $0x129] sm:$0xff]
      %v1031 = vld [vmem:[%s297 + $0x139] sm:$0xff]
      %v1032 = vld [vmem:[%s297 + $0x141] sm:$0xff]
      %v1033 = vld [vmem:[%s297 + $0x151] sm:$0xff]
      %v1034 = vld [vmem:[%s297 + $0x159] sm:$0xff]
      %v1035 = vld [vmem:[%s297 + $0x169] sm:$0xff]
      %v1036 = vld [vmem:[%s297 + $0x171] sm:$0xff]
      %v1037 = vperm.slane %v310, 1
      %v1038 = vmul.f32 %v1005, %v1037
      %v1039 = vmul.f32 %v1006, %v1037
      %v1040 = vmul.f32 %v1007, %v1037
      %v1041 = vmul.f32 %v1008, %v1037
      %v1042 = vmul.f32 %v1009, %v1037
      %v1043 = vmul.f32 %v1010, %v1037
      %v1044 = vmul.f32 %v1011, %v1037
      %v1045 = vmul.f32 %v1012, %v1037
      %v1046 = vmul.f32 %v1013, %v1037
      %v1047 = vmul.f32 %v1014, %v1037
      %v1048 = vmul.f32 %v1015, %v1037
      %v1049 = vmul.f32 %v1016, %v1037
      %v1050 = vmul.f32 %v1017, %v1037
      %v1051 = vmul.f32 %v1018, %v1037
      %v1052 = vmul.f32 %v1019, %v1037
      %v1053 = vmul.f32 %v1020, %v1037
      %v1054 = vmul.f32 %v1021, %v1037
      %v1055 = vmul.f32 %v1022, %v1037
      %v1056 = vmul.f32 %v1023, %v1037
      %v1057 = vmul.f32 %v1024, %v1037
      %v1058 = vmul.f32 %v1025, %v1037
      %v1059 = vmul.f32 %v1026, %v1037
      %v1060 = vmul.f32 %v1027, %v1037
      %v1061 = vmul.f32 %v1028, %v1037
      %v1062 = vmul.f32 %v1029, %v1037
      %v1063 = vmul.f32 %v1030, %v1037
      %v1064 = vmul.f32 %v1031, %v1037
      %v1065 = vmul.f32 %v1032, %v1037
      %v1066 = vmul.f32 %v1033, %v1037
      %v1067 = vmul.f32 %v1034, %v1037
      %v1068 = vmul.f32 %v1035, %v1037
      %v1069 = vmul.f32 %v1036, %v1037
      %v1070 = vadd.f32 %v973, %v1038
      %v1071 = vadd.f32 %v974, %v1039
      %v1072 = vadd.f32 %v975, %v1040
      %v1073 = vadd.f32 %v976, %v1041
      %v1074 = vadd.f32 %v977, %v1042
      %v1075 = vadd.f32 %v978, %v1043
      %v1076 = vadd.f32 %v979, %v1044
      %v1077 = vadd.f32 %v980, %v1045
      %v1078 = vadd.f32 %v981, %v1046
      %v1079 = vadd.f32 %v982, %v1047
      %v1080 = vadd.f32 %v983, %v1048
      %v1081 = vadd.f32 %v984, %v1049
      %v1082 = vadd.f32 %v985, %v1050
      %v1083 = vadd.f32 %v986, %v1051
      %v1084 = vadd.f32 %v987, %v1052
      %v1085 = vadd.f32 %v988, %v1053
      %v1086 = vadd.f32 %v989, %v1054
      %v1087 = vadd.f32 %v990, %v1055
      %v1088 = vadd.f32 %v991, %v1056
      %v1089 = vadd.f32 %v992, %v1057
      %v1090 = vadd.f32 %v993, %v1058
      %v1091 = vadd.f32 %v994, %v1059
      %v1092 = vadd.f32 %v995, %v1060
      %v1093 = vadd.f32 %v996, %v1061
      %v1094 = vadd.f32 %v997, %v1062
      %v1095 = vadd.f32 %v998, %v1063
      %v1096 = vadd.f32 %v999, %v1064
      %v1097 = vadd.f32 %v1000, %v1065
      %v1098 = vadd.f32 %v1001, %v1066
      %v1099 = vadd.f32 %v1002, %v1067
      %v1100 = vadd.f32 %v1003, %v1068
      %v1101 = vadd.f32 %v1004, %v1069
      %v1102 = vld [vmem:[%s417 + $0x1] sm:$0xff]
      %v1103 = vld [vmem:[%s417 + $0x9] sm:$0xff]
      %v1104 = vld [vmem:[%s417 + $0x19] sm:$0xff]
      %v1105 = vld [vmem:[%s417 + $0x21] sm:$0xff]
      %v1106 = vld [vmem:[%s417 + $0x31] sm:$0xff]
      %v1107 = vld [vmem:[%s417 + $0x39] sm:$0xff]
      %v1108 = vld [vmem:[%s417 + $0x49] sm:$0xff]
      %v1109 = vld [vmem:[%s417 + $0x51] sm:$0xff]
      %v1110 = vld [vmem:[%s417 + $0x61] sm:$0xff]
      %v1111 = vld [vmem:[%s417 + $0x69] sm:$0xff]
      %v1112 = vld [vmem:[%s417 + $0x79] sm:$0xff]
      %v1113 = vld [vmem:[%s417 + $0x81] sm:$0xff]
      %v1114 = vld [vmem:[%s417 + $0x91] sm:$0xff]
      %v1115 = vld [vmem:[%s417 + $0x99] sm:$0xff]
      %v1116 = vld [vmem:[%s417 + $0xa9] sm:$0xff]
      %v1117 = vld [vmem:[%s417 + $0xb1] sm:$0xff]
      %v1118 = vld [vmem:[%s417 + $0xc1] sm:$0xff]
      %v1119 = vld [vmem:[%s417 + $0xc9] sm:$0xff]
      %v1120 = vld [vmem:[%s417 + $0xd9] sm:$0xff]
      %v1121 = vld [vmem:[%s417 + $0xe1] sm:$0xff]
      %v1122 = vld [vmem:[%s417 + $0xf1] sm:$0xff]
      %v1123 = vld [vmem:[%s417 + $0xf9] sm:$0xff]
      %v1124 = vld [vmem:[%s417 + $0x109] sm:$0xff]
      %v1125 = vld [vmem:[%s417 + $0x111] sm:$0xff]
      %v1126 = vld [vmem:[%s417 + $0x121] sm:$0xff]
      %v1127 = vld [vmem:[%s417 + $0x129] sm:$0xff]
      %v1128 = vld [vmem:[%s417 + $0x139] sm:$0xff]
      %v1129 = vld [vmem:[%s417 + $0x141] sm:$0xff]
      %v1130 = vld [vmem:[%s417 + $0x151] sm:$0xff]
      %v1131 = vld [vmem:[%s417 + $0x159] sm:$0xff]
      %v1132 = vld [vmem:[%s417 + $0x169] sm:$0xff]
      %v1133 = vld [vmem:[%s417 + $0x171] sm:$0xff]
      %v1134 = vperm.slane %v311, 1
      %v1135 = vmul.f32 %v1102, %v1134
      %v1136 = vmul.f32 %v1103, %v1134
      %v1137 = vmul.f32 %v1104, %v1134
      %v1138 = vmul.f32 %v1105, %v1134
      %v1139 = vmul.f32 %v1106, %v1134
      %v1140 = vmul.f32 %v1107, %v1134
      %v1141 = vmul.f32 %v1108, %v1134
      %v1142 = vmul.f32 %v1109, %v1134
      %v1143 = vmul.f32 %v1110, %v1134
      %v1144 = vmul.f32 %v1111, %v1134
      %v1145 = vmul.f32 %v1112, %v1134
      %v1146 = vmul.f32 %v1113, %v1134
      %v1147 = vmul.f32 %v1114, %v1134
      %v1148 = vmul.f32 %v1115, %v1134
      %v1149 = vmul.f32 %v1116, %v1134
      %v1150 = vmul.f32 %v1117, %v1134
      %v1151 = vmul.f32 %v1118, %v1134
      %v1152 = vmul.f32 %v1119, %v1134
      %v1153 = vmul.f32 %v1120, %v1134
      %v1154 = vmul.f32 %v1121, %v1134
      %v1155 = vmul.f32 %v1122, %v1134
      %v1156 = vmul.f32 %v1123, %v1134
      %v1157 = vmul.f32 %v1124, %v1134
      %v1158 = vmul.f32 %v1125, %v1134
      %v1159 = vmul.f32 %v1126, %v1134
      %v1160 = vmul.f32 %v1127, %v1134
      %v1161 = vmul.f32 %v1128, %v1134
      %v1162 = vmul.f32 %v1129, %v1134
      %v1163 = vmul.f32 %v1130, %v1134
      %v1164 = vmul.f32 %v1131, %v1134
      %v1165 = vmul.f32 %v1132, %v1134
      %v1166 = vmul.f32 %v1133, %v1134
      %v1167 = vadd.f32 %v1070, %v1135
      %v1168 = vadd.f32 %v1071, %v1136
      %v1169 = vadd.f32 %v1072, %v1137
      %v1170 = vadd.f32 %v1073, %v1138
      %v1171 = vadd.f32 %v1074, %v1139
      %v1172 = vadd.f32 %v1075, %v1140
      %v1173 = vadd.f32 %v1076, %v1141
      %v1174 = vadd.f32 %v1077, %v1142
      %v1175 = vadd.f32 %v1078, %v1143
      %v1176 = vadd.f32 %v1079, %v1144
      %v1177 = vadd.f32 %v1080, %v1145
      %v1178 = vadd.f32 %v1081, %v1146
      %v1179 = vadd.f32 %v1082, %v1147
      %v1180 = vadd.f32 %v1083, %v1148
      %v1181 = vadd.f32 %v1084, %v1149
      %v1182 = vadd.f32 %v1085, %v1150
      %v1183 = vadd.f32 %v1086, %v1151
      %v1184 = vadd.f32 %v1087, %v1152
      %v1185 = vadd.f32 %v1088, %v1153
      %v1186 = vadd.f32 %v1089, %v1154
      %v1187 = vadd.f32 %v1090, %v1155
      %v1188 = vadd.f32 %v1091, %v1156
      %v1189 = vadd.f32 %v1092, %v1157
      %v1190 = vadd.f32 %v1093, %v1158
      %v1191 = vadd.f32 %v1094, %v1159
      %v1192 = vadd.f32 %v1095, %v1160
      %v1193 = vadd.f32 %v1096, %v1161
      %v1194 = vadd.f32 %v1097, %v1162
      %v1195 = vadd.f32 %v1098, %v1163
      %v1196 = vadd.f32 %v1099, %v1164
      %v1197 = vadd.f32 %v1100, %v1165
      %v1198 = vadd.f32 %v1101, %v1166
      %v1199 = vld [vmem:[%s515 + $0x1] sm:$0xff]
      %v1200 = vld [vmem:[%s515 + $0x9] sm:$0xff]
      %v1201 = vld [vmem:[%s515 + $0x19] sm:$0xff]
      %v1202 = vld [vmem:[%s515 + $0x21] sm:$0xff]
      %v1203 = vld [vmem:[%s515 + $0x31] sm:$0xff]
      %v1204 = vld [vmem:[%s515 + $0x39] sm:$0xff]
      %v1205 = vld [vmem:[%s515 + $0x49] sm:$0xff]
      %v1206 = vld [vmem:[%s515 + $0x51] sm:$0xff]
      %v1207 = vld [vmem:[%s515 + $0x61] sm:$0xff]
      %v1208 = vld [vmem:[%s515 + $0x69] sm:$0xff]
      %v1209 = vld [vmem:[%s515 + $0x79] sm:$0xff]
      %v1210 = vld [vmem:[%s515 + $0x81] sm:$0xff]
      %v1211 = vld [vmem:[%s515 + $0x91] sm:$0xff]
      %v1212 = vld [vmem:[%s515 + $0x99] sm:$0xff]
      %v1213 = vld [vmem:[%s515 + $0xa9] sm:$0xff]
      %v1214 = vld [vmem:[%s515 + $0xb1] sm:$0xff]
      %v1215 = vld [vmem:[%s515 + $0xc1] sm:$0xff]
      %v1216 = vld [vmem:[%s515 + $0xc9] sm:$0xff]
      %v1217 = vld [vmem:[%s515 + $0xd9] sm:$0xff]
      %v1218 = vld [vmem:[%s515 + $0xe1] sm:$0xff]
      %v1219 = vld [vmem:[%s515 + $0xf1] sm:$0xff]
      %v1220 = vld [vmem:[%s515 + $0xf9] sm:$0xff]
      %v1221 = vld [vmem:[%s515 + $0x109] sm:$0xff]
      %v1222 = vld [vmem:[%s515 + $0x111] sm:$0xff]
      %v1223 = vld [vmem:[%s515 + $0x121] sm:$0xff]
      %v1224 = vld [vmem:[%s515 + $0x129] sm:$0xff]
      %v1225 = vld [vmem:[%s515 + $0x139] sm:$0xff]
      %v1226 = vld [vmem:[%s515 + $0x141] sm:$0xff]
      %v1227 = vld [vmem:[%s515 + $0x151] sm:$0xff]
      %v1228 = vld [vmem:[%s515 + $0x159] sm:$0xff]
      %v1229 = vld [vmem:[%s515 + $0x169] sm:$0xff]
      %v1230 = vld [vmem:[%s515 + $0x171] sm:$0xff]
      %v1231 = vperm.slane %v312, 1
      %v1232 = vmul.f32 %v1199, %v1231
      %v1233 = vmul.f32 %v1200, %v1231
      %v1234 = vmul.f32 %v1201, %v1231
      %v1235 = vmul.f32 %v1202, %v1231
      %v1236 = vmul.f32 %v1203, %v1231
      %v1237 = vmul.f32 %v1204, %v1231
      %v1238 = vmul.f32 %v1205, %v1231
      %v1239 = vmul.f32 %v1206, %v1231
      %v1240 = vmul.f32 %v1207, %v1231
      %v1241 = vmul.f32 %v1208, %v1231
      %v1242 = vmul.f32 %v1209, %v1231
      %v1243 = vmul.f32 %v1210, %v1231
      %v1244 = vmul.f32 %v1211, %v1231
      %v1245 = vmul.f32 %v1212, %v1231
      %v1246 = vmul.f32 %v1213, %v1231
      %v1247 = vmul.f32 %v1214, %v1231
      %v1248 = vmul.f32 %v1215, %v1231
      %v1249 = vmul.f32 %v1216, %v1231
      %v1250 = vmul.f32 %v1217, %v1231
      %v1251 = vmul.f32 %v1218, %v1231
      %v1252 = vmul.f32 %v1219, %v1231
      %v1253 = vmul.f32 %v1220, %v1231
      %v1254 = vmul.f32 %v1221, %v1231
      %v1255 = vmul.f32 %v1222, %v1231
      %v1256 = vmul.f32 %v1223, %v1231
      %v1257 = vmul.f32 %v1224, %v1231
      %v1258 = vmul.f32 %v1225, %v1231
      %v1259 = vmul.f32 %v1226, %v1231
      %v1260 = vmul.f32 %v1227, %v1231
      %v1261 = vmul.f32 %v1228, %v1231
      %v1262 = vmul.f32 %v1229, %v1231
      %v1263 = vmul.f32 %v1230, %v1231
      %v1264 = vadd.f32 %v1167, %v1232
      %v1265 = vadd.f32 %v1168, %v1233
      %v1266 = vadd.f32 %v1169, %v1234
      %v1267 = vadd.f32 %v1170, %v1235
      %v1268 = vadd.f32 %v1171, %v1236
      %v1269 = vadd.f32 %v1172, %v1237
      %v1270 = vadd.f32 %v1173, %v1238
      %v1271 = vadd.f32 %v1174, %v1239
      %v1272 = vadd.f32 %v1175, %v1240
      %v1273 = vadd.f32 %v1176, %v1241
      %v1274 = vadd.f32 %v1177, %v1242
      %v1275 = vadd.f32 %v1178, %v1243
      %v1276 = vadd.f32 %v1179, %v1244
      %v1277 = vadd.f32 %v1180, %v1245
      %v1278 = vadd.f32 %v1181, %v1246
      %v1279 = vadd.f32 %v1182, %v1247
      %v1280 = vadd.f32 %v1183, %v1248
      %v1281 = vadd.f32 %v1184, %v1249
      %v1282 = vadd.f32 %v1185, %v1250
      %v1283 = vadd.f32 %v1186, %v1251
      %v1284 = vadd.f32 %v1187, %v1252
      %v1285 = vadd.f32 %v1188, %v1253
      %v1286 = vadd.f32 %v1189, %v1254
      %v1287 = vadd.f32 %v1190, %v1255
      %v1288 = vadd.f32 %v1191, %v1256
      %v1289 = vadd.f32 %v1192, %v1257
      %v1290 = vadd.f32 %v1193, %v1258
      %v1291 = vadd.f32 %v1194, %v1259
      %v1292 = vadd.f32 %v1195, %v1260
      %v1293 = vadd.f32 %v1196, %v1261
      %v1294 = vadd.f32 %v1197, %v1262
      %v1295 = vadd.f32 %v1198, %v1263
      %v1296 = vld [vmem:[%s613 + $0x1] sm:$0xff]
      %v1297 = vld [vmem:[%s613 + $0x9] sm:$0xff]
      %v1298 = vld [vmem:[%s613 + $0x19] sm:$0xff]
      %v1299 = vld [vmem:[%s613 + $0x21] sm:$0xff]
      %v1300 = vld [vmem:[%s613 + $0x31] sm:$0xff]
      %v1301 = vld [vmem:[%s613 + $0x39] sm:$0xff]
      %v1302 = vld [vmem:[%s613 + $0x49] sm:$0xff]
      %v1303 = vld [vmem:[%s613 + $0x51] sm:$0xff]
      %v1304 = vld [vmem:[%s613 + $0x61] sm:$0xff]
      %v1305 = vld [vmem:[%s613 + $0x69] sm:$0xff]
      %v1306 = vld [vmem:[%s613 + $0x79] sm:$0xff]
      %v1307 = vld [vmem:[%s613 + $0x81] sm:$0xff]
      %v1308 = vld [vmem:[%s613 + $0x91] sm:$0xff]
      %v1309 = vld [vmem:[%s613 + $0x99] sm:$0xff]
      %v1310 = vld [vmem:[%s613 + $0xa9] sm:$0xff]
      %v1311 = vld [vmem:[%s613 + $0xb1] sm:$0xff]
      %v1312 = vld [vmem:[%s613 + $0xc1] sm:$0xff]
      %v1313 = vld [vmem:[%s613 + $0xc9] sm:$0xff]
      %v1314 = vld [vmem:[%s613 + $0xd9] sm:$0xff]
      %v1315 = vld [vmem:[%s613 + $0xe1] sm:$0xff]
      %v1316 = vld [vmem:[%s613 + $0xf1] sm:$0xff]
      %v1317 = vld [vmem:[%s613 + $0xf9] sm:$0xff]
      %v1318 = vld [vmem:[%s613 + $0x109] sm:$0xff]
      %v1319 = vld [vmem:[%s613 + $0x111] sm:$0xff]
      %v1320 = vld [vmem:[%s613 + $0x121] sm:$0xff]
      %v1321 = vld [vmem:[%s613 + $0x129] sm:$0xff]
      %v1322 = vld [vmem:[%s613 + $0x139] sm:$0xff]
      %v1323 = vld [vmem:[%s613 + $0x141] sm:$0xff]
      %v1324 = vld [vmem:[%s613 + $0x151] sm:$0xff]
      %v1325 = vld [vmem:[%s613 + $0x159] sm:$0xff]
      %v1326 = vld [vmem:[%s613 + $0x169] sm:$0xff]
      %v1327 = vld [vmem:[%s613 + $0x171] sm:$0xff]
      %v1328 = vperm.slane %v313, 1
      %v1329 = vmul.f32 %v1296, %v1328
      %v1330 = vmul.f32 %v1297, %v1328
      %v1331 = vmul.f32 %v1298, %v1328
      %v1332 = vmul.f32 %v1299, %v1328
      %v1333 = vmul.f32 %v1300, %v1328
      %v1334 = vmul.f32 %v1301, %v1328
      %v1335 = vmul.f32 %v1302, %v1328
      %v1336 = vmul.f32 %v1303, %v1328
      %v1337 = vmul.f32 %v1304, %v1328
      %v1338 = vmul.f32 %v1305, %v1328
      %v1339 = vmul.f32 %v1306, %v1328
      %v1340 = vmul.f32 %v1307, %v1328
      %v1341 = vmul.f32 %v1308, %v1328
      %v1342 = vmul.f32 %v1309, %v1328
      %v1343 = vmul.f32 %v1310, %v1328
      %v1344 = vmul.f32 %v1311, %v1328
      %v1345 = vmul.f32 %v1312, %v1328
      %v1346 = vmul.f32 %v1313, %v1328
      %v1347 = vmul.f32 %v1314, %v1328
      %v1348 = vmul.f32 %v1315, %v1328
      %v1349 = vmul.f32 %v1316, %v1328
      %v1350 = vmul.f32 %v1317, %v1328
      %v1351 = vmul.f32 %v1318, %v1328
      %v1352 = vmul.f32 %v1319, %v1328
      %v1353 = vmul.f32 %v1320, %v1328
      %v1354 = vmul.f32 %v1321, %v1328
      %v1355 = vmul.f32 %v1322, %v1328
      %v1356 = vmul.f32 %v1323, %v1328
      %v1357 = vmul.f32 %v1324, %v1328
      %v1358 = vmul.f32 %v1325, %v1328
      %v1359 = vmul.f32 %v1326, %v1328
      %v1360 = vmul.f32 %v1327, %v1328
      %v1361 = vadd.f32 %v1264, %v1329
      %v1362 = vadd.f32 %v1265, %v1330
      %v1363 = vadd.f32 %v1266, %v1331
      %v1364 = vadd.f32 %v1267, %v1332
      %v1365 = vadd.f32 %v1268, %v1333
      %v1366 = vadd.f32 %v1269, %v1334
      %v1367 = vadd.f32 %v1270, %v1335
      %v1368 = vadd.f32 %v1271, %v1336
      %v1369 = vadd.f32 %v1272, %v1337
      %v1370 = vadd.f32 %v1273, %v1338
      %v1371 = vadd.f32 %v1274, %v1339
      %v1372 = vadd.f32 %v1275, %v1340
      %v1373 = vadd.f32 %v1276, %v1341
      %v1374 = vadd.f32 %v1277, %v1342
      %v1375 = vadd.f32 %v1278, %v1343
      %v1376 = vadd.f32 %v1279, %v1344
      %v1377 = vadd.f32 %v1280, %v1345
      %v1378 = vadd.f32 %v1281, %v1346
      %v1379 = vadd.f32 %v1282, %v1347
      %v1380 = vadd.f32 %v1283, %v1348
      %v1381 = vadd.f32 %v1284, %v1349
      %v1382 = vadd.f32 %v1285, %v1350
      %v1383 = vadd.f32 %v1286, %v1351
      %v1384 = vadd.f32 %v1287, %v1352
      %v1385 = vadd.f32 %v1288, %v1353
      %v1386 = vadd.f32 %v1289, %v1354
      %v1387 = vadd.f32 %v1290, %v1355
      %v1388 = vadd.f32 %v1291, %v1356
      %v1389 = vadd.f32 %v1292, %v1357
      %v1390 = vadd.f32 %v1293, %v1358
      %v1391 = vadd.f32 %v1294, %v1359
      %v1392 = vadd.f32 %v1295, %v1360
      %v1393 = vld [vmem:[%s711 + $0x1] sm:$0xff]
      %v1394 = vld [vmem:[%s711 + $0x9] sm:$0xff]
      %v1395 = vld [vmem:[%s711 + $0x19] sm:$0xff]
      %v1396 = vld [vmem:[%s711 + $0x21] sm:$0xff]
      %v1397 = vld [vmem:[%s711 + $0x31] sm:$0xff]
      %v1398 = vld [vmem:[%s711 + $0x39] sm:$0xff]
      %v1399 = vld [vmem:[%s711 + $0x49] sm:$0xff]
      %v1400 = vld [vmem:[%s711 + $0x51] sm:$0xff]
      %v1401 = vld [vmem:[%s711 + $0x61] sm:$0xff]
      %v1402 = vld [vmem:[%s711 + $0x69] sm:$0xff]
      %v1403 = vld [vmem:[%s711 + $0x79] sm:$0xff]
      %v1404 = vld [vmem:[%s711 + $0x81] sm:$0xff]
      %v1405 = vld [vmem:[%s711 + $0x91] sm:$0xff]
      %v1406 = vld [vmem:[%s711 + $0x99] sm:$0xff]
      %v1407 = vld [vmem:[%s711 + $0xa9] sm:$0xff]
      %v1408 = vld [vmem:[%s711 + $0xb1] sm:$0xff]
      %v1409 = vld [vmem:[%s711 + $0xc1] sm:$0xff]
      %v1410 = vld [vmem:[%s711 + $0xc9] sm:$0xff]
      %v1411 = vld [vmem:[%s711 + $0xd9] sm:$0xff]
      %v1412 = vld [vmem:[%s711 + $0xe1] sm:$0xff]
      %v1413 = vld [vmem:[%s711 + $0xf1] sm:$0xff]
      %v1414 = vld [vmem:[%s711 + $0xf9] sm:$0xff]
      %v1415 = vld [vmem:[%s711 + $0x109] sm:$0xff]
      %v1416 = vld [vmem:[%s711 + $0x111] sm:$0xff]
      %v1417 = vld [vmem:[%s711 + $0x121] sm:$0xff]
      %v1418 = vld [vmem:[%s711 + $0x129] sm:$0xff]
      %v1419 = vld [vmem:[%s711 + $0x139] sm:$0xff]
      %v1420 = vld [vmem:[%s711 + $0x141] sm:$0xff]
      %v1421 = vld [vmem:[%s711 + $0x151] sm:$0xff]
      %v1422 = vld [vmem:[%s711 + $0x159] sm:$0xff]
      %v1423 = vld [vmem:[%s711 + $0x169] sm:$0xff]
      %v1424 = vld [vmem:[%s711 + $0x171] sm:$0xff]
      %v1425 = vperm.slane %v314, 1
      %v1426 = vmul.f32 %v1393, %v1425
      %v1427 = vmul.f32 %v1394, %v1425
      %v1428 = vmul.f32 %v1395, %v1425
      %v1429 = vmul.f32 %v1396, %v1425
      %v1430 = vmul.f32 %v1397, %v1425
      %v1431 = vmul.f32 %v1398, %v1425
      %v1432 = vmul.f32 %v1399, %v1425
      %v1433 = vmul.f32 %v1400, %v1425
      %v1434 = vmul.f32 %v1401, %v1425
      %v1435 = vmul.f32 %v1402, %v1425
      %v1436 = vmul.f32 %v1403, %v1425
      %v1437 = vmul.f32 %v1404, %v1425
      %v1438 = vmul.f32 %v1405, %v1425
      %v1439 = vmul.f32 %v1406, %v1425
      %v1440 = vmul.f32 %v1407, %v1425
      %v1441 = vmul.f32 %v1408, %v1425
      %v1442 = vmul.f32 %v1409, %v1425
      %v1443 = vmul.f32 %v1410, %v1425
      %v1444 = vmul.f32 %v1411, %v1425
      %v1445 = vmul.f32 %v1412, %v1425
      %v1446 = vmul.f32 %v1413, %v1425
      %v1447 = vmul.f32 %v1414, %v1425
      %v1448 = vmul.f32 %v1415, %v1425
      %v1449 = vmul.f32 %v1416, %v1425
      %v1450 = vmul.f32 %v1417, %v1425
      %v1451 = vmul.f32 %v1418, %v1425
      %v1452 = vmul.f32 %v1419, %v1425
      %v1453 = vmul.f32 %v1420, %v1425
      %v1454 = vmul.f32 %v1421, %v1425
      %v1455 = vmul.f32 %v1422, %v1425
      %v1456 = vmul.f32 %v1423, %v1425
      %v1457 = vmul.f32 %v1424, %v1425
      %v1458 = vadd.f32 %v1361, %v1426
      %v1459 = vadd.f32 %v1362, %v1427
      %v1460 = vadd.f32 %v1363, %v1428
      %v1461 = vadd.f32 %v1364, %v1429
      %v1462 = vadd.f32 %v1365, %v1430
      %v1463 = vadd.f32 %v1366, %v1431
      %v1464 = vadd.f32 %v1367, %v1432
      %v1465 = vadd.f32 %v1368, %v1433
      %v1466 = vadd.f32 %v1369, %v1434
      %v1467 = vadd.f32 %v1370, %v1435
      %v1468 = vadd.f32 %v1371, %v1436
      %v1469 = vadd.f32 %v1372, %v1437
      %v1470 = vadd.f32 %v1373, %v1438
      %v1471 = vadd.f32 %v1374, %v1439
      %v1472 = vadd.f32 %v1375, %v1440
      %v1473 = vadd.f32 %v1376, %v1441
      %v1474 = vadd.f32 %v1377, %v1442
      %v1475 = vadd.f32 %v1378, %v1443
      %v1476 = vadd.f32 %v1379, %v1444
      %v1477 = vadd.f32 %v1380, %v1445
      %v1478 = vadd.f32 %v1381, %v1446
      %v1479 = vadd.f32 %v1382, %v1447
      %v1480 = vadd.f32 %v1383, %v1448
      %v1481 = vadd.f32 %v1384, %v1449
      %v1482 = vadd.f32 %v1385, %v1450
      %v1483 = vadd.f32 %v1386, %v1451
      %v1484 = vadd.f32 %v1387, %v1452
      %v1485 = vadd.f32 %v1388, %v1453
      %v1486 = vadd.f32 %v1389, %v1454
      %v1487 = vadd.f32 %v1390, %v1455
      %v1488 = vadd.f32 %v1391, %v1456
      %v1489 = vadd.f32 %v1392, %v1457
      %v1490 = vld [vmem:[%s809 + $0x1] sm:$0xff]
      %v1491 = vld [vmem:[%s809 + $0x9] sm:$0xff]
      %v1492 = vld [vmem:[%s809 + $0x19] sm:$0xff]
      %v1493 = vld [vmem:[%s809 + $0x21] sm:$0xff]
      %v1494 = vld [vmem:[%s809 + $0x31] sm:$0xff]
      %v1495 = vld [vmem:[%s809 + $0x39] sm:$0xff]
      %v1496 = vld [vmem:[%s809 + $0x49] sm:$0xff]
      %v1497 = vld [vmem:[%s809 + $0x51] sm:$0xff]
      %v1498 = vld [vmem:[%s809 + $0x61] sm:$0xff]
      %v1499 = vld [vmem:[%s809 + $0x69] sm:$0xff]
      %v1500 = vld [vmem:[%s809 + $0x79] sm:$0xff]
      %v1501 = vld [vmem:[%s809 + $0x81] sm:$0xff]
      %v1502 = vld [vmem:[%s809 + $0x91] sm:$0xff]
      %v1503 = vld [vmem:[%s809 + $0x99] sm:$0xff]
      %v1504 = vld [vmem:[%s809 + $0xa9] sm:$0xff]
      %v1505 = vld [vmem:[%s809 + $0xb1] sm:$0xff]
      %v1506 = vld [vmem:[%s809 + $0xc1] sm:$0xff]
      %v1507 = vld [vmem:[%s809 + $0xc9] sm:$0xff]
      %v1508 = vld [vmem:[%s809 + $0xd9] sm:$0xff]
      %v1509 = vld [vmem:[%s809 + $0xe1] sm:$0xff]
      %v1510 = vld [vmem:[%s809 + $0xf1] sm:$0xff]
      %v1511 = vld [vmem:[%s809 + $0xf9] sm:$0xff]
      %v1512 = vld [vmem:[%s809 + $0x109] sm:$0xff]
      %v1513 = vld [vmem:[%s809 + $0x111] sm:$0xff]
      %v1514 = vld [vmem:[%s809 + $0x121] sm:$0xff]
      %v1515 = vld [vmem:[%s809 + $0x129] sm:$0xff]
      %v1516 = vld [vmem:[%s809 + $0x139] sm:$0xff]
      %v1517 = vld [vmem:[%s809 + $0x141] sm:$0xff]
      %v1518 = vld [vmem:[%s809 + $0x151] sm:$0xff]
      %v1519 = vld [vmem:[%s809 + $0x159] sm:$0xff]
      %v1520 = vld [vmem:[%s809 + $0x169] sm:$0xff]
      %v1521 = vld [vmem:[%s809 + $0x171] sm:$0xff]
      %v1522 = vperm.slane %v315, 1
      %v1523 = vmul.f32 %v1490, %v1522
      %v1524 = vmul.f32 %v1491, %v1522
      %v1525 = vmul.f32 %v1492, %v1522
      %v1526 = vmul.f32 %v1493, %v1522
      %v1527 = vmul.f32 %v1494, %v1522
      %v1528 = vmul.f32 %v1495, %v1522
      %v1529 = vmul.f32 %v1496, %v1522
      %v1530 = vmul.f32 %v1497, %v1522
      %v1531 = vmul.f32 %v1498, %v1522
      %v1532 = vmul.f32 %v1499, %v1522
      %v1533 = vmul.f32 %v1500, %v1522
      %v1534 = vmul.f32 %v1501, %v1522
      %v1535 = vmul.f32 %v1502, %v1522
      %v1536 = vmul.f32 %v1503, %v1522
      %v1537 = vmul.f32 %v1504, %v1522
      %v1538 = vmul.f32 %v1505, %v1522
      %v1539 = vmul.f32 %v1506, %v1522
      %v1540 = vmul.f32 %v1507, %v1522
      %v1541 = vmul.f32 %v1508, %v1522
      %v1542 = vmul.f32 %v1509, %v1522
      %v1543 = vmul.f32 %v1510, %v1522
      %v1544 = vmul.f32 %v1511, %v1522
      %v1545 = vmul.f32 %v1512, %v1522
      %v1546 = vmul.f32 %v1513, %v1522
      %v1547 = vmul.f32 %v1514, %v1522
      %v1548 = vmul.f32 %v1515, %v1522
      %v1549 = vmul.f32 %v1516, %v1522
      %v1550 = vmul.f32 %v1517, %v1522
      %v1551 = vmul.f32 %v1518, %v1522
      %v1552 = vmul.f32 %v1519, %v1522
      %v1553 = vmul.f32 %v1520, %v1522
      %v1554 = vmul.f32 %v1521, %v1522
      %v1555 = vadd.f32 %v1458, %v1523
      %v1556 = vadd.f32 %v1459, %v1524
      %v1557 = vadd.f32 %v1460, %v1525
      %v1558 = vadd.f32 %v1461, %v1526
      %v1559 = vadd.f32 %v1462, %v1527
      %v1560 = vadd.f32 %v1463, %v1528
      %v1561 = vadd.f32 %v1464, %v1529
      %v1562 = vadd.f32 %v1465, %v1530
      %v1563 = vadd.f32 %v1466, %v1531
      %v1564 = vadd.f32 %v1467, %v1532
      %v1565 = vadd.f32 %v1468, %v1533
      %v1566 = vadd.f32 %v1469, %v1534
      %v1567 = vadd.f32 %v1470, %v1535
      %v1568 = vadd.f32 %v1471, %v1536
      %v1569 = vadd.f32 %v1472, %v1537
      %v1570 = vadd.f32 %v1473, %v1538
      %v1571 = vadd.f32 %v1474, %v1539
      %v1572 = vadd.f32 %v1475, %v1540
      %v1573 = vadd.f32 %v1476, %v1541
      %v1574 = vadd.f32 %v1477, %v1542
      %v1575 = vadd.f32 %v1478, %v1543
      %v1576 = vadd.f32 %v1479, %v1544
      %v1577 = vadd.f32 %v1480, %v1545
      %v1578 = vadd.f32 %v1481, %v1546
      %v1579 = vadd.f32 %v1482, %v1547
      %v1580 = vadd.f32 %v1483, %v1548
      %v1581 = vadd.f32 %v1484, %v1549
      %v1582 = vadd.f32 %v1485, %v1550
      %v1583 = vadd.f32 %v1486, %v1551
      %v1584 = vadd.f32 %v1487, %v1552
      %v1585 = vadd.f32 %v1488, %v1553
      %v1586 = vadd.f32 %v1489, %v1554
      %v1587 = vld [vmem:[%s907 + $0x1] sm:$0xff]
      %v1588 = vld [vmem:[%s907 + $0x9] sm:$0xff]
      %v1589 = vld [vmem:[%s907 + $0x19] sm:$0xff]
      %v1590 = vld [vmem:[%s907 + $0x21] sm:$0xff]
      %v1591 = vld [vmem:[%s907 + $0x31] sm:$0xff]
      %v1592 = vld [vmem:[%s907 + $0x39] sm:$0xff]
      %v1593 = vld [vmem:[%s907 + $0x49] sm:$0xff]
      %v1594 = vld [vmem:[%s907 + $0x51] sm:$0xff]
      %v1595 = vld [vmem:[%s907 + $0x61] sm:$0xff]
      %v1596 = vld [vmem:[%s907 + $0x69] sm:$0xff]
      %v1597 = vld [vmem:[%s907 + $0x79] sm:$0xff]
      %v1598 = vld [vmem:[%s907 + $0x81] sm:$0xff]
      %v1599 = vld [vmem:[%s907 + $0x91] sm:$0xff]
      %v1600 = vld [vmem:[%s907 + $0x99] sm:$0xff]
      %v1601 = vld [vmem:[%s907 + $0xa9] sm:$0xff]
      %v1602 = vld [vmem:[%s907 + $0xb1] sm:$0xff]
      %v1603 = vld [vmem:[%s907 + $0xc1] sm:$0xff]
      %v1604 = vld [vmem:[%s907 + $0xc9] sm:$0xff]
      %v1605 = vld [vmem:[%s907 + $0xd9] sm:$0xff]
      %v1606 = vld [vmem:[%s907 + $0xe1] sm:$0xff]
      %v1607 = vld [vmem:[%s907 + $0xf1] sm:$0xff]
      %v1608 = vld [vmem:[%s907 + $0xf9] sm:$0xff]
      %v1609 = vld [vmem:[%s907 + $0x109] sm:$0xff]
      %v1610 = vld [vmem:[%s907 + $0x111] sm:$0xff]
      %v1611 = vld [vmem:[%s907 + $0x121] sm:$0xff]
      %v1612 = vld [vmem:[%s907 + $0x129] sm:$0xff]
      %v1613 = vld [vmem:[%s907 + $0x139] sm:$0xff]
      %v1614 = vld [vmem:[%s907 + $0x141] sm:$0xff]
      %v1615 = vld [vmem:[%s907 + $0x151] sm:$0xff]
      %v1616 = vld [vmem:[%s907 + $0x159] sm:$0xff]
      %v1617 = vld [vmem:[%s907 + $0x169] sm:$0xff]
      %v1618 = vld [vmem:[%s907 + $0x171] sm:$0xff]
      %v1619 = vperm.slane %v316, 1
      %v1620 = vmul.f32 %v1587, %v1619
      %v1621 = vmul.f32 %v1588, %v1619
      %v1622 = vmul.f32 %v1589, %v1619
      %v1623 = vmul.f32 %v1590, %v1619
      %v1624 = vmul.f32 %v1591, %v1619
      %v1625 = vmul.f32 %v1592, %v1619
      %v1626 = vmul.f32 %v1593, %v1619
      %v1627 = vmul.f32 %v1594, %v1619
      %v1628 = vmul.f32 %v1595, %v1619
      %v1629 = vmul.f32 %v1596, %v1619
      %v1630 = vmul.f32 %v1597, %v1619
      %v1631 = vmul.f32 %v1598, %v1619
      %v1632 = vmul.f32 %v1599, %v1619
      %v1633 = vmul.f32 %v1600, %v1619
      %v1634 = vmul.f32 %v1601, %v1619
      %v1635 = vmul.f32 %v1602, %v1619
      %v1636 = vmul.f32 %v1603, %v1619
      %v1637 = vmul.f32 %v1604, %v1619
      %v1638 = vmul.f32 %v1605, %v1619
      %v1639 = vmul.f32 %v1606, %v1619
      %v1640 = vmul.f32 %v1607, %v1619
      %v1641 = vmul.f32 %v1608, %v1619
      %v1642 = vmul.f32 %v1609, %v1619
      %v1643 = vmul.f32 %v1610, %v1619
      %v1644 = vmul.f32 %v1611, %v1619
      %v1645 = vmul.f32 %v1612, %v1619
      %v1646 = vmul.f32 %v1613, %v1619
      %v1647 = vmul.f32 %v1614, %v1619
      %v1648 = vmul.f32 %v1615, %v1619
      %v1649 = vmul.f32 %v1616, %v1619
      %v1650 = vmul.f32 %v1617, %v1619
      %v1651 = vmul.f32 %v1618, %v1619
      %v1652 = vadd.f32 %v1555, %v1620
      %v1653 = vadd.f32 %v1556, %v1621
      %v1654 = vadd.f32 %v1557, %v1622
      %v1655 = vadd.f32 %v1558, %v1623
      %v1656 = vadd.f32 %v1559, %v1624
      %v1657 = vadd.f32 %v1560, %v1625
      %v1658 = vadd.f32 %v1561, %v1626
      %v1659 = vadd.f32 %v1562, %v1627
      %v1660 = vadd.f32 %v1563, %v1628
      %v1661 = vadd.f32 %v1564, %v1629
      %v1662 = vadd.f32 %v1565, %v1630
      %v1663 = vadd.f32 %v1566, %v1631
      %v1664 = vadd.f32 %v1567, %v1632
      %v1665 = vadd.f32 %v1568, %v1633
      %v1666 = vadd.f32 %v1569, %v1634
      %v1667 = vadd.f32 %v1570, %v1635
      %v1668 = vadd.f32 %v1571, %v1636
      %v1669 = vadd.f32 %v1572, %v1637
      %v1670 = vadd.f32 %v1573, %v1638
      %v1671 = vadd.f32 %v1574, %v1639
      %v1672 = vadd.f32 %v1575, %v1640
      %v1673 = vadd.f32 %v1576, %v1641
      %v1674 = vadd.f32 %v1577, %v1642
      %v1675 = vadd.f32 %v1578, %v1643
      %v1676 = vadd.f32 %v1579, %v1644
      %v1677 = vadd.f32 %v1580, %v1645
      %v1678 = vadd.f32 %v1581, %v1646
      %v1679 = vadd.f32 %v1582, %v1647
      %v1680 = vadd.f32 %v1583, %v1648
      %v1681 = vadd.f32 %v1584, %v1649
      %v1682 = vadd.f32 %v1585, %v1650
      %v1683 = vadd.f32 %v1586, %v1651
      %v1684 = vld [vmem:[%s297 + $0x2] sm:$0xff]
      %v1685 = vld [vmem:[%s297 + $0xa] sm:$0xff]
      %v1686 = vld [vmem:[%s297 + $0x1a] sm:$0xff]
      %v1687 = vld [vmem:[%s297 + $0x22] sm:$0xff]
      %v1688 = vld [vmem:[%s297 + $0x32] sm:$0xff]
      %v1689 = vld [vmem:[%s297 + $0x3a] sm:$0xff]
      %v1690 = vld [vmem:[%s297 + $0x4a] sm:$0xff]
      %v1691 = vld [vmem:[%s297 + $0x52] sm:$0xff]
      %v1692 = vld [vmem:[%s297 + $0x62] sm:$0xff]
      %v1693 = vld [vmem:[%s297 + $0x6a] sm:$0xff]
      %v1694 = vld [vmem:[%s297 + $0x7a] sm:$0xff]
      %v1695 = vld [vmem:[%s297 + $0x82] sm:$0xff]
      %v1696 = vld [vmem:[%s297 + $0x92] sm:$0xff]
      %v1697 = vld [vmem:[%s297 + $0x9a] sm:$0xff]
      %v1698 = vld [vmem:[%s297 + $0xaa] sm:$0xff]
      %v1699 = vld [vmem:[%s297 + $0xb2] sm:$0xff]
      %v1700 = vld [vmem:[%s297 + $0xc2] sm:$0xff]
      %v1701 = vld [vmem:[%s297 + $0xca] sm:$0xff]
      %v1702 = vld [vmem:[%s297 + $0xda] sm:$0xff]
      %v1703 = vld [vmem:[%s297 + $0xe2] sm:$0xff]
      %v1704 = vld [vmem:[%s297 + $0xf2] sm:$0xff]
      %v1705 = vld [vmem:[%s297 + $0xfa] sm:$0xff]
      %v1706 = vld [vmem:[%s297 + $0x10a] sm:$0xff]
      %v1707 = vld [vmem:[%s297 + $0x112] sm:$0xff]
      %v1708 = vld [vmem:[%s297 + $0x122] sm:$0xff]
      %v1709 = vld [vmem:[%s297 + $0x12a] sm:$0xff]
      %v1710 = vld [vmem:[%s297 + $0x13a] sm:$0xff]
      %v1711 = vld [vmem:[%s297 + $0x142] sm:$0xff]
      %v1712 = vld [vmem:[%s297 + $0x152] sm:$0xff]
      %v1713 = vld [vmem:[%s297 + $0x15a] sm:$0xff]
      %v1714 = vld [vmem:[%s297 + $0x16a] sm:$0xff]
      %v1715 = vld [vmem:[%s297 + $0x172] sm:$0xff]
      %v1716 = vperm.slane %v310, 2
      %v1717 = vmul.f32 %v1684, %v1716
      %v1718 = vmul.f32 %v1685, %v1716
      %v1719 = vmul.f32 %v1686, %v1716
      %v1720 = vmul.f32 %v1687, %v1716
      %v1721 = vmul.f32 %v1688, %v1716
      %v1722 = vmul.f32 %v1689, %v1716
      %v1723 = vmul.f32 %v1690, %v1716
      %v1724 = vmul.f32 %v1691, %v1716
      %v1725 = vmul.f32 %v1692, %v1716
      %v1726 = vmul.f32 %v1693, %v1716
      %v1727 = vmul.f32 %v1694, %v1716
      %v1728 = vmul.f32 %v1695, %v1716
      %v1729 = vmul.f32 %v1696, %v1716
      %v1730 = vmul.f32 %v1697, %v1716
      %v1731 = vmul.f32 %v1698, %v1716
      %v1732 = vmul.f32 %v1699, %v1716
      %v1733 = vmul.f32 %v1700, %v1716
      %v1734 = vmul.f32 %v1701, %v1716
      %v1735 = vmul.f32 %v1702, %v1716
      %v1736 = vmul.f32 %v1703, %v1716
      %v1737 = vmul.f32 %v1704, %v1716
      %v1738 = vmul.f32 %v1705, %v1716
      %v1739 = vmul.f32 %v1706, %v1716
      %v1740 = vmul.f32 %v1707, %v1716
      %v1741 = vmul.f32 %v1708, %v1716
      %v1742 = vmul.f32 %v1709, %v1716
      %v1743 = vmul.f32 %v1710, %v1716
      %v1744 = vmul.f32 %v1711, %v1716
      %v1745 = vmul.f32 %v1712, %v1716
      %v1746 = vmul.f32 %v1713, %v1716
      %v1747 = vmul.f32 %v1714, %v1716
      %v1748 = vmul.f32 %v1715, %v1716
      %v1749 = vadd.f32 %v1652, %v1717
      %v1750 = vadd.f32 %v1653, %v1718
      %v1751 = vadd.f32 %v1654, %v1719
      %v1752 = vadd.f32 %v1655, %v1720
      %v1753 = vadd.f32 %v1656, %v1721
      %v1754 = vadd.f32 %v1657, %v1722
      %v1755 = vadd.f32 %v1658, %v1723
      %v1756 = vadd.f32 %v1659, %v1724
      %v1757 = vadd.f32 %v1660, %v1725
      %v1758 = vadd.f32 %v1661, %v1726
      %v1759 = vadd.f32 %v1662, %v1727
      %v1760 = vadd.f32 %v1663, %v1728
      %v1761 = vadd.f32 %v1664, %v1729
      %v1762 = vadd.f32 %v1665, %v1730
      %v1763 = vadd.f32 %v1666, %v1731
      %v1764 = vadd.f32 %v1667, %v1732
      %v1765 = vadd.f32 %v1668, %v1733
      %v1766 = vadd.f32 %v1669, %v1734
      %v1767 = vadd.f32 %v1670, %v1735
      %v1768 = vadd.f32 %v1671, %v1736
      %v1769 = vadd.f32 %v1672, %v1737
      %v1770 = vadd.f32 %v1673, %v1738
      %v1771 = vadd.f32 %v1674, %v1739
      %v1772 = vadd.f32 %v1675, %v1740
      %v1773 = vadd.f32 %v1676, %v1741
      %v1774 = vadd.f32 %v1677, %v1742
      %v1775 = vadd.f32 %v1678, %v1743
      %v1776 = vadd.f32 %v1679, %v1744
      %v1777 = vadd.f32 %v1680, %v1745
      %v1778 = vadd.f32 %v1681, %v1746
      %v1779 = vadd.f32 %v1682, %v1747
      %v1780 = vadd.f32 %v1683, %v1748
      %v1781 = vld [vmem:[%s417 + $0x2] sm:$0xff]
      %v1782 = vld [vmem:[%s417 + $0xa] sm:$0xff]
      %v1783 = vld [vmem:[%s417 + $0x1a] sm:$0xff]
      %v1784 = vld [vmem:[%s417 + $0x22] sm:$0xff]
      %v1785 = vld [vmem:[%s417 + $0x32] sm:$0xff]
      %v1786 = vld [vmem:[%s417 + $0x3a] sm:$0xff]
      %v1787 = vld [vmem:[%s417 + $0x4a] sm:$0xff]
      %v1788 = vld [vmem:[%s417 + $0x52] sm:$0xff]
      %v1789 = vld [vmem:[%s417 + $0x62] sm:$0xff]
      %v1790 = vld [vmem:[%s417 + $0x6a] sm:$0xff]
      %v1791 = vld [vmem:[%s417 + $0x7a] sm:$0xff]
      %v1792 = vld [vmem:[%s417 + $0x82] sm:$0xff]
      %v1793 = vld [vmem:[%s417 + $0x92] sm:$0xff]
      %v1794 = vld [vmem:[%s417 + $0x9a] sm:$0xff]
      %v1795 = vld [vmem:[%s417 + $0xaa] sm:$0xff]
      %v1796 = vld [vmem:[%s417 + $0xb2] sm:$0xff]
      %v1797 = vld [vmem:[%s417 + $0xc2] sm:$0xff]
      %v1798 = vld [vmem:[%s417 + $0xca] sm:$0xff]
      %v1799 = vld [vmem:[%s417 + $0xda] sm:$0xff]
      %v1800 = vld [vmem:[%s417 + $0xe2] sm:$0xff]
      %v1801 = vld [vmem:[%s417 + $0xf2] sm:$0xff]
      %v1802 = vld [vmem:[%s417 + $0xfa] sm:$0xff]
      %v1803 = vld [vmem:[%s417 + $0x10a] sm:$0xff]
      %v1804 = vld [vmem:[%s417 + $0x112] sm:$0xff]
      %v1805 = vld [vmem:[%s417 + $0x122] sm:$0xff]
      %v1806 = vld [vmem:[%s417 + $0x12a] sm:$0xff]
      %v1807 = vld [vmem:[%s417 + $0x13a] sm:$0xff]
      %v1808 = vld [vmem:[%s417 + $0x142] sm:$0xff]
      %v1809 = vld [vmem:[%s417 + $0x152] sm:$0xff]
      %v1810 = vld [vmem:[%s417 + $0x15a] sm:$0xff]
      %v1811 = vld [vmem:[%s417 + $0x16a] sm:$0xff]
      %v1812 = vld [vmem:[%s417 + $0x172] sm:$0xff]
      %v1813 = vperm.slane %v311, 2
      %v1814 = vmul.f32 %v1781, %v1813
      %v1815 = vmul.f32 %v1782, %v1813
      %v1816 = vmul.f32 %v1783, %v1813
      %v1817 = vmul.f32 %v1784, %v1813
      %v1818 = vmul.f32 %v1785, %v1813
      %v1819 = vmul.f32 %v1786, %v1813
      %v1820 = vmul.f32 %v1787, %v1813
      %v1821 = vmul.f32 %v1788, %v1813
      %v1822 = vmul.f32 %v1789, %v1813
      %v1823 = vmul.f32 %v1790, %v1813
      %v1824 = vmul.f32 %v1791, %v1813
      %v1825 = vmul.f32 %v1792, %v1813
      %v1826 = vmul.f32 %v1793, %v1813
      %v1827 = vmul.f32 %v1794, %v1813
      %v1828 = vmul.f32 %v1795, %v1813
      %v1829 = vmul.f32 %v1796, %v1813
      %v1830 = vmul.f32 %v1797, %v1813
      %v1831 = vmul.f32 %v1798, %v1813
      %v1832 = vmul.f32 %v1799, %v1813
      %v1833 = vmul.f32 %v1800, %v1813
      %v1834 = vmul.f32 %v1801, %v1813
      %v1835 = vmul.f32 %v1802, %v1813
      %v1836 = vmul.f32 %v1803, %v1813
      %v1837 = vmul.f32 %v1804, %v1813
      %v1838 = vmul.f32 %v1805, %v1813
      %v1839 = vmul.f32 %v1806, %v1813
      %v1840 = vmul.f32 %v1807, %v1813
      %v1841 = vmul.f32 %v1808, %v1813
      %v1842 = vmul.f32 %v1809, %v1813
      %v1843 = vmul.f32 %v1810, %v1813
      %v1844 = vmul.f32 %v1811, %v1813
      %v1845 = vmul.f32 %v1812, %v1813
      %v1846 = vadd.f32 %v1749, %v1814
      %v1847 = vadd.f32 %v1750, %v1815
      %v1848 = vadd.f32 %v1751, %v1816
      %v1849 = vadd.f32 %v1752, %v1817
      %v1850 = vadd.f32 %v1753, %v1818
      %v1851 = vadd.f32 %v1754, %v1819
      %v1852 = vadd.f32 %v1755, %v1820
      %v1853 = vadd.f32 %v1756, %v1821
      %v1854 = vadd.f32 %v1757, %v1822
      %v1855 = vadd.f32 %v1758, %v1823
      %v1856 = vadd.f32 %v1759, %v1824
      %v1857 = vadd.f32 %v1760, %v1825
      %v1858 = vadd.f32 %v1761, %v1826
      %v1859 = vadd.f32 %v1762, %v1827
      %v1860 = vadd.f32 %v1763, %v1828
      %v1861 = vadd.f32 %v1764, %v1829
      %v1862 = vadd.f32 %v1765, %v1830
      %v1863 = vadd.f32 %v1766, %v1831
      %v1864 = vadd.f32 %v1767, %v1832
      %v1865 = vadd.f32 %v1768, %v1833
      %v1866 = vadd.f32 %v1769, %v1834
      %v1867 = vadd.f32 %v1770, %v1835
      %v1868 = vadd.f32 %v1771, %v1836
      %v1869 = vadd.f32 %v1772, %v1837
      %v1870 = vadd.f32 %v1773, %v1838
      %v1871 = vadd.f32 %v1774, %v1839
      %v1872 = vadd.f32 %v1775, %v1840
      %v1873 = vadd.f32 %v1776, %v1841
      %v1874 = vadd.f32 %v1777, %v1842
      %v1875 = vadd.f32 %v1778, %v1843
      %v1876 = vadd.f32 %v1779, %v1844
      %v1877 = vadd.f32 %v1780, %v1845
      %v1878 = vld [vmem:[%s515 + $0x2] sm:$0xff]
      %v1879 = vld [vmem:[%s515 + $0xa] sm:$0xff]
      %v1880 = vld [vmem:[%s515 + $0x1a] sm:$0xff]
      %v1881 = vld [vmem:[%s515 + $0x22] sm:$0xff]
      %v1882 = vld [vmem:[%s515 + $0x32] sm:$0xff]
      %v1883 = vld [vmem:[%s515 + $0x3a] sm:$0xff]
      %v1884 = vld [vmem:[%s515 + $0x4a] sm:$0xff]
      %v1885 = vld [vmem:[%s515 + $0x52] sm:$0xff]
      %v1886 = vld [vmem:[%s515 + $0x62] sm:$0xff]
      %v1887 = vld [vmem:[%s515 + $0x6a] sm:$0xff]
      %v1888 = vld [vmem:[%s515 + $0x7a] sm:$0xff]
      %v1889 = vld [vmem:[%s515 + $0x82] sm:$0xff]
      %v1890 = vld [vmem:[%s515 + $0x92] sm:$0xff]
      %v1891 = vld [vmem:[%s515 + $0x9a] sm:$0xff]
      %v1892 = vld [vmem:[%s515 + $0xaa] sm:$0xff]
      %v1893 = vld [vmem:[%s515 + $0xb2] sm:$0xff]
      %v1894 = vld [vmem:[%s515 + $0xc2] sm:$0xff]
      %v1895 = vld [vmem:[%s515 + $0xca] sm:$0xff]
      %v1896 = vld [vmem:[%s515 + $0xda] sm:$0xff]
      %v1897 = vld [vmem:[%s515 + $0xe2] sm:$0xff]
      %v1898 = vld [vmem:[%s515 + $0xf2] sm:$0xff]
      %v1899 = vld [vmem:[%s515 + $0xfa] sm:$0xff]
      %v1900 = vld [vmem:[%s515 + $0x10a] sm:$0xff]
      %v1901 = vld [vmem:[%s515 + $0x112] sm:$0xff]
      %v1902 = vld [vmem:[%s515 + $0x122] sm:$0xff]
      %v1903 = vld [vmem:[%s515 + $0x12a] sm:$0xff]
      %v1904 = vld [vmem:[%s515 + $0x13a] sm:$0xff]
      %v1905 = vld [vmem:[%s515 + $0x142] sm:$0xff]
      %v1906 = vld [vmem:[%s515 + $0x152] sm:$0xff]
      %v1907 = vld [vmem:[%s515 + $0x15a] sm:$0xff]
      %v1908 = vld [vmem:[%s515 + $0x16a] sm:$0xff]
      %v1909 = vld [vmem:[%s515 + $0x172] sm:$0xff]
      %v1910 = vperm.slane %v312, 2
      %v1911 = vmul.f32 %v1878, %v1910
      %v1912 = vmul.f32 %v1879, %v1910
      %v1913 = vmul.f32 %v1880, %v1910
      %v1914 = vmul.f32 %v1881, %v1910
      %v1915 = vmul.f32 %v1882, %v1910
      %v1916 = vmul.f32 %v1883, %v1910
      %v1917 = vmul.f32 %v1884, %v1910
      %v1918 = vmul.f32 %v1885, %v1910
      %v1919 = vmul.f32 %v1886, %v1910
      %v1920 = vmul.f32 %v1887, %v1910
      %v1921 = vmul.f32 %v1888, %v1910
      %v1922 = vmul.f32 %v1889, %v1910
      %v1923 = vmul.f32 %v1890, %v1910
      %v1924 = vmul.f32 %v1891, %v1910
      %v1925 = vmul.f32 %v1892, %v1910
      %v1926 = vmul.f32 %v1893, %v1910
      %v1927 = vmul.f32 %v1894, %v1910
      %v1928 = vmul.f32 %v1895, %v1910
      %v1929 = vmul.f32 %v1896, %v1910
      %v1930 = vmul.f32 %v1897, %v1910
      %v1931 = vmul.f32 %v1898, %v1910
      %v1932 = vmul.f32 %v1899, %v1910
      %v1933 = vmul.f32 %v1900, %v1910
      %v1934 = vmul.f32 %v1901, %v1910
      %v1935 = vmul.f32 %v1902, %v1910
      %v1936 = vmul.f32 %v1903, %v1910
      %v1937 = vmul.f32 %v1904, %v1910
      %v1938 = vmul.f32 %v1905, %v1910
      %v1939 = vmul.f32 %v1906, %v1910
      %v1940 = vmul.f32 %v1907, %v1910
      %v1941 = vmul.f32 %v1908, %v1910
      %v1942 = vmul.f32 %v1909, %v1910
      %v1943 = vadd.f32 %v1846, %v1911
      %v1944 = vadd.f32 %v1847, %v1912
      %v1945 = vadd.f32 %v1848, %v1913
      %v1946 = vadd.f32 %v1849, %v1914
      %v1947 = vadd.f32 %v1850, %v1915
      %v1948 = vadd.f32 %v1851, %v1916
      %v1949 = vadd.f32 %v1852, %v1917
      %v1950 = vadd.f32 %v1853, %v1918
      %v1951 = vadd.f32 %v1854, %v1919
      %v1952 = vadd.f32 %v1855, %v1920
      %v1953 = vadd.f32 %v1856, %v1921
      %v1954 = vadd.f32 %v1857, %v1922
      %v1955 = vadd.f32 %v1858, %v1923
      %v1956 = vadd.f32 %v1859, %v1924
      %v1957 = vadd.f32 %v1860, %v1925
      %v1958 = vadd.f32 %v1861, %v1926
      %v1959 = vadd.f32 %v1862, %v1927
      %v1960 = vadd.f32 %v1863, %v1928
      %v1961 = vadd.f32 %v1864, %v1929
      %v1962 = vadd.f32 %v1865, %v1930
      %v1963 = vadd.f32 %v1866, %v1931
      %v1964 = vadd.f32 %v1867, %v1932
      %v1965 = vadd.f32 %v1868, %v1933
      %v1966 = vadd.f32 %v1869, %v1934
      %v1967 = vadd.f32 %v1870, %v1935
      %v1968 = vadd.f32 %v1871, %v1936
      %v1969 = vadd.f32 %v1872, %v1937
      %v1970 = vadd.f32 %v1873, %v1938
      %v1971 = vadd.f32 %v1874, %v1939
      %v1972 = vadd.f32 %v1875, %v1940
      %v1973 = vadd.f32 %v1876, %v1941
      %v1974 = vadd.f32 %v1877, %v1942
      %v1975 = vld [vmem:[%s613 + $0x2] sm:$0xff]
      %v1976 = vld [vmem:[%s613 + $0xa] sm:$0xff]
      %v1977 = vld [vmem:[%s613 + $0x1a] sm:$0xff]
      %v1978 = vld [vmem:[%s613 + $0x22] sm:$0xff]
      %v1979 = vld [vmem:[%s613 + $0x32] sm:$0xff]
      %v1980 = vld [vmem:[%s613 + $0x3a] sm:$0xff]
      %v1981 = vld [vmem:[%s613 + $0x4a] sm:$0xff]
      %v1982 = vld [vmem:[%s613 + $0x52] sm:$0xff]
      %v1983 = vld [vmem:[%s613 + $0x62] sm:$0xff]
      %v1984 = vld [vmem:[%s613 + $0x6a] sm:$0xff]
      %v1985 = vld [vmem:[%s613 + $0x7a] sm:$0xff]
      %v1986 = vld [vmem:[%s613 + $0x82] sm:$0xff]
      %v1987 = vld [vmem:[%s613 + $0x92] sm:$0xff]
      %v1988 = vld [vmem:[%s613 + $0x9a] sm:$0xff]
      %v1989 = vld [vmem:[%s613 + $0xaa] sm:$0xff]
      %v1990 = vld [vmem:[%s613 + $0xb2] sm:$0xff]
      %v1991 = vld [vmem:[%s613 + $0xc2] sm:$0xff]
      %v1992 = vld [vmem:[%s613 + $0xca] sm:$0xff]
      %v1993 = vld [vmem:[%s613 + $0xda] sm:$0xff]
      %v1994 = vld [vmem:[%s613 + $0xe2] sm:$0xff]
      %v1995 = vld [vmem:[%s613 + $0xf2] sm:$0xff]
      %v1996 = vld [vmem:[%s613 + $0xfa] sm:$0xff]
      %v1997 = vld [vmem:[%s613 + $0x10a] sm:$0xff]
      %v1998 = vld [vmem:[%s613 + $0x112] sm:$0xff]
      %v1999 = vld [vmem:[%s613 + $0x122] sm:$0xff]
      %v2000 = vld [vmem:[%s613 + $0x12a] sm:$0xff]
      %v2001 = vld [vmem:[%s613 + $0x13a] sm:$0xff]
      %v2002 = vld [vmem:[%s613 + $0x142] sm:$0xff]
      %v2003 = vld [vmem:[%s613 + $0x152] sm:$0xff]
      %v2004 = vld [vmem:[%s613 + $0x15a] sm:$0xff]
      %v2005 = vld [vmem:[%s613 + $0x16a] sm:$0xff]
      %v2006 = vld [vmem:[%s613 + $0x172] sm:$0xff]
      %v2007 = vperm.slane %v313, 2
      %v2008 = vmul.f32 %v1975, %v2007
      %v2009 = vmul.f32 %v1976, %v2007
      %v2010 = vmul.f32 %v1977, %v2007
      %v2011 = vmul.f32 %v1978, %v2007
      %v2012 = vmul.f32 %v1979, %v2007
      %v2013 = vmul.f32 %v1980, %v2007
      %v2014 = vmul.f32 %v1981, %v2007
      %v2015 = vmul.f32 %v1982, %v2007
      %v2016 = vmul.f32 %v1983, %v2007
      %v2017 = vmul.f32 %v1984, %v2007
      %v2018 = vmul.f32 %v1985, %v2007
      %v2019 = vmul.f32 %v1986, %v2007
      %v2020 = vmul.f32 %v1987, %v2007
      %v2021 = vmul.f32 %v1988, %v2007
      %v2022 = vmul.f32 %v1989, %v2007
      %v2023 = vmul.f32 %v1990, %v2007
      %v2024 = vmul.f32 %v1991, %v2007
      %v2025 = vmul.f32 %v1992, %v2007
      %v2026 = vmul.f32 %v1993, %v2007
      %v2027 = vmul.f32 %v1994, %v2007
      %v2028 = vmul.f32 %v1995, %v2007
      %v2029 = vmul.f32 %v1996, %v2007
      %v2030 = vmul.f32 %v1997, %v2007
      %v2031 = vmul.f32 %v1998, %v2007
      %v2032 = vmul.f32 %v1999, %v2007
      %v2033 = vmul.f32 %v2000, %v2007
      %v2034 = vmul.f32 %v2001, %v2007
      %v2035 = vmul.f32 %v2002, %v2007
      %v2036 = vmul.f32 %v2003, %v2007
      %v2037 = vmul.f32 %v2004, %v2007
      %v2038 = vmul.f32 %v2005, %v2007
      %v2039 = vmul.f32 %v2006, %v2007
      %v2040 = vadd.f32 %v1943, %v2008
      %v2041 = vadd.f32 %v1944, %v2009
      %v2042 = vadd.f32 %v1945, %v2010
      %v2043 = vadd.f32 %v1946, %v2011
      %v2044 = vadd.f32 %v1947, %v2012
      %v2045 = vadd.f32 %v1948, %v2013
      %v2046 = vadd.f32 %v1949, %v2014
      %v2047 = vadd.f32 %v1950, %v2015
      %v2048 = vadd.f32 %v1951, %v2016
      %v2049 = vadd.f32 %v1952, %v2017
      %v2050 = vadd.f32 %v1953, %v2018
      %v2051 = vadd.f32 %v1954, %v2019
      %v2052 = vadd.f32 %v1955, %v2020
      %v2053 = vadd.f32 %v1956, %v2021
      %v2054 = vadd.f32 %v1957, %v2022
      %v2055 = vadd.f32 %v1958, %v2023
      %v2056 = vadd.f32 %v1959, %v2024
      %v2057 = vadd.f32 %v1960, %v2025
      %v2058 = vadd.f32 %v1961, %v2026
      %v2059 = vadd.f32 %v1962, %v2027
      %v2060 = vadd.f32 %v1963, %v2028
      %v2061 = vadd.f32 %v1964, %v2029
      %v2062 = vadd.f32 %v1965, %v2030
      %v2063 = vadd.f32 %v1966, %v2031
      %v2064 = vadd.f32 %v1967, %v2032
      %v2065 = vadd.f32 %v1968, %v2033
      %v2066 = vadd.f32 %v1969, %v2034
      %v2067 = vadd.f32 %v1970, %v2035
      %v2068 = vadd.f32 %v1971, %v2036
      %v2069 = vadd.f32 %v1972, %v2037
      %v2070 = vadd.f32 %v1973, %v2038
      %v2071 = vadd.f32 %v1974, %v2039
      %v2072 = vld [vmem:[%s711 + $0x2] sm:$0xff]
      %v2073 = vld [vmem:[%s711 + $0xa] sm:$0xff]
      %v2074 = vld [vmem:[%s711 + $0x1a] sm:$0xff]
      %v2075 = vld [vmem:[%s711 + $0x22] sm:$0xff]
      %v2076 = vld [vmem:[%s711 + $0x32] sm:$0xff]
      %v2077 = vld [vmem:[%s711 + $0x3a] sm:$0xff]
      %v2078 = vld [vmem:[%s711 + $0x4a] sm:$0xff]
      %v2079 = vld [vmem:[%s711 + $0x52] sm:$0xff]
      %v2080 = vld [vmem:[%s711 + $0x62] sm:$0xff]
      %v2081 = vld [vmem:[%s711 + $0x6a] sm:$0xff]
      %v2082 = vld [vmem:[%s711 + $0x7a] sm:$0xff]
      %v2083 = vld [vmem:[%s711 + $0x82] sm:$0xff]
      %v2084 = vld [vmem:[%s711 + $0x92] sm:$0xff]
      %v2085 = vld [vmem:[%s711 + $0x9a] sm:$0xff]
      %v2086 = vld [vmem:[%s711 + $0xaa] sm:$0xff]
      %v2087 = vld [vmem:[%s711 + $0xb2] sm:$0xff]
      %v2088 = vld [vmem:[%s711 + $0xc2] sm:$0xff]
      %v2089 = vld [vmem:[%s711 + $0xca] sm:$0xff]
      %v2090 = vld [vmem:[%s711 + $0xda] sm:$0xff]
      %v2091 = vld [vmem:[%s711 + $0xe2] sm:$0xff]
      %v2092 = vld [vmem:[%s711 + $0xf2] sm:$0xff]
      %v2093 = vld [vmem:[%s711 + $0xfa] sm:$0xff]
      %v2094 = vld [vmem:[%s711 + $0x10a] sm:$0xff]
      %v2095 = vld [vmem:[%s711 + $0x112] sm:$0xff]
      %v2096 = vld [vmem:[%s711 + $0x122] sm:$0xff]
      %v2097 = vld [vmem:[%s711 + $0x12a] sm:$0xff]
      %v2098 = vld [vmem:[%s711 + $0x13a] sm:$0xff]
      %v2099 = vld [vmem:[%s711 + $0x142] sm:$0xff]
      %v2100 = vld [vmem:[%s711 + $0x152] sm:$0xff]
      %v2101 = vld [vmem:[%s711 + $0x15a] sm:$0xff]
      %v2102 = vld [vmem:[%s711 + $0x16a] sm:$0xff]
      %v2103 = vld [vmem:[%s711 + $0x172] sm:$0xff]
      %v2104 = vperm.slane %v314, 2
      %v2105 = vmul.f32 %v2072, %v2104
      %v2106 = vmul.f32 %v2073, %v2104
      %v2107 = vmul.f32 %v2074, %v2104
      %v2108 = vmul.f32 %v2075, %v2104
      %v2109 = vmul.f32 %v2076, %v2104
      %v2110 = vmul.f32 %v2077, %v2104
      %v2111 = vmul.f32 %v2078, %v2104
      %v2112 = vmul.f32 %v2079, %v2104
      %v2113 = vmul.f32 %v2080, %v2104
      %v2114 = vmul.f32 %v2081, %v2104
      %v2115 = vmul.f32 %v2082, %v2104
      %v2116 = vmul.f32 %v2083, %v2104
      %v2117 = vmul.f32 %v2084, %v2104
      %v2118 = vmul.f32 %v2085, %v2104
      %v2119 = vmul.f32 %v2086, %v2104
      %v2120 = vmul.f32 %v2087, %v2104
      %v2121 = vmul.f32 %v2088, %v2104
      %v2122 = vmul.f32 %v2089, %v2104
      %v2123 = vmul.f32 %v2090, %v2104
      %v2124 = vmul.f32 %v2091, %v2104
      %v2125 = vmul.f32 %v2092, %v2104
      %v2126 = vmul.f32 %v2093, %v2104
      %v2127 = vmul.f32 %v2094, %v2104
      %v2128 = vmul.f32 %v2095, %v2104
      %v2129 = vmul.f32 %v2096, %v2104
      %v2130 = vmul.f32 %v2097, %v2104
      %v2131 = vmul.f32 %v2098, %v2104
      %v2132 = vmul.f32 %v2099, %v2104
      %v2133 = vmul.f32 %v2100, %v2104
      %v2134 = vmul.f32 %v2101, %v2104
      %v2135 = vmul.f32 %v2102, %v2104
      %v2136 = vmul.f32 %v2103, %v2104
      %v2137 = vadd.f32 %v2040, %v2105
      %v2138 = vadd.f32 %v2041, %v2106
      %v2139 = vadd.f32 %v2042, %v2107
      %v2140 = vadd.f32 %v2043, %v2108
      %v2141 = vadd.f32 %v2044, %v2109
      %v2142 = vadd.f32 %v2045, %v2110
      %v2143 = vadd.f32 %v2046, %v2111
      %v2144 = vadd.f32 %v2047, %v2112
      %v2145 = vadd.f32 %v2048, %v2113
      %v2146 = vadd.f32 %v2049, %v2114
      %v2147 = vadd.f32 %v2050, %v2115
      %v2148 = vadd.f32 %v2051, %v2116
      %v2149 = vadd.f32 %v2052, %v2117
      %v2150 = vadd.f32 %v2053, %v2118
      %v2151 = vadd.f32 %v2054, %v2119
      %v2152 = vadd.f32 %v2055, %v2120
      %v2153 = vadd.f32 %v2056, %v2121
      %v2154 = vadd.f32 %v2057, %v2122
      %v2155 = vadd.f32 %v2058, %v2123
      %v2156 = vadd.f32 %v2059, %v2124
      %v2157 = vadd.f32 %v2060, %v2125
      %v2158 = vadd.f32 %v2061, %v2126
      %v2159 = vadd.f32 %v2062, %v2127
      %v2160 = vadd.f32 %v2063, %v2128
      %v2161 = vadd.f32 %v2064, %v2129
      %v2162 = vadd.f32 %v2065, %v2130
      %v2163 = vadd.f32 %v2066, %v2131
      %v2164 = vadd.f32 %v2067, %v2132
      %v2165 = vadd.f32 %v2068, %v2133
      %v2166 = vadd.f32 %v2069, %v2134
      %v2167 = vadd.f32 %v2070, %v2135
      %v2168 = vadd.f32 %v2071, %v2136
      %v2169 = vld [vmem:[%s809 + $0x2] sm:$0xff]
      %v2170 = vld [vmem:[%s809 + $0xa] sm:$0xff]
      %v2171 = vld [vmem:[%s809 + $0x1a] sm:$0xff]
      %v2172 = vld [vmem:[%s809 + $0x22] sm:$0xff]
      %v2173 = vld [vmem:[%s809 + $0x32] sm:$0xff]
      %v2174 = vld [vmem:[%s809 + $0x3a] sm:$0xff]
      %v2175 = vld [vmem:[%s809 + $0x4a] sm:$0xff]
      %v2176 = vld [vmem:[%s809 + $0x52] sm:$0xff]
      %v2177 = vld [vmem:[%s809 + $0x62] sm:$0xff]
      %v2178 = vld [vmem:[%s809 + $0x6a] sm:$0xff]
      %v2179 = vld [vmem:[%s809 + $0x7a] sm:$0xff]
      %v2180 = vld [vmem:[%s809 + $0x82] sm:$0xff]
      %v2181 = vld [vmem:[%s809 + $0x92] sm:$0xff]
      %v2182 = vld [vmem:[%s809 + $0x9a] sm:$0xff]
      %v2183 = vld [vmem:[%s809 + $0xaa] sm:$0xff]
      %v2184 = vld [vmem:[%s809 + $0xb2] sm:$0xff]
      %v2185 = vld [vmem:[%s809 + $0xc2] sm:$0xff]
      %v2186 = vld [vmem:[%s809 + $0xca] sm:$0xff]
      %v2187 = vld [vmem:[%s809 + $0xda] sm:$0xff]
      %v2188 = vld [vmem:[%s809 + $0xe2] sm:$0xff]
      %v2189 = vld [vmem:[%s809 + $0xf2] sm:$0xff]
      %v2190 = vld [vmem:[%s809 + $0xfa] sm:$0xff]
      %v2191 = vld [vmem:[%s809 + $0x10a] sm:$0xff]
      %v2192 = vld [vmem:[%s809 + $0x112] sm:$0xff]
      %v2193 = vld [vmem:[%s809 + $0x122] sm:$0xff]
      %v2194 = vld [vmem:[%s809 + $0x12a] sm:$0xff]
      %v2195 = vld [vmem:[%s809 + $0x13a] sm:$0xff]
      %v2196 = vld [vmem:[%s809 + $0x142] sm:$0xff]
      %v2197 = vld [vmem:[%s809 + $0x152] sm:$0xff]
      %v2198 = vld [vmem:[%s809 + $0x15a] sm:$0xff]
      %v2199 = vld [vmem:[%s809 + $0x16a] sm:$0xff]
      %v2200 = vld [vmem:[%s809 + $0x172] sm:$0xff]
      %v2201 = vperm.slane %v315, 2
      %v2202 = vmul.f32 %v2169, %v2201
      %v2203 = vmul.f32 %v2170, %v2201
      %v2204 = vmul.f32 %v2171, %v2201
      %v2205 = vmul.f32 %v2172, %v2201
      %v2206 = vmul.f32 %v2173, %v2201
      %v2207 = vmul.f32 %v2174, %v2201
      %v2208 = vmul.f32 %v2175, %v2201
      %v2209 = vmul.f32 %v2176, %v2201
      %v2210 = vmul.f32 %v2177, %v2201
      %v2211 = vmul.f32 %v2178, %v2201
      %v2212 = vmul.f32 %v2179, %v2201
      %v2213 = vmul.f32 %v2180, %v2201
      %v2214 = vmul.f32 %v2181, %v2201
      %v2215 = vmul.f32 %v2182, %v2201
      %v2216 = vmul.f32 %v2183, %v2201
      %v2217 = vmul.f32 %v2184, %v2201
      %v2218 = vmul.f32 %v2185, %v2201
      %v2219 = vmul.f32 %v2186, %v2201
      %v2220 = vmul.f32 %v2187, %v2201
      %v2221 = vmul.f32 %v2188, %v2201
      %v2222 = vmul.f32 %v2189, %v2201
      %v2223 = vmul.f32 %v2190, %v2201
      %v2224 = vmul.f32 %v2191, %v2201
      %v2225 = vmul.f32 %v2192, %v2201
      %v2226 = vmul.f32 %v2193, %v2201
      %v2227 = vmul.f32 %v2194, %v2201
      %v2228 = vmul.f32 %v2195, %v2201
      %v2229 = vmul.f32 %v2196, %v2201
      %v2230 = vmul.f32 %v2197, %v2201
      %v2231 = vmul.f32 %v2198, %v2201
      %v2232 = vmul.f32 %v2199, %v2201
      %v2233 = vmul.f32 %v2200, %v2201
      %v2234 = vadd.f32 %v2137, %v2202
      %v2235 = vadd.f32 %v2138, %v2203
      %v2236 = vadd.f32 %v2139, %v2204
      %v2237 = vadd.f32 %v2140, %v2205
      %v2238 = vadd.f32 %v2141, %v2206
      %v2239 = vadd.f32 %v2142, %v2207
      %v2240 = vadd.f32 %v2143, %v2208
      %v2241 = vadd.f32 %v2144, %v2209
      %v2242 = vadd.f32 %v2145, %v2210
      %v2243 = vadd.f32 %v2146, %v2211
      %v2244 = vadd.f32 %v2147, %v2212
      %v2245 = vadd.f32 %v2148, %v2213
      %v2246 = vadd.f32 %v2149, %v2214
      %v2247 = vadd.f32 %v2150, %v2215
      %v2248 = vadd.f32 %v2151, %v2216
      %v2249 = vadd.f32 %v2152, %v2217
      %v2250 = vadd.f32 %v2153, %v2218
      %v2251 = vadd.f32 %v2154, %v2219
      %v2252 = vadd.f32 %v2155, %v2220
      %v2253 = vadd.f32 %v2156, %v2221
      %v2254 = vadd.f32 %v2157, %v2222
      %v2255 = vadd.f32 %v2158, %v2223
      %v2256 = vadd.f32 %v2159, %v2224
      %v2257 = vadd.f32 %v2160, %v2225
      %v2258 = vadd.f32 %v2161, %v2226
      %v2259 = vadd.f32 %v2162, %v2227
      %v2260 = vadd.f32 %v2163, %v2228
      %v2261 = vadd.f32 %v2164, %v2229
      %v2262 = vadd.f32 %v2165, %v2230
      %v2263 = vadd.f32 %v2166, %v2231
      %v2264 = vadd.f32 %v2167, %v2232
      %v2265 = vadd.f32 %v2168, %v2233
      %v2266 = vld [vmem:[%s907 + $0x2] sm:$0xff]
      %v2267 = vld [vmem:[%s907 + $0xa] sm:$0xff]
      %v2268 = vld [vmem:[%s907 + $0x1a] sm:$0xff]
      %v2269 = vld [vmem:[%s907 + $0x22] sm:$0xff]
      %v2270 = vld [vmem:[%s907 + $0x32] sm:$0xff]
      %v2271 = vld [vmem:[%s907 + $0x3a] sm:$0xff]
      %v2272 = vld [vmem:[%s907 + $0x4a] sm:$0xff]
      %v2273 = vld [vmem:[%s907 + $0x52] sm:$0xff]
      %v2274 = vld [vmem:[%s907 + $0x62] sm:$0xff]
      %v2275 = vld [vmem:[%s907 + $0x6a] sm:$0xff]
      %v2276 = vld [vmem:[%s907 + $0x7a] sm:$0xff]
      %v2277 = vld [vmem:[%s907 + $0x82] sm:$0xff]
      %v2278 = vld [vmem:[%s907 + $0x92] sm:$0xff]
      %v2279 = vld [vmem:[%s907 + $0x9a] sm:$0xff]
      %v2280 = vld [vmem:[%s907 + $0xaa] sm:$0xff]
      %v2281 = vld [vmem:[%s907 + $0xb2] sm:$0xff]
      %v2282 = vld [vmem:[%s907 + $0xc2] sm:$0xff]
      %v2283 = vld [vmem:[%s907 + $0xca] sm:$0xff]
      %v2284 = vld [vmem:[%s907 + $0xda] sm:$0xff]
      %v2285 = vld [vmem:[%s907 + $0xe2] sm:$0xff]
      %v2286 = vld [vmem:[%s907 + $0xf2] sm:$0xff]
      %v2287 = vld [vmem:[%s907 + $0xfa] sm:$0xff]
      %v2288 = vld [vmem:[%s907 + $0x10a] sm:$0xff]
      %v2289 = vld [vmem:[%s907 + $0x112] sm:$0xff]
      %v2290 = vld [vmem:[%s907 + $0x122] sm:$0xff]
      %v2291 = vld [vmem:[%s907 + $0x12a] sm:$0xff]
      %v2292 = vld [vmem:[%s907 + $0x13a] sm:$0xff]
      %v2293 = vld [vmem:[%s907 + $0x142] sm:$0xff]
      %v2294 = vld [vmem:[%s907 + $0x152] sm:$0xff]
      %v2295 = vld [vmem:[%s907 + $0x15a] sm:$0xff]
      %v2296 = vld [vmem:[%s907 + $0x16a] sm:$0xff]
      %v2297 = vld [vmem:[%s907 + $0x172] sm:$0xff]
      %v2298 = vperm.slane %v316, 2
      %v2299 = vmul.f32 %v2266, %v2298
      %v2300 = vmul.f32 %v2267, %v2298
      %v2301 = vmul.f32 %v2268, %v2298
      %v2302 = vmul.f32 %v2269, %v2298
      %v2303 = vmul.f32 %v2270, %v2298
      %v2304 = vmul.f32 %v2271, %v2298
      %v2305 = vmul.f32 %v2272, %v2298
      %v2306 = vmul.f32 %v2273, %v2298
      %v2307 = vmul.f32 %v2274, %v2298
      %v2308 = vmul.f32 %v2275, %v2298
      %v2309 = vmul.f32 %v2276, %v2298
      %v2310 = vmul.f32 %v2277, %v2298
      %v2311 = vmul.f32 %v2278, %v2298
      %v2312 = vmul.f32 %v2279, %v2298
      %v2313 = vmul.f32 %v2280, %v2298
      %v2314 = vmul.f32 %v2281, %v2298
      %v2315 = vmul.f32 %v2282, %v2298
      %v2316 = vmul.f32 %v2283, %v2298
      %v2317 = vmul.f32 %v2284, %v2298
      %v2318 = vmul.f32 %v2285, %v2298
      %v2319 = vmul.f32 %v2286, %v2298
      %v2320 = vmul.f32 %v2287, %v2298
      %v2321 = vmul.f32 %v2288, %v2298
      %v2322 = vmul.f32 %v2289, %v2298
      %v2323 = vmul.f32 %v2290, %v2298
      %v2324 = vmul.f32 %v2291, %v2298
      %v2325 = vmul.f32 %v2292, %v2298
      %v2326 = vmul.f32 %v2293, %v2298
      %v2327 = vmul.f32 %v2294, %v2298
      %v2328 = vmul.f32 %v2295, %v2298
      %v2329 = vmul.f32 %v2296, %v2298
      %v2330 = vmul.f32 %v2297, %v2298
      %v2331 = vadd.f32 %v2234, %v2299
      %v2332 = vadd.f32 %v2235, %v2300
      %v2333 = vadd.f32 %v2236, %v2301
      %v2334 = vadd.f32 %v2237, %v2302
      %v2335 = vadd.f32 %v2238, %v2303
      %v2336 = vadd.f32 %v2239, %v2304
      %v2337 = vadd.f32 %v2240, %v2305
      %v2338 = vadd.f32 %v2241, %v2306
      %v2339 = vadd.f32 %v2242, %v2307
      %v2340 = vadd.f32 %v2243, %v2308
      %v2341 = vadd.f32 %v2244, %v2309
      %v2342 = vadd.f32 %v2245, %v2310
      %v2343 = vadd.f32 %v2246, %v2311
      %v2344 = vadd.f32 %v2247, %v2312
      %v2345 = vadd.f32 %v2248, %v2313
      %v2346 = vadd.f32 %v2249, %v2314
      %v2347 = vadd.f32 %v2250, %v2315
      %v2348 = vadd.f32 %v2251, %v2316
      %v2349 = vadd.f32 %v2252, %v2317
      %v2350 = vadd.f32 %v2253, %v2318
      %v2351 = vadd.f32 %v2254, %v2319
      %v2352 = vadd.f32 %v2255, %v2320
      %v2353 = vadd.f32 %v2256, %v2321
      %v2354 = vadd.f32 %v2257, %v2322
      %v2355 = vadd.f32 %v2258, %v2323
      %v2356 = vadd.f32 %v2259, %v2324
      %v2357 = vadd.f32 %v2260, %v2325
      %v2358 = vadd.f32 %v2261, %v2326
      %v2359 = vadd.f32 %v2262, %v2327
      %v2360 = vadd.f32 %v2263, %v2328
      %v2361 = vadd.f32 %v2264, %v2329
      %v2362 = vadd.f32 %v2265, %v2330
      %v2363 = vld [vmem:[%s297 + $0x3] sm:$0xff]
      %v2364 = vld [vmem:[%s297 + $0xb] sm:$0xff]
      %v2365 = vld [vmem:[%s297 + $0x1b] sm:$0xff]
      %v2366 = vld [vmem:[%s297 + $0x23] sm:$0xff]
      %v2367 = vld [vmem:[%s297 + $0x33] sm:$0xff]
      %v2368 = vld [vmem:[%s297 + $0x3b] sm:$0xff]
      %v2369 = vld [vmem:[%s297 + $0x4b] sm:$0xff]
      %v2370 = vld [vmem:[%s297 + $0x53] sm:$0xff]
      %v2371 = vld [vmem:[%s297 + $0x63] sm:$0xff]
      %v2372 = vld [vmem:[%s297 + $0x6b] sm:$0xff]
      %v2373 = vld [vmem:[%s297 + $0x7b] sm:$0xff]
      %v2374 = vld [vmem:[%s297 + $0x83] sm:$0xff]
      %v2375 = vld [vmem:[%s297 + $0x93] sm:$0xff]
      %v2376 = vld [vmem:[%s297 + $0x9b] sm:$0xff]
      %v2377 = vld [vmem:[%s297 + $0xab] sm:$0xff]
      %v2378 = vld [vmem:[%s297 + $0xb3] sm:$0xff]
      %v2379 = vld [vmem:[%s297 + $0xc3] sm:$0xff]
      %v2380 = vld [vmem:[%s297 + $0xcb] sm:$0xff]
      %v2381 = vld [vmem:[%s297 + $0xdb] sm:$0xff]
      %v2382 = vld [vmem:[%s297 + $0xe3] sm:$0xff]
      %v2383 = vld [vmem:[%s297 + $0xf3] sm:$0xff]
      %v2384 = vld [vmem:[%s297 + $0xfb] sm:$0xff]
      %v2385 = vld [vmem:[%s297 + $0x10b] sm:$0xff]
      %v2386 = vld [vmem:[%s297 + $0x113] sm:$0xff]
      %v2387 = vld [vmem:[%s297 + $0x123] sm:$0xff]
      %v2388 = vld [vmem:[%s297 + $0x12b] sm:$0xff]
      %v2389 = vld [vmem:[%s297 + $0x13b] sm:$0xff]
      %v2390 = vld [vmem:[%s297 + $0x143] sm:$0xff]
      %v2391 = vld [vmem:[%s297 + $0x153] sm:$0xff]
      %v2392 = vld [vmem:[%s297 + $0x15b] sm:$0xff]
      %v2393 = vld [vmem:[%s297 + $0x16b] sm:$0xff]
      %v2394 = vld [vmem:[%s297 + $0x173] sm:$0xff]
      %v2395 = vperm.slane %v310, 3
      %v2396 = vmul.f32 %v2363, %v2395
      %v2397 = vmul.f32 %v2364, %v2395
      %v2398 = vmul.f32 %v2365, %v2395
      %v2399 = vmul.f32 %v2366, %v2395
      %v2400 = vmul.f32 %v2367, %v2395
      %v2401 = vmul.f32 %v2368, %v2395
      %v2402 = vmul.f32 %v2369, %v2395
      %v2403 = vmul.f32 %v2370, %v2395
      %v2404 = vmul.f32 %v2371, %v2395
      %v2405 = vmul.f32 %v2372, %v2395
      %v2406 = vmul.f32 %v2373, %v2395
      %v2407 = vmul.f32 %v2374, %v2395
      %v2408 = vmul.f32 %v2375, %v2395
      %v2409 = vmul.f32 %v2376, %v2395
      %v2410 = vmul.f32 %v2377, %v2395
      %v2411 = vmul.f32 %v2378, %v2395
      %v2412 = vmul.f32 %v2379, %v2395
      %v2413 = vmul.f32 %v2380, %v2395
      %v2414 = vmul.f32 %v2381, %v2395
      %v2415 = vmul.f32 %v2382, %v2395
      %v2416 = vmul.f32 %v2383, %v2395
      %v2417 = vmul.f32 %v2384, %v2395
      %v2418 = vmul.f32 %v2385, %v2395
      %v2419 = vmul.f32 %v2386, %v2395
      %v2420 = vmul.f32 %v2387, %v2395
      %v2421 = vmul.f32 %v2388, %v2395
      %v2422 = vmul.f32 %v2389, %v2395
      %v2423 = vmul.f32 %v2390, %v2395
      %v2424 = vmul.f32 %v2391, %v2395
      %v2425 = vmul.f32 %v2392, %v2395
      %v2426 = vmul.f32 %v2393, %v2395
      %v2427 = vmul.f32 %v2394, %v2395
      %v2428 = vadd.f32 %v2331, %v2396
      %v2429 = vadd.f32 %v2332, %v2397
      %v2430 = vadd.f32 %v2333, %v2398
      %v2431 = vadd.f32 %v2334, %v2399
      %v2432 = vadd.f32 %v2335, %v2400
      %v2433 = vadd.f32 %v2336, %v2401
      %v2434 = vadd.f32 %v2337, %v2402
      %v2435 = vadd.f32 %v2338, %v2403
      %v2436 = vadd.f32 %v2339, %v2404
      %v2437 = vadd.f32 %v2340, %v2405
      %v2438 = vadd.f32 %v2341, %v2406
      %v2439 = vadd.f32 %v2342, %v2407
      %v2440 = vadd.f32 %v2343, %v2408
      %v2441 = vadd.f32 %v2344, %v2409
      %v2442 = vadd.f32 %v2345, %v2410
      %v2443 = vadd.f32 %v2346, %v2411
      %v2444 = vadd.f32 %v2347, %v2412
      %v2445 = vadd.f32 %v2348, %v2413
      %v2446 = vadd.f32 %v2349, %v2414
      %v2447 = vadd.f32 %v2350, %v2415
      %v2448 = vadd.f32 %v2351, %v2416
      %v2449 = vadd.f32 %v2352, %v2417
      %v2450 = vadd.f32 %v2353, %v2418
      %v2451 = vadd.f32 %v2354, %v2419
      %v2452 = vadd.f32 %v2355, %v2420
      %v2453 = vadd.f32 %v2356, %v2421
      %v2454 = vadd.f32 %v2357, %v2422
      %v2455 = vadd.f32 %v2358, %v2423
      %v2456 = vadd.f32 %v2359, %v2424
      %v2457 = vadd.f32 %v2360, %v2425
      %v2458 = vadd.f32 %v2361, %v2426
      %v2459 = vadd.f32 %v2362, %v2427
      %v2460 = vld [vmem:[%s417 + $0x3] sm:$0xff]
      %v2461 = vld [vmem:[%s417 + $0xb] sm:$0xff]
      %v2462 = vld [vmem:[%s417 + $0x1b] sm:$0xff]
      %v2463 = vld [vmem:[%s417 + $0x23] sm:$0xff]
      %v2464 = vld [vmem:[%s417 + $0x33] sm:$0xff]
      %v2465 = vld [vmem:[%s417 + $0x3b] sm:$0xff]
      %v2466 = vld [vmem:[%s417 + $0x4b] sm:$0xff]
      %v2467 = vld [vmem:[%s417 + $0x53] sm:$0xff]
      %v2468 = vld [vmem:[%s417 + $0x63] sm:$0xff]
      %v2469 = vld [vmem:[%s417 + $0x6b] sm:$0xff]
      %v2470 = vld [vmem:[%s417 + $0x7b] sm:$0xff]
      %v2471 = vld [vmem:[%s417 + $0x83] sm:$0xff]
      %v2472 = vld [vmem:[%s417 + $0x93] sm:$0xff]
      %v2473 = vld [vmem:[%s417 + $0x9b] sm:$0xff]
      %v2474 = vld [vmem:[%s417 + $0xab] sm:$0xff]
      %v2475 = vld [vmem:[%s417 + $0xb3] sm:$0xff]
      %v2476 = vld [vmem:[%s417 + $0xc3] sm:$0xff]
      %v2477 = vld [vmem:[%s417 + $0xcb] sm:$0xff]
      %v2478 = vld [vmem:[%s417 + $0xdb] sm:$0xff]
      %v2479 = vld [vmem:[%s417 + $0xe3] sm:$0xff]
      %v2480 = vld [vmem:[%s417 + $0xf3] sm:$0xff]
      %v2481 = vld [vmem:[%s417 + $0xfb] sm:$0xff]
      %v2482 = vld [vmem:[%s417 + $0x10b] sm:$0xff]
      %v2483 = vld [vmem:[%s417 + $0x113] sm:$0xff]
      %v2484 = vld [vmem:[%s417 + $0x123] sm:$0xff]
      %v2485 = vld [vmem:[%s417 + $0x12b] sm:$0xff]
      %v2486 = vld [vmem:[%s417 + $0x13b] sm:$0xff]
      %v2487 = vld [vmem:[%s417 + $0x143] sm:$0xff]
      %v2488 = vld [vmem:[%s417 + $0x153] sm:$0xff]
      %v2489 = vld [vmem:[%s417 + $0x15b] sm:$0xff]
      %v2490 = vld [vmem:[%s417 + $0x16b] sm:$0xff]
      %v2491 = vld [vmem:[%s417 + $0x173] sm:$0xff]
      %v2492 = vperm.slane %v311, 3
      %v2493 = vmul.f32 %v2460, %v2492
      %v2494 = vmul.f32 %v2461, %v2492
      %v2495 = vmul.f32 %v2462, %v2492
      %v2496 = vmul.f32 %v2463, %v2492
      %v2497 = vmul.f32 %v2464, %v2492
      %v2498 = vmul.f32 %v2465, %v2492
      %v2499 = vmul.f32 %v2466, %v2492
      %v2500 = vmul.f32 %v2467, %v2492
      %v2501 = vmul.f32 %v2468, %v2492
      %v2502 = vmul.f32 %v2469, %v2492
      %v2503 = vmul.f32 %v2470, %v2492
      %v2504 = vmul.f32 %v2471, %v2492
      %v2505 = vmul.f32 %v2472, %v2492
      %v2506 = vmul.f32 %v2473, %v2492
      %v2507 = vmul.f32 %v2474, %v2492
      %v2508 = vmul.f32 %v2475, %v2492
      %v2509 = vmul.f32 %v2476, %v2492
      %v2510 = vmul.f32 %v2477, %v2492
      %v2511 = vmul.f32 %v2478, %v2492
      %v2512 = vmul.f32 %v2479, %v2492
      %v2513 = vmul.f32 %v2480, %v2492
      %v2514 = vmul.f32 %v2481, %v2492
      %v2515 = vmul.f32 %v2482, %v2492
      %v2516 = vmul.f32 %v2483, %v2492
      %v2517 = vmul.f32 %v2484, %v2492
      %v2518 = vmul.f32 %v2485, %v2492
      %v2519 = vmul.f32 %v2486, %v2492
      %v2520 = vmul.f32 %v2487, %v2492
      %v2521 = vmul.f32 %v2488, %v2492
      %v2522 = vmul.f32 %v2489, %v2492
      %v2523 = vmul.f32 %v2490, %v2492
      %v2524 = vmul.f32 %v2491, %v2492
      %v2525 = vadd.f32 %v2428, %v2493
      %v2526 = vadd.f32 %v2429, %v2494
      %v2527 = vadd.f32 %v2430, %v2495
      %v2528 = vadd.f32 %v2431, %v2496
      %v2529 = vadd.f32 %v2432, %v2497
      %v2530 = vadd.f32 %v2433, %v2498
      %v2531 = vadd.f32 %v2434, %v2499
      %v2532 = vadd.f32 %v2435, %v2500
      %v2533 = vadd.f32 %v2436, %v2501
      %v2534 = vadd.f32 %v2437, %v2502
      %v2535 = vadd.f32 %v2438, %v2503
      %v2536 = vadd.f32 %v2439, %v2504
      %v2537 = vadd.f32 %v2440, %v2505
      %v2538 = vadd.f32 %v2441, %v2506
      %v2539 = vadd.f32 %v2442, %v2507
      %v2540 = vadd.f32 %v2443, %v2508
      %v2541 = vadd.f32 %v2444, %v2509
      %v2542 = vadd.f32 %v2445, %v2510
      %v2543 = vadd.f32 %v2446, %v2511
      %v2544 = vadd.f32 %v2447, %v2512
      %v2545 = vadd.f32 %v2448, %v2513
      %v2546 = vadd.f32 %v2449, %v2514
      %v2547 = vadd.f32 %v2450, %v2515
      %v2548 = vadd.f32 %v2451, %v2516
      %v2549 = vadd.f32 %v2452, %v2517
      %v2550 = vadd.f32 %v2453, %v2518
      %v2551 = vadd.f32 %v2454, %v2519
      %v2552 = vadd.f32 %v2455, %v2520
      %v2553 = vadd.f32 %v2456, %v2521
      %v2554 = vadd.f32 %v2457, %v2522
      %v2555 = vadd.f32 %v2458, %v2523
      %v2556 = vadd.f32 %v2459, %v2524
      %v2557 = vld [vmem:[%s515 + $0x3] sm:$0xff]
      %v2558 = vld [vmem:[%s515 + $0xb] sm:$0xff]
      %v2559 = vld [vmem:[%s515 + $0x1b] sm:$0xff]
      %v2560 = vld [vmem:[%s515 + $0x23] sm:$0xff]
      %v2561 = vld [vmem:[%s515 + $0x33] sm:$0xff]
      %v2562 = vld [vmem:[%s515 + $0x3b] sm:$0xff]
      %v2563 = vld [vmem:[%s515 + $0x4b] sm:$0xff]
      %v2564 = vld [vmem:[%s515 + $0x53] sm:$0xff]
      %v2565 = vld [vmem:[%s515 + $0x63] sm:$0xff]
      %v2566 = vld [vmem:[%s515 + $0x6b] sm:$0xff]
      %v2567 = vld [vmem:[%s515 + $0x7b] sm:$0xff]
      %v2568 = vld [vmem:[%s515 + $0x83] sm:$0xff]
      %v2569 = vld [vmem:[%s515 + $0x93] sm:$0xff]
      %v2570 = vld [vmem:[%s515 + $0x9b] sm:$0xff]
      %v2571 = vld [vmem:[%s515 + $0xab] sm:$0xff]
      %v2572 = vld [vmem:[%s515 + $0xb3] sm:$0xff]
      %v2573 = vld [vmem:[%s515 + $0xc3] sm:$0xff]
      %v2574 = vld [vmem:[%s515 + $0xcb] sm:$0xff]
      %v2575 = vld [vmem:[%s515 + $0xdb] sm:$0xff]
      %v2576 = vld [vmem:[%s515 + $0xe3] sm:$0xff]
      %v2577 = vld [vmem:[%s515 + $0xf3] sm:$0xff]
      %v2578 = vld [vmem:[%s515 + $0xfb] sm:$0xff]
      %v2579 = vld [vmem:[%s515 + $0x10b] sm:$0xff]
      %v2580 = vld [vmem:[%s515 + $0x113] sm:$0xff]
      %v2581 = vld [vmem:[%s515 + $0x123] sm:$0xff]
      %v2582 = vld [vmem:[%s515 + $0x12b] sm:$0xff]
      %v2583 = vld [vmem:[%s515 + $0x13b] sm:$0xff]
      %v2584 = vld [vmem:[%s515 + $0x143] sm:$0xff]
      %v2585 = vld [vmem:[%s515 + $0x153] sm:$0xff]
      %v2586 = vld [vmem:[%s515 + $0x15b] sm:$0xff]
      %v2587 = vld [vmem:[%s515 + $0x16b] sm:$0xff]
      %v2588 = vld [vmem:[%s515 + $0x173] sm:$0xff]
      %v2589 = vperm.slane %v312, 3
      %v2590 = vmul.f32 %v2557, %v2589
      %v2591 = vmul.f32 %v2558, %v2589
      %v2592 = vmul.f32 %v2559, %v2589
      %v2593 = vmul.f32 %v2560, %v2589
      %v2594 = vmul.f32 %v2561, %v2589
      %v2595 = vmul.f32 %v2562, %v2589
      %v2596 = vmul.f32 %v2563, %v2589
      %v2597 = vmul.f32 %v2564, %v2589
      %v2598 = vmul.f32 %v2565, %v2589
      %v2599 = vmul.f32 %v2566, %v2589
      %v2600 = vmul.f32 %v2567, %v2589
      %v2601 = vmul.f32 %v2568, %v2589
      %v2602 = vmul.f32 %v2569, %v2589
      %v2603 = vmul.f32 %v2570, %v2589
      %v2604 = vmul.f32 %v2571, %v2589
      %v2605 = vmul.f32 %v2572, %v2589
      %v2606 = vmul.f32 %v2573, %v2589
      %v2607 = vmul.f32 %v2574, %v2589
      %v2608 = vmul.f32 %v2575, %v2589
      %v2609 = vmul.f32 %v2576, %v2589
      %v2610 = vmul.f32 %v2577, %v2589
      %v2611 = vmul.f32 %v2578, %v2589
      %v2612 = vmul.f32 %v2579, %v2589
      %v2613 = vmul.f32 %v2580, %v2589
      %v2614 = vmul.f32 %v2581, %v2589
      %v2615 = vmul.f32 %v2582, %v2589
      %v2616 = vmul.f32 %v2583, %v2589
      %v2617 = vmul.f32 %v2584, %v2589
      %v2618 = vmul.f32 %v2585, %v2589
      %v2619 = vmul.f32 %v2586, %v2589
      %v2620 = vmul.f32 %v2587, %v2589
      %v2621 = vmul.f32 %v2588, %v2589
      %v2622 = vadd.f32 %v2525, %v2590
      %v2623 = vadd.f32 %v2526, %v2591
      %v2624 = vadd.f32 %v2527, %v2592
      %v2625 = vadd.f32 %v2528, %v2593
      %v2626 = vadd.f32 %v2529, %v2594
      %v2627 = vadd.f32 %v2530, %v2595
      %v2628 = vadd.f32 %v2531, %v2596
      %v2629 = vadd.f32 %v2532, %v2597
      %v2630 = vadd.f32 %v2533, %v2598
      %v2631 = vadd.f32 %v2534, %v2599
      %v2632 = vadd.f32 %v2535, %v2600
      %v2633 = vadd.f32 %v2536, %v2601
      %v2634 = vadd.f32 %v2537, %v2602
      %v2635 = vadd.f32 %v2538, %v2603
      %v2636 = vadd.f32 %v2539, %v2604
      %v2637 = vadd.f32 %v2540, %v2605
      %v2638 = vadd.f32 %v2541, %v2606
      %v2639 = vadd.f32 %v2542, %v2607
      %v2640 = vadd.f32 %v2543, %v2608
      %v2641 = vadd.f32 %v2544, %v2609
      %v2642 = vadd.f32 %v2545, %v2610
      %v2643 = vadd.f32 %v2546, %v2611
      %v2644 = vadd.f32 %v2547, %v2612
      %v2645 = vadd.f32 %v2548, %v2613
      %v2646 = vadd.f32 %v2549, %v2614
      %v2647 = vadd.f32 %v2550, %v2615
      %v2648 = vadd.f32 %v2551, %v2616
      %v2649 = vadd.f32 %v2552, %v2617
      %v2650 = vadd.f32 %v2553, %v2618
      %v2651 = vadd.f32 %v2554, %v2619
      %v2652 = vadd.f32 %v2555, %v2620
      %v2653 = vadd.f32 %v2556, %v2621
      %v2654 = vld [vmem:[%s613 + $0x3] sm:$0xff]
      %v2655 = vld [vmem:[%s613 + $0xb] sm:$0xff]
      %v2656 = vld [vmem:[%s613 + $0x1b] sm:$0xff]
      %v2657 = vld [vmem:[%s613 + $0x23] sm:$0xff]
      %v2658 = vld [vmem:[%s613 + $0x33] sm:$0xff]
      %v2659 = vld [vmem:[%s613 + $0x3b] sm:$0xff]
      %v2660 = vld [vmem:[%s613 + $0x4b] sm:$0xff]
      %v2661 = vld [vmem:[%s613 + $0x53] sm:$0xff]
      %v2662 = vld [vmem:[%s613 + $0x63] sm:$0xff]
      %v2663 = vld [vmem:[%s613 + $0x6b] sm:$0xff]
      %v2664 = vld [vmem:[%s613 + $0x7b] sm:$0xff]
      %v2665 = vld [vmem:[%s613 + $0x83] sm:$0xff]
      %v2666 = vld [vmem:[%s613 + $0x93] sm:$0xff]
      %v2667 = vld [vmem:[%s613 + $0x9b] sm:$0xff]
      %v2668 = vld [vmem:[%s613 + $0xab] sm:$0xff]
      %v2669 = vld [vmem:[%s613 + $0xb3] sm:$0xff]
      %v2670 = vld [vmem:[%s613 + $0xc3] sm:$0xff]
      %v2671 = vld [vmem:[%s613 + $0xcb] sm:$0xff]
      %v2672 = vld [vmem:[%s613 + $0xdb] sm:$0xff]
      %v2673 = vld [vmem:[%s613 + $0xe3] sm:$0xff]
      %v2674 = vld [vmem:[%s613 + $0xf3] sm:$0xff]
      %v2675 = vld [vmem:[%s613 + $0xfb] sm:$0xff]
      %v2676 = vld [vmem:[%s613 + $0x10b] sm:$0xff]
      %v2677 = vld [vmem:[%s613 + $0x113] sm:$0xff]
      %v2678 = vld [vmem:[%s613 + $0x123] sm:$0xff]
      %v2679 = vld [vmem:[%s613 + $0x12b] sm:$0xff]
      %v2680 = vld [vmem:[%s613 + $0x13b] sm:$0xff]
      %v2681 = vld [vmem:[%s613 + $0x143] sm:$0xff]
      %v2682 = vld [vmem:[%s613 + $0x153] sm:$0xff]
      %v2683 = vld [vmem:[%s613 + $0x15b] sm:$0xff]
      %v2684 = vld [vmem:[%s613 + $0x16b] sm:$0xff]
      %v2685 = vld [vmem:[%s613 + $0x173] sm:$0xff]
      %v2686 = vperm.slane %v313, 3
      %v2687 = vmul.f32 %v2654, %v2686
      %v2688 = vmul.f32 %v2655, %v2686
      %v2689 = vmul.f32 %v2656, %v2686
      %v2690 = vmul.f32 %v2657, %v2686
      %v2691 = vmul.f32 %v2658, %v2686
      %v2692 = vmul.f32 %v2659, %v2686
      %v2693 = vmul.f32 %v2660, %v2686
      %v2694 = vmul.f32 %v2661, %v2686
      %v2695 = vmul.f32 %v2662, %v2686
      %v2696 = vmul.f32 %v2663, %v2686
      %v2697 = vmul.f32 %v2664, %v2686
      %v2698 = vmul.f32 %v2665, %v2686
      %v2699 = vmul.f32 %v2666, %v2686
      %v2700 = vmul.f32 %v2667, %v2686
      %v2701 = vmul.f32 %v2668, %v2686
      %v2702 = vmul.f32 %v2669, %v2686
      %v2703 = vmul.f32 %v2670, %v2686
      %v2704 = vmul.f32 %v2671, %v2686
      %v2705 = vmul.f32 %v2672, %v2686
      %v2706 = vmul.f32 %v2673, %v2686
      %v2707 = vmul.f32 %v2674, %v2686
      %v2708 = vmul.f32 %v2675, %v2686
      %v2709 = vmul.f32 %v2676, %v2686
      %v2710 = vmul.f32 %v2677, %v2686
      %v2711 = vmul.f32 %v2678, %v2686
      %v2712 = vmul.f32 %v2679, %v2686
      %v2713 = vmul.f32 %v2680, %v2686
      %v2714 = vmul.f32 %v2681, %v2686
      %v2715 = vmul.f32 %v2682, %v2686
      %v2716 = vmul.f32 %v2683, %v2686
      %v2717 = vmul.f32 %v2684, %v2686
      %v2718 = vmul.f32 %v2685, %v2686
      %v2719 = vadd.f32 %v2622, %v2687
      %v2720 = vadd.f32 %v2623, %v2688
      %v2721 = vadd.f32 %v2624, %v2689
      %v2722 = vadd.f32 %v2625, %v2690
      %v2723 = vadd.f32 %v2626, %v2691
      %v2724 = vadd.f32 %v2627, %v2692
      %v2725 = vadd.f32 %v2628, %v2693
      %v2726 = vadd.f32 %v2629, %v2694
      %v2727 = vadd.f32 %v2630, %v2695
      %v2728 = vadd.f32 %v2631, %v2696
      %v2729 = vadd.f32 %v2632, %v2697
      %v2730 = vadd.f32 %v2633, %v2698
      %v2731 = vadd.f32 %v2634, %v2699
      %v2732 = vadd.f32 %v2635, %v2700
      %v2733 = vadd.f32 %v2636, %v2701
      %v2734 = vadd.f32 %v2637, %v2702
      %v2735 = vadd.f32 %v2638, %v2703
      %v2736 = vadd.f32 %v2639, %v2704
      %v2737 = vadd.f32 %v2640, %v2705
      %v2738 = vadd.f32 %v2641, %v2706
      %v2739 = vadd.f32 %v2642, %v2707
      %v2740 = vadd.f32 %v2643, %v2708
      %v2741 = vadd.f32 %v2644, %v2709
      %v2742 = vadd.f32 %v2645, %v2710
      %v2743 = vadd.f32 %v2646, %v2711
      %v2744 = vadd.f32 %v2647, %v2712
      %v2745 = vadd.f32 %v2648, %v2713
      %v2746 = vadd.f32 %v2649, %v2714
      %v2747 = vadd.f32 %v2650, %v2715
      %v2748 = vadd.f32 %v2651, %v2716
      %v2749 = vadd.f32 %v2652, %v2717
      %v2750 = vadd.f32 %v2653, %v2718
      %v2751 = vld [vmem:[%s711 + $0x3] sm:$0xff]
      %v2752 = vld [vmem:[%s711 + $0xb] sm:$0xff]
      %v2753 = vld [vmem:[%s711 + $0x1b] sm:$0xff]
      %v2754 = vld [vmem:[%s711 + $0x23] sm:$0xff]
      %v2755 = vld [vmem:[%s711 + $0x33] sm:$0xff]
      %v2756 = vld [vmem:[%s711 + $0x3b] sm:$0xff]
      %v2757 = vld [vmem:[%s711 + $0x4b] sm:$0xff]
      %v2758 = vld [vmem:[%s711 + $0x53] sm:$0xff]
      %v2759 = vld [vmem:[%s711 + $0x63] sm:$0xff]
      %v2760 = vld [vmem:[%s711 + $0x6b] sm:$0xff]
      %v2761 = vld [vmem:[%s711 + $0x7b] sm:$0xff]
      %v2762 = vld [vmem:[%s711 + $0x83] sm:$0xff]
      %v2763 = vld [vmem:[%s711 + $0x93] sm:$0xff]
      %v2764 = vld [vmem:[%s711 + $0x9b] sm:$0xff]
      %v2765 = vld [vmem:[%s711 + $0xab] sm:$0xff]
      %v2766 = vld [vmem:[%s711 + $0xb3] sm:$0xff]
      %v2767 = vld [vmem:[%s711 + $0xc3] sm:$0xff]
      %v2768 = vld [vmem:[%s711 + $0xcb] sm:$0xff]
      %v2769 = vld [vmem:[%s711 + $0xdb] sm:$0xff]
      %v2770 = vld [vmem:[%s711 + $0xe3] sm:$0xff]
      %v2771 = vld [vmem:[%s711 + $0xf3] sm:$0xff]
      %v2772 = vld [vmem:[%s711 + $0xfb] sm:$0xff]
      %v2773 = vld [vmem:[%s711 + $0x10b] sm:$0xff]
      %v2774 = vld [vmem:[%s711 + $0x113] sm:$0xff]
      %v2775 = vld [vmem:[%s711 + $0x123] sm:$0xff]
      %v2776 = vld [vmem:[%s711 + $0x12b] sm:$0xff]
      %v2777 = vld [vmem:[%s711 + $0x13b] sm:$0xff]
      %v2778 = vld [vmem:[%s711 + $0x143] sm:$0xff]
      %v2779 = vld [vmem:[%s711 + $0x153] sm:$0xff]
      %v2780 = vld [vmem:[%s711 + $0x15b] sm:$0xff]
      %v2781 = vld [vmem:[%s711 + $0x16b] sm:$0xff]
      %v2782 = vld [vmem:[%s711 + $0x173] sm:$0xff]
      %v2783 = vperm.slane %v314, 3
      %v2784 = vmul.f32 %v2751, %v2783
      %v2785 = vmul.f32 %v2752, %v2783
      %v2786 = vmul.f32 %v2753, %v2783
      %v2787 = vmul.f32 %v2754, %v2783
      %v2788 = vmul.f32 %v2755, %v2783
      %v2789 = vmul.f32 %v2756, %v2783
      %v2790 = vmul.f32 %v2757, %v2783
      %v2791 = vmul.f32 %v2758, %v2783
      %v2792 = vmul.f32 %v2759, %v2783
      %v2793 = vmul.f32 %v2760, %v2783
      %v2794 = vmul.f32 %v2761, %v2783
      %v2795 = vmul.f32 %v2762, %v2783
      %v2796 = vmul.f32 %v2763, %v2783
      %v2797 = vmul.f32 %v2764, %v2783
      %v2798 = vmul.f32 %v2765, %v2783
      %v2799 = vmul.f32 %v2766, %v2783
      %v2800 = vmul.f32 %v2767, %v2783
      %v2801 = vmul.f32 %v2768, %v2783
      %v2802 = vmul.f32 %v2769, %v2783
      %v2803 = vmul.f32 %v2770, %v2783
      %v2804 = vmul.f32 %v2771, %v2783
      %v2805 = vmul.f32 %v2772, %v2783
      %v2806 = vmul.f32 %v2773, %v2783
      %v2807 = vmul.f32 %v2774, %v2783
      %v2808 = vmul.f32 %v2775, %v2783
      %v2809 = vmul.f32 %v2776, %v2783
      %v2810 = vmul.f32 %v2777, %v2783
      %v2811 = vmul.f32 %v2778, %v2783
      %v2812 = vmul.f32 %v2779, %v2783
      %v2813 = vmul.f32 %v2780, %v2783
      %v2814 = vmul.f32 %v2781, %v2783
      %v2815 = vmul.f32 %v2782, %v2783
      %v2816 = vadd.f32 %v2719, %v2784
      %v2817 = vadd.f32 %v2720, %v2785
      %v2818 = vadd.f32 %v2721, %v2786
      %v2819 = vadd.f32 %v2722, %v2787
      %v2820 = vadd.f32 %v2723, %v2788
      %v2821 = vadd.f32 %v2724, %v2789
      %v2822 = vadd.f32 %v2725, %v2790
      %v2823 = vadd.f32 %v2726, %v2791
      %v2824 = vadd.f32 %v2727, %v2792
      %v2825 = vadd.f32 %v2728, %v2793
      %v2826 = vadd.f32 %v2729, %v2794
      %v2827 = vadd.f32 %v2730, %v2795
      %v2828 = vadd.f32 %v2731, %v2796
      %v2829 = vadd.f32 %v2732, %v2797
      %v2830 = vadd.f32 %v2733, %v2798
      %v2831 = vadd.f32 %v2734, %v2799
      %v2832 = vadd.f32 %v2735, %v2800
      %v2833 = vadd.f32 %v2736, %v2801
      %v2834 = vadd.f32 %v2737, %v2802
      %v2835 = vadd.f32 %v2738, %v2803
      %v2836 = vadd.f32 %v2739, %v2804
      %v2837 = vadd.f32 %v2740, %v2805
      %v2838 = vadd.f32 %v2741, %v2806
      %v2839 = vadd.f32 %v2742, %v2807
      %v2840 = vadd.f32 %v2743, %v2808
      %v2841 = vadd.f32 %v2744, %v2809
      %v2842 = vadd.f32 %v2745, %v2810
      %v2843 = vadd.f32 %v2746, %v2811
      %v2844 = vadd.f32 %v2747, %v2812
      %v2845 = vadd.f32 %v2748, %v2813
      %v2846 = vadd.f32 %v2749, %v2814
      %v2847 = vadd.f32 %v2750, %v2815
      %v2848 = vld [vmem:[%s809 + $0x3] sm:$0xff]
      %v2849 = vld [vmem:[%s809 + $0xb] sm:$0xff]
      %v2850 = vld [vmem:[%s809 + $0x1b] sm:$0xff]
      %v2851 = vld [vmem:[%s809 + $0x23] sm:$0xff]
      %v2852 = vld [vmem:[%s809 + $0x33] sm:$0xff]
      %v2853 = vld [vmem:[%s809 + $0x3b] sm:$0xff]
      %v2854 = vld [vmem:[%s809 + $0x4b] sm:$0xff]
      %v2855 = vld [vmem:[%s809 + $0x53] sm:$0xff]
      %v2856 = vld [vmem:[%s809 + $0x63] sm:$0xff]
      %v2857 = vld [vmem:[%s809 + $0x6b] sm:$0xff]
      %v2858 = vld [vmem:[%s809 + $0x7b] sm:$0xff]
      %v2859 = vld [vmem:[%s809 + $0x83] sm:$0xff]
      %v2860 = vld [vmem:[%s809 + $0x93] sm:$0xff]
      %v2861 = vld [vmem:[%s809 + $0x9b] sm:$0xff]
      %v2862 = vld [vmem:[%s809 + $0xab] sm:$0xff]
      %v2863 = vld [vmem:[%s809 + $0xb3] sm:$0xff]
      %v2864 = vld [vmem:[%s809 + $0xc3] sm:$0xff]
      %v2865 = vld [vmem:[%s809 + $0xcb] sm:$0xff]
      %v2866 = vld [vmem:[%s809 + $0xdb] sm:$0xff]
      %v2867 = vld [vmem:[%s809 + $0xe3] sm:$0xff]
      %v2868 = vld [vmem:[%s809 + $0xf3] sm:$0xff]
      %v2869 = vld [vmem:[%s809 + $0xfb] sm:$0xff]
      %v2870 = vld [vmem:[%s809 + $0x10b] sm:$0xff]
      %v2871 = vld [vmem:[%s809 + $0x113] sm:$0xff]
      %v2872 = vld [vmem:[%s809 + $0x123] sm:$0xff]
      %v2873 = vld [vmem:[%s809 + $0x12b] sm:$0xff]
      %v2874 = vld [vmem:[%s809 + $0x13b] sm:$0xff]
      %v2875 = vld [vmem:[%s809 + $0x143] sm:$0xff]
      %v2876 = vld [vmem:[%s809 + $0x153] sm:$0xff]
      %v2877 = vld [vmem:[%s809 + $0x15b] sm:$0xff]
      %v2878 = vld [vmem:[%s809 + $0x16b] sm:$0xff]
      %v2879 = vld [vmem:[%s809 + $0x173] sm:$0xff]
      %v2880 = vperm.slane %v315, 3
      %v2881 = vmul.f32 %v2848, %v2880
      %v2882 = vmul.f32 %v2849, %v2880
      %v2883 = vmul.f32 %v2850, %v2880
      %v2884 = vmul.f32 %v2851, %v2880
      %v2885 = vmul.f32 %v2852, %v2880
      %v2886 = vmul.f32 %v2853, %v2880
      %v2887 = vmul.f32 %v2854, %v2880
      %v2888 = vmul.f32 %v2855, %v2880
      %v2889 = vmul.f32 %v2856, %v2880
      %v2890 = vmul.f32 %v2857, %v2880
      %v2891 = vmul.f32 %v2858, %v2880
      %v2892 = vmul.f32 %v2859, %v2880
      %v2893 = vmul.f32 %v2860, %v2880
      %v2894 = vmul.f32 %v2861, %v2880
      %v2895 = vmul.f32 %v2862, %v2880
      %v2896 = vmul.f32 %v2863, %v2880
      %v2897 = vmul.f32 %v2864, %v2880
      %v2898 = vmul.f32 %v2865, %v2880
      %v2899 = vmul.f32 %v2866, %v2880
      %v2900 = vmul.f32 %v2867, %v2880
      %v2901 = vmul.f32 %v2868, %v2880
      %v2902 = vmul.f32 %v2869, %v2880
      %v2903 = vmul.f32 %v2870, %v2880
      %v2904 = vmul.f32 %v2871, %v2880
      %v2905 = vmul.f32 %v2872, %v2880
      %v2906 = vmul.f32 %v2873, %v2880
      %v2907 = vmul.f32 %v2874, %v2880
      %v2908 = vmul.f32 %v2875, %v2880
      %v2909 = vmul.f32 %v2876, %v2880
      %v2910 = vmul.f32 %v2877, %v2880
      %v2911 = vmul.f32 %v2878, %v2880
      %v2912 = vmul.f32 %v2879, %v2880
      %v2913 = vadd.f32 %v2816, %v2881
      %v2914 = vadd.f32 %v2817, %v2882
      %v2915 = vadd.f32 %v2818, %v2883
      %v2916 = vadd.f32 %v2819, %v2884
      %v2917 = vadd.f32 %v2820, %v2885
      %v2918 = vadd.f32 %v2821, %v2886
      %v2919 = vadd.f32 %v2822, %v2887
      %v2920 = vadd.f32 %v2823, %v2888
      %v2921 = vadd.f32 %v2824, %v2889
      %v2922 = vadd.f32 %v2825, %v2890
      %v2923 = vadd.f32 %v2826, %v2891
      %v2924 = vadd.f32 %v2827, %v2892
      %v2925 = vadd.f32 %v2828, %v2893
      %v2926 = vadd.f32 %v2829, %v2894
      %v2927 = vadd.f32 %v2830, %v2895
      %v2928 = vadd.f32 %v2831, %v2896
      %v2929 = vadd.f32 %v2832, %v2897
      %v2930 = vadd.f32 %v2833, %v2898
      %v2931 = vadd.f32 %v2834, %v2899
      %v2932 = vadd.f32 %v2835, %v2900
      %v2933 = vadd.f32 %v2836, %v2901
      %v2934 = vadd.f32 %v2837, %v2902
      %v2935 = vadd.f32 %v2838, %v2903
      %v2936 = vadd.f32 %v2839, %v2904
      %v2937 = vadd.f32 %v2840, %v2905
      %v2938 = vadd.f32 %v2841, %v2906
      %v2939 = vadd.f32 %v2842, %v2907
      %v2940 = vadd.f32 %v2843, %v2908
      %v2941 = vadd.f32 %v2844, %v2909
      %v2942 = vadd.f32 %v2845, %v2910
      %v2943 = vadd.f32 %v2846, %v2911
      %v2944 = vadd.f32 %v2847, %v2912
      %v2945 = vld [vmem:[%s907 + $0x3] sm:$0xff]
      %v2946 = vld [vmem:[%s907 + $0xb] sm:$0xff]
      %v2947 = vld [vmem:[%s907 + $0x1b] sm:$0xff]
      %v2948 = vld [vmem:[%s907 + $0x23] sm:$0xff]
      %v2949 = vld [vmem:[%s907 + $0x33] sm:$0xff]
      %v2950 = vld [vmem:[%s907 + $0x3b] sm:$0xff]
      %v2951 = vld [vmem:[%s907 + $0x4b] sm:$0xff]
      %v2952 = vld [vmem:[%s907 + $0x53] sm:$0xff]
      %v2953 = vld [vmem:[%s907 + $0x63] sm:$0xff]
      %v2954 = vld [vmem:[%s907 + $0x6b] sm:$0xff]
      %v2955 = vld [vmem:[%s907 + $0x7b] sm:$0xff]
      %v2956 = vld [vmem:[%s907 + $0x83] sm:$0xff]
      %v2957 = vld [vmem:[%s907 + $0x93] sm:$0xff]
      %v2958 = vld [vmem:[%s907 + $0x9b] sm:$0xff]
      %v2959 = vld [vmem:[%s907 + $0xab] sm:$0xff]
      %v2960 = vld [vmem:[%s907 + $0xb3] sm:$0xff]
      %v2961 = vld [vmem:[%s907 + $0xc3] sm:$0xff]
      %v2962 = vld [vmem:[%s907 + $0xcb] sm:$0xff]
      %v2963 = vld [vmem:[%s907 + $0xdb] sm:$0xff]
      %v2964 = vld [vmem:[%s907 + $0xe3] sm:$0xff]
      %v2965 = vld [vmem:[%s907 + $0xf3] sm:$0xff]
      %v2966 = vld [vmem:[%s907 + $0xfb] sm:$0xff]
      %v2967 = vld [vmem:[%s907 + $0x10b] sm:$0xff]
      %v2968 = vld [vmem:[%s907 + $0x113] sm:$0xff]
      %v2969 = vld [vmem:[%s907 + $0x123] sm:$0xff]
      %v2970 = vld [vmem:[%s907 + $0x12b] sm:$0xff]
      %v2971 = vld [vmem:[%s907 + $0x13b] sm:$0xff]
      %v2972 = vld [vmem:[%s907 + $0x143] sm:$0xff]
      %v2973 = vld [vmem:[%s907 + $0x153] sm:$0xff]
      %v2974 = vld [vmem:[%s907 + $0x15b] sm:$0xff]
      %v2975 = vld [vmem:[%s907 + $0x16b] sm:$0xff]
      %v2976 = vld [vmem:[%s907 + $0x173] sm:$0xff]
      %v2977 = vperm.slane %v316, 3
      %v2978 = vmul.f32 %v2945, %v2977
      %v2979 = vmul.f32 %v2946, %v2977
      %v2980 = vmul.f32 %v2947, %v2977
      %v2981 = vmul.f32 %v2948, %v2977
      %v2982 = vmul.f32 %v2949, %v2977
      %v2983 = vmul.f32 %v2950, %v2977
      %v2984 = vmul.f32 %v2951, %v2977
      %v2985 = vmul.f32 %v2952, %v2977
      %v2986 = vmul.f32 %v2953, %v2977
      %v2987 = vmul.f32 %v2954, %v2977
      %v2988 = vmul.f32 %v2955, %v2977
      %v2989 = vmul.f32 %v2956, %v2977
      %v2990 = vmul.f32 %v2957, %v2977
      %v2991 = vmul.f32 %v2958, %v2977
      %v2992 = vmul.f32 %v2959, %v2977
      %v2993 = vmul.f32 %v2960, %v2977
      %v2994 = vmul.f32 %v2961, %v2977
      %v2995 = vmul.f32 %v2962, %v2977
      %v2996 = vmul.f32 %v2963, %v2977
      %v2997 = vmul.f32 %v2964, %v2977
      %v2998 = vmul.f32 %v2965, %v2977
      %v2999 = vmul.f32 %v2966, %v2977
      %v3000 = vmul.f32 %v2967, %v2977
      %v3001 = vmul.f32 %v2968, %v2977
      %v3002 = vmul.f32 %v2969, %v2977
      %v3003 = vmul.f32 %v2970, %v2977
      %v3004 = vmul.f32 %v2971, %v2977
      %v3005 = vmul.f32 %v2972, %v2977
      %v3006 = vmul.f32 %v2973, %v2977
      %v3007 = vmul.f32 %v2974, %v2977
      %v3008 = vmul.f32 %v2975, %v2977
      %v3009 = vmul.f32 %v2976, %v2977
      %v3010 = vadd.f32 %v2913, %v2978
      %v3011 = vadd.f32 %v2914, %v2979
      %v3012 = vadd.f32 %v2915, %v2980
      %v3013 = vadd.f32 %v2916, %v2981
      %v3014 = vadd.f32 %v2917, %v2982
      %v3015 = vadd.f32 %v2918, %v2983
      %v3016 = vadd.f32 %v2919, %v2984
      %v3017 = vadd.f32 %v2920, %v2985
      %v3018 = vadd.f32 %v2921, %v2986
      %v3019 = vadd.f32 %v2922, %v2987
      %v3020 = vadd.f32 %v2923, %v2988
      %v3021 = vadd.f32 %v2924, %v2989
      %v3022 = vadd.f32 %v2925, %v2990
      %v3023 = vadd.f32 %v2926, %v2991
      %v3024 = vadd.f32 %v2927, %v2992
      %v3025 = vadd.f32 %v2928, %v2993
      %v3026 = vadd.f32 %v2929, %v2994
      %v3027 = vadd.f32 %v2930, %v2995
      %v3028 = vadd.f32 %v2931, %v2996
      %v3029 = vadd.f32 %v2932, %v2997
      %v3030 = vadd.f32 %v2933, %v2998
      %v3031 = vadd.f32 %v2934, %v2999
      %v3032 = vadd.f32 %v2935, %v3000
      %v3033 = vadd.f32 %v2936, %v3001
      %v3034 = vadd.f32 %v2937, %v3002
      %v3035 = vadd.f32 %v2938, %v3003
      %v3036 = vadd.f32 %v2939, %v3004
      %v3037 = vadd.f32 %v2940, %v3005
      %v3038 = vadd.f32 %v2941, %v3006
      %v3039 = vadd.f32 %v2942, %v3007
      %v3040 = vadd.f32 %v2943, %v3008
      %v3041 = vadd.f32 %v2944, %v3009
      %v3042 = vld [vmem:[%s297 + $0x4] sm:$0xff]
      %v3043 = vld [vmem:[%s297 + $0xc] sm:$0xff]
      %v3044 = vld [vmem:[%s297 + $0x1c] sm:$0xff]
      %v3045 = vld [vmem:[%s297 + $0x24] sm:$0xff]
      %v3046 = vld [vmem:[%s297 + $0x34] sm:$0xff]
      %v3047 = vld [vmem:[%s297 + $0x3c] sm:$0xff]
      %v3048 = vld [vmem:[%s297 + $0x4c] sm:$0xff]
      %v3049 = vld [vmem:[%s297 + $0x54] sm:$0xff]
      %v3050 = vld [vmem:[%s297 + $0x64] sm:$0xff]
      %v3051 = vld [vmem:[%s297 + $0x6c] sm:$0xff]
      %v3052 = vld [vmem:[%s297 + $0x7c] sm:$0xff]
      %v3053 = vld [vmem:[%s297 + $0x84] sm:$0xff]
      %v3054 = vld [vmem:[%s297 + $0x94] sm:$0xff]
      %v3055 = vld [vmem:[%s297 + $0x9c] sm:$0xff]
      %v3056 = vld [vmem:[%s297 + $0xac] sm:$0xff]
      %v3057 = vld [vmem:[%s297 + $0xb4] sm:$0xff]
      %v3058 = vld [vmem:[%s297 + $0xc4] sm:$0xff]
      %v3059 = vld [vmem:[%s297 + $0xcc] sm:$0xff]
      %v3060 = vld [vmem:[%s297 + $0xdc] sm:$0xff]
      %v3061 = vld [vmem:[%s297 + $0xe4] sm:$0xff]
      %v3062 = vld [vmem:[%s297 + $0xf4] sm:$0xff]
      %v3063 = vld [vmem:[%s297 + $0xfc] sm:$0xff]
      %v3064 = vld [vmem:[%s297 + $0x10c] sm:$0xff]
      %v3065 = vld [vmem:[%s297 + $0x114] sm:$0xff]
      %v3066 = vld [vmem:[%s297 + $0x124] sm:$0xff]
      %v3067 = vld [vmem:[%s297 + $0x12c] sm:$0xff]
      %v3068 = vld [vmem:[%s297 + $0x13c] sm:$0xff]
      %v3069 = vld [vmem:[%s297 + $0x144] sm:$0xff]
      %v3070 = vld [vmem:[%s297 + $0x154] sm:$0xff]
      %v3071 = vld [vmem:[%s297 + $0x15c] sm:$0xff]
      %v3072 = vld [vmem:[%s297 + $0x16c] sm:$0xff]
      %v3073 = vld [vmem:[%s297 + $0x174] sm:$0xff]
      %v3074 = vperm.slane %v310, 4
      %v3075 = vmul.f32 %v3042, %v3074
      %v3076 = vmul.f32 %v3043, %v3074
      %v3077 = vmul.f32 %v3044, %v3074
      %v3078 = vmul.f32 %v3045, %v3074
      %v3079 = vmul.f32 %v3046, %v3074
      %v3080 = vmul.f32 %v3047, %v3074
      %v3081 = vmul.f32 %v3048, %v3074
      %v3082 = vmul.f32 %v3049, %v3074
      %v3083 = vmul.f32 %v3050, %v3074
      %v3084 = vmul.f32 %v3051, %v3074
      %v3085 = vmul.f32 %v3052, %v3074
      %v3086 = vmul.f32 %v3053, %v3074
      %v3087 = vmul.f32 %v3054, %v3074
      %v3088 = vmul.f32 %v3055, %v3074
      %v3089 = vmul.f32 %v3056, %v3074
      %v3090 = vmul.f32 %v3057, %v3074
      %v3091 = vmul.f32 %v3058, %v3074
      %v3092 = vmul.f32 %v3059, %v3074
      %v3093 = vmul.f32 %v3060, %v3074
      %v3094 = vmul.f32 %v3061, %v3074
      %v3095 = vmul.f32 %v3062, %v3074
      %v3096 = vmul.f32 %v3063, %v3074
      %v3097 = vmul.f32 %v3064, %v3074
      %v3098 = vmul.f32 %v3065, %v3074
      %v3099 = vmul.f32 %v3066, %v3074
      %v3100 = vmul.f32 %v3067, %v3074
      %v3101 = vmul.f32 %v3068, %v3074
      %v3102 = vmul.f32 %v3069, %v3074
      %v3103 = vmul.f32 %v3070, %v3074
      %v3104 = vmul.f32 %v3071, %v3074
      %v3105 = vmul.f32 %v3072, %v3074
      %v3106 = vmul.f32 %v3073, %v3074
      %v3107 = vadd.f32 %v3010, %v3075
      %v3108 = vadd.f32 %v3011, %v3076
      %v3109 = vadd.f32 %v3012, %v3077
      %v3110 = vadd.f32 %v3013, %v3078
      %v3111 = vadd.f32 %v3014, %v3079
      %v3112 = vadd.f32 %v3015, %v3080
      %v3113 = vadd.f32 %v3016, %v3081
      %v3114 = vadd.f32 %v3017, %v3082
      %v3115 = vadd.f32 %v3018, %v3083
      %v3116 = vadd.f32 %v3019, %v3084
      %v3117 = vadd.f32 %v3020, %v3085
      %v3118 = vadd.f32 %v3021, %v3086
      %v3119 = vadd.f32 %v3022, %v3087
      %v3120 = vadd.f32 %v3023, %v3088
      %v3121 = vadd.f32 %v3024, %v3089
      %v3122 = vadd.f32 %v3025, %v3090
      %v3123 = vadd.f32 %v3026, %v3091
      %v3124 = vadd.f32 %v3027, %v3092
      %v3125 = vadd.f32 %v3028, %v3093
      %v3126 = vadd.f32 %v3029, %v3094
      %v3127 = vadd.f32 %v3030, %v3095
      %v3128 = vadd.f32 %v3031, %v3096
      %v3129 = vadd.f32 %v3032, %v3097
      %v3130 = vadd.f32 %v3033, %v3098
      %v3131 = vadd.f32 %v3034, %v3099
      %v3132 = vadd.f32 %v3035, %v3100
      %v3133 = vadd.f32 %v3036, %v3101
      %v3134 = vadd.f32 %v3037, %v3102
      %v3135 = vadd.f32 %v3038, %v3103
      %v3136 = vadd.f32 %v3039, %v3104
      %v3137 = vadd.f32 %v3040, %v3105
      %v3138 = vadd.f32 %v3041, %v3106
      %v3139 = vld [vmem:[%s417 + $0x4] sm:$0xff]
      %v3140 = vld [vmem:[%s417 + $0xc] sm:$0xff]
      %v3141 = vld [vmem:[%s417 + $0x1c] sm:$0xff]
      %v3142 = vld [vmem:[%s417 + $0x24] sm:$0xff]
      %v3143 = vld [vmem:[%s417 + $0x34] sm:$0xff]
      %v3144 = vld [vmem:[%s417 + $0x3c] sm:$0xff]
      %v3145 = vld [vmem:[%s417 + $0x4c] sm:$0xff]
      %v3146 = vld [vmem:[%s417 + $0x54] sm:$0xff]
      %v3147 = vld [vmem:[%s417 + $0x64] sm:$0xff]
      %v3148 = vld [vmem:[%s417 + $0x6c] sm:$0xff]
      %v3149 = vld [vmem:[%s417 + $0x7c] sm:$0xff]
      %v3150 = vld [vmem:[%s417 + $0x84] sm:$0xff]
      %v3151 = vld [vmem:[%s417 + $0x94] sm:$0xff]
      %v3152 = vld [vmem:[%s417 + $0x9c] sm:$0xff]
      %v3153 = vld [vmem:[%s417 + $0xac] sm:$0xff]
      %v3154 = vld [vmem:[%s417 + $0xb4] sm:$0xff]
      %v3155 = vld [vmem:[%s417 + $0xc4] sm:$0xff]
      %v3156 = vld [vmem:[%s417 + $0xcc] sm:$0xff]
      %v3157 = vld [vmem:[%s417 + $0xdc] sm:$0xff]
      %v3158 = vld [vmem:[%s417 + $0xe4] sm:$0xff]
      %v3159 = vld [vmem:[%s417 + $0xf4] sm:$0xff]
      %v3160 = vld [vmem:[%s417 + $0xfc] sm:$0xff]
      %v3161 = vld [vmem:[%s417 + $0x10c] sm:$0xff]
      %v3162 = vld [vmem:[%s417 + $0x114] sm:$0xff]
      %v3163 = vld [vmem:[%s417 + $0x124] sm:$0xff]
      %v3164 = vld [vmem:[%s417 + $0x12c] sm:$0xff]
      %v3165 = vld [vmem:[%s417 + $0x13c] sm:$0xff]
      %v3166 = vld [vmem:[%s417 + $0x144] sm:$0xff]
      %v3167 = vld [vmem:[%s417 + $0x154] sm:$0xff]
      %v3168 = vld [vmem:[%s417 + $0x15c] sm:$0xff]
      %v3169 = vld [vmem:[%s417 + $0x16c] sm:$0xff]
      %v3170 = vld [vmem:[%s417 + $0x174] sm:$0xff]
      %v3171 = vperm.slane %v311, 4
      %v3172 = vmul.f32 %v3139, %v3171
      %v3173 = vmul.f32 %v3140, %v3171
      %v3174 = vmul.f32 %v3141, %v3171
      %v3175 = vmul.f32 %v3142, %v3171
      %v3176 = vmul.f32 %v3143, %v3171
      %v3177 = vmul.f32 %v3144, %v3171
      %v3178 = vmul.f32 %v3145, %v3171
      %v3179 = vmul.f32 %v3146, %v3171
      %v3180 = vmul.f32 %v3147, %v3171
      %v3181 = vmul.f32 %v3148, %v3171
      %v3182 = vmul.f32 %v3149, %v3171
      %v3183 = vmul.f32 %v3150, %v3171
      %v3184 = vmul.f32 %v3151, %v3171
      %v3185 = vmul.f32 %v3152, %v3171
      %v3186 = vmul.f32 %v3153, %v3171
      %v3187 = vmul.f32 %v3154, %v3171
      %v3188 = vmul.f32 %v3155, %v3171
      %v3189 = vmul.f32 %v3156, %v3171
      %v3190 = vmul.f32 %v3157, %v3171
      %v3191 = vmul.f32 %v3158, %v3171
      %v3192 = vmul.f32 %v3159, %v3171
      %v3193 = vmul.f32 %v3160, %v3171
      %v3194 = vmul.f32 %v3161, %v3171
      %v3195 = vmul.f32 %v3162, %v3171
      %v3196 = vmul.f32 %v3163, %v3171
      %v3197 = vmul.f32 %v3164, %v3171
      %v3198 = vmul.f32 %v3165, %v3171
      %v3199 = vmul.f32 %v3166, %v3171
      %v3200 = vmul.f32 %v3167, %v3171
      %v3201 = vmul.f32 %v3168, %v3171
      %v3202 = vmul.f32 %v3169, %v3171
      %v3203 = vmul.f32 %v3170, %v3171
      %v3204 = vadd.f32 %v3107, %v3172
      %v3205 = vadd.f32 %v3108, %v3173
      %v3206 = vadd.f32 %v3109, %v3174
      %v3207 = vadd.f32 %v3110, %v3175
      %v3208 = vadd.f32 %v3111, %v3176
      %v3209 = vadd.f32 %v3112, %v3177
      %v3210 = vadd.f32 %v3113, %v3178
      %v3211 = vadd.f32 %v3114, %v3179
      %v3212 = vadd.f32 %v3115, %v3180
      %v3213 = vadd.f32 %v3116, %v3181
      %v3214 = vadd.f32 %v3117, %v3182
      %v3215 = vadd.f32 %v3118, %v3183
      %v3216 = vadd.f32 %v3119, %v3184
      %v3217 = vadd.f32 %v3120, %v3185
      %v3218 = vadd.f32 %v3121, %v3186
      %v3219 = vadd.f32 %v3122, %v3187
      %v3220 = vadd.f32 %v3123, %v3188
      %v3221 = vadd.f32 %v3124, %v3189
      %v3222 = vadd.f32 %v3125, %v3190
      %v3223 = vadd.f32 %v3126, %v3191
      %v3224 = vadd.f32 %v3127, %v3192
      %v3225 = vadd.f32 %v3128, %v3193
      %v3226 = vadd.f32 %v3129, %v3194
      %v3227 = vadd.f32 %v3130, %v3195
      %v3228 = vadd.f32 %v3131, %v3196
      %v3229 = vadd.f32 %v3132, %v3197
      %v3230 = vadd.f32 %v3133, %v3198
      %v3231 = vadd.f32 %v3134, %v3199
      %v3232 = vadd.f32 %v3135, %v3200
      %v3233 = vadd.f32 %v3136, %v3201
      %v3234 = vadd.f32 %v3137, %v3202
      %v3235 = vadd.f32 %v3138, %v3203
      %v3236 = vld [vmem:[%s515 + $0x4] sm:$0xff]
      %v3237 = vld [vmem:[%s515 + $0xc] sm:$0xff]
      %v3238 = vld [vmem:[%s515 + $0x1c] sm:$0xff]
      %v3239 = vld [vmem:[%s515 + $0x24] sm:$0xff]
      %v3240 = vld [vmem:[%s515 + $0x34] sm:$0xff]
      %v3241 = vld [vmem:[%s515 + $0x3c] sm:$0xff]
      %v3242 = vld [vmem:[%s515 + $0x4c] sm:$0xff]
      %v3243 = vld [vmem:[%s515 + $0x54] sm:$0xff]
      %v3244 = vld [vmem:[%s515 + $0x64] sm:$0xff]
      %v3245 = vld [vmem:[%s515 + $0x6c] sm:$0xff]
      %v3246 = vld [vmem:[%s515 + $0x7c] sm:$0xff]
      %v3247 = vld [vmem:[%s515 + $0x84] sm:$0xff]
      %v3248 = vld [vmem:[%s515 + $0x94] sm:$0xff]
      %v3249 = vld [vmem:[%s515 + $0x9c] sm:$0xff]
      %v3250 = vld [vmem:[%s515 + $0xac] sm:$0xff]
      %v3251 = vld [vmem:[%s515 + $0xb4] sm:$0xff]
      %v3252 = vld [vmem:[%s515 + $0xc4] sm:$0xff]
      %v3253 = vld [vmem:[%s515 + $0xcc] sm:$0xff]
      %v3254 = vld [vmem:[%s515 + $0xdc] sm:$0xff]
      %v3255 = vld [vmem:[%s515 + $0xe4] sm:$0xff]
      %v3256 = vld [vmem:[%s515 + $0xf4] sm:$0xff]
      %v3257 = vld [vmem:[%s515 + $0xfc] sm:$0xff]
      %v3258 = vld [vmem:[%s515 + $0x10c] sm:$0xff]
      %v3259 = vld [vmem:[%s515 + $0x114] sm:$0xff]
      %v3260 = vld [vmem:[%s515 + $0x124] sm:$0xff]
      %v3261 = vld [vmem:[%s515 + $0x12c] sm:$0xff]
      %v3262 = vld [vmem:[%s515 + $0x13c] sm:$0xff]
      %v3263 = vld [vmem:[%s515 + $0x144] sm:$0xff]
      %v3264 = vld [vmem:[%s515 + $0x154] sm:$0xff]
      %v3265 = vld [vmem:[%s515 + $0x15c] sm:$0xff]
      %v3266 = vld [vmem:[%s515 + $0x16c] sm:$0xff]
      %v3267 = vld [vmem:[%s515 + $0x174] sm:$0xff]
      %v3268 = vperm.slane %v312, 4
      %v3269 = vmul.f32 %v3236, %v3268
      %v3270 = vmul.f32 %v3237, %v3268
      %v3271 = vmul.f32 %v3238, %v3268
      %v3272 = vmul.f32 %v3239, %v3268
      %v3273 = vmul.f32 %v3240, %v3268
      %v3274 = vmul.f32 %v3241, %v3268
      %v3275 = vmul.f32 %v3242, %v3268
      %v3276 = vmul.f32 %v3243, %v3268
      %v3277 = vmul.f32 %v3244, %v3268
      %v3278 = vmul.f32 %v3245, %v3268
      %v3279 = vmul.f32 %v3246, %v3268
      %v3280 = vmul.f32 %v3247, %v3268
      %v3281 = vmul.f32 %v3248, %v3268
      %v3282 = vmul.f32 %v3249, %v3268
      %v3283 = vmul.f32 %v3250, %v3268
      %v3284 = vmul.f32 %v3251, %v3268
      %v3285 = vmul.f32 %v3252, %v3268
      %v3286 = vmul.f32 %v3253, %v3268
      %v3287 = vmul.f32 %v3254, %v3268
      %v3288 = vmul.f32 %v3255, %v3268
      %v3289 = vmul.f32 %v3256, %v3268
      %v3290 = vmul.f32 %v3257, %v3268
      %v3291 = vmul.f32 %v3258, %v3268
      %v3292 = vmul.f32 %v3259, %v3268
      %v3293 = vmul.f32 %v3260, %v3268
      %v3294 = vmul.f32 %v3261, %v3268
      %v3295 = vmul.f32 %v3262, %v3268
      %v3296 = vmul.f32 %v3263, %v3268
      %v3297 = vmul.f32 %v3264, %v3268
      %v3298 = vmul.f32 %v3265, %v3268
      %v3299 = vmul.f32 %v3266, %v3268
      %v3300 = vmul.f32 %v3267, %v3268
      %v3301 = vadd.f32 %v3204, %v3269
      %v3302 = vadd.f32 %v3205, %v3270
      %v3303 = vadd.f32 %v3206, %v3271
      %v3304 = vadd.f32 %v3207, %v3272
      %v3305 = vadd.f32 %v3208, %v3273
      %v3306 = vadd.f32 %v3209, %v3274
      %v3307 = vadd.f32 %v3210, %v3275
      %v3308 = vadd.f32 %v3211, %v3276
      %v3309 = vadd.f32 %v3212, %v3277
      %v3310 = vadd.f32 %v3213, %v3278
      %v3311 = vadd.f32 %v3214, %v3279
      %v3312 = vadd.f32 %v3215, %v3280
      %v3313 = vadd.f32 %v3216, %v3281
      %v3314 = vadd.f32 %v3217, %v3282
      %v3315 = vadd.f32 %v3218, %v3283
      %v3316 = vadd.f32 %v3219, %v3284
      %v3317 = vadd.f32 %v3220, %v3285
      %v3318 = vadd.f32 %v3221, %v3286
      %v3319 = vadd.f32 %v3222, %v3287
      %v3320 = vadd.f32 %v3223, %v3288
      %v3321 = vadd.f32 %v3224, %v3289
      %v3322 = vadd.f32 %v3225, %v3290
      %v3323 = vadd.f32 %v3226, %v3291
      %v3324 = vadd.f32 %v3227, %v3292
      %v3325 = vadd.f32 %v3228, %v3293
      %v3326 = vadd.f32 %v3229, %v3294
      %v3327 = vadd.f32 %v3230, %v3295
      %v3328 = vadd.f32 %v3231, %v3296
      %v3329 = vadd.f32 %v3232, %v3297
      %v3330 = vadd.f32 %v3233, %v3298
      %v3331 = vadd.f32 %v3234, %v3299
      %v3332 = vadd.f32 %v3235, %v3300
      %v3333 = vld [vmem:[%s613 + $0x4] sm:$0xff]
      %v3334 = vld [vmem:[%s613 + $0xc] sm:$0xff]
      %v3335 = vld [vmem:[%s613 + $0x1c] sm:$0xff]
      %v3336 = vld [vmem:[%s613 + $0x24] sm:$0xff]
      %v3337 = vld [vmem:[%s613 + $0x34] sm:$0xff]
      %v3338 = vld [vmem:[%s613 + $0x3c] sm:$0xff]
      %v3339 = vld [vmem:[%s613 + $0x4c] sm:$0xff]
      %v3340 = vld [vmem:[%s613 + $0x54] sm:$0xff]
      %v3341 = vld [vmem:[%s613 + $0x64] sm:$0xff]
      %v3342 = vld [vmem:[%s613 + $0x6c] sm:$0xff]
      %v3343 = vld [vmem:[%s613 + $0x7c] sm:$0xff]
      %v3344 = vld [vmem:[%s613 + $0x84] sm:$0xff]
      %v3345 = vld [vmem:[%s613 + $0x94] sm:$0xff]
      %v3346 = vld [vmem:[%s613 + $0x9c] sm:$0xff]
      %v3347 = vld [vmem:[%s613 + $0xac] sm:$0xff]
      %v3348 = vld [vmem:[%s613 + $0xb4] sm:$0xff]
      %v3349 = vld [vmem:[%s613 + $0xc4] sm:$0xff]
      %v3350 = vld [vmem:[%s613 + $0xcc] sm:$0xff]
      %v3351 = vld [vmem:[%s613 + $0xdc] sm:$0xff]
      %v3352 = vld [vmem:[%s613 + $0xe4] sm:$0xff]
      %v3353 = vld [vmem:[%s613 + $0xf4] sm:$0xff]
      %v3354 = vld [vmem:[%s613 + $0xfc] sm:$0xff]
      %v3355 = vld [vmem:[%s613 + $0x10c] sm:$0xff]
      %v3356 = vld [vmem:[%s613 + $0x114] sm:$0xff]
      %v3357 = vld [vmem:[%s613 + $0x124] sm:$0xff]
      %v3358 = vld [vmem:[%s613 + $0x12c] sm:$0xff]
      %v3359 = vld [vmem:[%s613 + $0x13c] sm:$0xff]
      %v3360 = vld [vmem:[%s613 + $0x144] sm:$0xff]
      %v3361 = vld [vmem:[%s613 + $0x154] sm:$0xff]
      %v3362 = vld [vmem:[%s613 + $0x15c] sm:$0xff]
      %v3363 = vld [vmem:[%s613 + $0x16c] sm:$0xff]
      %v3364 = vld [vmem:[%s613 + $0x174] sm:$0xff]
      %v3365 = vperm.slane %v313, 4
      %v3366 = vmul.f32 %v3333, %v3365
      %v3367 = vmul.f32 %v3334, %v3365
      %v3368 = vmul.f32 %v3335, %v3365
      %v3369 = vmul.f32 %v3336, %v3365
      %v3370 = vmul.f32 %v3337, %v3365
      %v3371 = vmul.f32 %v3338, %v3365
      %v3372 = vmul.f32 %v3339, %v3365
      %v3373 = vmul.f32 %v3340, %v3365
      %v3374 = vmul.f32 %v3341, %v3365
      %v3375 = vmul.f32 %v3342, %v3365
      %v3376 = vmul.f32 %v3343, %v3365
      %v3377 = vmul.f32 %v3344, %v3365
      %v3378 = vmul.f32 %v3345, %v3365
      %v3379 = vmul.f32 %v3346, %v3365
      %v3380 = vmul.f32 %v3347, %v3365
      %v3381 = vmul.f32 %v3348, %v3365
      %v3382 = vmul.f32 %v3349, %v3365
      %v3383 = vmul.f32 %v3350, %v3365
      %v3384 = vmul.f32 %v3351, %v3365
      %v3385 = vmul.f32 %v3352, %v3365
      %v3386 = vmul.f32 %v3353, %v3365
      %v3387 = vmul.f32 %v3354, %v3365
      %v3388 = vmul.f32 %v3355, %v3365
      %v3389 = vmul.f32 %v3356, %v3365
      %v3390 = vmul.f32 %v3357, %v3365
      %v3391 = vmul.f32 %v3358, %v3365
      %v3392 = vmul.f32 %v3359, %v3365
      %v3393 = vmul.f32 %v3360, %v3365
      %v3394 = vmul.f32 %v3361, %v3365
      %v3395 = vmul.f32 %v3362, %v3365
      %v3396 = vmul.f32 %v3363, %v3365
      %v3397 = vmul.f32 %v3364, %v3365
      %v3398 = vadd.f32 %v3301, %v3366
      %v3399 = vadd.f32 %v3302, %v3367
      %v3400 = vadd.f32 %v3303, %v3368
      %v3401 = vadd.f32 %v3304, %v3369
      %v3402 = vadd.f32 %v3305, %v3370
      %v3403 = vadd.f32 %v3306, %v3371
      %v3404 = vadd.f32 %v3307, %v3372
      %v3405 = vadd.f32 %v3308, %v3373
      %v3406 = vadd.f32 %v3309, %v3374
      %v3407 = vadd.f32 %v3310, %v3375
      %v3408 = vadd.f32 %v3311, %v3376
      %v3409 = vadd.f32 %v3312, %v3377
      %v3410 = vadd.f32 %v3313, %v3378
      %v3411 = vadd.f32 %v3314, %v3379
      %v3412 = vadd.f32 %v3315, %v3380
      %v3413 = vadd.f32 %v3316, %v3381
      %v3414 = vadd.f32 %v3317, %v3382
      %v3415 = vadd.f32 %v3318, %v3383
      %v3416 = vadd.f32 %v3319, %v3384
      %v3417 = vadd.f32 %v3320, %v3385
      %v3418 = vadd.f32 %v3321, %v3386
      %v3419 = vadd.f32 %v3322, %v3387
      %v3420 = vadd.f32 %v3323, %v3388
      %v3421 = vadd.f32 %v3324, %v3389
      %v3422 = vadd.f32 %v3325, %v3390
      %v3423 = vadd.f32 %v3326, %v3391
      %v3424 = vadd.f32 %v3327, %v3392
      %v3425 = vadd.f32 %v3328, %v3393
      %v3426 = vadd.f32 %v3329, %v3394
      %v3427 = vadd.f32 %v3330, %v3395
      %v3428 = vadd.f32 %v3331, %v3396
      %v3429 = vadd.f32 %v3332, %v3397
      %v3430 = vld [vmem:[%s711 + $0x4] sm:$0xff]
      %v3431 = vld [vmem:[%s711 + $0xc] sm:$0xff]
      %v3432 = vld [vmem:[%s711 + $0x1c] sm:$0xff]
      %v3433 = vld [vmem:[%s711 + $0x24] sm:$0xff]
      %v3434 = vld [vmem:[%s711 + $0x34] sm:$0xff]
      %v3435 = vld [vmem:[%s711 + $0x3c] sm:$0xff]
      %v3436 = vld [vmem:[%s711 + $0x4c] sm:$0xff]
      %v3437 = vld [vmem:[%s711 + $0x54] sm:$0xff]
      %v3438 = vld [vmem:[%s711 + $0x64] sm:$0xff]
      %v3439 = vld [vmem:[%s711 + $0x6c] sm:$0xff]
      %v3440 = vld [vmem:[%s711 + $0x7c] sm:$0xff]
      %v3441 = vld [vmem:[%s711 + $0x84] sm:$0xff]
      %v3442 = vld [vmem:[%s711 + $0x94] sm:$0xff]
      %v3443 = vld [vmem:[%s711 + $0x9c] sm:$0xff]
      %v3444 = vld [vmem:[%s711 + $0xac] sm:$0xff]
      %v3445 = vld [vmem:[%s711 + $0xb4] sm:$0xff]
      %v3446 = vld [vmem:[%s711 + $0xc4] sm:$0xff]
      %v3447 = vld [vmem:[%s711 + $0xcc] sm:$0xff]
      %v3448 = vld [vmem:[%s711 + $0xdc] sm:$0xff]
      %v3449 = vld [vmem:[%s711 + $0xe4] sm:$0xff]
      %v3450 = vld [vmem:[%s711 + $0xf4] sm:$0xff]
      %v3451 = vld [vmem:[%s711 + $0xfc] sm:$0xff]
      %v3452 = vld [vmem:[%s711 + $0x10c] sm:$0xff]
      %v3453 = vld [vmem:[%s711 + $0x114] sm:$0xff]
      %v3454 = vld [vmem:[%s711 + $0x124] sm:$0xff]
      %v3455 = vld [vmem:[%s711 + $0x12c] sm:$0xff]
      %v3456 = vld [vmem:[%s711 + $0x13c] sm:$0xff]
      %v3457 = vld [vmem:[%s711 + $0x144] sm:$0xff]
      %v3458 = vld [vmem:[%s711 + $0x154] sm:$0xff]
      %v3459 = vld [vmem:[%s711 + $0x15c] sm:$0xff]
      %v3460 = vld [vmem:[%s711 + $0x16c] sm:$0xff]
      %v3461 = vld [vmem:[%s711 + $0x174] sm:$0xff]
      %v3462 = vperm.slane %v314, 4
      %v3463 = vmul.f32 %v3430, %v3462
      %v3464 = vmul.f32 %v3431, %v3462
      %v3465 = vmul.f32 %v3432, %v3462
      %v3466 = vmul.f32 %v3433, %v3462
      %v3467 = vmul.f32 %v3434, %v3462
      %v3468 = vmul.f32 %v3435, %v3462
      %v3469 = vmul.f32 %v3436, %v3462
      %v3470 = vmul.f32 %v3437, %v3462
      %v3471 = vmul.f32 %v3438, %v3462
      %v3472 = vmul.f32 %v3439, %v3462
      %v3473 = vmul.f32 %v3440, %v3462
      %v3474 = vmul.f32 %v3441, %v3462
      %v3475 = vmul.f32 %v3442, %v3462
      %v3476 = vmul.f32 %v3443, %v3462
      %v3477 = vmul.f32 %v3444, %v3462
      %v3478 = vmul.f32 %v3445, %v3462
      %v3479 = vmul.f32 %v3446, %v3462
      %v3480 = vmul.f32 %v3447, %v3462
      %v3481 = vmul.f32 %v3448, %v3462
      %v3482 = vmul.f32 %v3449, %v3462
      %v3483 = vmul.f32 %v3450, %v3462
      %v3484 = vmul.f32 %v3451, %v3462
      %v3485 = vmul.f32 %v3452, %v3462
      %v3486 = vmul.f32 %v3453, %v3462
      %v3487 = vmul.f32 %v3454, %v3462
      %v3488 = vmul.f32 %v3455, %v3462
      %v3489 = vmul.f32 %v3456, %v3462
      %v3490 = vmul.f32 %v3457, %v3462
      %v3491 = vmul.f32 %v3458, %v3462
      %v3492 = vmul.f32 %v3459, %v3462
      %v3493 = vmul.f32 %v3460, %v3462
      %v3494 = vmul.f32 %v3461, %v3462
      %v3495 = vadd.f32 %v3398, %v3463
      %v3496 = vadd.f32 %v3399, %v3464
      %v3497 = vadd.f32 %v3400, %v3465
      %v3498 = vadd.f32 %v3401, %v3466
      %v3499 = vadd.f32 %v3402, %v3467
      %v3500 = vadd.f32 %v3403, %v3468
      %v3501 = vadd.f32 %v3404, %v3469
      %v3502 = vadd.f32 %v3405, %v3470
      %v3503 = vadd.f32 %v3406, %v3471
      %v3504 = vadd.f32 %v3407, %v3472
      %v3505 = vadd.f32 %v3408, %v3473
      %v3506 = vadd.f32 %v3409, %v3474
      %v3507 = vadd.f32 %v3410, %v3475
      %v3508 = vadd.f32 %v3411, %v3476
      %v3509 = vadd.f32 %v3412, %v3477
      %v3510 = vadd.f32 %v3413, %v3478
      %v3511 = vadd.f32 %v3414, %v3479
      %v3512 = vadd.f32 %v3415, %v3480
      %v3513 = vadd.f32 %v3416, %v3481
      %v3514 = vadd.f32 %v3417, %v3482
      %v3515 = vadd.f32 %v3418, %v3483
      %v3516 = vadd.f32 %v3419, %v3484
      %v3517 = vadd.f32 %v3420, %v3485
      %v3518 = vadd.f32 %v3421, %v3486
      %v3519 = vadd.f32 %v3422, %v3487
      %v3520 = vadd.f32 %v3423, %v3488
      %v3521 = vadd.f32 %v3424, %v3489
      %v3522 = vadd.f32 %v3425, %v3490
      %v3523 = vadd.f32 %v3426, %v3491
      %v3524 = vadd.f32 %v3427, %v3492
      %v3525 = vadd.f32 %v3428, %v3493
      %v3526 = vadd.f32 %v3429, %v3494
      %v3527 = vld [vmem:[%s809 + $0x4] sm:$0xff]
      %v3528 = vld [vmem:[%s809 + $0xc] sm:$0xff]
      %v3529 = vld [vmem:[%s809 + $0x1c] sm:$0xff]
      %v3530 = vld [vmem:[%s809 + $0x24] sm:$0xff]
      %v3531 = vld [vmem:[%s809 + $0x34] sm:$0xff]
      %v3532 = vld [vmem:[%s809 + $0x3c] sm:$0xff]
      %v3533 = vld [vmem:[%s809 + $0x4c] sm:$0xff]
      %v3534 = vld [vmem:[%s809 + $0x54] sm:$0xff]
      %v3535 = vld [vmem:[%s809 + $0x64] sm:$0xff]
      %v3536 = vld [vmem:[%s809 + $0x6c] sm:$0xff]
      %v3537 = vld [vmem:[%s809 + $0x7c] sm:$0xff]
      %v3538 = vld [vmem:[%s809 + $0x84] sm:$0xff]
      %v3539 = vld [vmem:[%s809 + $0x94] sm:$0xff]
      %v3540 = vld [vmem:[%s809 + $0x9c] sm:$0xff]
      %v3541 = vld [vmem:[%s809 + $0xac] sm:$0xff]
      %v3542 = vld [vmem:[%s809 + $0xb4] sm:$0xff]
      %v3543 = vld [vmem:[%s809 + $0xc4] sm:$0xff]
      %v3544 = vld [vmem:[%s809 + $0xcc] sm:$0xff]
      %v3545 = vld [vmem:[%s809 + $0xdc] sm:$0xff]
      %v3546 = vld [vmem:[%s809 + $0xe4] sm:$0xff]
      %v3547 = vld [vmem:[%s809 + $0xf4] sm:$0xff]
      %v3548 = vld [vmem:[%s809 + $0xfc] sm:$0xff]
      %v3549 = vld [vmem:[%s809 + $0x10c] sm:$0xff]
      %v3550 = vld [vmem:[%s809 + $0x114] sm:$0xff]
      %v3551 = vld [vmem:[%s809 + $0x124] sm:$0xff]
      %v3552 = vld [vmem:[%s809 + $0x12c] sm:$0xff]
      %v3553 = vld [vmem:[%s809 + $0x13c] sm:$0xff]
      %v3554 = vld [vmem:[%s809 + $0x144] sm:$0xff]
      %v3555 = vld [vmem:[%s809 + $0x154] sm:$0xff]
      %v3556 = vld [vmem:[%s809 + $0x15c] sm:$0xff]
      %v3557 = vld [vmem:[%s809 + $0x16c] sm:$0xff]
      %v3558 = vld [vmem:[%s809 + $0x174] sm:$0xff]
      %v3559 = vperm.slane %v315, 4
      %v3560 = vmul.f32 %v3527, %v3559
      %v3561 = vmul.f32 %v3528, %v3559
      %v3562 = vmul.f32 %v3529, %v3559
      %v3563 = vmul.f32 %v3530, %v3559
      %v3564 = vmul.f32 %v3531, %v3559
      %v3565 = vmul.f32 %v3532, %v3559
      %v3566 = vmul.f32 %v3533, %v3559
      %v3567 = vmul.f32 %v3534, %v3559
      %v3568 = vmul.f32 %v3535, %v3559
      %v3569 = vmul.f32 %v3536, %v3559
      %v3570 = vmul.f32 %v3537, %v3559
      %v3571 = vmul.f32 %v3538, %v3559
      %v3572 = vmul.f32 %v3539, %v3559
      %v3573 = vmul.f32 %v3540, %v3559
      %v3574 = vmul.f32 %v3541, %v3559
      %v3575 = vmul.f32 %v3542, %v3559
      %v3576 = vmul.f32 %v3543, %v3559
      %v3577 = vmul.f32 %v3544, %v3559
      %v3578 = vmul.f32 %v3545, %v3559
      %v3579 = vmul.f32 %v3546, %v3559
      %v3580 = vmul.f32 %v3547, %v3559
      %v3581 = vmul.f32 %v3548, %v3559
      %v3582 = vmul.f32 %v3549, %v3559
      %v3583 = vmul.f32 %v3550, %v3559
      %v3584 = vmul.f32 %v3551, %v3559
      %v3585 = vmul.f32 %v3552, %v3559
      %v3586 = vmul.f32 %v3553, %v3559
      %v3587 = vmul.f32 %v3554, %v3559
      %v3588 = vmul.f32 %v3555, %v3559
      %v3589 = vmul.f32 %v3556, %v3559
      %v3590 = vmul.f32 %v3557, %v3559
      %v3591 = vmul.f32 %v3558, %v3559
      %v3592 = vadd.f32 %v3495, %v3560
      %v3593 = vadd.f32 %v3496, %v3561
      %v3594 = vadd.f32 %v3497, %v3562
      %v3595 = vadd.f32 %v3498, %v3563
      %v3596 = vadd.f32 %v3499, %v3564
      %v3597 = vadd.f32 %v3500, %v3565
      %v3598 = vadd.f32 %v3501, %v3566
      %v3599 = vadd.f32 %v3502, %v3567
      %v3600 = vadd.f32 %v3503, %v3568
      %v3601 = vadd.f32 %v3504, %v3569
      %v3602 = vadd.f32 %v3505, %v3570
      %v3603 = vadd.f32 %v3506, %v3571
      %v3604 = vadd.f32 %v3507, %v3572
      %v3605 = vadd.f32 %v3508, %v3573
      %v3606 = vadd.f32 %v3509, %v3574
      %v3607 = vadd.f32 %v3510, %v3575
      %v3608 = vadd.f32 %v3511, %v3576
      %v3609 = vadd.f32 %v3512, %v3577
      %v3610 = vadd.f32 %v3513, %v3578
      %v3611 = vadd.f32 %v3514, %v3579
      %v3612 = vadd.f32 %v3515, %v3580
      %v3613 = vadd.f32 %v3516, %v3581
      %v3614 = vadd.f32 %v3517, %v3582
      %v3615 = vadd.f32 %v3518, %v3583
      %v3616 = vadd.f32 %v3519, %v3584
      %v3617 = vadd.f32 %v3520, %v3585
      %v3618 = vadd.f32 %v3521, %v3586
      %v3619 = vadd.f32 %v3522, %v3587
      %v3620 = vadd.f32 %v3523, %v3588
      %v3621 = vadd.f32 %v3524, %v3589
      %v3622 = vadd.f32 %v3525, %v3590
      %v3623 = vadd.f32 %v3526, %v3591
      %v3624 = vld [vmem:[%s907 + $0x4] sm:$0xff]
      %v3625 = vld [vmem:[%s907 + $0xc] sm:$0xff]
      %v3626 = vld [vmem:[%s907 + $0x1c] sm:$0xff]
      %v3627 = vld [vmem:[%s907 + $0x24] sm:$0xff]
      %v3628 = vld [vmem:[%s907 + $0x34] sm:$0xff]
      %v3629 = vld [vmem:[%s907 + $0x3c] sm:$0xff]
      %v3630 = vld [vmem:[%s907 + $0x4c] sm:$0xff]
      %v3631 = vld [vmem:[%s907 + $0x54] sm:$0xff]
      %v3632 = vld [vmem:[%s907 + $0x64] sm:$0xff]
      %v3633 = vld [vmem:[%s907 + $0x6c] sm:$0xff]
      %v3634 = vld [vmem:[%s907 + $0x7c] sm:$0xff]
      %v3635 = vld [vmem:[%s907 + $0x84] sm:$0xff]
      %v3636 = vld [vmem:[%s907 + $0x94] sm:$0xff]
      %v3637 = vld [vmem:[%s907 + $0x9c] sm:$0xff]
      %v3638 = vld [vmem:[%s907 + $0xac] sm:$0xff]
      %v3639 = vld [vmem:[%s907 + $0xb4] sm:$0xff]
      %v3640 = vld [vmem:[%s907 + $0xc4] sm:$0xff]
      %v3641 = vld [vmem:[%s907 + $0xcc] sm:$0xff]
      %v3642 = vld [vmem:[%s907 + $0xdc] sm:$0xff]
      %v3643 = vld [vmem:[%s907 + $0xe4] sm:$0xff]
      %v3644 = vld [vmem:[%s907 + $0xf4] sm:$0xff]
      %v3645 = vld [vmem:[%s907 + $0xfc] sm:$0xff]
      %v3646 = vld [vmem:[%s907 + $0x10c] sm:$0xff]
      %v3647 = vld [vmem:[%s907 + $0x114] sm:$0xff]
      %v3648 = vld [vmem:[%s907 + $0x124] sm:$0xff]
      %v3649 = vld [vmem:[%s907 + $0x12c] sm:$0xff]
      %v3650 = vld [vmem:[%s907 + $0x13c] sm:$0xff]
      %v3651 = vld [vmem:[%s907 + $0x144] sm:$0xff]
      %v3652 = vld [vmem:[%s907 + $0x154] sm:$0xff]
      %v3653 = vld [vmem:[%s907 + $0x15c] sm:$0xff]
      %v3654 = vld [vmem:[%s907 + $0x16c] sm:$0xff]
      %v3655 = vld [vmem:[%s907 + $0x174] sm:$0xff]
      %v3656 = vperm.slane %v316, 4
      %v3657 = vmul.f32 %v3624, %v3656
      %v3658 = vmul.f32 %v3625, %v3656
      %v3659 = vmul.f32 %v3626, %v3656
      %v3660 = vmul.f32 %v3627, %v3656
      %v3661 = vmul.f32 %v3628, %v3656
      %v3662 = vmul.f32 %v3629, %v3656
      %v3663 = vmul.f32 %v3630, %v3656
      %v3664 = vmul.f32 %v3631, %v3656
      %v3665 = vmul.f32 %v3632, %v3656
      %v3666 = vmul.f32 %v3633, %v3656
      %v3667 = vmul.f32 %v3634, %v3656
      %v3668 = vmul.f32 %v3635, %v3656
      %v3669 = vmul.f32 %v3636, %v3656
      %v3670 = vmul.f32 %v3637, %v3656
      %v3671 = vmul.f32 %v3638, %v3656
      %v3672 = vmul.f32 %v3639, %v3656
      %v3673 = vmul.f32 %v3640, %v3656
      %v3674 = vmul.f32 %v3641, %v3656
      %v3675 = vmul.f32 %v3642, %v3656
      %v3676 = vmul.f32 %v3643, %v3656
      %v3677 = vmul.f32 %v3644, %v3656
      %v3678 = vmul.f32 %v3645, %v3656
      %v3679 = vmul.f32 %v3646, %v3656
      %v3680 = vmul.f32 %v3647, %v3656
      %v3681 = vmul.f32 %v3648, %v3656
      %v3682 = vmul.f32 %v3649, %v3656
      %v3683 = vmul.f32 %v3650, %v3656
      %v3684 = vmul.f32 %v3651, %v3656
      %v3685 = vmul.f32 %v3652, %v3656
      %v3686 = vmul.f32 %v3653, %v3656
      %v3687 = vmul.f32 %v3654, %v3656
      %v3688 = vmul.f32 %v3655, %v3656
      %v3689 = vadd.f32 %v3592, %v3657
      %v3690 = vadd.f32 %v3593, %v3658
      %v3691 = vadd.f32 %v3594, %v3659
      %v3692 = vadd.f32 %v3595, %v3660
      %v3693 = vadd.f32 %v3596, %v3661
      %v3694 = vadd.f32 %v3597, %v3662
      %v3695 = vadd.f32 %v3598, %v3663
      %v3696 = vadd.f32 %v3599, %v3664
      %v3697 = vadd.f32 %v3600, %v3665
      %v3698 = vadd.f32 %v3601, %v3666
      %v3699 = vadd.f32 %v3602, %v3667
      %v3700 = vadd.f32 %v3603, %v3668
      %v3701 = vadd.f32 %v3604, %v3669
      %v3702 = vadd.f32 %v3605, %v3670
      %v3703 = vadd.f32 %v3606, %v3671
      %v3704 = vadd.f32 %v3607, %v3672
      %v3705 = vadd.f32 %v3608, %v3673
      %v3706 = vadd.f32 %v3609, %v3674
      %v3707 = vadd.f32 %v3610, %v3675
      %v3708 = vadd.f32 %v3611, %v3676
      %v3709 = vadd.f32 %v3612, %v3677
      %v3710 = vadd.f32 %v3613, %v3678
      %v3711 = vadd.f32 %v3614, %v3679
      %v3712 = vadd.f32 %v3615, %v3680
      %v3713 = vadd.f32 %v3616, %v3681
      %v3714 = vadd.f32 %v3617, %v3682
      %v3715 = vadd.f32 %v3618, %v3683
      %v3716 = vadd.f32 %v3619, %v3684
      %v3717 = vadd.f32 %v3620, %v3685
      %v3718 = vadd.f32 %v3621, %v3686
      %v3719 = vadd.f32 %v3622, %v3687
      %v3720 = vadd.f32 %v3623, %v3688
      %v3721 = vld [vmem:[%s297 + $0x5] sm:$0xff]
      %v3722 = vld [vmem:[%s297 + $0xd] sm:$0xff]
      %v3723 = vld [vmem:[%s297 + $0x1d] sm:$0xff]
      %v3724 = vld [vmem:[%s297 + $0x25] sm:$0xff]
      %v3725 = vld [vmem:[%s297 + $0x35] sm:$0xff]
      %v3726 = vld [vmem:[%s297 + $0x3d] sm:$0xff]
      %v3727 = vld [vmem:[%s297 + $0x4d] sm:$0xff]
      %v3728 = vld [vmem:[%s297 + $0x55] sm:$0xff]
      %v3729 = vld [vmem:[%s297 + $0x65] sm:$0xff]
      %v3730 = vld [vmem:[%s297 + $0x6d] sm:$0xff]
      %v3731 = vld [vmem:[%s297 + $0x7d] sm:$0xff]
      %v3732 = vld [vmem:[%s297 + $0x85] sm:$0xff]
      %v3733 = vld [vmem:[%s297 + $0x95] sm:$0xff]
      %v3734 = vld [vmem:[%s297 + $0x9d] sm:$0xff]
      %v3735 = vld [vmem:[%s297 + $0xad] sm:$0xff]
      %v3736 = vld [vmem:[%s297 + $0xb5] sm:$0xff]
      %v3737 = vld [vmem:[%s297 + $0xc5] sm:$0xff]
      %v3738 = vld [vmem:[%s297 + $0xcd] sm:$0xff]
      %v3739 = vld [vmem:[%s297 + $0xdd] sm:$0xff]
      %v3740 = vld [vmem:[%s297 + $0xe5] sm:$0xff]
      %v3741 = vld [vmem:[%s297 + $0xf5] sm:$0xff]
      %v3742 = vld [vmem:[%s297 + $0xfd] sm:$0xff]
      %v3743 = vld [vmem:[%s297 + $0x10d] sm:$0xff]
      %v3744 = vld [vmem:[%s297 + $0x115] sm:$0xff]
      %v3745 = vld [vmem:[%s297 + $0x125] sm:$0xff]
      %v3746 = vld [vmem:[%s297 + $0x12d] sm:$0xff]
      %v3747 = vld [vmem:[%s297 + $0x13d] sm:$0xff]
      %v3748 = vld [vmem:[%s297 + $0x145] sm:$0xff]
      %v3749 = vld [vmem:[%s297 + $0x155] sm:$0xff]
      %v3750 = vld [vmem:[%s297 + $0x15d] sm:$0xff]
      %v3751 = vld [vmem:[%s297 + $0x16d] sm:$0xff]
      %v3752 = vld [vmem:[%s297 + $0x175] sm:$0xff]
      %v3753 = vperm.slane %v310, 5
      %v3754 = vmul.f32 %v3721, %v3753
      %v3755 = vmul.f32 %v3722, %v3753
      %v3756 = vmul.f32 %v3723, %v3753
      %v3757 = vmul.f32 %v3724, %v3753
      %v3758 = vmul.f32 %v3725, %v3753
      %v3759 = vmul.f32 %v3726, %v3753
      %v3760 = vmul.f32 %v3727, %v3753
      %v3761 = vmul.f32 %v3728, %v3753
      %v3762 = vmul.f32 %v3729, %v3753
      %v3763 = vmul.f32 %v3730, %v3753
      %v3764 = vmul.f32 %v3731, %v3753
      %v3765 = vmul.f32 %v3732, %v3753
      %v3766 = vmul.f32 %v3733, %v3753
      %v3767 = vmul.f32 %v3734, %v3753
      %v3768 = vmul.f32 %v3735, %v3753
      %v3769 = vmul.f32 %v3736, %v3753
      %v3770 = vmul.f32 %v3737, %v3753
      %v3771 = vmul.f32 %v3738, %v3753
      %v3772 = vmul.f32 %v3739, %v3753
      %v3773 = vmul.f32 %v3740, %v3753
      %v3774 = vmul.f32 %v3741, %v3753
      %v3775 = vmul.f32 %v3742, %v3753
      %v3776 = vmul.f32 %v3743, %v3753
      %v3777 = vmul.f32 %v3744, %v3753
      %v3778 = vmul.f32 %v3745, %v3753
      %v3779 = vmul.f32 %v3746, %v3753
      %v3780 = vmul.f32 %v3747, %v3753
      %v3781 = vmul.f32 %v3748, %v3753
      %v3782 = vmul.f32 %v3749, %v3753
      %v3783 = vmul.f32 %v3750, %v3753
      %v3784 = vmul.f32 %v3751, %v3753
      %v3785 = vmul.f32 %v3752, %v3753
      %v3786 = vadd.f32 %v3689, %v3754
      %v3787 = vadd.f32 %v3690, %v3755
      %v3788 = vadd.f32 %v3691, %v3756
      %v3789 = vadd.f32 %v3692, %v3757
      %v3790 = vadd.f32 %v3693, %v3758
      %v3791 = vadd.f32 %v3694, %v3759
      %v3792 = vadd.f32 %v3695, %v3760
      %v3793 = vadd.f32 %v3696, %v3761
      %v3794 = vadd.f32 %v3697, %v3762
      %v3795 = vadd.f32 %v3698, %v3763
      %v3796 = vadd.f32 %v3699, %v3764
      %v3797 = vadd.f32 %v3700, %v3765
      %v3798 = vadd.f32 %v3701, %v3766
      %v3799 = vadd.f32 %v3702, %v3767
      %v3800 = vadd.f32 %v3703, %v3768
      %v3801 = vadd.f32 %v3704, %v3769
      %v3802 = vadd.f32 %v3705, %v3770
      %v3803 = vadd.f32 %v3706, %v3771
      %v3804 = vadd.f32 %v3707, %v3772
      %v3805 = vadd.f32 %v3708, %v3773
      %v3806 = vadd.f32 %v3709, %v3774
      %v3807 = vadd.f32 %v3710, %v3775
      %v3808 = vadd.f32 %v3711, %v3776
      %v3809 = vadd.f32 %v3712, %v3777
      %v3810 = vadd.f32 %v3713, %v3778
      %v3811 = vadd.f32 %v3714, %v3779
      %v3812 = vadd.f32 %v3715, %v3780
      %v3813 = vadd.f32 %v3716, %v3781
      %v3814 = vadd.f32 %v3717, %v3782
      %v3815 = vadd.f32 %v3718, %v3783
      %v3816 = vadd.f32 %v3719, %v3784
      %v3817 = vadd.f32 %v3720, %v3785
      %v3818 = vld [vmem:[%s417 + $0x5] sm:$0xff]
      %v3819 = vld [vmem:[%s417 + $0xd] sm:$0xff]
      %v3820 = vld [vmem:[%s417 + $0x1d] sm:$0xff]
      %v3821 = vld [vmem:[%s417 + $0x25] sm:$0xff]
      %v3822 = vld [vmem:[%s417 + $0x35] sm:$0xff]
      %v3823 = vld [vmem:[%s417 + $0x3d] sm:$0xff]
      %v3824 = vld [vmem:[%s417 + $0x4d] sm:$0xff]
      %v3825 = vld [vmem:[%s417 + $0x55] sm:$0xff]
      %v3826 = vld [vmem:[%s417 + $0x65] sm:$0xff]
      %v3827 = vld [vmem:[%s417 + $0x6d] sm:$0xff]
      %v3828 = vld [vmem:[%s417 + $0x7d] sm:$0xff]
      %v3829 = vld [vmem:[%s417 + $0x85] sm:$0xff]
      %v3830 = vld [vmem:[%s417 + $0x95] sm:$0xff]
      %v3831 = vld [vmem:[%s417 + $0x9d] sm:$0xff]
      %v3832 = vld [vmem:[%s417 + $0xad] sm:$0xff]
      %v3833 = vld [vmem:[%s417 + $0xb5] sm:$0xff]
      %v3834 = vld [vmem:[%s417 + $0xc5] sm:$0xff]
      %v3835 = vld [vmem:[%s417 + $0xcd] sm:$0xff]
      %v3836 = vld [vmem:[%s417 + $0xdd] sm:$0xff]
      %v3837 = vld [vmem:[%s417 + $0xe5] sm:$0xff]
      %v3838 = vld [vmem:[%s417 + $0xf5] sm:$0xff]
      %v3839 = vld [vmem:[%s417 + $0xfd] sm:$0xff]
      %v3840 = vld [vmem:[%s417 + $0x10d] sm:$0xff]
      %v3841 = vld [vmem:[%s417 + $0x115] sm:$0xff]
      %v3842 = vld [vmem:[%s417 + $0x125] sm:$0xff]
      %v3843 = vld [vmem:[%s417 + $0x12d] sm:$0xff]
      %v3844 = vld [vmem:[%s417 + $0x13d] sm:$0xff]
      %v3845 = vld [vmem:[%s417 + $0x145] sm:$0xff]
      %v3846 = vld [vmem:[%s417 + $0x155] sm:$0xff]
      %v3847 = vld [vmem:[%s417 + $0x15d] sm:$0xff]
      %v3848 = vld [vmem:[%s417 + $0x16d] sm:$0xff]
      %v3849 = vld [vmem:[%s417 + $0x175] sm:$0xff]
      %v3850 = vperm.slane %v311, 5
      %v3851 = vmul.f32 %v3818, %v3850
      %v3852 = vmul.f32 %v3819, %v3850
      %v3853 = vmul.f32 %v3820, %v3850
      %v3854 = vmul.f32 %v3821, %v3850
      %v3855 = vmul.f32 %v3822, %v3850
      %v3856 = vmul.f32 %v3823, %v3850
      %v3857 = vmul.f32 %v3824, %v3850
      %v3858 = vmul.f32 %v3825, %v3850
      %v3859 = vmul.f32 %v3826, %v3850
      %v3860 = vmul.f32 %v3827, %v3850
      %v3861 = vmul.f32 %v3828, %v3850
      %v3862 = vmul.f32 %v3829, %v3850
      %v3863 = vmul.f32 %v3830, %v3850
      %v3864 = vmul.f32 %v3831, %v3850
      %v3865 = vmul.f32 %v3832, %v3850
      %v3866 = vmul.f32 %v3833, %v3850
      %v3867 = vmul.f32 %v3834, %v3850
      %v3868 = vmul.f32 %v3835, %v3850
      %v3869 = vmul.f32 %v3836, %v3850
      %v3870 = vmul.f32 %v3837, %v3850
      %v3871 = vmul.f32 %v3838, %v3850
      %v3872 = vmul.f32 %v3839, %v3850
      %v3873 = vmul.f32 %v3840, %v3850
      %v3874 = vmul.f32 %v3841, %v3850
      %v3875 = vmul.f32 %v3842, %v3850
      %v3876 = vmul.f32 %v3843, %v3850
      %v3877 = vmul.f32 %v3844, %v3850
      %v3878 = vmul.f32 %v3845, %v3850
      %v3879 = vmul.f32 %v3846, %v3850
      %v3880 = vmul.f32 %v3847, %v3850
      %v3881 = vmul.f32 %v3848, %v3850
      %v3882 = vmul.f32 %v3849, %v3850
      %v3883 = vadd.f32 %v3786, %v3851
      %v3884 = vadd.f32 %v3787, %v3852
      %v3885 = vadd.f32 %v3788, %v3853
      %v3886 = vadd.f32 %v3789, %v3854
      %v3887 = vadd.f32 %v3790, %v3855
      %v3888 = vadd.f32 %v3791, %v3856
      %v3889 = vadd.f32 %v3792, %v3857
      %v3890 = vadd.f32 %v3793, %v3858
      %v3891 = vadd.f32 %v3794, %v3859
      %v3892 = vadd.f32 %v3795, %v3860
      %v3893 = vadd.f32 %v3796, %v3861
      %v3894 = vadd.f32 %v3797, %v3862
      %v3895 = vadd.f32 %v3798, %v3863
      %v3896 = vadd.f32 %v3799, %v3864
      %v3897 = vadd.f32 %v3800, %v3865
      %v3898 = vadd.f32 %v3801, %v3866
      %v3899 = vadd.f32 %v3802, %v3867
      %v3900 = vadd.f32 %v3803, %v3868
      %v3901 = vadd.f32 %v3804, %v3869
      %v3902 = vadd.f32 %v3805, %v3870
      %v3903 = vadd.f32 %v3806, %v3871
      %v3904 = vadd.f32 %v3807, %v3872
      %v3905 = vadd.f32 %v3808, %v3873
      %v3906 = vadd.f32 %v3809, %v3874
      %v3907 = vadd.f32 %v3810, %v3875
      %v3908 = vadd.f32 %v3811, %v3876
      %v3909 = vadd.f32 %v3812, %v3877
      %v3910 = vadd.f32 %v3813, %v3878
      %v3911 = vadd.f32 %v3814, %v3879
      %v3912 = vadd.f32 %v3815, %v3880
      %v3913 = vadd.f32 %v3816, %v3881
      %v3914 = vadd.f32 %v3817, %v3882
      %v3915 = vld [vmem:[%s515 + $0x5] sm:$0xff]
      %v3916 = vld [vmem:[%s515 + $0xd] sm:$0xff]
      %v3917 = vld [vmem:[%s515 + $0x1d] sm:$0xff]
      %v3918 = vld [vmem:[%s515 + $0x25] sm:$0xff]
      %v3919 = vld [vmem:[%s515 + $0x35] sm:$0xff]
      %v3920 = vld [vmem:[%s515 + $0x3d] sm:$0xff]
      %v3921 = vld [vmem:[%s515 + $0x4d] sm:$0xff]
      %v3922 = vld [vmem:[%s515 + $0x55] sm:$0xff]
      %v3923 = vld [vmem:[%s515 + $0x65] sm:$0xff]
      %v3924 = vld [vmem:[%s515 + $0x6d] sm:$0xff]
      %v3925 = vld [vmem:[%s515 + $0x7d] sm:$0xff]
      %v3926 = vld [vmem:[%s515 + $0x85] sm:$0xff]
      %v3927 = vld [vmem:[%s515 + $0x95] sm:$0xff]
      %v3928 = vld [vmem:[%s515 + $0x9d] sm:$0xff]
      %v3929 = vld [vmem:[%s515 + $0xad] sm:$0xff]
      %v3930 = vld [vmem:[%s515 + $0xb5] sm:$0xff]
      %v3931 = vld [vmem:[%s515 + $0xc5] sm:$0xff]
      %v3932 = vld [vmem:[%s515 + $0xcd] sm:$0xff]
      %v3933 = vld [vmem:[%s515 + $0xdd] sm:$0xff]
      %v3934 = vld [vmem:[%s515 + $0xe5] sm:$0xff]
      %v3935 = vld [vmem:[%s515 + $0xf5] sm:$0xff]
      %v3936 = vld [vmem:[%s515 + $0xfd] sm:$0xff]
      %v3937 = vld [vmem:[%s515 + $0x10d] sm:$0xff]
      %v3938 = vld [vmem:[%s515 + $0x115] sm:$0xff]
      %v3939 = vld [vmem:[%s515 + $0x125] sm:$0xff]
      %v3940 = vld [vmem:[%s515 + $0x12d] sm:$0xff]
      %v3941 = vld [vmem:[%s515 + $0x13d] sm:$0xff]
      %v3942 = vld [vmem:[%s515 + $0x145] sm:$0xff]
      %v3943 = vld [vmem:[%s515 + $0x155] sm:$0xff]
      %v3944 = vld [vmem:[%s515 + $0x15d] sm:$0xff]
      %v3945 = vld [vmem:[%s515 + $0x16d] sm:$0xff]
      %v3946 = vld [vmem:[%s515 + $0x175] sm:$0xff]
      %v3947 = vperm.slane %v312, 5
      %v3948 = vmul.f32 %v3915, %v3947
      %v3949 = vmul.f32 %v3916, %v3947
      %v3950 = vmul.f32 %v3917, %v3947
      %v3951 = vmul.f32 %v3918, %v3947
      %v3952 = vmul.f32 %v3919, %v3947
      %v3953 = vmul.f32 %v3920, %v3947
      %v3954 = vmul.f32 %v3921, %v3947
      %v3955 = vmul.f32 %v3922, %v3947
      %v3956 = vmul.f32 %v3923, %v3947
      %v3957 = vmul.f32 %v3924, %v3947
      %v3958 = vmul.f32 %v3925, %v3947
      %v3959 = vmul.f32 %v3926, %v3947
      %v3960 = vmul.f32 %v3927, %v3947
      %v3961 = vmul.f32 %v3928, %v3947
      %v3962 = vmul.f32 %v3929, %v3947
      %v3963 = vmul.f32 %v3930, %v3947
      %v3964 = vmul.f32 %v3931, %v3947
      %v3965 = vmul.f32 %v3932, %v3947
      %v3966 = vmul.f32 %v3933, %v3947
      %v3967 = vmul.f32 %v3934, %v3947
      %v3968 = vmul.f32 %v3935, %v3947
      %v3969 = vmul.f32 %v3936, %v3947
      %v3970 = vmul.f32 %v3937, %v3947
      %v3971 = vmul.f32 %v3938, %v3947
      %v3972 = vmul.f32 %v3939, %v3947
      %v3973 = vmul.f32 %v3940, %v3947
      %v3974 = vmul.f32 %v3941, %v3947
      %v3975 = vmul.f32 %v3942, %v3947
      %v3976 = vmul.f32 %v3943, %v3947
      %v3977 = vmul.f32 %v3944, %v3947
      %v3978 = vmul.f32 %v3945, %v3947
      %v3979 = vmul.f32 %v3946, %v3947
      %v3980 = vadd.f32 %v3883, %v3948
      %v3981 = vadd.f32 %v3884, %v3949
      %v3982 = vadd.f32 %v3885, %v3950
      %v3983 = vadd.f32 %v3886, %v3951
      %v3984 = vadd.f32 %v3887, %v3952
      %v3985 = vadd.f32 %v3888, %v3953
      %v3986 = vadd.f32 %v3889, %v3954
      %v3987 = vadd.f32 %v3890, %v3955
      %v3988 = vadd.f32 %v3891, %v3956
      %v3989 = vadd.f32 %v3892, %v3957
      %v3990 = vadd.f32 %v3893, %v3958
      %v3991 = vadd.f32 %v3894, %v3959
      %v3992 = vadd.f32 %v3895, %v3960
      %v3993 = vadd.f32 %v3896, %v3961
      %v3994 = vadd.f32 %v3897, %v3962
      %v3995 = vadd.f32 %v3898, %v3963
      %v3996 = vadd.f32 %v3899, %v3964
      %v3997 = vadd.f32 %v3900, %v3965
      %v3998 = vadd.f32 %v3901, %v3966
      %v3999 = vadd.f32 %v3902, %v3967
      %v4000 = vadd.f32 %v3903, %v3968
      %v4001 = vadd.f32 %v3904, %v3969
      %v4002 = vadd.f32 %v3905, %v3970
      %v4003 = vadd.f32 %v3906, %v3971
      %v4004 = vadd.f32 %v3907, %v3972
      %v4005 = vadd.f32 %v3908, %v3973
      %v4006 = vadd.f32 %v3909, %v3974
      %v4007 = vadd.f32 %v3910, %v3975
      %v4008 = vadd.f32 %v3911, %v3976
      %v4009 = vadd.f32 %v3912, %v3977
      %v4010 = vadd.f32 %v3913, %v3978
      %v4011 = vadd.f32 %v3914, %v3979
      %v4012 = vld [vmem:[%s613 + $0x5] sm:$0xff]
      %v4013 = vld [vmem:[%s613 + $0xd] sm:$0xff]
      %v4014 = vld [vmem:[%s613 + $0x1d] sm:$0xff]
      %v4015 = vld [vmem:[%s613 + $0x25] sm:$0xff]
      %v4016 = vld [vmem:[%s613 + $0x35] sm:$0xff]
      %v4017 = vld [vmem:[%s613 + $0x3d] sm:$0xff]
      %v4018 = vld [vmem:[%s613 + $0x4d] sm:$0xff]
      %v4019 = vld [vmem:[%s613 + $0x55] sm:$0xff]
      %v4020 = vld [vmem:[%s613 + $0x65] sm:$0xff]
      %v4021 = vld [vmem:[%s613 + $0x6d] sm:$0xff]
      %v4022 = vld [vmem:[%s613 + $0x7d] sm:$0xff]
      %v4023 = vld [vmem:[%s613 + $0x85] sm:$0xff]
      %v4024 = vld [vmem:[%s613 + $0x95] sm:$0xff]
      %v4025 = vld [vmem:[%s613 + $0x9d] sm:$0xff]
      %v4026 = vld [vmem:[%s613 + $0xad] sm:$0xff]
      %v4027 = vld [vmem:[%s613 + $0xb5] sm:$0xff]
      %v4028 = vld [vmem:[%s613 + $0xc5] sm:$0xff]
      %v4029 = vld [vmem:[%s613 + $0xcd] sm:$0xff]
      %v4030 = vld [vmem:[%s613 + $0xdd] sm:$0xff]
      %v4031 = vld [vmem:[%s613 + $0xe5] sm:$0xff]
      %v4032 = vld [vmem:[%s613 + $0xf5] sm:$0xff]
      %v4033 = vld [vmem:[%s613 + $0xfd] sm:$0xff]
      %v4034 = vld [vmem:[%s613 + $0x10d] sm:$0xff]
      %v4035 = vld [vmem:[%s613 + $0x115] sm:$0xff]
      %v4036 = vld [vmem:[%s613 + $0x125] sm:$0xff]
      %v4037 = vld [vmem:[%s613 + $0x12d] sm:$0xff]
      %v4038 = vld [vmem:[%s613 + $0x13d] sm:$0xff]
      %v4039 = vld [vmem:[%s613 + $0x145] sm:$0xff]
      %v4040 = vld [vmem:[%s613 + $0x155] sm:$0xff]
      %v4041 = vld [vmem:[%s613 + $0x15d] sm:$0xff]
      %v4042 = vld [vmem:[%s613 + $0x16d] sm:$0xff]
      %v4043 = vld [vmem:[%s613 + $0x175] sm:$0xff]
      %v4044 = vperm.slane %v313, 5
      %v4045 = vmul.f32 %v4012, %v4044
      %v4046 = vmul.f32 %v4013, %v4044
      %v4047 = vmul.f32 %v4014, %v4044
      %v4048 = vmul.f32 %v4015, %v4044
      %v4049 = vmul.f32 %v4016, %v4044
      %v4050 = vmul.f32 %v4017, %v4044
      %v4051 = vmul.f32 %v4018, %v4044
      %v4052 = vmul.f32 %v4019, %v4044
      %v4053 = vmul.f32 %v4020, %v4044
      %v4054 = vmul.f32 %v4021, %v4044
      %v4055 = vmul.f32 %v4022, %v4044
      %v4056 = vmul.f32 %v4023, %v4044
      %v4057 = vmul.f32 %v4024, %v4044
      %v4058 = vmul.f32 %v4025, %v4044
      %v4059 = vmul.f32 %v4026, %v4044
      %v4060 = vmul.f32 %v4027, %v4044
      %v4061 = vmul.f32 %v4028, %v4044
      %v4062 = vmul.f32 %v4029, %v4044
      %v4063 = vmul.f32 %v4030, %v4044
      %v4064 = vmul.f32 %v4031, %v4044
      %v4065 = vmul.f32 %v4032, %v4044
      %v4066 = vmul.f32 %v4033, %v4044
      %v4067 = vmul.f32 %v4034, %v4044
      %v4068 = vmul.f32 %v4035, %v4044
      %v4069 = vmul.f32 %v4036, %v4044
      %v4070 = vmul.f32 %v4037, %v4044
      %v4071 = vmul.f32 %v4038, %v4044
      %v4072 = vmul.f32 %v4039, %v4044
      %v4073 = vmul.f32 %v4040, %v4044
      %v4074 = vmul.f32 %v4041, %v4044
      %v4075 = vmul.f32 %v4042, %v4044
      %v4076 = vmul.f32 %v4043, %v4044
      %v4077 = vadd.f32 %v3980, %v4045
      %v4078 = vadd.f32 %v3981, %v4046
      %v4079 = vadd.f32 %v3982, %v4047
      %v4080 = vadd.f32 %v3983, %v4048
      %v4081 = vadd.f32 %v3984, %v4049
      %v4082 = vadd.f32 %v3985, %v4050
      %v4083 = vadd.f32 %v3986, %v4051
      %v4084 = vadd.f32 %v3987, %v4052
      %v4085 = vadd.f32 %v3988, %v4053
      %v4086 = vadd.f32 %v3989, %v4054
      %v4087 = vadd.f32 %v3990, %v4055
      %v4088 = vadd.f32 %v3991, %v4056
      %v4089 = vadd.f32 %v3992, %v4057
      %v4090 = vadd.f32 %v3993, %v4058
      %v4091 = vadd.f32 %v3994, %v4059
      %v4092 = vadd.f32 %v3995, %v4060
      %v4093 = vadd.f32 %v3996, %v4061
      %v4094 = vadd.f32 %v3997, %v4062
      %v4095 = vadd.f32 %v3998, %v4063
      %v4096 = vadd.f32 %v3999, %v4064
      %v4097 = vadd.f32 %v4000, %v4065
      %v4098 = vadd.f32 %v4001, %v4066
      %v4099 = vadd.f32 %v4002, %v4067
      %v4100 = vadd.f32 %v4003, %v4068
      %v4101 = vadd.f32 %v4004, %v4069
      %v4102 = vadd.f32 %v4005, %v4070
      %v4103 = vadd.f32 %v4006, %v4071
      %v4104 = vadd.f32 %v4007, %v4072
      %v4105 = vadd.f32 %v4008, %v4073
      %v4106 = vadd.f32 %v4009, %v4074
      %v4107 = vadd.f32 %v4010, %v4075
      %v4108 = vadd.f32 %v4011, %v4076
      %v4109 = vld [vmem:[%s711 + $0x5] sm:$0xff]
      %v4110 = vld [vmem:[%s711 + $0xd] sm:$0xff]
      %v4111 = vld [vmem:[%s711 + $0x1d] sm:$0xff]
      %v4112 = vld [vmem:[%s711 + $0x25] sm:$0xff]
      %v4113 = vld [vmem:[%s711 + $0x35] sm:$0xff]
      %v4114 = vld [vmem:[%s711 + $0x3d] sm:$0xff]
      %v4115 = vld [vmem:[%s711 + $0x4d] sm:$0xff]
      %v4116 = vld [vmem:[%s711 + $0x55] sm:$0xff]
      %v4117 = vld [vmem:[%s711 + $0x65] sm:$0xff]
      %v4118 = vld [vmem:[%s711 + $0x6d] sm:$0xff]
      %v4119 = vld [vmem:[%s711 + $0x7d] sm:$0xff]
      %v4120 = vld [vmem:[%s711 + $0x85] sm:$0xff]
      %v4121 = vld [vmem:[%s711 + $0x95] sm:$0xff]
      %v4122 = vld [vmem:[%s711 + $0x9d] sm:$0xff]
      %v4123 = vld [vmem:[%s711 + $0xad] sm:$0xff]
      %v4124 = vld [vmem:[%s711 + $0xb5] sm:$0xff]
      %v4125 = vld [vmem:[%s711 + $0xc5] sm:$0xff]
      %v4126 = vld [vmem:[%s711 + $0xcd] sm:$0xff]
      %v4127 = vld [vmem:[%s711 + $0xdd] sm:$0xff]
      %v4128 = vld [vmem:[%s711 + $0xe5] sm:$0xff]
      %v4129 = vld [vmem:[%s711 + $0xf5] sm:$0xff]
      %v4130 = vld [vmem:[%s711 + $0xfd] sm:$0xff]
      %v4131 = vld [vmem:[%s711 + $0x10d] sm:$0xff]
      %v4132 = vld [vmem:[%s711 + $0x115] sm:$0xff]
      %v4133 = vld [vmem:[%s711 + $0x125] sm:$0xff]
      %v4134 = vld [vmem:[%s711 + $0x12d] sm:$0xff]
      %v4135 = vld [vmem:[%s711 + $0x13d] sm:$0xff]
      %v4136 = vld [vmem:[%s711 + $0x145] sm:$0xff]
      %v4137 = vld [vmem:[%s711 + $0x155] sm:$0xff]
      %v4138 = vld [vmem:[%s711 + $0x15d] sm:$0xff]
      %v4139 = vld [vmem:[%s711 + $0x16d] sm:$0xff]
      %v4140 = vld [vmem:[%s711 + $0x175] sm:$0xff]
      %v4141 = vperm.slane %v314, 5
      %v4142 = vmul.f32 %v4109, %v4141
      %v4143 = vmul.f32 %v4110, %v4141
      %v4144 = vmul.f32 %v4111, %v4141
      %v4145 = vmul.f32 %v4112, %v4141
      %v4146 = vmul.f32 %v4113, %v4141
      %v4147 = vmul.f32 %v4114, %v4141
      %v4148 = vmul.f32 %v4115, %v4141
      %v4149 = vmul.f32 %v4116, %v4141
      %v4150 = vmul.f32 %v4117, %v4141
      %v4151 = vmul.f32 %v4118, %v4141
      %v4152 = vmul.f32 %v4119, %v4141
      %v4153 = vmul.f32 %v4120, %v4141
      %v4154 = vmul.f32 %v4121, %v4141
      %v4155 = vmul.f32 %v4122, %v4141
      %v4156 = vmul.f32 %v4123, %v4141
      %v4157 = vmul.f32 %v4124, %v4141
      %v4158 = vmul.f32 %v4125, %v4141
      %v4159 = vmul.f32 %v4126, %v4141
      %v4160 = vmul.f32 %v4127, %v4141
      %v4161 = vmul.f32 %v4128, %v4141
      %v4162 = vmul.f32 %v4129, %v4141
      %v4163 = vmul.f32 %v4130, %v4141
      %v4164 = vmul.f32 %v4131, %v4141
      %v4165 = vmul.f32 %v4132, %v4141
      %v4166 = vmul.f32 %v4133, %v4141
      %v4167 = vmul.f32 %v4134, %v4141
      %v4168 = vmul.f32 %v4135, %v4141
      %v4169 = vmul.f32 %v4136, %v4141
      %v4170 = vmul.f32 %v4137, %v4141
      %v4171 = vmul.f32 %v4138, %v4141
      %v4172 = vmul.f32 %v4139, %v4141
      %v4173 = vmul.f32 %v4140, %v4141
      %v4174 = vadd.f32 %v4077, %v4142
      %v4175 = vadd.f32 %v4078, %v4143
      %v4176 = vadd.f32 %v4079, %v4144
      %v4177 = vadd.f32 %v4080, %v4145
      %v4178 = vadd.f32 %v4081, %v4146
      %v4179 = vadd.f32 %v4082, %v4147
      %v4180 = vadd.f32 %v4083, %v4148
      %v4181 = vadd.f32 %v4084, %v4149
      %v4182 = vadd.f32 %v4085, %v4150
      %v4183 = vadd.f32 %v4086, %v4151
      %v4184 = vadd.f32 %v4087, %v4152
      %v4185 = vadd.f32 %v4088, %v4153
      %v4186 = vadd.f32 %v4089, %v4154
      %v4187 = vadd.f32 %v4090, %v4155
      %v4188 = vadd.f32 %v4091, %v4156
      %v4189 = vadd.f32 %v4092, %v4157
      %v4190 = vadd.f32 %v4093, %v4158
      %v4191 = vadd.f32 %v4094, %v4159
      %v4192 = vadd.f32 %v4095, %v4160
      %v4193 = vadd.f32 %v4096, %v4161
      %v4194 = vadd.f32 %v4097, %v4162
      %v4195 = vadd.f32 %v4098, %v4163
      %v4196 = vadd.f32 %v4099, %v4164
      %v4197 = vadd.f32 %v4100, %v4165
      %v4198 = vadd.f32 %v4101, %v4166
      %v4199 = vadd.f32 %v4102, %v4167
      %v4200 = vadd.f32 %v4103, %v4168
      %v4201 = vadd.f32 %v4104, %v4169
      %v4202 = vadd.f32 %v4105, %v4170
      %v4203 = vadd.f32 %v4106, %v4171
      %v4204 = vadd.f32 %v4107, %v4172
      %v4205 = vadd.f32 %v4108, %v4173
      %v4206 = vld [vmem:[%s809 + $0x5] sm:$0xff]
      %v4207 = vld [vmem:[%s809 + $0xd] sm:$0xff]
      %v4208 = vld [vmem:[%s809 + $0x1d] sm:$0xff]
      %v4209 = vld [vmem:[%s809 + $0x25] sm:$0xff]
      %v4210 = vld [vmem:[%s809 + $0x35] sm:$0xff]
      %v4211 = vld [vmem:[%s809 + $0x3d] sm:$0xff]
      %v4212 = vld [vmem:[%s809 + $0x4d] sm:$0xff]
      %v4213 = vld [vmem:[%s809 + $0x55] sm:$0xff]
      %v4214 = vld [vmem:[%s809 + $0x65] sm:$0xff]
      %v4215 = vld [vmem:[%s809 + $0x6d] sm:$0xff]
      %v4216 = vld [vmem:[%s809 + $0x7d] sm:$0xff]
      %v4217 = vld [vmem:[%s809 + $0x85] sm:$0xff]
      %v4218 = vld [vmem:[%s809 + $0x95] sm:$0xff]
      %v4219 = vld [vmem:[%s809 + $0x9d] sm:$0xff]
      %v4220 = vld [vmem:[%s809 + $0xad] sm:$0xff]
      %v4221 = vld [vmem:[%s809 + $0xb5] sm:$0xff]
      %v4222 = vld [vmem:[%s809 + $0xc5] sm:$0xff]
      %v4223 = vld [vmem:[%s809 + $0xcd] sm:$0xff]
      %v4224 = vld [vmem:[%s809 + $0xdd] sm:$0xff]
      %v4225 = vld [vmem:[%s809 + $0xe5] sm:$0xff]
      %v4226 = vld [vmem:[%s809 + $0xf5] sm:$0xff]
      %v4227 = vld [vmem:[%s809 + $0xfd] sm:$0xff]
      %v4228 = vld [vmem:[%s809 + $0x10d] sm:$0xff]
      %v4229 = vld [vmem:[%s809 + $0x115] sm:$0xff]
      %v4230 = vld [vmem:[%s809 + $0x125] sm:$0xff]
      %v4231 = vld [vmem:[%s809 + $0x12d] sm:$0xff]
      %v4232 = vld [vmem:[%s809 + $0x13d] sm:$0xff]
      %v4233 = vld [vmem:[%s809 + $0x145] sm:$0xff]
      %v4234 = vld [vmem:[%s809 + $0x155] sm:$0xff]
      %v4235 = vld [vmem:[%s809 + $0x15d] sm:$0xff]
      %v4236 = vld [vmem:[%s809 + $0x16d] sm:$0xff]
      %v4237 = vld [vmem:[%s809 + $0x175] sm:$0xff]
      %v4238 = vperm.slane %v315, 5
      %v4239 = vmul.f32 %v4206, %v4238
      %v4240 = vmul.f32 %v4207, %v4238
      %v4241 = vmul.f32 %v4208, %v4238
      %v4242 = vmul.f32 %v4209, %v4238
      %v4243 = vmul.f32 %v4210, %v4238
      %v4244 = vmul.f32 %v4211, %v4238
      %v4245 = vmul.f32 %v4212, %v4238
      %v4246 = vmul.f32 %v4213, %v4238
      %v4247 = vmul.f32 %v4214, %v4238
      %v4248 = vmul.f32 %v4215, %v4238
      %v4249 = vmul.f32 %v4216, %v4238
      %v4250 = vmul.f32 %v4217, %v4238
      %v4251 = vmul.f32 %v4218, %v4238
      %v4252 = vmul.f32 %v4219, %v4238
      %v4253 = vmul.f32 %v4220, %v4238
      %v4254 = vmul.f32 %v4221, %v4238
      %v4255 = vmul.f32 %v4222, %v4238
      %v4256 = vmul.f32 %v4223, %v4238
      %v4257 = vmul.f32 %v4224, %v4238
      %v4258 = vmul.f32 %v4225, %v4238
      %v4259 = vmul.f32 %v4226, %v4238
      %v4260 = vmul.f32 %v4227, %v4238
      %v4261 = vmul.f32 %v4228, %v4238
      %v4262 = vmul.f32 %v4229, %v4238
      %v4263 = vmul.f32 %v4230, %v4238
      %v4264 = vmul.f32 %v4231, %v4238
      %v4265 = vmul.f32 %v4232, %v4238
      %v4266 = vmul.f32 %v4233, %v4238
      %v4267 = vmul.f32 %v4234, %v4238
      %v4268 = vmul.f32 %v4235, %v4238
      %v4269 = vmul.f32 %v4236, %v4238
      %v4270 = vmul.f32 %v4237, %v4238
      %v4271 = vadd.f32 %v4174, %v4239
      %v4272 = vadd.f32 %v4175, %v4240
      %v4273 = vadd.f32 %v4176, %v4241
      %v4274 = vadd.f32 %v4177, %v4242
      %v4275 = vadd.f32 %v4178, %v4243
      %v4276 = vadd.f32 %v4179, %v4244
      %v4277 = vadd.f32 %v4180, %v4245
      %v4278 = vadd.f32 %v4181, %v4246
      %v4279 = vadd.f32 %v4182, %v4247
      %v4280 = vadd.f32 %v4183, %v4248
      %v4281 = vadd.f32 %v4184, %v4249
      %v4282 = vadd.f32 %v4185, %v4250
      %v4283 = vadd.f32 %v4186, %v4251
      %v4284 = vadd.f32 %v4187, %v4252
      %v4285 = vadd.f32 %v4188, %v4253
      %v4286 = vadd.f32 %v4189, %v4254
      %v4287 = vadd.f32 %v4190, %v4255
      %v4288 = vadd.f32 %v4191, %v4256
      %v4289 = vadd.f32 %v4192, %v4257
      %v4290 = vadd.f32 %v4193, %v4258
      %v4291 = vadd.f32 %v4194, %v4259
      %v4292 = vadd.f32 %v4195, %v4260
      %v4293 = vadd.f32 %v4196, %v4261
      %v4294 = vadd.f32 %v4197, %v4262
      %v4295 = vadd.f32 %v4198, %v4263
      %v4296 = vadd.f32 %v4199, %v4264
      %v4297 = vadd.f32 %v4200, %v4265
      %v4298 = vadd.f32 %v4201, %v4266
      %v4299 = vadd.f32 %v4202, %v4267
      %v4300 = vadd.f32 %v4203, %v4268
      %v4301 = vadd.f32 %v4204, %v4269
      %v4302 = vadd.f32 %v4205, %v4270
      %v4303 = vld [vmem:[%s907 + $0x5] sm:$0xff]
      %v4304 = vld [vmem:[%s907 + $0xd] sm:$0xff]
      %v4305 = vld [vmem:[%s907 + $0x1d] sm:$0xff]
      %v4306 = vld [vmem:[%s907 + $0x25] sm:$0xff]
      %v4307 = vld [vmem:[%s907 + $0x35] sm:$0xff]
      %v4308 = vld [vmem:[%s907 + $0x3d] sm:$0xff]
      %v4309 = vld [vmem:[%s907 + $0x4d] sm:$0xff]
      %v4310 = vld [vmem:[%s907 + $0x55] sm:$0xff]
      %v4311 = vld [vmem:[%s907 + $0x65] sm:$0xff]
      %v4312 = vld [vmem:[%s907 + $0x6d] sm:$0xff]
      %v4313 = vld [vmem:[%s907 + $0x7d] sm:$0xff]
      %v4314 = vld [vmem:[%s907 + $0x85] sm:$0xff]
      %v4315 = vld [vmem:[%s907 + $0x95] sm:$0xff]
      %v4316 = vld [vmem:[%s907 + $0x9d] sm:$0xff]
      %v4317 = vld [vmem:[%s907 + $0xad] sm:$0xff]
      %v4318 = vld [vmem:[%s907 + $0xb5] sm:$0xff]
      %v4319 = vld [vmem:[%s907 + $0xc5] sm:$0xff]
      %v4320 = vld [vmem:[%s907 + $0xcd] sm:$0xff]
      %v4321 = vld [vmem:[%s907 + $0xdd] sm:$0xff]
      %v4322 = vld [vmem:[%s907 + $0xe5] sm:$0xff]
      %v4323 = vld [vmem:[%s907 + $0xf5] sm:$0xff]
      %v4324 = vld [vmem:[%s907 + $0xfd] sm:$0xff]
      %v4325 = vld [vmem:[%s907 + $0x10d] sm:$0xff]
      %v4326 = vld [vmem:[%s907 + $0x115] sm:$0xff]
      %v4327 = vld [vmem:[%s907 + $0x125] sm:$0xff]
      %v4328 = vld [vmem:[%s907 + $0x12d] sm:$0xff]
      %v4329 = vld [vmem:[%s907 + $0x13d] sm:$0xff]
      %v4330 = vld [vmem:[%s907 + $0x145] sm:$0xff]
      %v4331 = vld [vmem:[%s907 + $0x155] sm:$0xff]
      %v4332 = vld [vmem:[%s907 + $0x15d] sm:$0xff]
      %v4333 = vld [vmem:[%s907 + $0x16d] sm:$0xff]
      %v4334 = vld [vmem:[%s907 + $0x175] sm:$0xff]
      %v4335 = vperm.slane %v316, 5
      %v4336 = vmul.f32 %v4303, %v4335
      %v4337 = vmul.f32 %v4304, %v4335
      %v4338 = vmul.f32 %v4305, %v4335
      %v4339 = vmul.f32 %v4306, %v4335
      %v4340 = vmul.f32 %v4307, %v4335
      %v4341 = vmul.f32 %v4308, %v4335
      %v4342 = vmul.f32 %v4309, %v4335
      %v4343 = vmul.f32 %v4310, %v4335
      %v4344 = vmul.f32 %v4311, %v4335
      %v4345 = vmul.f32 %v4312, %v4335
      %v4346 = vmul.f32 %v4313, %v4335
      %v4347 = vmul.f32 %v4314, %v4335
      %v4348 = vmul.f32 %v4315, %v4335
      %v4349 = vmul.f32 %v4316, %v4335
      %v4350 = vmul.f32 %v4317, %v4335
      %v4351 = vmul.f32 %v4318, %v4335
      %v4352 = vmul.f32 %v4319, %v4335
      %v4353 = vmul.f32 %v4320, %v4335
      %v4354 = vmul.f32 %v4321, %v4335
      %v4355 = vmul.f32 %v4322, %v4335
      %v4356 = vmul.f32 %v4323, %v4335
      %v4357 = vmul.f32 %v4324, %v4335
      %v4358 = vmul.f32 %v4325, %v4335
      %v4359 = vmul.f32 %v4326, %v4335
      %v4360 = vmul.f32 %v4327, %v4335
      %v4361 = vmul.f32 %v4328, %v4335
      %v4362 = vmul.f32 %v4329, %v4335
      %v4363 = vmul.f32 %v4330, %v4335
      %v4364 = vmul.f32 %v4331, %v4335
      %v4365 = vmul.f32 %v4332, %v4335
      %v4366 = vmul.f32 %v4333, %v4335
      %v4367 = vmul.f32 %v4334, %v4335
      %v4368 = vadd.f32 %v4271, %v4336
      %v4369 = vadd.f32 %v4272, %v4337
      %v4370 = vadd.f32 %v4273, %v4338
      %v4371 = vadd.f32 %v4274, %v4339
      %v4372 = vadd.f32 %v4275, %v4340
      %v4373 = vadd.f32 %v4276, %v4341
      %v4374 = vadd.f32 %v4277, %v4342
      %v4375 = vadd.f32 %v4278, %v4343
      %v4376 = vadd.f32 %v4279, %v4344
      %v4377 = vadd.f32 %v4280, %v4345
      %v4378 = vadd.f32 %v4281, %v4346
      %v4379 = vadd.f32 %v4282, %v4347
      %v4380 = vadd.f32 %v4283, %v4348
      %v4381 = vadd.f32 %v4284, %v4349
      %v4382 = vadd.f32 %v4285, %v4350
      %v4383 = vadd.f32 %v4286, %v4351
      %v4384 = vadd.f32 %v4287, %v4352
      %v4385 = vadd.f32 %v4288, %v4353
      %v4386 = vadd.f32 %v4289, %v4354
      %v4387 = vadd.f32 %v4290, %v4355
      %v4388 = vadd.f32 %v4291, %v4356
      %v4389 = vadd.f32 %v4292, %v4357
      %v4390 = vadd.f32 %v4293, %v4358
      %v4391 = vadd.f32 %v4294, %v4359
      %v4392 = vadd.f32 %v4295, %v4360
      %v4393 = vadd.f32 %v4296, %v4361
      %v4394 = vadd.f32 %v4297, %v4362
      %v4395 = vadd.f32 %v4298, %v4363
      %v4396 = vadd.f32 %v4299, %v4364
      %v4397 = vadd.f32 %v4300, %v4365
      %v4398 = vadd.f32 %v4301, %v4366
      %v4399 = vadd.f32 %v4302, %v4367
      %v4400 = vld [vmem:[%s297 + $0x6] sm:$0xff]
      %v4401 = vld [vmem:[%s297 + $0xe] sm:$0xff]
      %v4402 = vld [vmem:[%s297 + $0x1e] sm:$0xff]
      %v4403 = vld [vmem:[%s297 + $0x26] sm:$0xff]
      %v4404 = vld [vmem:[%s297 + $0x36] sm:$0xff]
      %v4405 = vld [vmem:[%s297 + $0x3e] sm:$0xff]
      %v4406 = vld [vmem:[%s297 + $0x4e] sm:$0xff]
      %v4407 = vld [vmem:[%s297 + $0x56] sm:$0xff]
      %v4408 = vld [vmem:[%s297 + $0x66] sm:$0xff]
      %v4409 = vld [vmem:[%s297 + $0x6e] sm:$0xff]
      %v4410 = vld [vmem:[%s297 + $0x7e] sm:$0xff]
      %v4411 = vld [vmem:[%s297 + $0x86] sm:$0xff]
      %v4412 = vld [vmem:[%s297 + $0x96] sm:$0xff]
      %v4413 = vld [vmem:[%s297 + $0x9e] sm:$0xff]
      %v4414 = vld [vmem:[%s297 + $0xae] sm:$0xff]
      %v4415 = vld [vmem:[%s297 + $0xb6] sm:$0xff]
      %v4416 = vld [vmem:[%s297 + $0xc6] sm:$0xff]
      %v4417 = vld [vmem:[%s297 + $0xce] sm:$0xff]
      %v4418 = vld [vmem:[%s297 + $0xde] sm:$0xff]
      %v4419 = vld [vmem:[%s297 + $0xe6] sm:$0xff]
      %v4420 = vld [vmem:[%s297 + $0xf6] sm:$0xff]
      %v4421 = vld [vmem:[%s297 + $0xfe] sm:$0xff]
      %v4422 = vld [vmem:[%s297 + $0x10e] sm:$0xff]
      %v4423 = vld [vmem:[%s297 + $0x116] sm:$0xff]
      %v4424 = vld [vmem:[%s297 + $0x126] sm:$0xff]
      %v4425 = vld [vmem:[%s297 + $0x12e] sm:$0xff]
      %v4426 = vld [vmem:[%s297 + $0x13e] sm:$0xff]
      %v4427 = vld [vmem:[%s297 + $0x146] sm:$0xff]
      %v4428 = vld [vmem:[%s297 + $0x156] sm:$0xff]
      %v4429 = vld [vmem:[%s297 + $0x15e] sm:$0xff]
      %v4430 = vld [vmem:[%s297 + $0x16e] sm:$0xff]
      %v4431 = vld [vmem:[%s297 + $0x176] sm:$0xff]
      %v4432 = vperm.slane %v310, 6
      %v4433 = vmul.f32 %v4400, %v4432
      %v4434 = vmul.f32 %v4401, %v4432
      %v4435 = vmul.f32 %v4402, %v4432
      %v4436 = vmul.f32 %v4403, %v4432
      %v4437 = vmul.f32 %v4404, %v4432
      %v4438 = vmul.f32 %v4405, %v4432
      %v4439 = vmul.f32 %v4406, %v4432
      %v4440 = vmul.f32 %v4407, %v4432
      %v4441 = vmul.f32 %v4408, %v4432
      %v4442 = vmul.f32 %v4409, %v4432
      %v4443 = vmul.f32 %v4410, %v4432
      %v4444 = vmul.f32 %v4411, %v4432
      %v4445 = vmul.f32 %v4412, %v4432
      %v4446 = vmul.f32 %v4413, %v4432
      %v4447 = vmul.f32 %v4414, %v4432
      %v4448 = vmul.f32 %v4415, %v4432
      %v4449 = vmul.f32 %v4416, %v4432
      %v4450 = vmul.f32 %v4417, %v4432
      %v4451 = vmul.f32 %v4418, %v4432
      %v4452 = vmul.f32 %v4419, %v4432
      %v4453 = vmul.f32 %v4420, %v4432
      %v4454 = vmul.f32 %v4421, %v4432
      %v4455 = vmul.f32 %v4422, %v4432
      %v4456 = vmul.f32 %v4423, %v4432
      %v4457 = vmul.f32 %v4424, %v4432
      %v4458 = vmul.f32 %v4425, %v4432
      %v4459 = vmul.f32 %v4426, %v4432
      %v4460 = vmul.f32 %v4427, %v4432
      %v4461 = vmul.f32 %v4428, %v4432
      %v4462 = vmul.f32 %v4429, %v4432
      %v4463 = vmul.f32 %v4430, %v4432
      %v4464 = vmul.f32 %v4431, %v4432
      %v4465 = vadd.f32 %v4368, %v4433
      %v4466 = vadd.f32 %v4369, %v4434
      %v4467 = vadd.f32 %v4370, %v4435
      %v4468 = vadd.f32 %v4371, %v4436
      %v4469 = vadd.f32 %v4372, %v4437
      %v4470 = vadd.f32 %v4373, %v4438
      %v4471 = vadd.f32 %v4374, %v4439
      %v4472 = vadd.f32 %v4375, %v4440
      %v4473 = vadd.f32 %v4376, %v4441
      %v4474 = vadd.f32 %v4377, %v4442
      %v4475 = vadd.f32 %v4378, %v4443
      %v4476 = vadd.f32 %v4379, %v4444
      %v4477 = vadd.f32 %v4380, %v4445
      %v4478 = vadd.f32 %v4381, %v4446
      %v4479 = vadd.f32 %v4382, %v4447
      %v4480 = vadd.f32 %v4383, %v4448
      %v4481 = vadd.f32 %v4384, %v4449
      %v4482 = vadd.f32 %v4385, %v4450
      %v4483 = vadd.f32 %v4386, %v4451
      %v4484 = vadd.f32 %v4387, %v4452
      %v4485 = vadd.f32 %v4388, %v4453
      %v4486 = vadd.f32 %v4389, %v4454
      %v4487 = vadd.f32 %v4390, %v4455
      %v4488 = vadd.f32 %v4391, %v4456
      %v4489 = vadd.f32 %v4392, %v4457
      %v4490 = vadd.f32 %v4393, %v4458
      %v4491 = vadd.f32 %v4394, %v4459
      %v4492 = vadd.f32 %v4395, %v4460
      %v4493 = vadd.f32 %v4396, %v4461
      %v4494 = vadd.f32 %v4397, %v4462
      %v4495 = vadd.f32 %v4398, %v4463
      %v4496 = vadd.f32 %v4399, %v4464
      %v4497 = vld [vmem:[%s417 + $0x6] sm:$0xff]
      %v4498 = vld [vmem:[%s417 + $0xe] sm:$0xff]
      %v4499 = vld [vmem:[%s417 + $0x1e] sm:$0xff]
      %v4500 = vld [vmem:[%s417 + $0x26] sm:$0xff]
      %v4501 = vld [vmem:[%s417 + $0x36] sm:$0xff]
      %v4502 = vld [vmem:[%s417 + $0x3e] sm:$0xff]
      %v4503 = vld [vmem:[%s417 + $0x4e] sm:$0xff]
      %v4504 = vld [vmem:[%s417 + $0x56] sm:$0xff]
      %v4505 = vld [vmem:[%s417 + $0x66] sm:$0xff]
      %v4506 = vld [vmem:[%s417 + $0x6e] sm:$0xff]
      %v4507 = vld [vmem:[%s417 + $0x7e] sm:$0xff]
      %v4508 = vld [vmem:[%s417 + $0x86] sm:$0xff]
      %v4509 = vld [vmem:[%s417 + $0x96] sm:$0xff]
      %v4510 = vld [vmem:[%s417 + $0x9e] sm:$0xff]
      %v4511 = vld [vmem:[%s417 + $0xae] sm:$0xff]
      %v4512 = vld [vmem:[%s417 + $0xb6] sm:$0xff]
      %v4513 = vld [vmem:[%s417 + $0xc6] sm:$0xff]
      %v4514 = vld [vmem:[%s417 + $0xce] sm:$0xff]
      %v4515 = vld [vmem:[%s417 + $0xde] sm:$0xff]
      %v4516 = vld [vmem:[%s417 + $0xe6] sm:$0xff]
      %v4517 = vld [vmem:[%s417 + $0xf6] sm:$0xff]
      %v4518 = vld [vmem:[%s417 + $0xfe] sm:$0xff]
      %v4519 = vld [vmem:[%s417 + $0x10e] sm:$0xff]
      %v4520 = vld [vmem:[%s417 + $0x116] sm:$0xff]
      %v4521 = vld [vmem:[%s417 + $0x126] sm:$0xff]
      %v4522 = vld [vmem:[%s417 + $0x12e] sm:$0xff]
      %v4523 = vld [vmem:[%s417 + $0x13e] sm:$0xff]
      %v4524 = vld [vmem:[%s417 + $0x146] sm:$0xff]
      %v4525 = vld [vmem:[%s417 + $0x156] sm:$0xff]
      %v4526 = vld [vmem:[%s417 + $0x15e] sm:$0xff]
      %v4527 = vld [vmem:[%s417 + $0x16e] sm:$0xff]
      %v4528 = vld [vmem:[%s417 + $0x176] sm:$0xff]
      %v4529 = vperm.slane %v311, 6
      %v4530 = vmul.f32 %v4497, %v4529
      %v4531 = vmul.f32 %v4498, %v4529
      %v4532 = vmul.f32 %v4499, %v4529
      %v4533 = vmul.f32 %v4500, %v4529
      %v4534 = vmul.f32 %v4501, %v4529
      %v4535 = vmul.f32 %v4502, %v4529
      %v4536 = vmul.f32 %v4503, %v4529
      %v4537 = vmul.f32 %v4504, %v4529
      %v4538 = vmul.f32 %v4505, %v4529
      %v4539 = vmul.f32 %v4506, %v4529
      %v4540 = vmul.f32 %v4507, %v4529
      %v4541 = vmul.f32 %v4508, %v4529
      %v4542 = vmul.f32 %v4509, %v4529
      %v4543 = vmul.f32 %v4510, %v4529
      %v4544 = vmul.f32 %v4511, %v4529
      %v4545 = vmul.f32 %v4512, %v4529
      %v4546 = vmul.f32 %v4513, %v4529
      %v4547 = vmul.f32 %v4514, %v4529
      %v4548 = vmul.f32 %v4515, %v4529
      %v4549 = vmul.f32 %v4516, %v4529
      %v4550 = vmul.f32 %v4517, %v4529
      %v4551 = vmul.f32 %v4518, %v4529
      %v4552 = vmul.f32 %v4519, %v4529
      %v4553 = vmul.f32 %v4520, %v4529
      %v4554 = vmul.f32 %v4521, %v4529
      %v4555 = vmul.f32 %v4522, %v4529
      %v4556 = vmul.f32 %v4523, %v4529
      %v4557 = vmul.f32 %v4524, %v4529
      %v4558 = vmul.f32 %v4525, %v4529
      %v4559 = vmul.f32 %v4526, %v4529
      %v4560 = vmul.f32 %v4527, %v4529
      %v4561 = vmul.f32 %v4528, %v4529
      %v4562 = vadd.f32 %v4465, %v4530
      %v4563 = vadd.f32 %v4466, %v4531
      %v4564 = vadd.f32 %v4467, %v4532
      %v4565 = vadd.f32 %v4468, %v4533
      %v4566 = vadd.f32 %v4469, %v4534
      %v4567 = vadd.f32 %v4470, %v4535
      %v4568 = vadd.f32 %v4471, %v4536
      %v4569 = vadd.f32 %v4472, %v4537
      %v4570 = vadd.f32 %v4473, %v4538
      %v4571 = vadd.f32 %v4474, %v4539
      %v4572 = vadd.f32 %v4475, %v4540
      %v4573 = vadd.f32 %v4476, %v4541
      %v4574 = vadd.f32 %v4477, %v4542
      %v4575 = vadd.f32 %v4478, %v4543
      %v4576 = vadd.f32 %v4479, %v4544
      %v4577 = vadd.f32 %v4480, %v4545
      %v4578 = vadd.f32 %v4481, %v4546
      %v4579 = vadd.f32 %v4482, %v4547
      %v4580 = vadd.f32 %v4483, %v4548
      %v4581 = vadd.f32 %v4484, %v4549
      %v4582 = vadd.f32 %v4485, %v4550
      %v4583 = vadd.f32 %v4486, %v4551
      %v4584 = vadd.f32 %v4487, %v4552
      %v4585 = vadd.f32 %v4488, %v4553
      %v4586 = vadd.f32 %v4489, %v4554
      %v4587 = vadd.f32 %v4490, %v4555
      %v4588 = vadd.f32 %v4491, %v4556
      %v4589 = vadd.f32 %v4492, %v4557
      %v4590 = vadd.f32 %v4493, %v4558
      %v4591 = vadd.f32 %v4494, %v4559
      %v4592 = vadd.f32 %v4495, %v4560
      %v4593 = vadd.f32 %v4496, %v4561
      %v4594 = vld [vmem:[%s515 + $0x6] sm:$0xff]
      %v4595 = vld [vmem:[%s515 + $0xe] sm:$0xff]
      %v4596 = vld [vmem:[%s515 + $0x1e] sm:$0xff]
      %v4597 = vld [vmem:[%s515 + $0x26] sm:$0xff]
      %v4598 = vld [vmem:[%s515 + $0x36] sm:$0xff]
      %v4599 = vld [vmem:[%s515 + $0x3e] sm:$0xff]
      %v4600 = vld [vmem:[%s515 + $0x4e] sm:$0xff]
      %v4601 = vld [vmem:[%s515 + $0x56] sm:$0xff]
      %v4602 = vld [vmem:[%s515 + $0x66] sm:$0xff]
      %v4603 = vld [vmem:[%s515 + $0x6e] sm:$0xff]
      %v4604 = vld [vmem:[%s515 + $0x7e] sm:$0xff]
      %v4605 = vld [vmem:[%s515 + $0x86] sm:$0xff]
      %v4606 = vld [vmem:[%s515 + $0x96] sm:$0xff]
      %v4607 = vld [vmem:[%s515 + $0x9e] sm:$0xff]
      %v4608 = vld [vmem:[%s515 + $0xae] sm:$0xff]
      %v4609 = vld [vmem:[%s515 + $0xb6] sm:$0xff]
      %v4610 = vld [vmem:[%s515 + $0xc6] sm:$0xff]
      %v4611 = vld [vmem:[%s515 + $0xce] sm:$0xff]
      %v4612 = vld [vmem:[%s515 + $0xde] sm:$0xff]
      %v4613 = vld [vmem:[%s515 + $0xe6] sm:$0xff]
      %v4614 = vld [vmem:[%s515 + $0xf6] sm:$0xff]
      %v4615 = vld [vmem:[%s515 + $0xfe] sm:$0xff]
      %v4616 = vld [vmem:[%s515 + $0x10e] sm:$0xff]
      %v4617 = vld [vmem:[%s515 + $0x116] sm:$0xff]
      %v4618 = vld [vmem:[%s515 + $0x126] sm:$0xff]
      %v4619 = vld [vmem:[%s515 + $0x12e] sm:$0xff]
      %v4620 = vld [vmem:[%s515 + $0x13e] sm:$0xff]
      %v4621 = vld [vmem:[%s515 + $0x146] sm:$0xff]
      %v4622 = vld [vmem:[%s515 + $0x156] sm:$0xff]
      %v4623 = vld [vmem:[%s515 + $0x15e] sm:$0xff]
      %v4624 = vld [vmem:[%s515 + $0x16e] sm:$0xff]
      %v4625 = vld [vmem:[%s515 + $0x176] sm:$0xff]
      %v4626 = vperm.slane %v312, 6
      %v4627 = vmul.f32 %v4594, %v4626
      %v4628 = vmul.f32 %v4595, %v4626
      %v4629 = vmul.f32 %v4596, %v4626
      %v4630 = vmul.f32 %v4597, %v4626
      %v4631 = vmul.f32 %v4598, %v4626
      %v4632 = vmul.f32 %v4599, %v4626
      %v4633 = vmul.f32 %v4600, %v4626
      %v4634 = vmul.f32 %v4601, %v4626
      %v4635 = vmul.f32 %v4602, %v4626
      %v4636 = vmul.f32 %v4603, %v4626
      %v4637 = vmul.f32 %v4604, %v4626
      %v4638 = vmul.f32 %v4605, %v4626
      %v4639 = vmul.f32 %v4606, %v4626
      %v4640 = vmul.f32 %v4607, %v4626
      %v4641 = vmul.f32 %v4608, %v4626
      %v4642 = vmul.f32 %v4609, %v4626
      %v4643 = vmul.f32 %v4610, %v4626
      %v4644 = vmul.f32 %v4611, %v4626
      %v4645 = vmul.f32 %v4612, %v4626
      %v4646 = vmul.f32 %v4613, %v4626
      %v4647 = vmul.f32 %v4614, %v4626
      %v4648 = vmul.f32 %v4615, %v4626
      %v4649 = vmul.f32 %v4616, %v4626
      %v4650 = vmul.f32 %v4617, %v4626
      %v4651 = vmul.f32 %v4618, %v4626
      %v4652 = vmul.f32 %v4619, %v4626
      %v4653 = vmul.f32 %v4620, %v4626
      %v4654 = vmul.f32 %v4621, %v4626
      %v4655 = vmul.f32 %v4622, %v4626
      %v4656 = vmul.f32 %v4623, %v4626
      %v4657 = vmul.f32 %v4624, %v4626
      %v4658 = vmul.f32 %v4625, %v4626
      %v4659 = vadd.f32 %v4562, %v4627
      %v4660 = vadd.f32 %v4563, %v4628
      %v4661 = vadd.f32 %v4564, %v4629
      %v4662 = vadd.f32 %v4565, %v4630
      %v4663 = vadd.f32 %v4566, %v4631
      %v4664 = vadd.f32 %v4567, %v4632
      %v4665 = vadd.f32 %v4568, %v4633
      %v4666 = vadd.f32 %v4569, %v4634
      %v4667 = vadd.f32 %v4570, %v4635
      %v4668 = vadd.f32 %v4571, %v4636
      %v4669 = vadd.f32 %v4572, %v4637
      %v4670 = vadd.f32 %v4573, %v4638
      %v4671 = vadd.f32 %v4574, %v4639
      %v4672 = vadd.f32 %v4575, %v4640
      %v4673 = vadd.f32 %v4576, %v4641
      %v4674 = vadd.f32 %v4577, %v4642
      %v4675 = vadd.f32 %v4578, %v4643
      %v4676 = vadd.f32 %v4579, %v4644
      %v4677 = vadd.f32 %v4580, %v4645
      %v4678 = vadd.f32 %v4581, %v4646
      %v4679 = vadd.f32 %v4582, %v4647
      %v4680 = vadd.f32 %v4583, %v4648
      %v4681 = vadd.f32 %v4584, %v4649
      %v4682 = vadd.f32 %v4585, %v4650
      %v4683 = vadd.f32 %v4586, %v4651
      %v4684 = vadd.f32 %v4587, %v4652
      %v4685 = vadd.f32 %v4588, %v4653
      %v4686 = vadd.f32 %v4589, %v4654
      %v4687 = vadd.f32 %v4590, %v4655
      %v4688 = vadd.f32 %v4591, %v4656
      %v4689 = vadd.f32 %v4592, %v4657
      %v4690 = vadd.f32 %v4593, %v4658
      %v4691 = vld [vmem:[%s613 + $0x6] sm:$0xff]
      %v4692 = vld [vmem:[%s613 + $0xe] sm:$0xff]
      %v4693 = vld [vmem:[%s613 + $0x1e] sm:$0xff]
      %v4694 = vld [vmem:[%s613 + $0x26] sm:$0xff]
      %v4695 = vld [vmem:[%s613 + $0x36] sm:$0xff]
      %v4696 = vld [vmem:[%s613 + $0x3e] sm:$0xff]
      %v4697 = vld [vmem:[%s613 + $0x4e] sm:$0xff]
      %v4698 = vld [vmem:[%s613 + $0x56] sm:$0xff]
      %v4699 = vld [vmem:[%s613 + $0x66] sm:$0xff]
      %v4700 = vld [vmem:[%s613 + $0x6e] sm:$0xff]
      %v4701 = vld [vmem:[%s613 + $0x7e] sm:$0xff]
      %v4702 = vld [vmem:[%s613 + $0x86] sm:$0xff]
      %v4703 = vld [vmem:[%s613 + $0x96] sm:$0xff]
      %v4704 = vld [vmem:[%s613 + $0x9e] sm:$0xff]
      %v4705 = vld [vmem:[%s613 + $0xae] sm:$0xff]
      %v4706 = vld [vmem:[%s613 + $0xb6] sm:$0xff]
      %v4707 = vld [vmem:[%s613 + $0xc6] sm:$0xff]
      %v4708 = vld [vmem:[%s613 + $0xce] sm:$0xff]
      %v4709 = vld [vmem:[%s613 + $0xde] sm:$0xff]
      %v4710 = vld [vmem:[%s613 + $0xe6] sm:$0xff]
      %v4711 = vld [vmem:[%s613 + $0xf6] sm:$0xff]
      %v4712 = vld [vmem:[%s613 + $0xfe] sm:$0xff]
      %v4713 = vld [vmem:[%s613 + $0x10e] sm:$0xff]
      %v4714 = vld [vmem:[%s613 + $0x116] sm:$0xff]
      %v4715 = vld [vmem:[%s613 + $0x126] sm:$0xff]
      %v4716 = vld [vmem:[%s613 + $0x12e] sm:$0xff]
      %v4717 = vld [vmem:[%s613 + $0x13e] sm:$0xff]
      %v4718 = vld [vmem:[%s613 + $0x146] sm:$0xff]
      %v4719 = vld [vmem:[%s613 + $0x156] sm:$0xff]
      %v4720 = vld [vmem:[%s613 + $0x15e] sm:$0xff]
      %v4721 = vld [vmem:[%s613 + $0x16e] sm:$0xff]
      %v4722 = vld [vmem:[%s613 + $0x176] sm:$0xff]
      %v4723 = vperm.slane %v313, 6
      %v4724 = vmul.f32 %v4691, %v4723
      %v4725 = vmul.f32 %v4692, %v4723
      %v4726 = vmul.f32 %v4693, %v4723
      %v4727 = vmul.f32 %v4694, %v4723
      %v4728 = vmul.f32 %v4695, %v4723
      %v4729 = vmul.f32 %v4696, %v4723
      %v4730 = vmul.f32 %v4697, %v4723
      %v4731 = vmul.f32 %v4698, %v4723
      %v4732 = vmul.f32 %v4699, %v4723
      %v4733 = vmul.f32 %v4700, %v4723
      %v4734 = vmul.f32 %v4701, %v4723
      %v4735 = vmul.f32 %v4702, %v4723
      %v4736 = vmul.f32 %v4703, %v4723
      %v4737 = vmul.f32 %v4704, %v4723
      %v4738 = vmul.f32 %v4705, %v4723
      %v4739 = vmul.f32 %v4706, %v4723
      %v4740 = vmul.f32 %v4707, %v4723
      %v4741 = vmul.f32 %v4708, %v4723
      %v4742 = vmul.f32 %v4709, %v4723
      %v4743 = vmul.f32 %v4710, %v4723
      %v4744 = vmul.f32 %v4711, %v4723
      %v4745 = vmul.f32 %v4712, %v4723
      %v4746 = vmul.f32 %v4713, %v4723
      %v4747 = vmul.f32 %v4714, %v4723
      %v4748 = vmul.f32 %v4715, %v4723
      %v4749 = vmul.f32 %v4716, %v4723
      %v4750 = vmul.f32 %v4717, %v4723
      %v4751 = vmul.f32 %v4718, %v4723
      %v4752 = vmul.f32 %v4719, %v4723
      %v4753 = vmul.f32 %v4720, %v4723
      %v4754 = vmul.f32 %v4721, %v4723
      %v4755 = vmul.f32 %v4722, %v4723
      %v4756 = vadd.f32 %v4659, %v4724
      %v4757 = vadd.f32 %v4660, %v4725
      %v4758 = vadd.f32 %v4661, %v4726
      %v4759 = vadd.f32 %v4662, %v4727
      %v4760 = vadd.f32 %v4663, %v4728
      %v4761 = vadd.f32 %v4664, %v4729
      %v4762 = vadd.f32 %v4665, %v4730
      %v4763 = vadd.f32 %v4666, %v4731
      %v4764 = vadd.f32 %v4667, %v4732
      %v4765 = vadd.f32 %v4668, %v4733
      %v4766 = vadd.f32 %v4669, %v4734
      %v4767 = vadd.f32 %v4670, %v4735
      %v4768 = vadd.f32 %v4671, %v4736
      %v4769 = vadd.f32 %v4672, %v4737
      %v4770 = vadd.f32 %v4673, %v4738
      %v4771 = vadd.f32 %v4674, %v4739
      %v4772 = vadd.f32 %v4675, %v4740
      %v4773 = vadd.f32 %v4676, %v4741
      %v4774 = vadd.f32 %v4677, %v4742
      %v4775 = vadd.f32 %v4678, %v4743
      %v4776 = vadd.f32 %v4679, %v4744
      %v4777 = vadd.f32 %v4680, %v4745
      %v4778 = vadd.f32 %v4681, %v4746
      %v4779 = vadd.f32 %v4682, %v4747
      %v4780 = vadd.f32 %v4683, %v4748
      %v4781 = vadd.f32 %v4684, %v4749
      %v4782 = vadd.f32 %v4685, %v4750
      %v4783 = vadd.f32 %v4686, %v4751
      %v4784 = vadd.f32 %v4687, %v4752
      %v4785 = vadd.f32 %v4688, %v4753
      %v4786 = vadd.f32 %v4689, %v4754
      %v4787 = vadd.f32 %v4690, %v4755
      %v4788 = vld [vmem:[%s711 + $0x6] sm:$0xff]
      %v4789 = vld [vmem:[%s711 + $0xe] sm:$0xff]
      %v4790 = vld [vmem:[%s711 + $0x1e] sm:$0xff]
      %v4791 = vld [vmem:[%s711 + $0x26] sm:$0xff]
      %v4792 = vld [vmem:[%s711 + $0x36] sm:$0xff]
      %v4793 = vld [vmem:[%s711 + $0x3e] sm:$0xff]
      %v4794 = vld [vmem:[%s711 + $0x4e] sm:$0xff]
      %v4795 = vld [vmem:[%s711 + $0x56] sm:$0xff]
      %v4796 = vld [vmem:[%s711 + $0x66] sm:$0xff]
      %v4797 = vld [vmem:[%s711 + $0x6e] sm:$0xff]
      %v4798 = vld [vmem:[%s711 + $0x7e] sm:$0xff]
      %v4799 = vld [vmem:[%s711 + $0x86] sm:$0xff]
      %v4800 = vld [vmem:[%s711 + $0x96] sm:$0xff]
      %v4801 = vld [vmem:[%s711 + $0x9e] sm:$0xff]
      %v4802 = vld [vmem:[%s711 + $0xae] sm:$0xff]
      %v4803 = vld [vmem:[%s711 + $0xb6] sm:$0xff]
      %v4804 = vld [vmem:[%s711 + $0xc6] sm:$0xff]
      %v4805 = vld [vmem:[%s711 + $0xce] sm:$0xff]
      %v4806 = vld [vmem:[%s711 + $0xde] sm:$0xff]
      %v4807 = vld [vmem:[%s711 + $0xe6] sm:$0xff]
      %v4808 = vld [vmem:[%s711 + $0xf6] sm:$0xff]
      %v4809 = vld [vmem:[%s711 + $0xfe] sm:$0xff]
      %v4810 = vld [vmem:[%s711 + $0x10e] sm:$0xff]
      %v4811 = vld [vmem:[%s711 + $0x116] sm:$0xff]
      %v4812 = vld [vmem:[%s711 + $0x126] sm:$0xff]
      %v4813 = vld [vmem:[%s711 + $0x12e] sm:$0xff]
      %v4814 = vld [vmem:[%s711 + $0x13e] sm:$0xff]
      %v4815 = vld [vmem:[%s711 + $0x146] sm:$0xff]
      %v4816 = vld [vmem:[%s711 + $0x156] sm:$0xff]
      %v4817 = vld [vmem:[%s711 + $0x15e] sm:$0xff]
      %v4818 = vld [vmem:[%s711 + $0x16e] sm:$0xff]
      %v4819 = vld [vmem:[%s711 + $0x176] sm:$0xff]
      %v4820 = vperm.slane %v314, 6
      %v4821 = vmul.f32 %v4788, %v4820
      %v4822 = vmul.f32 %v4789, %v4820
      %v4823 = vmul.f32 %v4790, %v4820
      %v4824 = vmul.f32 %v4791, %v4820
      %v4825 = vmul.f32 %v4792, %v4820
      %v4826 = vmul.f32 %v4793, %v4820
      %v4827 = vmul.f32 %v4794, %v4820
      %v4828 = vmul.f32 %v4795, %v4820
      %v4829 = vmul.f32 %v4796, %v4820
      %v4830 = vmul.f32 %v4797, %v4820
      %v4831 = vmul.f32 %v4798, %v4820
      %v4832 = vmul.f32 %v4799, %v4820
      %v4833 = vmul.f32 %v4800, %v4820
      %v4834 = vmul.f32 %v4801, %v4820
      %v4835 = vmul.f32 %v4802, %v4820
      %v4836 = vmul.f32 %v4803, %v4820
      %v4837 = vmul.f32 %v4804, %v4820
      %v4838 = vmul.f32 %v4805, %v4820
      %v4839 = vmul.f32 %v4806, %v4820
      %v4840 = vmul.f32 %v4807, %v4820
      %v4841 = vmul.f32 %v4808, %v4820
      %v4842 = vmul.f32 %v4809, %v4820
      %v4843 = vmul.f32 %v4810, %v4820
      %v4844 = vmul.f32 %v4811, %v4820
      %v4845 = vmul.f32 %v4812, %v4820
      %v4846 = vmul.f32 %v4813, %v4820
      %v4847 = vmul.f32 %v4814, %v4820
      %v4848 = vmul.f32 %v4815, %v4820
      %v4849 = vmul.f32 %v4816, %v4820
      %v4850 = vmul.f32 %v4817, %v4820
      %v4851 = vmul.f32 %v4818, %v4820
      %v4852 = vmul.f32 %v4819, %v4820
      %v4853 = vadd.f32 %v4756, %v4821
      %v4854 = vadd.f32 %v4757, %v4822
      %v4855 = vadd.f32 %v4758, %v4823
      %v4856 = vadd.f32 %v4759, %v4824
      %v4857 = vadd.f32 %v4760, %v4825
      %v4858 = vadd.f32 %v4761, %v4826
      %v4859 = vadd.f32 %v4762, %v4827
      %v4860 = vadd.f32 %v4763, %v4828
      %v4861 = vadd.f32 %v4764, %v4829
      %v4862 = vadd.f32 %v4765, %v4830
      %v4863 = vadd.f32 %v4766, %v4831
      %v4864 = vadd.f32 %v4767, %v4832
      %v4865 = vadd.f32 %v4768, %v4833
      %v4866 = vadd.f32 %v4769, %v4834
      %v4867 = vadd.f32 %v4770, %v4835
      %v4868 = vadd.f32 %v4771, %v4836
      %v4869 = vadd.f32 %v4772, %v4837
      %v4870 = vadd.f32 %v4773, %v4838
      %v4871 = vadd.f32 %v4774, %v4839
      %v4872 = vadd.f32 %v4775, %v4840
      %v4873 = vadd.f32 %v4776, %v4841
      %v4874 = vadd.f32 %v4777, %v4842
      %v4875 = vadd.f32 %v4778, %v4843
      %v4876 = vadd.f32 %v4779, %v4844
      %v4877 = vadd.f32 %v4780, %v4845
      %v4878 = vadd.f32 %v4781, %v4846
      %v4879 = vadd.f32 %v4782, %v4847
      %v4880 = vadd.f32 %v4783, %v4848
      %v4881 = vadd.f32 %v4784, %v4849
      %v4882 = vadd.f32 %v4785, %v4850
      %v4883 = vadd.f32 %v4786, %v4851
      %v4884 = vadd.f32 %v4787, %v4852
      %v4885 = vld [vmem:[%s809 + $0x6] sm:$0xff]
      %v4886 = vld [vmem:[%s809 + $0xe] sm:$0xff]
      %v4887 = vld [vmem:[%s809 + $0x1e] sm:$0xff]
      %v4888 = vld [vmem:[%s809 + $0x26] sm:$0xff]
      %v4889 = vld [vmem:[%s809 + $0x36] sm:$0xff]
      %v4890 = vld [vmem:[%s809 + $0x3e] sm:$0xff]
      %v4891 = vld [vmem:[%s809 + $0x4e] sm:$0xff]
      %v4892 = vld [vmem:[%s809 + $0x56] sm:$0xff]
      %v4893 = vld [vmem:[%s809 + $0x66] sm:$0xff]
      %v4894 = vld [vmem:[%s809 + $0x6e] sm:$0xff]
      %v4895 = vld [vmem:[%s809 + $0x7e] sm:$0xff]
      %v4896 = vld [vmem:[%s809 + $0x86] sm:$0xff]
      %v4897 = vld [vmem:[%s809 + $0x96] sm:$0xff]
      %v4898 = vld [vmem:[%s809 + $0x9e] sm:$0xff]
      %v4899 = vld [vmem:[%s809 + $0xae] sm:$0xff]
      %v4900 = vld [vmem:[%s809 + $0xb6] sm:$0xff]
      %v4901 = vld [vmem:[%s809 + $0xc6] sm:$0xff]
      %v4902 = vld [vmem:[%s809 + $0xce] sm:$0xff]
      %v4903 = vld [vmem:[%s809 + $0xde] sm:$0xff]
      %v4904 = vld [vmem:[%s809 + $0xe6] sm:$0xff]
      %v4905 = vld [vmem:[%s809 + $0xf6] sm:$0xff]
      %v4906 = vld [vmem:[%s809 + $0xfe] sm:$0xff]
      %v4907 = vld [vmem:[%s809 + $0x10e] sm:$0xff]
      %v4908 = vld [vmem:[%s809 + $0x116] sm:$0xff]
      %v4909 = vld [vmem:[%s809 + $0x126] sm:$0xff]
      %v4910 = vld [vmem:[%s809 + $0x12e] sm:$0xff]
      %v4911 = vld [vmem:[%s809 + $0x13e] sm:$0xff]
      %v4912 = vld [vmem:[%s809 + $0x146] sm:$0xff]
      %v4913 = vld [vmem:[%s809 + $0x156] sm:$0xff]
      %v4914 = vld [vmem:[%s809 + $0x15e] sm:$0xff]
      %v4915 = vld [vmem:[%s809 + $0x16e] sm:$0xff]
      %v4916 = vld [vmem:[%s809 + $0x176] sm:$0xff]
      %v4917 = vperm.slane %v315, 6
      %v4918 = vmul.f32 %v4885, %v4917
      %v4919 = vmul.f32 %v4886, %v4917
      %v4920 = vmul.f32 %v4887, %v4917
      %v4921 = vmul.f32 %v4888, %v4917
      %v4922 = vmul.f32 %v4889, %v4917
      %v4923 = vmul.f32 %v4890, %v4917
      %v4924 = vmul.f32 %v4891, %v4917
      %v4925 = vmul.f32 %v4892, %v4917
      %v4926 = vmul.f32 %v4893, %v4917
      %v4927 = vmul.f32 %v4894, %v4917
      %v4928 = vmul.f32 %v4895, %v4917
      %v4929 = vmul.f32 %v4896, %v4917
      %v4930 = vmul.f32 %v4897, %v4917
      %v4931 = vmul.f32 %v4898, %v4917
      %v4932 = vmul.f32 %v4899, %v4917
      %v4933 = vmul.f32 %v4900, %v4917
      %v4934 = vmul.f32 %v4901, %v4917
      %v4935 = vmul.f32 %v4902, %v4917
      %v4936 = vmul.f32 %v4903, %v4917
      %v4937 = vmul.f32 %v4904, %v4917
      %v4938 = vmul.f32 %v4905, %v4917
      %v4939 = vmul.f32 %v4906, %v4917
      %v4940 = vmul.f32 %v4907, %v4917
      %v4941 = vmul.f32 %v4908, %v4917
      %v4942 = vmul.f32 %v4909, %v4917
      %v4943 = vmul.f32 %v4910, %v4917
      %v4944 = vmul.f32 %v4911, %v4917
      %v4945 = vmul.f32 %v4912, %v4917
      %v4946 = vmul.f32 %v4913, %v4917
      %v4947 = vmul.f32 %v4914, %v4917
      %v4948 = vmul.f32 %v4915, %v4917
      %v4949 = vmul.f32 %v4916, %v4917
      %v4950 = vadd.f32 %v4853, %v4918
      %v4951 = vadd.f32 %v4854, %v4919
      %v4952 = vadd.f32 %v4855, %v4920
      %v4953 = vadd.f32 %v4856, %v4921
      %v4954 = vadd.f32 %v4857, %v4922
      %v4955 = vadd.f32 %v4858, %v4923
      %v4956 = vadd.f32 %v4859, %v4924
      %v4957 = vadd.f32 %v4860, %v4925
      %v4958 = vadd.f32 %v4861, %v4926
      %v4959 = vadd.f32 %v4862, %v4927
      %v4960 = vadd.f32 %v4863, %v4928
      %v4961 = vadd.f32 %v4864, %v4929
      %v4962 = vadd.f32 %v4865, %v4930
      %v4963 = vadd.f32 %v4866, %v4931
      %v4964 = vadd.f32 %v4867, %v4932
      %v4965 = vadd.f32 %v4868, %v4933
      %v4966 = vadd.f32 %v4869, %v4934
      %v4967 = vadd.f32 %v4870, %v4935
      %v4968 = vadd.f32 %v4871, %v4936
      %v4969 = vadd.f32 %v4872, %v4937
      %v4970 = vadd.f32 %v4873, %v4938
      %v4971 = vadd.f32 %v4874, %v4939
      %v4972 = vadd.f32 %v4875, %v4940
      %v4973 = vadd.f32 %v4876, %v4941
      %v4974 = vadd.f32 %v4877, %v4942
      %v4975 = vadd.f32 %v4878, %v4943
      %v4976 = vadd.f32 %v4879, %v4944
      %v4977 = vadd.f32 %v4880, %v4945
      %v4978 = vadd.f32 %v4881, %v4946
      %v4979 = vadd.f32 %v4882, %v4947
      %v4980 = vadd.f32 %v4883, %v4948
      %v4981 = vadd.f32 %v4884, %v4949
      %v4982 = vld [vmem:[%s907 + $0x6] sm:$0xff]
      %v4983 = vld [vmem:[%s907 + $0xe] sm:$0xff]
      %v4984 = vld [vmem:[%s907 + $0x1e] sm:$0xff]
      %v4985 = vld [vmem:[%s907 + $0x26] sm:$0xff]
      %v4986 = vld [vmem:[%s907 + $0x36] sm:$0xff]
      %v4987 = vld [vmem:[%s907 + $0x3e] sm:$0xff]
      %v4988 = vld [vmem:[%s907 + $0x4e] sm:$0xff]
      %v4989 = vld [vmem:[%s907 + $0x56] sm:$0xff]
      %v4990 = vld [vmem:[%s907 + $0x66] sm:$0xff]
      %v4991 = vld [vmem:[%s907 + $0x6e] sm:$0xff]
      %v4992 = vld [vmem:[%s907 + $0x7e] sm:$0xff]
      %v4993 = vld [vmem:[%s907 + $0x86] sm:$0xff]
      %v4994 = vld [vmem:[%s907 + $0x96] sm:$0xff]
      %v4995 = vld [vmem:[%s907 + $0x9e] sm:$0xff]
      %v4996 = vld [vmem:[%s907 + $0xae] sm:$0xff]
      %v4997 = vld [vmem:[%s907 + $0xb6] sm:$0xff]
      %v4998 = vld [vmem:[%s907 + $0xc6] sm:$0xff]
      %v4999 = vld [vmem:[%s907 + $0xce] sm:$0xff]
      %v5000 = vld [vmem:[%s907 + $0xde] sm:$0xff]
      %v5001 = vld [vmem:[%s907 + $0xe6] sm:$0xff]
      %v5002 = vld [vmem:[%s907 + $0xf6] sm:$0xff]
      %v5003 = vld [vmem:[%s907 + $0xfe] sm:$0xff]
      %v5004 = vld [vmem:[%s907 + $0x10e] sm:$0xff]
      %v5005 = vld [vmem:[%s907 + $0x116] sm:$0xff]
      %v5006 = vld [vmem:[%s907 + $0x126] sm:$0xff]
      %v5007 = vld [vmem:[%s907 + $0x12e] sm:$0xff]
      %v5008 = vld [vmem:[%s907 + $0x13e] sm:$0xff]
      %v5009 = vld [vmem:[%s907 + $0x146] sm:$0xff]
      %v5010 = vld [vmem:[%s907 + $0x156] sm:$0xff]
      %v5011 = vld [vmem:[%s907 + $0x15e] sm:$0xff]
      %v5012 = vld [vmem:[%s907 + $0x16e] sm:$0xff]
      %v5013 = vld [vmem:[%s907 + $0x176] sm:$0xff]
      %v5014 = vperm.slane %v316, 6
      %v5015 = vmul.f32 %v4982, %v5014
      %v5016 = vmul.f32 %v4983, %v5014
      %v5017 = vmul.f32 %v4984, %v5014
      %v5018 = vmul.f32 %v4985, %v5014
      %v5019 = vmul.f32 %v4986, %v5014
      %v5020 = vmul.f32 %v4987, %v5014
      %v5021 = vmul.f32 %v4988, %v5014
      %v5022 = vmul.f32 %v4989, %v5014
      %v5023 = vmul.f32 %v4990, %v5014
      %v5024 = vmul.f32 %v4991, %v5014
      %v5025 = vmul.f32 %v4992, %v5014
      %v5026 = vmul.f32 %v4993, %v5014
      %v5027 = vmul.f32 %v4994, %v5014
      %v5028 = vmul.f32 %v4995, %v5014
      %v5029 = vmul.f32 %v4996, %v5014
      %v5030 = vmul.f32 %v4997, %v5014
      %v5031 = vmul.f32 %v4998, %v5014
      %v5032 = vmul.f32 %v4999, %v5014
      %v5033 = vmul.f32 %v5000, %v5014
      %v5034 = vmul.f32 %v5001, %v5014
      %v5035 = vmul.f32 %v5002, %v5014
      %v5036 = vmul.f32 %v5003, %v5014
      %v5037 = vmul.f32 %v5004, %v5014
      %v5038 = vmul.f32 %v5005, %v5014
      %v5039 = vmul.f32 %v5006, %v5014
      %v5040 = vmul.f32 %v5007, %v5014
      %v5041 = vmul.f32 %v5008, %v5014
      %v5042 = vmul.f32 %v5009, %v5014
      %v5043 = vmul.f32 %v5010, %v5014
      %v5044 = vmul.f32 %v5011, %v5014
      %v5045 = vmul.f32 %v5012, %v5014
      %v5046 = vmul.f32 %v5013, %v5014
      %v5047 = vadd.f32 %v4950, %v5015
      %v5048 = vadd.f32 %v4951, %v5016
      %v5049 = vadd.f32 %v4952, %v5017
      %v5050 = vadd.f32 %v4953, %v5018
      %v5051 = vadd.f32 %v4954, %v5019
      %v5052 = vadd.f32 %v4955, %v5020
      %v5053 = vadd.f32 %v4956, %v5021
      %v5054 = vadd.f32 %v4957, %v5022
      %v5055 = vadd.f32 %v4958, %v5023
      %v5056 = vadd.f32 %v4959, %v5024
      %v5057 = vadd.f32 %v4960, %v5025
      %v5058 = vadd.f32 %v4961, %v5026
      %v5059 = vadd.f32 %v4962, %v5027
      %v5060 = vadd.f32 %v4963, %v5028
      %v5061 = vadd.f32 %v4964, %v5029
      %v5062 = vadd.f32 %v4965, %v5030
      %v5063 = vadd.f32 %v4966, %v5031
      %v5064 = vadd.f32 %v4967, %v5032
      %v5065 = vadd.f32 %v4968, %v5033
      %v5066 = vadd.f32 %v4969, %v5034
      %v5067 = vadd.f32 %v4970, %v5035
      %v5068 = vadd.f32 %v4971, %v5036
      %v5069 = vadd.f32 %v4972, %v5037
      %v5070 = vadd.f32 %v4973, %v5038
      %v5071 = vadd.f32 %v4974, %v5039
      %v5072 = vadd.f32 %v4975, %v5040
      %v5073 = vadd.f32 %v4976, %v5041
      %v5074 = vadd.f32 %v4977, %v5042
      %v5075 = vadd.f32 %v4978, %v5043
      %v5076 = vadd.f32 %v4979, %v5044
      %v5077 = vadd.f32 %v4980, %v5045
      %v5078 = vadd.f32 %v4981, %v5046
      %v5080 = vperm.slane %v317, 0
      %v5082 = vadd.f32 %v5047, %v5080
      %v5083 = vadd.f32 %v5048, %v5080
      %v5084 = vadd.f32 %v5049, %v5080
      %v5085 = vadd.f32 %v5050, %v5080
      %v5086 = vadd.f32 %v5051, %v5080
      %v5087 = vadd.f32 %v5052, %v5080
      %v5088 = vadd.f32 %v5053, %v5080
      %v5089 = vadd.f32 %v5054, %v5080
      %v5090 = vadd.f32 %v5055, %v5080
      %v5091 = vadd.f32 %v5056, %v5080
      %v5092 = vadd.f32 %v5057, %v5080
      %v5093 = vadd.f32 %v5058, %v5080
      %v5094 = vadd.f32 %v5059, %v5080
      %v5095 = vadd.f32 %v5060, %v5080
      %v5096 = vadd.f32 %v5061, %v5080
      %v5097 = vadd.f32 %v5062, %v5080
      %v5098 = vadd.f32 %v5063, %v5080
      %v5099 = vadd.f32 %v5064, %v5080
      %v5100 = vadd.f32 %v5065, %v5080
      %v5101 = vadd.f32 %v5066, %v5080
      %v5102 = vadd.f32 %v5067, %v5080
      %v5103 = vadd.f32 %v5068, %v5080
      %v5104 = vadd.f32 %v5069, %v5080
      %v5105 = vadd.f32 %v5070, %v5080
      %v5106 = vadd.f32 %v5071, %v5080
      %v5107 = vadd.f32 %v5072, %v5080
      %v5108 = vadd.f32 %v5073, %v5080
      %v5109 = vadd.f32 %v5074, %v5080
      %v5110 = vadd.f32 %v5075, %v5080
      %v5111 = vadd.f32 %v5076, %v5080
      %v5112 = vadd.f32 %v5077, %v5080
      %v5113 = vadd.f32 %v5078, %v5080
      %vm5114 = vcmask 31744
      %v5115 = vsel %vm5114, %v5082, 0.0
      %5116 = vadd.xlane.f32.xlu0 %v5115
      %v5117 = vpop.xlane.xlu0 %5116
      %v5118 = vsel %vm5114, %v5083, 0.0
      %5119 = vadd.xlane.f32.xlu0 %v5118
      %v5120 = vpop.xlane.xlu0 %5119
      %v5121 = vsel %vm5114, %v5084, 0.0
      %5122 = vadd.xlane.f32.xlu0 %v5121
      %v5123 = vpop.xlane.xlu0 %5122
      %v5124 = vsel %vm5114, %v5085, 0.0
      %5125 = vadd.xlane.f32.xlu0 %v5124
      %v5126 = vpop.xlane.xlu0 %5125
      %v5127 = vsel %vm5114, %v5086, 0.0
      %5128 = vadd.xlane.f32.xlu0 %v5127
      %v5129 = vpop.xlane.xlu0 %5128
      %v5130 = vsel %vm5114, %v5087, 0.0
      %5131 = vadd.xlane.f32.xlu0 %v5130
      %v5132 = vpop.xlane.xlu0 %5131
      %v5133 = vsel %vm5114, %v5088, 0.0
      %5134 = vadd.xlane.f32.xlu0 %v5133
      %v5135 = vpop.xlane.xlu0 %5134
      %v5136 = vsel %vm5114, %v5089, 0.0
      %5137 = vadd.xlane.f32.xlu0 %v5136
      %v5138 = vpop.xlane.xlu0 %5137
      %v5139 = vsel %vm5114, %v5090, 0.0
      %5140 = vadd.xlane.f32.xlu0 %v5139
      %v5141 = vpop.xlane.xlu0 %5140
      %v5142 = vsel %vm5114, %v5091, 0.0
      %5143 = vadd.xlane.f32.xlu0 %v5142
      %v5144 = vpop.xlane.xlu0 %5143
      %v5145 = vsel %vm5114, %v5092, 0.0
      %5146 = vadd.xlane.f32.xlu0 %v5145
      %v5147 = vpop.xlane.xlu0 %5146
      %v5148 = vsel %vm5114, %v5093, 0.0
      %5149 = vadd.xlane.f32.xlu0 %v5148
      %v5150 = vpop.xlane.xlu0 %5149
      %v5151 = vsel %vm5114, %v5094, 0.0
      %5152 = vadd.xlane.f32.xlu0 %v5151
      %v5153 = vpop.xlane.xlu0 %5152
      %v5154 = vsel %vm5114, %v5095, 0.0
      %5155 = vadd.xlane.f32.xlu0 %v5154
      %v5156 = vpop.xlane.xlu0 %5155
      %v5157 = vsel %vm5114, %v5096, 0.0
      %5158 = vadd.xlane.f32.xlu0 %v5157
      %v5159 = vpop.xlane.xlu0 %5158
      %v5160 = vsel %vm5114, %v5097, 0.0
      %5161 = vadd.xlane.f32.xlu0 %v5160
      %v5162 = vpop.xlane.xlu0 %5161
      %v5163 = vsel %vm5114, %v5098, 0.0
      %5164 = vadd.xlane.f32.xlu0 %v5163
      %v5165 = vpop.xlane.xlu0 %5164
      %v5166 = vsel %vm5114, %v5099, 0.0
      %5167 = vadd.xlane.f32.xlu0 %v5166
      %v5168 = vpop.xlane.xlu0 %5167
      %v5169 = vsel %vm5114, %v5100, 0.0
      %5170 = vadd.xlane.f32.xlu0 %v5169
      %v5171 = vpop.xlane.xlu0 %5170
      %v5172 = vsel %vm5114, %v5101, 0.0
      %5173 = vadd.xlane.f32.xlu0 %v5172
      %v5174 = vpop.xlane.xlu0 %5173
      %v5175 = vsel %vm5114, %v5102, 0.0
      %5176 = vadd.xlane.f32.xlu0 %v5175
      %v5177 = vpop.xlane.xlu0 %5176
      %v5178 = vsel %vm5114, %v5103, 0.0
      %5179 = vadd.xlane.f32.xlu0 %v5178
      %v5180 = vpop.xlane.xlu0 %5179
      %v5181 = vsel %vm5114, %v5104, 0.0
      %5182 = vadd.xlane.f32.xlu0 %v5181
      %v5183 = vpop.xlane.xlu0 %5182
      %v5184 = vsel %vm5114, %v5105, 0.0
      %5185 = vadd.xlane.f32.xlu0 %v5184
      %v5186 = vpop.xlane.xlu0 %5185
      %v5187 = vsel %vm5114, %v5106, 0.0
      %5188 = vadd.xlane.f32.xlu0 %v5187
      %v5189 = vpop.xlane.xlu0 %5188
      %v5190 = vsel %vm5114, %v5107, 0.0
      %5191 = vadd.xlane.f32.xlu0 %v5190
      %v5192 = vpop.xlane.xlu0 %5191
      %v5193 = vsel %vm5114, %v5108, 0.0
      %5194 = vadd.xlane.f32.xlu0 %v5193
      %v5195 = vpop.xlane.xlu0 %5194
      %v5196 = vsel %vm5114, %v5109, 0.0
      %5197 = vadd.xlane.f32.xlu0 %v5196
      %v5198 = vpop.xlane.xlu0 %5197
      %v5199 = vsel %vm5114, %v5110, 0.0
      %5200 = vadd.xlane.f32.xlu0 %v5199
      %v5201 = vpop.xlane.xlu0 %5200
      %v5202 = vsel %vm5114, %v5111, 0.0
      %5203 = vadd.xlane.f32.xlu0 %v5202
      %v5204 = vpop.xlane.xlu0 %5203
      %v5205 = vsel %vm5114, %v5112, 0.0
      %5206 = vadd.xlane.f32.xlu0 %v5205
      %v5207 = vpop.xlane.xlu0 %5206
      %v5208 = vsel %vm5114, %v5113, 0.0
      %5209 = vadd.xlane.f32.xlu0 %v5208
      %v5210 = vpop.xlane.xlu0 %5209
      %v5211 = vrcp.pop 4.0
      %v5212 = vmul.f32 4.0, %v5211
      %v5213 = vsub.f32 1.0, %v5212
      %v5214 = vmul.f32 %v5211, %v5213
      %v5215 = vadd.f32 %v5211, %v5214
      %vm5216 = vweird.f32 %v5211
      %v5217 = vsel %vm5216, %v5211, %v5215
      %v5218 = vmul.f32 %v5117, %v5217
      %v5219 = vmul.f32 %v5120, %v5217
      %v5220 = vmul.f32 %v5123, %v5217
      %v5221 = vmul.f32 %v5126, %v5217
      %v5222 = vmul.f32 %v5129, %v5217
      %v5223 = vmul.f32 %v5132, %v5217
      %v5224 = vmul.f32 %v5135, %v5217
      %v5225 = vmul.f32 %v5138, %v5217
      %v5226 = vmul.f32 %v5141, %v5217
      %v5227 = vmul.f32 %v5144, %v5217
      %v5228 = vmul.f32 %v5147, %v5217
      %v5229 = vmul.f32 %v5150, %v5217
      %v5230 = vmul.f32 %v5153, %v5217
      %v5231 = vmul.f32 %v5156, %v5217
      %v5232 = vmul.f32 %v5159, %v5217
      %v5233 = vmul.f32 %v5162, %v5217
      %v5234 = vmul.f32 %v5165, %v5217
      %v5235 = vmul.f32 %v5168, %v5217
      %v5236 = vmul.f32 %v5171, %v5217
      %v5237 = vmul.f32 %v5174, %v5217
      %v5238 = vmul.f32 %v5177, %v5217
      %v5239 = vmul.f32 %v5180, %v5217
      %v5240 = vmul.f32 %v5183, %v5217
      %v5241 = vmul.f32 %v5186, %v5217
      %v5242 = vmul.f32 %v5189, %v5217
      %v5243 = vmul.f32 %v5192, %v5217
      %v5244 = vmul.f32 %v5195, %v5217
      %v5245 = vmul.f32 %v5198, %v5217
      %v5246 = vmul.f32 %v5201, %v5217
      %v5247 = vmul.f32 %v5204, %v5217
      %v5248 = vmul.f32 %v5207, %v5217
      %v5249 = vmul.f32 %v5210, %v5217
      %v5250 = vsub.f32 %v5082, %v5218
      %v5251 = vsub.f32 %v5083, %v5219
      %v5252 = vsub.f32 %v5084, %v5220
      %v5253 = vsub.f32 %v5085, %v5221
      %v5254 = vsub.f32 %v5086, %v5222
      %v5255 = vsub.f32 %v5087, %v5223
      %v5256 = vsub.f32 %v5088, %v5224
      %v5257 = vsub.f32 %v5089, %v5225
      %v5258 = vsub.f32 %v5090, %v5226
      %v5259 = vsub.f32 %v5091, %v5227
      %v5260 = vsub.f32 %v5092, %v5228
      %v5261 = vsub.f32 %v5093, %v5229
      %v5262 = vsub.f32 %v5094, %v5230
      %v5263 = vsub.f32 %v5095, %v5231
      %v5264 = vsub.f32 %v5096, %v5232
      %v5265 = vsub.f32 %v5097, %v5233
      %v5266 = vsub.f32 %v5098, %v5234
      %v5267 = vsub.f32 %v5099, %v5235
      %v5268 = vsub.f32 %v5100, %v5236
      %v5269 = vsub.f32 %v5101, %v5237
      %v5270 = vsub.f32 %v5102, %v5238
      %v5271 = vsub.f32 %v5103, %v5239
      %v5272 = vsub.f32 %v5104, %v5240
      %v5273 = vsub.f32 %v5105, %v5241
      %v5274 = vsub.f32 %v5106, %v5242
      %v5275 = vsub.f32 %v5107, %v5243
      %v5276 = vsub.f32 %v5108, %v5244
      %v5277 = vsub.f32 %v5109, %v5245
      %v5278 = vsub.f32 %v5110, %v5246
      %v5279 = vsub.f32 %v5111, %v5247
      %v5280 = vsub.f32 %v5112, %v5248
      %v5281 = vsub.f32 %v5113, %v5249
      %v5282 = vmul.f32 %v5250, %v5250
      %v5283 = vmul.f32 %v5251, %v5251
      %v5284 = vmul.f32 %v5252, %v5252
      %v5285 = vmul.f32 %v5253, %v5253
      %v5286 = vmul.f32 %v5254, %v5254
      %v5287 = vmul.f32 %v5255, %v5255
      %v5288 = vmul.f32 %v5256, %v5256
      %v5289 = vmul.f32 %v5257, %v5257
      %v5290 = vmul.f32 %v5258, %v5258
      %v5291 = vmul.f32 %v5259, %v5259
      %v5292 = vmul.f32 %v5260, %v5260
      %v5293 = vmul.f32 %v5261, %v5261
      %v5294 = vmul.f32 %v5262, %v5262
      %v5295 = vmul.f32 %v5263, %v5263
      %v5296 = vmul.f32 %v5264, %v5264
      %v5297 = vmul.f32 %v5265, %v5265
      %v5298 = vmul.f32 %v5266, %v5266
      %v5299 = vmul.f32 %v5267, %v5267
      %v5300 = vmul.f32 %v5268, %v5268
      %v5301 = vmul.f32 %v5269, %v5269
      %v5302 = vmul.f32 %v5270, %v5270
      %v5303 = vmul.f32 %v5271, %v5271
      %v5304 = vmul.f32 %v5272, %v5272
      %v5305 = vmul.f32 %v5273, %v5273
      %v5306 = vmul.f32 %v5274, %v5274
      %v5307 = vmul.f32 %v5275, %v5275
      %v5308 = vmul.f32 %v5276, %v5276
      %v5309 = vmul.f32 %v5277, %v5277
      %v5310 = vmul.f32 %v5278, %v5278
      %v5311 = vmul.f32 %v5279, %v5279
      %v5312 = vmul.f32 %v5280, %v5280
      %v5313 = vmul.f32 %v5281, %v5281
      %v5314 = vsel %vm5114, %v5282, 0.0
      %5315 = vadd.xlane.f32.xlu0 %v5314
      %v5316 = vpop.xlane.xlu0 %5315
      %v5317 = vsel %vm5114, %v5283, 0.0
      %5318 = vadd.xlane.f32.xlu0 %v5317
      %v5319 = vpop.xlane.xlu0 %5318
      %v5320 = vsel %vm5114, %v5284, 0.0
      %5321 = vadd.xlane.f32.xlu0 %v5320
      %v5322 = vpop.xlane.xlu0 %5321
      %v5323 = vsel %vm5114, %v5285, 0.0
      %5324 = vadd.xlane.f32.xlu0 %v5323
      %v5325 = vpop.xlane.xlu0 %5324
      %v5326 = vsel %vm5114, %v5286, 0.0
      %5327 = vadd.xlane.f32.xlu0 %v5326
      %v5328 = vpop.xlane.xlu0 %5327
      %v5329 = vsel %vm5114, %v5287, 0.0
      %5330 = vadd.xlane.f32.xlu0 %v5329
      %v5331 = vpop.xlane.xlu0 %5330
      %v5332 = vsel %vm5114, %v5288, 0.0
      %5333 = vadd.xlane.f32.xlu0 %v5332
      %v5334 = vpop.xlane.xlu0 %5333
      %v5335 = vsel %vm5114, %v5289, 0.0
      %5336 = vadd.xlane.f32.xlu0 %v5335
      %v5337 = vpop.xlane.xlu0 %5336
      %v5338 = vsel %vm5114, %v5290, 0.0
      %5339 = vadd.xlane.f32.xlu0 %v5338
      %v5340 = vpop.xlane.xlu0 %5339
      %v5341 = vsel %vm5114, %v5291, 0.0
      %5342 = vadd.xlane.f32.xlu0 %v5341
      %v5343 = vpop.xlane.xlu0 %5342
      %v5344 = vsel %vm5114, %v5292, 0.0
      %5345 = vadd.xlane.f32.xlu0 %v5344
      %v5346 = vpop.xlane.xlu0 %5345
      %v5347 = vsel %vm5114, %v5293, 0.0
      %5348 = vadd.xlane.f32.xlu0 %v5347
      %v5349 = vpop.xlane.xlu0 %5348
      %v5350 = vsel %vm5114, %v5294, 0.0
      %5351 = vadd.xlane.f32.xlu0 %v5350
      %v5352 = vpop.xlane.xlu0 %5351
      %v5353 = vsel %vm5114, %v5295, 0.0
      %5354 = vadd.xlane.f32.xlu0 %v5353
      %v5355 = vpop.xlane.xlu0 %5354
      %v5356 = vsel %vm5114, %v5296, 0.0
      %5357 = vadd.xlane.f32.xlu0 %v5356
      %v5358 = vpop.xlane.xlu0 %5357
      %v5359 = vsel %vm5114, %v5297, 0.0
      %5360 = vadd.xlane.f32.xlu0 %v5359
      %v5361 = vpop.xlane.xlu0 %5360
      %v5362 = vsel %vm5114, %v5298, 0.0
      %5363 = vadd.xlane.f32.xlu0 %v5362
      %v5364 = vpop.xlane.xlu0 %5363
      %v5365 = vsel %vm5114, %v5299, 0.0
      %5366 = vadd.xlane.f32.xlu0 %v5365
      %v5367 = vpop.xlane.xlu0 %5366
      %v5368 = vsel %vm5114, %v5300, 0.0
      %5369 = vadd.xlane.f32.xlu0 %v5368
      %v5370 = vpop.xlane.xlu0 %5369
      %v5371 = vsel %vm5114, %v5301, 0.0
      %5372 = vadd.xlane.f32.xlu0 %v5371
      %v5373 = vpop.xlane.xlu0 %5372
      %v5374 = vsel %vm5114, %v5302, 0.0
      %5375 = vadd.xlane.f32.xlu0 %v5374
      %v5376 = vpop.xlane.xlu0 %5375
      %v5377 = vsel %vm5114, %v5303, 0.0
      %5378 = vadd.xlane.f32.xlu0 %v5377
      %v5379 = vpop.xlane.xlu0 %5378
      %v5380 = vsel %vm5114, %v5304, 0.0
      %5381 = vadd.xlane.f32.xlu0 %v5380
      %v5382 = vpop.xlane.xlu0 %5381
      %v5383 = vsel %vm5114, %v5305, 0.0
      %5384 = vadd.xlane.f32.xlu0 %v5383
      %v5385 = vpop.xlane.xlu0 %5384
      %v5386 = vsel %vm5114, %v5306, 0.0
      %5387 = vadd.xlane.f32.xlu0 %v5386
      %v5388 = vpop.xlane.xlu0 %5387
      %v5389 = vsel %vm5114, %v5307, 0.0
      %5390 = vadd.xlane.f32.xlu0 %v5389
      %v5391 = vpop.xlane.xlu0 %5390
      %v5392 = vsel %vm5114, %v5308, 0.0
      %5393 = vadd.xlane.f32.xlu0 %v5392
      %v5394 = vpop.xlane.xlu0 %5393
      %v5395 = vsel %vm5114, %v5309, 0.0
      %5396 = vadd.xlane.f32.xlu0 %v5395
      %v5397 = vpop.xlane.xlu0 %5396
      %v5398 = vsel %vm5114, %v5310, 0.0
      %5399 = vadd.xlane.f32.xlu0 %v5398
      %v5400 = vpop.xlane.xlu0 %5399
      %v5401 = vsel %vm5114, %v5311, 0.0
      %5402 = vadd.xlane.f32.xlu0 %v5401
      %v5403 = vpop.xlane.xlu0 %5402
      %v5404 = vsel %vm5114, %v5312, 0.0
      %5405 = vadd.xlane.f32.xlu0 %v5404
      %v5406 = vpop.xlane.xlu0 %5405
      %v5407 = vsel %vm5114, %v5313, 0.0
      %5408 = vadd.xlane.f32.xlu0 %v5407
      %v5409 = vpop.xlane.xlu0 %5408
      %v5410 = vmul.f32 %v5316, %v5217
      %v5411 = vmul.f32 %v5319, %v5217
      %v5412 = vmul.f32 %v5322, %v5217
      %v5413 = vmul.f32 %v5325, %v5217
      %v5414 = vmul.f32 %v5328, %v5217
      %v5415 = vmul.f32 %v5331, %v5217
      %v5416 = vmul.f32 %v5334, %v5217
      %v5417 = vmul.f32 %v5337, %v5217
      %v5418 = vmul.f32 %v5340, %v5217
      %v5419 = vmul.f32 %v5343, %v5217
      %v5420 = vmul.f32 %v5346, %v5217
      %v5421 = vmul.f32 %v5349, %v5217
      %v5422 = vmul.f32 %v5352, %v5217
      %v5423 = vmul.f32 %v5355, %v5217
      %v5424 = vmul.f32 %v5358, %v5217
      %v5425 = vmul.f32 %v5361, %v5217
      %v5426 = vmul.f32 %v5364, %v5217
      %v5427 = vmul.f32 %v5367, %v5217
      %v5428 = vmul.f32 %v5370, %v5217
      %v5429 = vmul.f32 %v5373, %v5217
      %v5430 = vmul.f32 %v5376, %v5217
      %v5431 = vmul.f32 %v5379, %v5217
      %v5432 = vmul.f32 %v5382, %v5217
      %v5433 = vmul.f32 %v5385, %v5217
      %v5434 = vmul.f32 %v5388, %v5217
      %v5435 = vmul.f32 %v5391, %v5217
      %v5436 = vmul.f32 %v5394, %v5217
      %v5437 = vmul.f32 %v5397, %v5217
      %v5438 = vmul.f32 %v5400, %v5217
      %v5439 = vmul.f32 %v5403, %v5217
      %v5440 = vmul.f32 %v5406, %v5217
      %v5441 = vmul.f32 %v5409, %v5217
      %v5442 = vadd.f32 %v5410, 1e-06
      %v5443 = vadd.f32 %v5411, 1e-06
      %v5444 = vadd.f32 %v5412, 1e-06
      %v5445 = vadd.f32 %v5413, 1e-06
      %v5446 = vadd.f32 %v5414, 1e-06
      %v5447 = vadd.f32 %v5415, 1e-06
      %v5448 = vadd.f32 %v5416, 1e-06
      %v5449 = vadd.f32 %v5417, 1e-06
      %v5450 = vadd.f32 %v5418, 1e-06
      %v5451 = vadd.f32 %v5419, 1e-06
      %v5452 = vadd.f32 %v5420, 1e-06
      %v5453 = vadd.f32 %v5421, 1e-06
      %v5454 = vadd.f32 %v5422, 1e-06
      %v5455 = vadd.f32 %v5423, 1e-06
      %v5456 = vadd.f32 %v5424, 1e-06
      %v5457 = vadd.f32 %v5425, 1e-06
      %v5458 = vadd.f32 %v5426, 1e-06
      %v5459 = vadd.f32 %v5427, 1e-06
      %v5460 = vadd.f32 %v5428, 1e-06
      %v5461 = vadd.f32 %v5429, 1e-06
      %v5462 = vadd.f32 %v5430, 1e-06
      %v5463 = vadd.f32 %v5431, 1e-06
      %v5464 = vadd.f32 %v5432, 1e-06
      %v5465 = vadd.f32 %v5433, 1e-06
      %v5466 = vadd.f32 %v5434, 1e-06
      %v5467 = vadd.f32 %v5435, 1e-06
      %v5468 = vadd.f32 %v5436, 1e-06
      %v5469 = vadd.f32 %v5437, 1e-06
      %v5470 = vadd.f32 %v5438, 1e-06
      %v5471 = vadd.f32 %v5439, 1e-06
      %v5472 = vadd.f32 %v5440, 1e-06
      %v5473 = vadd.f32 %v5441, 1e-06
      %v5474 = vrsqrt.pop %v5442
      %v5475 = vmul.f32 %v5474, %v5442
      %v5476 = vmul.f32 %v5475, %v5474
      %v5477 = vmul.f32 0.5, %v5476
      %v5478 = vsub.f32 1.5, %v5477
      %v5479 = vmul.f32 %v5474, %v5478
      %vm5480 = vweird.f32 %v5442
      %vm5481 = vweird.f32 %v5474
      %vm5482 = vmor %vm5480, %vm5481
      %v5483 = vsel %vm5482, %v5474, %v5479
      %v5484 = vrsqrt.pop %v5443
      %v5485 = vmul.f32 %v5484, %v5443
      %v5486 = vmul.f32 %v5485, %v5484
      %v5487 = vmul.f32 0.5, %v5486
      %v5488 = vsub.f32 1.5, %v5487
      %v5489 = vmul.f32 %v5484, %v5488
      %vm5490 = vweird.f32 %v5443
      %vm5491 = vweird.f32 %v5484
      %vm5492 = vmor %vm5490, %vm5491
      %v5493 = vsel %vm5492, %v5484, %v5489
      %v5494 = vrsqrt.pop %v5444
      %v5495 = vmul.f32 %v5494, %v5444
      %v5496 = vmul.f32 %v5495, %v5494
      %v5497 = vmul.f32 0.5, %v5496
      %v5498 = vsub.f32 1.5, %v5497
      %v5499 = vmul.f32 %v5494, %v5498
      %vm5500 = vweird.f32 %v5444
      %vm5501 = vweird.f32 %v5494
      %vm5502 = vmor %vm5500, %vm5501
      %v5503 = vsel %vm5502, %v5494, %v5499
      %v5504 = vrsqrt.pop %v5445
      %v5505 = vmul.f32 %v5504, %v5445
      %v5506 = vmul.f32 %v5505, %v5504
      %v5507 = vmul.f32 0.5, %v5506
      %v5508 = vsub.f32 1.5, %v5507
      %v5509 = vmul.f32 %v5504, %v5508
      %vm5510 = vweird.f32 %v5445
      %vm5511 = vweird.f32 %v5504
      %vm5512 = vmor %vm5510, %vm5511
      %v5513 = vsel %vm5512, %v5504, %v5509
      %v5514 = vrsqrt.pop %v5446
      %v5515 = vmul.f32 %v5514, %v5446
      %v5516 = vmul.f32 %v5515, %v5514
      %v5517 = vmul.f32 0.5, %v5516
      %v5518 = vsub.f32 1.5, %v5517
      %v5519 = vmul.f32 %v5514, %v5518
      %vm5520 = vweird.f32 %v5446
      %vm5521 = vweird.f32 %v5514
      %vm5522 = vmor %vm5520, %vm5521
      %v5523 = vsel %vm5522, %v5514, %v5519
      %v5524 = vrsqrt.pop %v5447
      %v5525 = vmul.f32 %v5524, %v5447
      %v5526 = vmul.f32 %v5525, %v5524
      %v5527 = vmul.f32 0.5, %v5526
      %v5528 = vsub.f32 1.5, %v5527
      %v5529 = vmul.f32 %v5524, %v5528
      %vm5530 = vweird.f32 %v5447
      %vm5531 = vweird.f32 %v5524
      %vm5532 = vmor %vm5530, %vm5531
      %v5533 = vsel %vm5532, %v5524, %v5529
      %v5534 = vrsqrt.pop %v5448
      %v5535 = vmul.f32 %v5534, %v5448
      %v5536 = vmul.f32 %v5535, %v5534
      %v5537 = vmul.f32 0.5, %v5536
      %v5538 = vsub.f32 1.5, %v5537
      %v5539 = vmul.f32 %v5534, %v5538
      %vm5540 = vweird.f32 %v5448
      %vm5541 = vweird.f32 %v5534
      %vm5542 = vmor %vm5540, %vm5541
      %v5543 = vsel %vm5542, %v5534, %v5539
      %v5544 = vrsqrt.pop %v5449
      %v5545 = vmul.f32 %v5544, %v5449
      %v5546 = vmul.f32 %v5545, %v5544
      %v5547 = vmul.f32 0.5, %v5546
      %v5548 = vsub.f32 1.5, %v5547
      %v5549 = vmul.f32 %v5544, %v5548
      %vm5550 = vweird.f32 %v5449
      %vm5551 = vweird.f32 %v5544
      %vm5552 = vmor %vm5550, %vm5551
      %v5553 = vsel %vm5552, %v5544, %v5549
      %v5554 = vrsqrt.pop %v5450
      %v5555 = vmul.f32 %v5554, %v5450
      %v5556 = vmul.f32 %v5555, %v5554
      %v5557 = vmul.f32 0.5, %v5556
      %v5558 = vsub.f32 1.5, %v5557
      %v5559 = vmul.f32 %v5554, %v5558
      %vm5560 = vweird.f32 %v5450
      %vm5561 = vweird.f32 %v5554
      %vm5562 = vmor %vm5560, %vm5561
      %v5563 = vsel %vm5562, %v5554, %v5559
      %v5564 = vrsqrt.pop %v5451
      %v5565 = vmul.f32 %v5564, %v5451
      %v5566 = vmul.f32 %v5565, %v5564
      %v5567 = vmul.f32 0.5, %v5566
      %v5568 = vsub.f32 1.5, %v5567
      %v5569 = vmul.f32 %v5564, %v5568
      %vm5570 = vweird.f32 %v5451
      %vm5571 = vweird.f32 %v5564
      %vm5572 = vmor %vm5570, %vm5571
      %v5573 = vsel %vm5572, %v5564, %v5569
      %v5574 = vrsqrt.pop %v5452
      %v5575 = vmul.f32 %v5574, %v5452
      %v5576 = vmul.f32 %v5575, %v5574
      %v5577 = vmul.f32 0.5, %v5576
      %v5578 = vsub.f32 1.5, %v5577
      %v5579 = vmul.f32 %v5574, %v5578
      %vm5580 = vweird.f32 %v5452
      %vm5581 = vweird.f32 %v5574
      %vm5582 = vmor %vm5580, %vm5581
      %v5583 = vsel %vm5582, %v5574, %v5579
      %v5584 = vrsqrt.pop %v5453
      %v5585 = vmul.f32 %v5584, %v5453
      %v5586 = vmul.f32 %v5585, %v5584
      %v5587 = vmul.f32 0.5, %v5586
      %v5588 = vsub.f32 1.5, %v5587
      %v5589 = vmul.f32 %v5584, %v5588
      %vm5590 = vweird.f32 %v5453
      %vm5591 = vweird.f32 %v5584
      %vm5592 = vmor %vm5590, %vm5591
      %v5593 = vsel %vm5592, %v5584, %v5589
      %v5594 = vrsqrt.pop %v5454
      %v5595 = vmul.f32 %v5594, %v5454
      %v5596 = vmul.f32 %v5595, %v5594
      %v5597 = vmul.f32 0.5, %v5596
      %v5598 = vsub.f32 1.5, %v5597
      %v5599 = vmul.f32 %v5594, %v5598
      %vm5600 = vweird.f32 %v5454
      %vm5601 = vweird.f32 %v5594
      %vm5602 = vmor %vm5600, %vm5601
      %v5603 = vsel %vm5602, %v5594, %v5599
      %v5604 = vrsqrt.pop %v5455
      %v5605 = vmul.f32 %v5604, %v5455
      %v5606 = vmul.f32 %v5605, %v5604
      %v5607 = vmul.f32 0.5, %v5606
      %v5608 = vsub.f32 1.5, %v5607
      %v5609 = vmul.f32 %v5604, %v5608
      %vm5610 = vweird.f32 %v5455
      %vm5611 = vweird.f32 %v5604
      %vm5612 = vmor %vm5610, %vm5611
      %v5613 = vsel %vm5612, %v5604, %v5609
      %v5614 = vrsqrt.pop %v5456
      %v5615 = vmul.f32 %v5614, %v5456
      %v5616 = vmul.f32 %v5615, %v5614
      %v5617 = vmul.f32 0.5, %v5616
      %v5618 = vsub.f32 1.5, %v5617
      %v5619 = vmul.f32 %v5614, %v5618
      %vm5620 = vweird.f32 %v5456
      %vm5621 = vweird.f32 %v5614
      %vm5622 = vmor %vm5620, %vm5621
      %v5623 = vsel %vm5622, %v5614, %v5619
      %v5624 = vrsqrt.pop %v5457
      %v5625 = vmul.f32 %v5624, %v5457
      %v5626 = vmul.f32 %v5625, %v5624
      %v5627 = vmul.f32 0.5, %v5626
      %v5628 = vsub.f32 1.5, %v5627
      %v5629 = vmul.f32 %v5624, %v5628
      %vm5630 = vweird.f32 %v5457
      %vm5631 = vweird.f32 %v5624
      %vm5632 = vmor %vm5630, %vm5631
      %v5633 = vsel %vm5632, %v5624, %v5629
      %v5634 = vrsqrt.pop %v5458
      %v5635 = vmul.f32 %v5634, %v5458
      %v5636 = vmul.f32 %v5635, %v5634
      %v5637 = vmul.f32 0.5, %v5636
      %v5638 = vsub.f32 1.5, %v5637
      %v5639 = vmul.f32 %v5634, %v5638
      %vm5640 = vweird.f32 %v5458
      %vm5641 = vweird.f32 %v5634
      %vm5642 = vmor %vm5640, %vm5641
      %v5643 = vsel %vm5642, %v5634, %v5639
      %v5644 = vrsqrt.pop %v5459
      %v5645 = vmul.f32 %v5644, %v5459
      %v5646 = vmul.f32 %v5645, %v5644
      %v5647 = vmul.f32 0.5, %v5646
      %v5648 = vsub.f32 1.5, %v5647
      %v5649 = vmul.f32 %v5644, %v5648
      %vm5650 = vweird.f32 %v5459
      %vm5651 = vweird.f32 %v5644
      %vm5652 = vmor %vm5650, %vm5651
      %v5653 = vsel %vm5652, %v5644, %v5649
      %v5654 = vrsqrt.pop %v5460
      %v5655 = vmul.f32 %v5654, %v5460
      %v5656 = vmul.f32 %v5655, %v5654
      %v5657 = vmul.f32 0.5, %v5656
      %v5658 = vsub.f32 1.5, %v5657
      %v5659 = vmul.f32 %v5654, %v5658
      %vm5660 = vweird.f32 %v5460
      %vm5661 = vweird.f32 %v5654
      %vm5662 = vmor %vm5660, %vm5661
      %v5663 = vsel %vm5662, %v5654, %v5659
      %v5664 = vrsqrt.pop %v5461
      %v5665 = vmul.f32 %v5664, %v5461
      %v5666 = vmul.f32 %v5665, %v5664
      %v5667 = vmul.f32 0.5, %v5666
      %v5668 = vsub.f32 1.5, %v5667
      %v5669 = vmul.f32 %v5664, %v5668
      %vm5670 = vweird.f32 %v5461
      %vm5671 = vweird.f32 %v5664
      %vm5672 = vmor %vm5670, %vm5671
      %v5673 = vsel %vm5672, %v5664, %v5669
      %v5674 = vrsqrt.pop %v5462
      %v5675 = vmul.f32 %v5674, %v5462
      %v5676 = vmul.f32 %v5675, %v5674
      %v5677 = vmul.f32 0.5, %v5676
      %v5678 = vsub.f32 1.5, %v5677
      %v5679 = vmul.f32 %v5674, %v5678
      %vm5680 = vweird.f32 %v5462
      %vm5681 = vweird.f32 %v5674
      %vm5682 = vmor %vm5680, %vm5681
      %v5683 = vsel %vm5682, %v5674, %v5679
      %v5684 = vrsqrt.pop %v5463
      %v5685 = vmul.f32 %v5684, %v5463
      %v5686 = vmul.f32 %v5685, %v5684
      %v5687 = vmul.f32 0.5, %v5686
      %v5688 = vsub.f32 1.5, %v5687
      %v5689 = vmul.f32 %v5684, %v5688
      %vm5690 = vweird.f32 %v5463
      %vm5691 = vweird.f32 %v5684
      %vm5692 = vmor %vm5690, %vm5691
      %v5693 = vsel %vm5692, %v5684, %v5689
      %v5694 = vrsqrt.pop %v5464
      %v5695 = vmul.f32 %v5694, %v5464
      %v5696 = vmul.f32 %v5695, %v5694
      %v5697 = vmul.f32 0.5, %v5696
      %v5698 = vsub.f32 1.5, %v5697
      %v5699 = vmul.f32 %v5694, %v5698
      %vm5700 = vweird.f32 %v5464
      %vm5701 = vweird.f32 %v5694
      %vm5702 = vmor %vm5700, %vm5701
      %v5703 = vsel %vm5702, %v5694, %v5699
      %v5704 = vrsqrt.pop %v5465
      %v5705 = vmul.f32 %v5704, %v5465
      %v5706 = vmul.f32 %v5705, %v5704
      %v5707 = vmul.f32 0.5, %v5706
      %v5708 = vsub.f32 1.5, %v5707
      %v5709 = vmul.f32 %v5704, %v5708
      %vm5710 = vweird.f32 %v5465
      %vm5711 = vweird.f32 %v5704
      %vm5712 = vmor %vm5710, %vm5711
      %v5713 = vsel %vm5712, %v5704, %v5709
      %v5714 = vrsqrt.pop %v5466
      %v5715 = vmul.f32 %v5714, %v5466
      %v5716 = vmul.f32 %v5715, %v5714
      %v5717 = vmul.f32 0.5, %v5716
      %v5718 = vsub.f32 1.5, %v5717
      %v5719 = vmul.f32 %v5714, %v5718
      %vm5720 = vweird.f32 %v5466
      %vm5721 = vweird.f32 %v5714
      %vm5722 = vmor %vm5720, %vm5721
      %v5723 = vsel %vm5722, %v5714, %v5719
      %v5724 = vrsqrt.pop %v5467
      %v5725 = vmul.f32 %v5724, %v5467
      %v5726 = vmul.f32 %v5725, %v5724
      %v5727 = vmul.f32 0.5, %v5726
      %v5728 = vsub.f32 1.5, %v5727
      %v5729 = vmul.f32 %v5724, %v5728
      %vm5730 = vweird.f32 %v5467
      %vm5731 = vweird.f32 %v5724
      %vm5732 = vmor %vm5730, %vm5731
      %v5733 = vsel %vm5732, %v5724, %v5729
      %v5734 = vrsqrt.pop %v5468
      %v5735 = vmul.f32 %v5734, %v5468
      %v5736 = vmul.f32 %v5735, %v5734
      %v5737 = vmul.f32 0.5, %v5736
      %v5738 = vsub.f32 1.5, %v5737
      %v5739 = vmul.f32 %v5734, %v5738
      %vm5740 = vweird.f32 %v5468
      %vm5741 = vweird.f32 %v5734
      %vm5742 = vmor %vm5740, %vm5741
      %v5743 = vsel %vm5742, %v5734, %v5739
      %v5744 = vrsqrt.pop %v5469
      %v5745 = vmul.f32 %v5744, %v5469
      %v5746 = vmul.f32 %v5745, %v5744
      %v5747 = vmul.f32 0.5, %v5746
      %v5748 = vsub.f32 1.5, %v5747
      %v5749 = vmul.f32 %v5744, %v5748
      %vm5750 = vweird.f32 %v5469
      %vm5751 = vweird.f32 %v5744
      %vm5752 = vmor %vm5750, %vm5751
      %v5753 = vsel %vm5752, %v5744, %v5749
      %v5754 = vrsqrt.pop %v5470
      %v5755 = vmul.f32 %v5754, %v5470
      %v5756 = vmul.f32 %v5755, %v5754
      %v5757 = vmul.f32 0.5, %v5756
      %v5758 = vsub.f32 1.5, %v5757
      %v5759 = vmul.f32 %v5754, %v5758
      %vm5760 = vweird.f32 %v5470
      %vm5761 = vweird.f32 %v5754
      %vm5762 = vmor %vm5760, %vm5761
      %v5763 = vsel %vm5762, %v5754, %v5759
      %v5764 = vrsqrt.pop %v5471
      %v5765 = vmul.f32 %v5764, %v5471
      %v5766 = vmul.f32 %v5765, %v5764
      %v5767 = vmul.f32 0.5, %v5766
      %v5768 = vsub.f32 1.5, %v5767
      %v5769 = vmul.f32 %v5764, %v5768
      %vm5770 = vweird.f32 %v5471
      %vm5771 = vweird.f32 %v5764
      %vm5772 = vmor %vm5770, %vm5771
      %v5773 = vsel %vm5772, %v5764, %v5769
      %v5774 = vrsqrt.pop %v5472
      %v5775 = vmul.f32 %v5774, %v5472
      %v5776 = vmul.f32 %v5775, %v5774
      %v5777 = vmul.f32 0.5, %v5776
      %v5778 = vsub.f32 1.5, %v5777
      %v5779 = vmul.f32 %v5774, %v5778
      %vm5780 = vweird.f32 %v5472
      %vm5781 = vweird.f32 %v5774
      %vm5782 = vmor %vm5780, %vm5781
      %v5783 = vsel %vm5782, %v5774, %v5779
      %v5784 = vrsqrt.pop %v5473
      %v5785 = vmul.f32 %v5784, %v5473
      %v5786 = vmul.f32 %v5785, %v5784
      %v5787 = vmul.f32 0.5, %v5786
      %v5788 = vsub.f32 1.5, %v5787
      %v5789 = vmul.f32 %v5784, %v5788
      %vm5790 = vweird.f32 %v5473
      %vm5791 = vweird.f32 %v5784
      %vm5792 = vmor %vm5790, %vm5791
      %v5793 = vsel %vm5792, %v5784, %v5789
      %v5794 = vmul.f32 %v5250, %v5483
      %v5795 = vmul.f32 %v5251, %v5493
      %v5796 = vmul.f32 %v5252, %v5503
      %v5797 = vmul.f32 %v5253, %v5513
      %v5798 = vmul.f32 %v5254, %v5523
      %v5799 = vmul.f32 %v5255, %v5533
      %v5800 = vmul.f32 %v5256, %v5543
      %v5801 = vmul.f32 %v5257, %v5553
      %v5802 = vmul.f32 %v5258, %v5563
      %v5803 = vmul.f32 %v5259, %v5573
      %v5804 = vmul.f32 %v5260, %v5583
      %v5805 = vmul.f32 %v5261, %v5593
      %v5806 = vmul.f32 %v5262, %v5603
      %v5807 = vmul.f32 %v5263, %v5613
      %v5808 = vmul.f32 %v5264, %v5623
      %v5809 = vmul.f32 %v5265, %v5633
      %v5810 = vmul.f32 %v5266, %v5643
      %v5811 = vmul.f32 %v5267, %v5653
      %v5812 = vmul.f32 %v5268, %v5663
      %v5813 = vmul.f32 %v5269, %v5673
      %v5814 = vmul.f32 %v5270, %v5683
      %v5815 = vmul.f32 %v5271, %v5693
      %v5816 = vmul.f32 %v5272, %v5703
      %v5817 = vmul.f32 %v5273, %v5713
      %v5818 = vmul.f32 %v5274, %v5723
      %v5819 = vmul.f32 %v5275, %v5733
      %v5820 = vmul.f32 %v5276, %v5743
      %v5821 = vmul.f32 %v5277, %v5753
      %v5822 = vmul.f32 %v5278, %v5763
      %v5823 = vmul.f32 %v5279, %v5773
      %v5824 = vmul.f32 %v5280, %v5783
      %v5825 = vmul.f32 %v5281, %v5793
      %v5826 = vpack.c.bf16 %v5795, %v5794
      %v5827 = vpack.c.bf16 %v5797, %v5796
      %v5828 = vpack.c.bf16 %v5799, %v5798
      %v5829 = vpack.c.bf16 %v5801, %v5800
      %v5830 = vpack.c.bf16 %v5803, %v5802
      %v5831 = vpack.c.bf16 %v5805, %v5804
      %v5832 = vpack.c.bf16 %v5807, %v5806
      %v5833 = vpack.c.bf16 %v5809, %v5808
      %v5834 = vpack.c.bf16 %v5811, %v5810
      %v5835 = vpack.c.bf16 %v5813, %v5812
      %v5836 = vpack.c.bf16 %v5815, %v5814
      %v5837 = vpack.c.bf16 %v5817, %v5816
      %v5838 = vpack.c.bf16 %v5819, %v5818
      %v5839 = vpack.c.bf16 %v5821, %v5820
      %v5840 = vpack.c.bf16 %v5823, %v5822
      %v5841 = vpack.c.bf16 %v5825, %v5824
      %v5842 = vld [vmem:[%s3] sm:$0x3]
      %v5844 = vperm.slane %v318, 0
      %v5847 = vsel %vm5114, %v5826, 0
      %v5850 = vsel %vm5114, %v5827, 0
      %v5853 = vsel %vm5114, %v5828, 0
      %v5856 = vsel %vm5114, %v5829, 0
      %v5859 = vsel %vm5114, %v5830, 0
      %v5862 = vsel %vm5114, %v5831, 0
      %v5865 = vsel %vm5114, %v5832, 0
      %v5868 = vsel %vm5114, %v5833, 0
      %v5871 = vsel %vm5114, %v5834, 0
      %v5874 = vsel %vm5114, %v5835, 0
      %v5877 = vsel %vm5114, %v5836, 0
      %v5880 = vsel %vm5114, %v5837, 0
      %v5883 = vsel %vm5114, %v5838, 0
      %v5886 = vsel %vm5114, %v5839, 0
      %v5889 = vsel %vm5114, %v5840, 0
      %v5892 = vsel %vm5114, %v5841, 0
      %vm5894 = vcmask 1041408
      %v5896 = vsel %vm5894, %v5842, 0
      %5898 = vmatpush.bf16.msra.mxu0 0
      %5899 = vmatpush.bf16.msra.mxu0 0
      %5900 = vmatpush.bf16.msra.mxu0 0
      %5901 = vmatpush.bf16.msra.mxu0 0
      %5902 = vmatpush.bf16.msra.mxu0 0
      %5903 = vmatpush.bf16.msra.mxu0 0
      %5904 = vmatpush.bf16.msra.mxu0 0
      %5905 = vmatpush.bf16.msra.mxu0 %v5896
      %5906 = vmatmul.bf16.gmra.mxu0 %v5847
      %v5907 = vpop.f32.mrf.mxu0
      %v5908 = vadd.f32 %v5844, %v5907
      %v5909 = vpop.f32.mrf.mxu0
      %v5910 = vadd.f32 %v5844, %v5909
      %5911 = vmatmul.bf16.gmra.mxu0 %v5850
      %v5912 = vpop.f32.mrf.mxu0
      %v5913 = vadd.f32 %v5844, %v5912
      %v5914 = vpop.f32.mrf.mxu0
      %v5915 = vadd.f32 %v5844, %v5914
      %5916 = vmatmul.bf16.gmra.mxu0 %v5853
      %v5917 = vpop.f32.mrf.mxu0
      %v5918 = vadd.f32 %v5844, %v5917
      %v5919 = vpop.f32.mrf.mxu0
      %v5920 = vadd.f32 %v5844, %v5919
      %5921 = vmatmul.bf16.gmra.mxu0 %v5856
      %v5922 = vpop.f32.mrf.mxu0
      %v5923 = vadd.f32 %v5844, %v5922
      %v5924 = vpop.f32.mrf.mxu0
      %v5925 = vadd.f32 %v5844, %v5924
      %5926 = vmatmul.bf16.gmra.mxu0 %v5859
      %v5927 = vpop.f32.mrf.mxu0
      %v5928 = vadd.f32 %v5844, %v5927
      %v5929 = vpop.f32.mrf.mxu0
      %v5930 = vadd.f32 %v5844, %v5929
      %5931 = vmatmul.bf16.gmra.mxu0 %v5862
      %v5932 = vpop.f32.mrf.mxu0
      %v5933 = vadd.f32 %v5844, %v5932
      %v5934 = vpop.f32.mrf.mxu0
      %v5935 = vadd.f32 %v5844, %v5934
      %5936 = vmatmul.bf16.gmra.mxu0 %v5865
      %v5937 = vpop.f32.mrf.mxu0
      %v5938 = vadd.f32 %v5844, %v5937
      %v5939 = vpop.f32.mrf.mxu0
      %v5940 = vadd.f32 %v5844, %v5939
      %5941 = vmatmul.bf16.gmra.mxu0 %v5868
      %v5942 = vpop.f32.mrf.mxu0
      %v5943 = vadd.f32 %v5844, %v5942
      %v5944 = vpop.f32.mrf.mxu0
      %v5945 = vadd.f32 %v5844, %v5944
      %5946 = vmatmul.bf16.gmra.mxu0 %v5871
      %v5947 = vpop.f32.mrf.mxu0
      %v5948 = vadd.f32 %v5844, %v5947
      %v5949 = vpop.f32.mrf.mxu0
      %v5950 = vadd.f32 %v5844, %v5949
      %5951 = vmatmul.bf16.gmra.mxu0 %v5874
      %v5952 = vpop.f32.mrf.mxu0
      %v5953 = vadd.f32 %v5844, %v5952
      %v5954 = vpop.f32.mrf.mxu0
      %v5955 = vadd.f32 %v5844, %v5954
      %5956 = vmatmul.bf16.gmra.mxu0 %v5877
      %v5957 = vpop.f32.mrf.mxu0
      %v5958 = vadd.f32 %v5844, %v5957
      %v5959 = vpop.f32.mrf.mxu0
      %v5960 = vadd.f32 %v5844, %v5959
      %5961 = vmatmul.bf16.gmra.mxu0 %v5880
      %v5962 = vpop.f32.mrf.mxu0
      %v5963 = vadd.f32 %v5844, %v5962
      %v5964 = vpop.f32.mrf.mxu0
      %v5965 = vadd.f32 %v5844, %v5964
      %5966 = vmatmul.bf16.gmra.mxu0 %v5883
      %v5967 = vpop.f32.mrf.mxu0
      %v5968 = vadd.f32 %v5844, %v5967
      %v5969 = vpop.f32.mrf.mxu0
      %v5970 = vadd.f32 %v5844, %v5969
      %5971 = vmatmul.bf16.gmra.mxu0 %v5886
      %v5972 = vpop.f32.mrf.mxu0
      %v5973 = vadd.f32 %v5844, %v5972
      %v5974 = vpop.f32.mrf.mxu0
      %v5975 = vadd.f32 %v5844, %v5974
      %5976 = vmatmul.bf16.gmra.mxu0 %v5889
      %v5977 = vpop.f32.mrf.mxu0
      %v5978 = vadd.f32 %v5844, %v5977
      %v5979 = vpop.f32.mrf.mxu0
      %v5980 = vadd.f32 %v5844, %v5979
      %5981 = vmatmul.bf16.gmra.mxu0 %v5892
      %v5982 = vpop.f32.mrf.mxu0
      %v5983 = vadd.f32 %v5844, %v5982
      %v5984 = vpop.f32.mrf.mxu0
      %v5985 = vadd.f32 %v5844, %v5984
      %5986 = vdwg.mxu0
      %v5987 = vmul.f32 %v5908, 0.70710677
      %v5988 = vmul.f32 %v5910, 0.70710677
      %v5989 = vmul.f32 %v5913, 0.70710677
      %v5990 = vmul.f32 %v5915, 0.70710677
      %v5991 = vmul.f32 %v5918, 0.70710677
      %v5992 = vmul.f32 %v5920, 0.70710677
      %v5993 = vmul.f32 %v5923, 0.70710677
      %v5994 = vmul.f32 %v5925, 0.70710677
      %v5995 = vmul.f32 %v5928, 0.70710677
      %v5996 = vmul.f32 %v5930, 0.70710677
      %v5997 = vmul.f32 %v5933, 0.70710677
      %v5998 = vmul.f32 %v5935, 0.70710677
      %v5999 = vmul.f32 %v5938, 0.70710677
      %v6000 = vmul.f32 %v5940, 0.70710677
      %v6001 = vmul.f32 %v5943, 0.70710677
      %v6002 = vmul.f32 %v5945, 0.70710677
      %v6003 = vmul.f32 %v5948, 0.70710677
      %v6004 = vmul.f32 %v5950, 0.70710677
      %v6005 = vmul.f32 %v5953, 0.70710677
      %v6006 = vmul.f32 %v5955, 0.70710677
      %v6007 = vmul.f32 %v5958, 0.70710677
      %v6008 = vmul.f32 %v5960, 0.70710677
      %v6009 = vmul.f32 %v5963, 0.70710677
      %v6010 = vmul.f32 %v5965, 0.70710677
      %v6011 = vmul.f32 %v5968, 0.70710677
      %v6012 = vmul.f32 %v5970, 0.70710677
      %v6013 = vmul.f32 %v5973, 0.70710677
      %v6014 = vmul.f32 %v5975, 0.70710677
      %v6015 = vmul.f32 %v5978, 0.70710677
      %v6016 = vmul.f32 %v5980, 0.70710677
      %v6017 = vmul.f32 %v5983, 0.70710677
      %v6018 = vmul.f32 %v5985, 0.70710677
      %v6019 = vand.u32 2147483647, %v5987
      %v6020 = vand.u32 2147483647, %v5988
      %v6021 = vand.u32 2147483647, %v5989
      %v6022 = vand.u32 2147483647, %v5990
      %v6023 = vand.u32 2147483647, %v5991
      %v6024 = vand.u32 2147483647, %v5992
      %v6025 = vand.u32 2147483647, %v5993
      %v6026 = vand.u32 2147483647, %v5994
      %v6027 = vand.u32 2147483647, %v5995
      %v6028 = vand.u32 2147483647, %v5996
      %v6029 = vand.u32 2147483647, %v5997
      %v6030 = vand.u32 2147483647, %v5998
      %v6031 = vand.u32 2147483647, %v5999
      %v6032 = vand.u32 2147483647, %v6000
      %v6033 = vand.u32 2147483647, %v6001
      %v6034 = vand.u32 2147483647, %v6002
      %v6035 = vand.u32 2147483647, %v6003
      %v6036 = vand.u32 2147483647, %v6004
      %v6037 = vand.u32 2147483647, %v6005
      %v6038 = vand.u32 2147483647, %v6006
      %v6039 = vand.u32 2147483647, %v6007
      %v6040 = vand.u32 2147483647, %v6008
      %v6041 = vand.u32 2147483647, %v6009
      %v6042 = vand.u32 2147483647, %v6010
      %v6043 = vand.u32 2147483647, %v6011
      %v6044 = vand.u32 2147483647, %v6012
      %v6045 = vand.u32 2147483647, %v6013
      %v6046 = vand.u32 2147483647, %v6014
      %v6047 = vand.u32 2147483647, %v6015
      %v6048 = vand.u32 2147483647, %v6016
      %v6049 = vand.u32 2147483647, %v6017
      %v6050 = vand.u32 2147483647, %v6018
      %v6051 = vmul.f32 %v6019, 0.3275911
      %v6052 = vmul.f32 %v6020, 0.3275911
      %v6053 = vmul.f32 %v6021, 0.3275911
      %v6054 = vmul.f32 %v6022, 0.3275911
      %v6055 = vmul.f32 %v6023, 0.3275911
      %v6056 = vmul.f32 %v6024, 0.3275911
      %v6057 = vmul.f32 %v6025, 0.3275911
      %v6058 = vmul.f32 %v6026, 0.3275911
      %v6059 = vmul.f32 %v6027, 0.3275911
      %v6060 = vmul.f32 %v6028, 0.3275911
      %v6061 = vmul.f32 %v6029, 0.3275911
      %v6062 = vmul.f32 %v6030, 0.3275911
      %v6063 = vmul.f32 %v6031, 0.3275911
      %v6064 = vmul.f32 %v6032, 0.3275911
      %v6065 = vmul.f32 %v6033, 0.3275911
      %v6066 = vmul.f32 %v6034, 0.3275911
      %v6067 = vmul.f32 %v6035, 0.3275911
      %v6068 = vmul.f32 %v6036, 0.3275911
      %v6069 = vmul.f32 %v6037, 0.3275911
      %v6070 = vmul.f32 %v6038, 0.3275911
      %v6071 = vmul.f32 %v6039, 0.3275911
      %v6072 = vmul.f32 %v6040, 0.3275911
      %v6073 = vmul.f32 %v6041, 0.3275911
      %v6074 = vmul.f32 %v6042, 0.3275911
      %v6075 = vmul.f32 %v6043, 0.3275911
      %v6076 = vmul.f32 %v6044, 0.3275911
      %v6077 = vmul.f32 %v6045, 0.3275911
      %v6078 = vmul.f32 %v6046, 0.3275911
      %v6079 = vmul.f32 %v6047, 0.3275911
      %v6080 = vmul.f32 %v6048, 0.3275911
      %v6081 = vmul.f32 %v6049, 0.3275911
      %v6082 = vmul.f32 %v6050, 0.3275911
      %v6083 = vadd.f32 %v6051, 1.0
      %v6084 = vadd.f32 %v6052, 1.0
      %v6085 = vadd.f32 %v6053, 1.0
      %v6086 = vadd.f32 %v6054, 1.0
      %v6087 = vadd.f32 %v6055, 1.0
      %v6088 = vadd.f32 %v6056, 1.0
      %v6089 = vadd.f32 %v6057, 1.0
      %v6090 = vadd.f32 %v6058, 1.0
      %v6091 = vadd.f32 %v6059, 1.0
      %v6092 = vadd.f32 %v6060, 1.0
      %v6093 = vadd.f32 %v6061, 1.0
      %v6094 = vadd.f32 %v6062, 1.0
      %v6095 = vadd.f32 %v6063, 1.0
      %v6096 = vadd.f32 %v6064, 1.0
      %v6097 = vadd.f32 %v6065, 1.0
      %v6098 = vadd.f32 %v6066, 1.0
      %v6099 = vadd.f32 %v6067, 1.0
      %v6100 = vadd.f32 %v6068, 1.0
      %v6101 = vadd.f32 %v6069, 1.0
      %v6102 = vadd.f32 %v6070, 1.0
      %v6103 = vadd.f32 %v6071, 1.0
      %v6104 = vadd.f32 %v6072, 1.0
      %v6105 = vadd.f32 %v6073, 1.0
      %v6106 = vadd.f32 %v6074, 1.0
      %v6107 = vadd.f32 %v6075, 1.0
      %v6108 = vadd.f32 %v6076, 1.0
      %v6109 = vadd.f32 %v6077, 1.0
      %v6110 = vadd.f32 %v6078, 1.0
      %v6111 = vadd.f32 %v6079, 1.0
      %v6112 = vadd.f32 %v6080, 1.0
      %v6113 = vadd.f32 %v6081, 1.0
      %v6114 = vadd.f32 %v6082, 1.0
      %v6115 = vrcp.pop %v6083
      %v6116 = vrcp.pop %v6084
      %v6117 = vrcp.pop %v6085
      %v6118 = vrcp.pop %v6086
      %v6119 = vrcp.pop %v6087
      %v6120 = vrcp.pop %v6088
      %v6121 = vrcp.pop %v6089
      %v6122 = vrcp.pop %v6090
      %v6123 = vrcp.pop %v6091
      %v6124 = vrcp.pop %v6092
      %v6125 = vrcp.pop %v6093
      %v6126 = vrcp.pop %v6094
      %v6127 = vrcp.pop %v6095
      %v6128 = vrcp.pop %v6096
      %v6129 = vrcp.pop %v6097
      %v6130 = vrcp.pop %v6098
      %v6131 = vrcp.pop %v6099
      %v6132 = vrcp.pop %v6100
      %v6133 = vrcp.pop %v6101
      %v6134 = vrcp.pop %v6102
      %v6135 = vrcp.pop %v6103
      %v6136 = vrcp.pop %v6104
      %v6137 = vrcp.pop %v6105
      %v6138 = vrcp.pop %v6106
      %v6139 = vrcp.pop %v6107
      %v6140 = vrcp.pop %v6108
      %v6141 = vrcp.pop %v6109
      %v6142 = vrcp.pop %v6110
      %v6143 = vrcp.pop %v6111
      %v6144 = vrcp.pop %v6112
      %v6145 = vrcp.pop %v6113
      %v6146 = vrcp.pop %v6114
      %v6147 = vmul.f32 %v6115, 1.0614054
      %v6148 = vmul.f32 %v6116, 1.0614054
      %v6149 = vmul.f32 %v6117, 1.0614054
      %v6150 = vmul.f32 %v6118, 1.0614054
      %v6151 = vmul.f32 %v6119, 1.0614054
      %v6152 = vmul.f32 %v6120, 1.0614054
      %v6153 = vmul.f32 %v6121, 1.0614054
      %v6154 = vmul.f32 %v6122, 1.0614054
      %v6155 = vmul.f32 %v6123, 1.0614054
      %v6156 = vmul.f32 %v6124, 1.0614054
      %v6157 = vmul.f32 %v6125, 1.0614054
      %v6158 = vmul.f32 %v6126, 1.0614054
      %v6159 = vmul.f32 %v6127, 1.0614054
      %v6160 = vmul.f32 %v6128, 1.0614054
      %v6161 = vmul.f32 %v6129, 1.0614054
      %v6162 = vmul.f32 %v6130, 1.0614054
      %v6163 = vmul.f32 %v6131, 1.0614054
      %v6164 = vmul.f32 %v6132, 1.0614054
      %v6165 = vmul.f32 %v6133, 1.0614054
      %v6166 = vmul.f32 %v6134, 1.0614054
      %v6167 = vmul.f32 %v6135, 1.0614054
      %v6168 = vmul.f32 %v6136, 1.0614054
      %v6169 = vmul.f32 %v6137, 1.0614054
      %v6170 = vmul.f32 %v6138, 1.0614054
      %v6171 = vmul.f32 %v6139, 1.0614054
      %v6172 = vmul.f32 %v6140, 1.0614054
      %v6173 = vmul.f32 %v6141, 1.0614054
      %v6174 = vmul.f32 %v6142, 1.0614054
      %v6175 = vmul.f32 %v6143, 1.0614054
      %v6176 = vmul.f32 %v6144, 1.0614054
      %v6177 = vmul.f32 %v6145, 1.0614054
      %v6178 = vmul.f32 %v6146, 1.0614054
      %v6179 = vadd.f32 %v6147, -1.4531521
      %v6180 = vadd.f32 %v6148, -1.4531521
      %v6181 = vadd.f32 %v6149, -1.4531521
      %v6182 = vadd.f32 %v6150, -1.4531521
      %v6183 = vadd.f32 %v6151, -1.4531521
      %v6184 = vadd.f32 %v6152, -1.4531521
      %v6185 = vadd.f32 %v6153, -1.4531521
      %v6186 = vadd.f32 %v6154, -1.4531521
      %v6187 = vadd.f32 %v6155, -1.4531521
      %v6188 = vadd.f32 %v6156, -1.4531521
      %v6189 = vadd.f32 %v6157, -1.4531521
      %v6190 = vadd.f32 %v6158, -1.4531521
      %v6191 = vadd.f32 %v6159, -1.4531521
      %v6192 = vadd.f32 %v6160, -1.4531521
      %v6193 = vadd.f32 %v6161, -1.4531521
      %v6194 = vadd.f32 %v6162, -1.4531521
      %v6195 = vadd.f32 %v6163, -1.4531521
      %v6196 = vadd.f32 %v6164, -1.4531521
      %v6197 = vadd.f32 %v6165, -1.4531521
      %v6198 = vadd.f32 %v6166, -1.4531521
      %v6199 = vadd.f32 %v6167, -1.4531521
      %v6200 = vadd.f32 %v6168, -1.4531521
      %v6201 = vadd.f32 %v6169, -1.4531521
      %v6202 = vadd.f32 %v6170, -1.4531521
      %v6203 = vadd.f32 %v6171, -1.4531521
      %v6204 = vadd.f32 %v6172, -1.4531521
      %v6205 = vadd.f32 %v6173, -1.4531521
      %v6206 = vadd.f32 %v6174, -1.4531521
      %v6207 = vadd.f32 %v6175, -1.4531521
      %v6208 = vadd.f32 %v6176, -1.4531521
      %v6209 = vadd.f32 %v6177, -1.4531521
      %v6210 = vadd.f32 %v6178, -1.4531521
      %v6211 = vmul.f32 %v6179, %v6115
      %v6212 = vmul.f32 %v6180, %v6116
      %v6213 = vmul.f32 %v6181, %v6117
      %v6214 = vmul.f32 %v6182, %v6118
      %v6215 = vmul.f32 %v6183, %v6119
      %v6216 = vmul.f32 %v6184, %v6120
      %v6217 = vmul.f32 %v6185, %v6121
      %v6218 = vmul.f32 %v6186, %v6122
      %v6219 = vmul.f32 %v6187, %v6123
      %v6220 = vmul.f32 %v6188, %v6124
      %v6221 = vmul.f32 %v6189, %v6125
      %v6222 = vmul.f32 %v6190, %v6126
      %v6223 = vmul.f32 %v6191, %v6127
      %v6224 = vmul.f32 %v6192, %v6128
      %v6225 = vmul.f32 %v6193, %v6129
      %v6226 = vmul.f32 %v6194, %v6130
      %v6227 = vmul.f32 %v6195, %v6131
      %v6228 = vmul.f32 %v6196, %v6132
      %v6229 = vmul.f32 %v6197, %v6133
      %v6230 = vmul.f32 %v6198, %v6134
      %v6231 = vmul.f32 %v6199, %v6135
      %v6232 = vmul.f32 %v6200, %v6136
      %v6233 = vmul.f32 %v6201, %v6137
      %v6234 = vmul.f32 %v6202, %v6138
      %v6235 = vmul.f32 %v6203, %v6139
      %v6236 = vmul.f32 %v6204, %v6140
      %v6237 = vmul.f32 %v6205, %v6141
      %v6238 = vmul.f32 %v6206, %v6142
      %v6239 = vmul.f32 %v6207, %v6143
      %v6240 = vmul.f32 %v6208, %v6144
      %v6241 = vmul.f32 %v6209, %v6145
      %v6242 = vmul.f32 %v6210, %v6146
      %v6243 = vadd.f32 %v6211, 1.4214138
      %v6244 = vadd.f32 %v6212, 1.4214138
      %v6245 = vadd.f32 %v6213, 1.4214138
      %v6246 = vadd.f32 %v6214, 1.4214138
      %v6247 = vadd.f32 %v6215, 1.4214138
      %v6248 = vadd.f32 %v6216, 1.4214138
      %v6249 = vadd.f32 %v6217, 1.4214138
      %v6250 = vadd.f32 %v6218, 1.4214138
      %v6251 = vadd.f32 %v6219, 1.4214138
      %v6252 = vadd.f32 %v6220, 1.4214138
      %v6253 = vadd.f32 %v6221, 1.4214138
      %v6254 = vadd.f32 %v6222, 1.4214138
      %v6255 = vadd.f32 %v6223, 1.4214138
      %v6256 = vadd.f32 %v6224, 1.4214138
      %v6257 = vadd.f32 %v6225, 1.4214138
      %v6258 = vadd.f32 %v6226, 1.4214138
      %v6259 = vadd.f32 %v6227, 1.4214138
      %v6260 = vadd.f32 %v6228, 1.4214138
      %v6261 = vadd.f32 %v6229, 1.4214138
      %v6262 = vadd.f32 %v6230, 1.4214138
      %v6263 = vadd.f32 %v6231, 1.4214138
      %v6264 = vadd.f32 %v6232, 1.4214138
      %v6265 = vadd.f32 %v6233, 1.4214138
      %v6266 = vadd.f32 %v6234, 1.4214138
      %v6267 = vadd.f32 %v6235, 1.4214138
      %v6268 = vadd.f32 %v6236, 1.4214138
      %v6269 = vadd.f32 %v6237, 1.4214138
      %v6270 = vadd.f32 %v6238, 1.4214138
      %v6271 = vadd.f32 %v6239, 1.4214138
      %v6272 = vadd.f32 %v6240, 1.4214138
      %v6273 = vadd.f32 %v6241, 1.4214138
      %v6274 = vadd.f32 %v6242, 1.4214138
      %v6275 = vmul.f32 %v6243, %v6115
      %v6276 = vmul.f32 %v6244, %v6116
      %v6277 = vmul.f32 %v6245, %v6117
      %v6278 = vmul.f32 %v6246, %v6118
      %v6279 = vmul.f32 %v6247, %v6119
      %v6280 = vmul.f32 %v6248, %v6120
      %v6281 = vmul.f32 %v6249, %v6121
      %v6282 = vmul.f32 %v6250, %v6122
      %v6283 = vmul.f32 %v6251, %v6123
      %v6284 = vmul.f32 %v6252, %v6124
      %v6285 = vmul.f32 %v6253, %v6125
      %v6286 = vmul.f32 %v6254, %v6126
      %v6287 = vmul.f32 %v6255, %v6127
      %v6288 = vmul.f32 %v6256, %v6128
      %v6289 = vmul.f32 %v6257, %v6129
      %v6290 = vmul.f32 %v6258, %v6130
      %v6291 = vmul.f32 %v6259, %v6131
      %v6292 = vmul.f32 %v6260, %v6132
      %v6293 = vmul.f32 %v6261, %v6133
      %v6294 = vmul.f32 %v6262, %v6134
      %v6295 = vmul.f32 %v6263, %v6135
      %v6296 = vmul.f32 %v6264, %v6136
      %v6297 = vmul.f32 %v6265, %v6137
      %v6298 = vmul.f32 %v6266, %v6138
      %v6299 = vmul.f32 %v6267, %v6139
      %v6300 = vmul.f32 %v6268, %v6140
      %v6301 = vmul.f32 %v6269, %v6141
      %v6302 = vmul.f32 %v6270, %v6142
      %v6303 = vmul.f32 %v6271, %v6143
      %v6304 = vmul.f32 %v6272, %v6144
      %v6305 = vmul.f32 %v6273, %v6145
      %v6306 = vmul.f32 %v6274, %v6146
      %v6307 = vadd.f32 %v6275, -0.28449672
      %v6308 = vadd.f32 %v6276, -0.28449672
      %v6309 = vadd.f32 %v6277, -0.28449672
      %v6310 = vadd.f32 %v6278, -0.28449672
      %v6311 = vadd.f32 %v6279, -0.28449672
      %v6312 = vadd.f32 %v6280, -0.28449672
      %v6313 = vadd.f32 %v6281, -0.28449672
      %v6314 = vadd.f32 %v6282, -0.28449672
      %v6315 = vadd.f32 %v6283, -0.28449672
      %v6316 = vadd.f32 %v6284, -0.28449672
      %v6317 = vadd.f32 %v6285, -0.28449672
      %v6318 = vadd.f32 %v6286, -0.28449672
      %v6319 = vadd.f32 %v6287, -0.28449672
      %v6320 = vadd.f32 %v6288, -0.28449672
      %v6321 = vadd.f32 %v6289, -0.28449672
      %v6322 = vadd.f32 %v6290, -0.28449672
      %v6323 = vadd.f32 %v6291, -0.28449672
      %v6324 = vadd.f32 %v6292, -0.28449672
      %v6325 = vadd.f32 %v6293, -0.28449672
      %v6326 = vadd.f32 %v6294, -0.28449672
      %v6327 = vadd.f32 %v6295, -0.28449672
      %v6328 = vadd.f32 %v6296, -0.28449672
      %v6329 = vadd.f32 %v6297, -0.28449672
      %v6330 = vadd.f32 %v6298, -0.28449672
      %v6331 = vadd.f32 %v6299, -0.28449672
      %v6332 = vadd.f32 %v6300, -0.28449672
      %v6333 = vadd.f32 %v6301, -0.28449672
      %v6334 = vadd.f32 %v6302, -0.28449672
      %v6335 = vadd.f32 %v6303, -0.28449672
      %v6336 = vadd.f32 %v6304, -0.28449672
      %v6337 = vadd.f32 %v6305, -0.28449672
      %v6338 = vadd.f32 %v6306, -0.28449672
      %v6339 = vmul.f32 %v6307, %v6115
      %v6340 = vmul.f32 %v6308, %v6116
      %v6341 = vmul.f32 %v6309, %v6117
      %v6342 = vmul.f32 %v6310, %v6118
      %v6343 = vmul.f32 %v6311, %v6119
      %v6344 = vmul.f32 %v6312, %v6120
      %v6345 = vmul.f32 %v6313, %v6121
      %v6346 = vmul.f32 %v6314, %v6122
      %v6347 = vmul.f32 %v6315, %v6123
      %v6348 = vmul.f32 %v6316, %v6124
      %v6349 = vmul.f32 %v6317, %v6125
      %v6350 = vmul.f32 %v6318, %v6126
      %v6351 = vmul.f32 %v6319, %v6127
      %v6352 = vmul.f32 %v6320, %v6128
      %v6353 = vmul.f32 %v6321, %v6129
      %v6354 = vmul.f32 %v6322, %v6130
      %v6355 = vmul.f32 %v6323, %v6131
      %v6356 = vmul.f32 %v6324, %v6132
      %v6357 = vmul.f32 %v6325, %v6133
      %v6358 = vmul.f32 %v6326, %v6134
      %v6359 = vmul.f32 %v6327, %v6135
      %v6360 = vmul.f32 %v6328, %v6136
      %v6361 = vmul.f32 %v6329, %v6137
      %v6362 = vmul.f32 %v6330, %v6138
      %v6363 = vmul.f32 %v6331, %v6139
      %v6364 = vmul.f32 %v6332, %v6140
      %v6365 = vmul.f32 %v6333, %v6141
      %v6366 = vmul.f32 %v6334, %v6142
      %v6367 = vmul.f32 %v6335, %v6143
      %v6368 = vmul.f32 %v6336, %v6144
      %v6369 = vmul.f32 %v6337, %v6145
      %v6370 = vmul.f32 %v6338, %v6146
      %v6371 = vadd.f32 %v6339, 0.2548296
      %v6372 = vadd.f32 %v6340, 0.2548296
      %v6373 = vadd.f32 %v6341, 0.2548296
      %v6374 = vadd.f32 %v6342, 0.2548296
      %v6375 = vadd.f32 %v6343, 0.2548296
      %v6376 = vadd.f32 %v6344, 0.2548296
      %v6377 = vadd.f32 %v6345, 0.2548296
      %v6378 = vadd.f32 %v6346, 0.2548296
      %v6379 = vadd.f32 %v6347, 0.2548296
      %v6380 = vadd.f32 %v6348, 0.2548296
      %v6381 = vadd.f32 %v6349, 0.2548296
      %v6382 = vadd.f32 %v6350, 0.2548296
      %v6383 = vadd.f32 %v6351, 0.2548296
      %v6384 = vadd.f32 %v6352, 0.2548296
      %v6385 = vadd.f32 %v6353, 0.2548296
      %v6386 = vadd.f32 %v6354, 0.2548296
      %v6387 = vadd.f32 %v6355, 0.2548296
      %v6388 = vadd.f32 %v6356, 0.2548296
      %v6389 = vadd.f32 %v6357, 0.2548296
      %v6390 = vadd.f32 %v6358, 0.2548296
      %v6391 = vadd.f32 %v6359, 0.2548296
      %v6392 = vadd.f32 %v6360, 0.2548296
      %v6393 = vadd.f32 %v6361, 0.2548296
      %v6394 = vadd.f32 %v6362, 0.2548296
      %v6395 = vadd.f32 %v6363, 0.2548296
      %v6396 = vadd.f32 %v6364, 0.2548296
      %v6397 = vadd.f32 %v6365, 0.2548296
      %v6398 = vadd.f32 %v6366, 0.2548296
      %v6399 = vadd.f32 %v6367, 0.2548296
      %v6400 = vadd.f32 %v6368, 0.2548296
      %v6401 = vadd.f32 %v6369, 0.2548296
      %v6402 = vadd.f32 %v6370, 0.2548296
      %v6403 = vmul.f32 %v6371, %v6115
      %v6404 = vmul.f32 %v6372, %v6116
      %v6405 = vmul.f32 %v6373, %v6117
      %v6406 = vmul.f32 %v6374, %v6118
      %v6407 = vmul.f32 %v6375, %v6119
      %v6408 = vmul.f32 %v6376, %v6120
      %v6409 = vmul.f32 %v6377, %v6121
      %v6410 = vmul.f32 %v6378, %v6122
      %v6411 = vmul.f32 %v6379, %v6123
      %v6412 = vmul.f32 %v6380, %v6124
      %v6413 = vmul.f32 %v6381, %v6125
      %v6414 = vmul.f32 %v6382, %v6126
      %v6415 = vmul.f32 %v6383, %v6127
      %v6416 = vmul.f32 %v6384, %v6128
      %v6417 = vmul.f32 %v6385, %v6129
      %v6418 = vmul.f32 %v6386, %v6130
      %v6419 = vmul.f32 %v6387, %v6131
      %v6420 = vmul.f32 %v6388, %v6132
      %v6421 = vmul.f32 %v6389, %v6133
      %v6422 = vmul.f32 %v6390, %v6134
      %v6423 = vmul.f32 %v6391, %v6135
      %v6424 = vmul.f32 %v6392, %v6136
      %v6425 = vmul.f32 %v6393, %v6137
      %v6426 = vmul.f32 %v6394, %v6138
      %v6427 = vmul.f32 %v6395, %v6139
      %v6428 = vmul.f32 %v6396, %v6140
      %v6429 = vmul.f32 %v6397, %v6141
      %v6430 = vmul.f32 %v6398, %v6142
      %v6431 = vmul.f32 %v6399, %v6143
      %v6432 = vmul.f32 %v6400, %v6144
      %v6433 = vmul.f32 %v6401, %v6145
      %v6434 = vmul.f32 %v6402, %v6146
      %v6435 = vsub.f32 0.0, %v6019
      %v6436 = vsub.f32 0.0, %v6020
      %v6437 = vsub.f32 0.0, %v6021
      %v6438 = vsub.f32 0.0, %v6022
      %v6439 = vsub.f32 0.0, %v6023
      %v6440 = vsub.f32 0.0, %v6024
      %v6441 = vsub.f32 0.0, %v6025
      %v6442 = vsub.f32 0.0, %v6026
      %v6443 = vsub.f32 0.0, %v6027
      %v6444 = vsub.f32 0.0, %v6028
      %v6445 = vsub.f32 0.0, %v6029
      %v6446 = vsub.f32 0.0, %v6030
      %v6447 = vsub.f32 0.0, %v6031
      %v6448 = vsub.f32 0.0, %v6032
      %v6449 = vsub.f32 0.0, %v6033
      %v6450 = vsub.f32 0.0, %v6034
      %v6451 = vsub.f32 0.0, %v6035
      %v6452 = vsub.f32 0.0, %v6036
      %v6453 = vsub.f32 0.0, %v6037
      %v6454 = vsub.f32 0.0, %v6038
      %v6455 = vsub.f32 0.0, %v6039
      %v6456 = vsub.f32 0.0, %v6040
      %v6457 = vsub.f32 0.0, %v6041
      %v6458 = vsub.f32 0.0, %v6042
      %v6459 = vsub.f32 0.0, %v6043
      %v6460 = vsub.f32 0.0, %v6044
      %v6461 = vsub.f32 0.0, %v6045
      %v6462 = vsub.f32 0.0, %v6046
      %v6463 = vsub.f32 0.0, %v6047
      %v6464 = vsub.f32 0.0, %v6048
      %v6465 = vsub.f32 0.0, %v6049
      %v6466 = vsub.f32 0.0, %v6050
      %v6467 = vmul.f32 %v6435, %v6019
      %v6468 = vmul.f32 %v6436, %v6020
      %v6469 = vmul.f32 %v6437, %v6021
      %v6470 = vmul.f32 %v6438, %v6022
      %v6471 = vmul.f32 %v6439, %v6023
      %v6472 = vmul.f32 %v6440, %v6024
      %v6473 = vmul.f32 %v6441, %v6025
      %v6474 = vmul.f32 %v6442, %v6026
      %v6475 = vmul.f32 %v6443, %v6027
      %v6476 = vmul.f32 %v6444, %v6028
      %v6477 = vmul.f32 %v6445, %v6029
      %v6478 = vmul.f32 %v6446, %v6030
      %v6479 = vmul.f32 %v6447, %v6031
      %v6480 = vmul.f32 %v6448, %v6032
      %v6481 = vmul.f32 %v6449, %v6033
      %v6482 = vmul.f32 %v6450, %v6034
      %v6483 = vmul.f32 %v6451, %v6035
      %v6484 = vmul.f32 %v6452, %v6036
      %v6485 = vmul.f32 %v6453, %v6037
      %v6486 = vmul.f32 %v6454, %v6038
      %v6487 = vmul.f32 %v6455, %v6039
      %v6488 = vmul.f32 %v6456, %v6040
      %v6489 = vmul.f32 %v6457, %v6041
      %v6490 = vmul.f32 %v6458, %v6042
      %v6491 = vmul.f32 %v6459, %v6043
      %v6492 = vmul.f32 %v6460, %v6044
      %v6493 = vmul.f32 %v6461, %v6045
      %v6494 = vmul.f32 %v6462, %v6046
      %v6495 = vmul.f32 %v6463, %v6047
      %v6496 = vmul.f32 %v6464, %v6048
      %v6497 = vmul.f32 %v6465, %v6049
      %v6498 = vmul.f32 %v6466, %v6050
      %v6499 = vmul.f32 %v6467, 1.442695
      %v6500 = vpow.pop %v6499
      %v6501 = vmul.f32 %v6468, 1.442695
      %v6502 = vpow.pop %v6501
      %v6503 = vmul.f32 %v6469, 1.442695
      %v6504 = vpow.pop %v6503
      %v6505 = vmul.f32 %v6470, 1.442695
      %v6506 = vpow.pop %v6505
      %v6507 = vmul.f32 %v6471, 1.442695
      %v6508 = vpow.pop %v6507
      %v6509 = vmul.f32 %v6472, 1.442695
      %v6510 = vpow.pop %v6509
      %v6511 = vmul.f32 %v6473, 1.442695
      %v6512 = vpow.pop %v6511
      %v6513 = vmul.f32 %v6474, 1.442695
      %v6514 = vpow.pop %v6513
      %v6515 = vmul.f32 %v6475, 1.442695
      %v6516 = vpow.pop %v6515
      %v6517 = vmul.f32 %v6476, 1.442695
      %v6518 = vpow.pop %v6517
      %v6519 = vmul.f32 %v6477, 1.442695
      %v6520 = vpow.pop %v6519
      %v6521 = vmul.f32 %v6478, 1.442695
      %v6522 = vpow.pop %v6521
      %v6523 = vmul.f32 %v6479, 1.442695
      %v6524 = vpow.pop %v6523
      %v6525 = vmul.f32 %v6480, 1.442695
      %v6526 = vpow.pop %v6525
      %v6527 = vmul.f32 %v6481, 1.442695
      %v6528 = vpow.pop %v6527
      %v6529 = vmul.f32 %v6482, 1.442695
      %v6530 = vpow.pop %v6529
      %v6531 = vmul.f32 %v6483, 1.442695
      %v6532 = vpow.pop %v6531
      %v6533 = vmul.f32 %v6484, 1.442695
      %v6534 = vpow.pop %v6533
      %v6535 = vmul.f32 %v6485, 1.442695
      %v6536 = vpow.pop %v6535
      %v6537 = vmul.f32 %v6486, 1.442695
      %v6538 = vpow.pop %v6537
      %v6539 = vmul.f32 %v6487, 1.442695
      %v6540 = vpow.pop %v6539
      %v6541 = vmul.f32 %v6488, 1.442695
      %v6542 = vpow.pop %v6541
      %v6543 = vmul.f32 %v6489, 1.442695
      %v6544 = vpow.pop %v6543
      %v6545 = vmul.f32 %v6490, 1.442695
      %v6546 = vpow.pop %v6545
      %v6547 = vmul.f32 %v6491, 1.442695
      %v6548 = vpow.pop %v6547
      %v6549 = vmul.f32 %v6492, 1.442695
      %v6550 = vpow.pop %v6549
      %v6551 = vmul.f32 %v6493, 1.442695
      %v6552 = vpow.pop %v6551
      %v6553 = vmul.f32 %v6494, 1.442695
      %v6554 = vpow.pop %v6553
      %v6555 = vmul.f32 %v6495, 1.442695
      %v6556 = vpow.pop %v6555
      %v6557 = vmul.f32 %v6496, 1.442695
      %v6558 = vpow.pop %v6557
      %v6559 = vmul.f32 %v6497, 1.442695
      %v6560 = vpow.pop %v6559
      %v6561 = vmul.f32 %v6498, 1.442695
      %v6562 = vpow.pop %v6561
      %v6563 = vmul.f32 %v6403, %v6500
      %v6564 = vmul.f32 %v6404, %v6502
      %v6565 = vmul.f32 %v6405, %v6504
      %v6566 = vmul.f32 %v6406, %v6506
      %v6567 = vmul.f32 %v6407, %v6508
      %v6568 = vmul.f32 %v6408, %v6510
      %v6569 = vmul.f32 %v6409, %v6512
      %v6570 = vmul.f32 %v6410, %v6514
      %v6571 = vmul.f32 %v6411, %v6516
      %v6572 = vmul.f32 %v6412, %v6518
      %v6573 = vmul.f32 %v6413, %v6520
      %v6574 = vmul.f32 %v6414, %v6522
      %v6575 = vmul.f32 %v6415, %v6524
      %v6576 = vmul.f32 %v6416, %v6526
      %v6577 = vmul.f32 %v6417, %v6528
      %v6578 = vmul.f32 %v6418, %v6530
      %v6579 = vmul.f32 %v6419, %v6532
      %v6580 = vmul.f32 %v6420, %v6534
      %v6581 = vmul.f32 %v6421, %v6536
      %v6582 = vmul.f32 %v6422, %v6538
      %v6583 = vmul.f32 %v6423, %v6540
      %v6584 = vmul.f32 %v6424, %v6542
      %v6585 = vmul.f32 %v6425, %v6544
      %v6586 = vmul.f32 %v6426, %v6546
      %v6587 = vmul.f32 %v6427, %v6548
      %v6588 = vmul.f32 %v6428, %v6550
      %v6589 = vmul.f32 %v6429, %v6552
      %v6590 = vmul.f32 %v6430, %v6554
      %v6591 = vmul.f32 %v6431, %v6556
      %v6592 = vmul.f32 %v6432, %v6558
      %v6593 = vmul.f32 %v6433, %v6560
      %v6594 = vmul.f32 %v6434, %v6562
      %v6595 = vsub.f32 1.0, %v6563
      %v6596 = vsub.f32 1.0, %v6564
      %v6597 = vsub.f32 1.0, %v6565
      %v6598 = vsub.f32 1.0, %v6566
      %v6599 = vsub.f32 1.0, %v6567
      %v6600 = vsub.f32 1.0, %v6568
      %v6601 = vsub.f32 1.0, %v6569
      %v6602 = vsub.f32 1.0, %v6570
      %v6603 = vsub.f32 1.0, %v6571
      %v6604 = vsub.f32 1.0, %v6572
      %v6605 = vsub.f32 1.0, %v6573
      %v6606 = vsub.f32 1.0, %v6574
      %v6607 = vsub.f32 1.0, %v6575
      %v6608 = vsub.f32 1.0, %v6576
      %v6609 = vsub.f32 1.0, %v6577
      %v6610 = vsub.f32 1.0, %v6578
      %v6611 = vsub.f32 1.0, %v6579
      %v6612 = vsub.f32 1.0, %v6580
      %v6613 = vsub.f32 1.0, %v6581
      %v6614 = vsub.f32 1.0, %v6582
      %v6615 = vsub.f32 1.0, %v6583
      %v6616 = vsub.f32 1.0, %v6584
      %v6617 = vsub.f32 1.0, %v6585
      %v6618 = vsub.f32 1.0, %v6586
      %v6619 = vsub.f32 1.0, %v6587
      %v6620 = vsub.f32 1.0, %v6588
      %v6621 = vsub.f32 1.0, %v6589
      %v6622 = vsub.f32 1.0, %v6590
      %v6623 = vsub.f32 1.0, %v6591
      %v6624 = vsub.f32 1.0, %v6592
      %v6625 = vsub.f32 1.0, %v6593
      %v6626 = vsub.f32 1.0, %v6594
      %vm6627 = vcmp.ge.f32.partialorder %v5987, 0.0
      %vm6628 = vcmp.ge.f32.partialorder %v5988, 0.0
      %vm6629 = vcmp.ge.f32.partialorder %v5989, 0.0
      %vm6630 = vcmp.ge.f32.partialorder %v5990, 0.0
      %vm6631 = vcmp.ge.f32.partialorder %v5991, 0.0
      %vm6632 = vcmp.ge.f32.partialorder %v5992, 0.0
      %vm6633 = vcmp.ge.f32.partialorder %v5993, 0.0
      %vm6634 = vcmp.ge.f32.partialorder %v5994, 0.0
      %vm6635 = vcmp.ge.f32.partialorder %v5995, 0.0
      %vm6636 = vcmp.ge.f32.partialorder %v5996, 0.0
      %vm6637 = vcmp.ge.f32.partialorder %v5997, 0.0
      %vm6638 = vcmp.ge.f32.partialorder %v5998, 0.0
      %vm6639 = vcmp.ge.f32.partialorder %v5999, 0.0
      %vm6640 = vcmp.ge.f32.partialorder %v6000, 0.0
      %vm6641 = vcmp.ge.f32.partialorder %v6001, 0.0
      %vm6642 = vcmp.ge.f32.partialorder %v6002, 0.0
      %vm6643 = vcmp.ge.f32.partialorder %v6003, 0.0
      %vm6644 = vcmp.ge.f32.partialorder %v6004, 0.0
      %vm6645 = vcmp.ge.f32.partialorder %v6005, 0.0
      %vm6646 = vcmp.ge.f32.partialorder %v6006, 0.0
      %vm6647 = vcmp.ge.f32.partialorder %v6007, 0.0
      %vm6648 = vcmp.ge.f32.partialorder %v6008, 0.0
      %vm6649 = vcmp.ge.f32.partialorder %v6009, 0.0
      %vm6650 = vcmp.ge.f32.partialorder %v6010, 0.0
      %vm6651 = vcmp.ge.f32.partialorder %v6011, 0.0
      %vm6652 = vcmp.ge.f32.partialorder %v6012, 0.0
      %vm6653 = vcmp.ge.f32.partialorder %v6013, 0.0
      %vm6654 = vcmp.ge.f32.partialorder %v6014, 0.0
      %vm6655 = vcmp.ge.f32.partialorder %v6015, 0.0
      %vm6656 = vcmp.ge.f32.partialorder %v6016, 0.0
      %vm6657 = vcmp.ge.f32.partialorder %v6017, 0.0
      %vm6658 = vcmp.ge.f32.partialorder %v6018, 0.0
      %v6659 = vsub.f32 0.0, %v6595
      %v6660 = vsub.f32 0.0, %v6596
      %v6661 = vsub.f32 0.0, %v6597
      %v6662 = vsub.f32 0.0, %v6598
      %v6663 = vsub.f32 0.0, %v6599
      %v6664 = vsub.f32 0.0, %v6600
      %v6665 = vsub.f32 0.0, %v6601
      %v6666 = vsub.f32 0.0, %v6602
      %v6667 = vsub.f32 0.0, %v6603
      %v6668 = vsub.f32 0.0, %v6604
      %v6669 = vsub.f32 0.0, %v6605
      %v6670 = vsub.f32 0.0, %v6606
      %v6671 = vsub.f32 0.0, %v6607
      %v6672 = vsub.f32 0.0, %v6608
      %v6673 = vsub.f32 0.0, %v6609
      %v6674 = vsub.f32 0.0, %v6610
      %v6675 = vsub.f32 0.0, %v6611
      %v6676 = vsub.f32 0.0, %v6612
      %v6677 = vsub.f32 0.0, %v6613
      %v6678 = vsub.f32 0.0, %v6614
      %v6679 = vsub.f32 0.0, %v6615
      %v6680 = vsub.f32 0.0, %v6616
      %v6681 = vsub.f32 0.0, %v6617
      %v6682 = vsub.f32 0.0, %v6618
      %v6683 = vsub.f32 0.0, %v6619
      %v6684 = vsub.f32 0.0, %v6620
      %v6685 = vsub.f32 0.0, %v6621
      %v6686 = vsub.f32 0.0, %v6622
      %v6687 = vsub.f32 0.0, %v6623
      %v6688 = vsub.f32 0.0, %v6624
      %v6689 = vsub.f32 0.0, %v6625
      %v6690 = vsub.f32 0.0, %v6626
      %v6691 = vsel %vm6627, %v6595, %v6659
      %v6692 = vsel %vm6628, %v6596, %v6660
      %v6693 = vsel %vm6629, %v6597, %v6661
      %v6694 = vsel %vm6630, %v6598, %v6662
      %v6695 = vsel %vm6631, %v6599, %v6663
      %v6696 = vsel %vm6632, %v6600, %v6664
      %v6697 = vsel %vm6633, %v6601, %v6665
      %v6698 = vsel %vm6634, %v6602, %v6666
      %v6699 = vsel %vm6635, %v6603, %v6667
      %v6700 = vsel %vm6636, %v6604, %v6668
      %v6701 = vsel %vm6637, %v6605, %v6669
      %v6702 = vsel %vm6638, %v6606, %v6670
      %v6703 = vsel %vm6639, %v6607, %v6671
      %v6704 = vsel %vm6640, %v6608, %v6672
      %v6705 = vsel %vm6641, %v6609, %v6673
      %v6706 = vsel %vm6642, %v6610, %v6674
      %v6707 = vsel %vm6643, %v6611, %v6675
      %v6708 = vsel %vm6644, %v6612, %v6676
      %v6709 = vsel %vm6645, %v6613, %v6677
      %v6710 = vsel %vm6646, %v6614, %v6678
      %v6711 = vsel %vm6647, %v6615, %v6679
      %v6712 = vsel %vm6648, %v6616, %v6680
      %v6713 = vsel %vm6649, %v6617, %v6681
      %v6714 = vsel %vm6650, %v6618, %v6682
      %v6715 = vsel %vm6651, %v6619, %v6683
      %v6716 = vsel %vm6652, %v6620, %v6684
      %v6717 = vsel %vm6653, %v6621, %v6685
      %v6718 = vsel %vm6654, %v6622, %v6686
      %v6719 = vsel %vm6655, %v6623, %v6687
      %v6720 = vsel %vm6656, %v6624, %v6688
      %v6721 = vsel %vm6657, %v6625, %v6689
      %v6722 = vsel %vm6658, %v6626, %v6690
      %v6723 = vmul.f32 %v5908, 0.5
      %v6724 = vmul.f32 %v5910, 0.5
      %v6725 = vmul.f32 %v5913, 0.5
      %v6726 = vmul.f32 %v5915, 0.5
      %v6727 = vmul.f32 %v5918, 0.5
      %v6728 = vmul.f32 %v5920, 0.5
      %v6729 = vmul.f32 %v5923, 0.5
      %v6730 = vmul.f32 %v5925, 0.5
      %v6731 = vmul.f32 %v5928, 0.5
      %v6732 = vmul.f32 %v5930, 0.5
      %v6733 = vmul.f32 %v5933, 0.5
      %v6734 = vmul.f32 %v5935, 0.5
      %v6735 = vmul.f32 %v5938, 0.5
      %v6736 = vmul.f32 %v5940, 0.5
      %v6737 = vmul.f32 %v5943, 0.5
      %v6738 = vmul.f32 %v5945, 0.5
      %v6739 = vmul.f32 %v5948, 0.5
      %v6740 = vmul.f32 %v5950, 0.5
      %v6741 = vmul.f32 %v5953, 0.5
      %v6742 = vmul.f32 %v5955, 0.5
      %v6743 = vmul.f32 %v5958, 0.5
      %v6744 = vmul.f32 %v5960, 0.5
      %v6745 = vmul.f32 %v5963, 0.5
      %v6746 = vmul.f32 %v5965, 0.5
      %v6747 = vmul.f32 %v5968, 0.5
      %v6748 = vmul.f32 %v5970, 0.5
      %v6749 = vmul.f32 %v5973, 0.5
      %v6750 = vmul.f32 %v5975, 0.5
      %v6751 = vmul.f32 %v5978, 0.5
      %v6752 = vmul.f32 %v5980, 0.5
      %v6753 = vmul.f32 %v5983, 0.5
      %v6754 = vmul.f32 %v5985, 0.5
      %v6755 = vadd.f32 %v6691, 1.0
      %v6756 = vadd.f32 %v6692, 1.0
      %v6757 = vadd.f32 %v6693, 1.0
      %v6758 = vadd.f32 %v6694, 1.0
      %v6759 = vadd.f32 %v6695, 1.0
      %v6760 = vadd.f32 %v6696, 1.0
      %v6761 = vadd.f32 %v6697, 1.0
      %v6762 = vadd.f32 %v6698, 1.0
      %v6763 = vadd.f32 %v6699, 1.0
      %v6764 = vadd.f32 %v6700, 1.0
      %v6765 = vadd.f32 %v6701, 1.0
      %v6766 = vadd.f32 %v6702, 1.0
      %v6767 = vadd.f32 %v6703, 1.0
      %v6768 = vadd.f32 %v6704, 1.0
      %v6769 = vadd.f32 %v6705, 1.0
      %v6770 = vadd.f32 %v6706, 1.0
      %v6771 = vadd.f32 %v6707, 1.0
      %v6772 = vadd.f32 %v6708, 1.0
      %v6773 = vadd.f32 %v6709, 1.0
      %v6774 = vadd.f32 %v6710, 1.0
      %v6775 = vadd.f32 %v6711, 1.0
      %v6776 = vadd.f32 %v6712, 1.0
      %v6777 = vadd.f32 %v6713, 1.0
      %v6778 = vadd.f32 %v6714, 1.0
      %v6779 = vadd.f32 %v6715, 1.0
      %v6780 = vadd.f32 %v6716, 1.0
      %v6781 = vadd.f32 %v6717, 1.0
      %v6782 = vadd.f32 %v6718, 1.0
      %v6783 = vadd.f32 %v6719, 1.0
      %v6784 = vadd.f32 %v6720, 1.0
      %v6785 = vadd.f32 %v6721, 1.0
      %v6786 = vadd.f32 %v6722, 1.0
      %v6787 = vmul.f32 %v6723, %v6755
      %v6788 = vmul.f32 %v6724, %v6756
      %v6789 = vmul.f32 %v6725, %v6757
      %v6790 = vmul.f32 %v6726, %v6758
      %v6791 = vmul.f32 %v6727, %v6759
      %v6792 = vmul.f32 %v6728, %v6760
      %v6793 = vmul.f32 %v6729, %v6761
      %v6794 = vmul.f32 %v6730, %v6762
      %v6795 = vmul.f32 %v6731, %v6763
      %v6796 = vmul.f32 %v6732, %v6764
      %v6797 = vmul.f32 %v6733, %v6765
      %v6798 = vmul.f32 %v6734, %v6766
      %v6799 = vmul.f32 %v6735, %v6767
      %v6800 = vmul.f32 %v6736, %v6768
      %v6801 = vmul.f32 %v6737, %v6769
      %v6802 = vmul.f32 %v6738, %v6770
      %v6803 = vmul.f32 %v6739, %v6771
      %v6804 = vmul.f32 %v6740, %v6772
      %v6805 = vmul.f32 %v6741, %v6773
      %v6806 = vmul.f32 %v6742, %v6774
      %v6807 = vmul.f32 %v6743, %v6775
      %v6808 = vmul.f32 %v6744, %v6776
      %v6809 = vmul.f32 %v6745, %v6777
      %v6810 = vmul.f32 %v6746, %v6778
      %v6811 = vmul.f32 %v6747, %v6779
      %v6812 = vmul.f32 %v6748, %v6780
      %v6813 = vmul.f32 %v6749, %v6781
      %v6814 = vmul.f32 %v6750, %v6782
      %v6815 = vmul.f32 %v6751, %v6783
      %v6816 = vmul.f32 %v6752, %v6784
      %v6817 = vmul.f32 %v6753, %v6785
      %v6818 = vmul.f32 %v6754, %v6786
      %v6819 = vpack.c.bf16 %v6788, %v6787
      %v6820 = vpack.c.bf16 %v6790, %v6789
      %v6821 = vpack.c.bf16 %v6792, %v6791
      %v6822 = vpack.c.bf16 %v6794, %v6793
      %v6823 = vpack.c.bf16 %v6796, %v6795
      %v6824 = vpack.c.bf16 %v6798, %v6797
      %v6825 = vpack.c.bf16 %v6800, %v6799
      %v6826 = vpack.c.bf16 %v6802, %v6801
      %v6827 = vpack.c.bf16 %v6804, %v6803
      %v6828 = vpack.c.bf16 %v6806, %v6805
      %v6829 = vpack.c.bf16 %v6808, %v6807
      %v6830 = vpack.c.bf16 %v6810, %v6809
      %v6831 = vpack.c.bf16 %v6812, %v6811
      %v6832 = vpack.c.bf16 %v6814, %v6813
      %v6833 = vpack.c.bf16 %v6816, %v6815
      %v6834 = vpack.c.bf16 %v6818, %v6817
      %v6835 = vld [vmem:[%s5] sm:$0xf]
      %v6836 = vld [vmem:[%s5 + $0x4] sm:$0xf]
      %v6838 = vperm.slane %v319, 0
      %v6842 = vunpack.c.l.b16 %v6835
      %v6843 = vunpack.c.l.b16 %v6836
      %v6844 = vpack.c.b16 %v6843, %v6842
      %vm6846 = vcmask 130048
      %v6848 = vsel %vm6846, %v6819, 0
      %v6851 = vsel %vm6846, %v6820, 0
      %v6854 = vsel %vm6846, %v6821, 0
      %v6857 = vsel %vm6846, %v6822, 0
      %v6860 = vsel %vm6846, %v6823, 0
      %v6863 = vsel %vm6846, %v6824, 0
      %v6866 = vsel %vm6846, %v6825, 0
      %v6869 = vsel %vm6846, %v6826, 0
      %v6872 = vsel %vm6846, %v6827, 0
      %v6875 = vsel %vm6846, %v6828, 0
      %v6878 = vsel %vm6846, %v6829, 0
      %v6881 = vsel %vm6846, %v6830, 0
      %v6884 = vsel %vm6846, %v6831, 0
      %v6887 = vsel %vm6846, %v6832, 0
      %v6890 = vsel %vm6846, %v6833, 0
      %v6893 = vsel %vm6846, %v6834, 0
      %6895 = vmatpush.bf16.msra.mxu0 0
      %6896 = vmatpush.bf16.msra.mxu0 0
      %6897 = vmatpush.bf16.msra.mxu0 0
      %6898 = vmatpush.bf16.msra.mxu0 0
      %6899 = vmatpush.bf16.msra.mxu0 0
      %6900 = vmatpush.bf16.msra.mxu0 0
      %6901 = vmatpush.bf16.msra.mxu0 0
      %6902 = vmatpush.bf16.msra.mxu0 %v6844
      %6903 = vmatmul.bf16.gmra.mxu0 %v6848
      %v6904 = vpop.f32.mrf.mxu0
      %v6905 = vadd.f32 %v6838, %v6904
      %v6906 = vpop.f32.mrf.mxu0
      %v6907 = vadd.f32 %v6838, %v6906
      %6908 = vmatmul.bf16.gmra.mxu0 %v6851
      %v6909 = vpop.f32.mrf.mxu0
      %v6910 = vadd.f32 %v6838, %v6909
      %v6911 = vpop.f32.mrf.mxu0
      %v6912 = vadd.f32 %v6838, %v6911
      %6913 = vmatmul.bf16.gmra.mxu0 %v6854
      %v6914 = vpop.f32.mrf.mxu0
      %v6915 = vadd.f32 %v6838, %v6914
      %v6916 = vpop.f32.mrf.mxu0
      %v6917 = vadd.f32 %v6838, %v6916
      %6918 = vmatmul.bf16.gmra.mxu0 %v6857
      %v6919 = vpop.f32.mrf.mxu0
      %v6920 = vadd.f32 %v6838, %v6919
      %v6921 = vpop.f32.mrf.mxu0
      %v6922 = vadd.f32 %v6838, %v6921
      %6923 = vmatmul.bf16.gmra.mxu0 %v6860
      %v6924 = vpop.f32.mrf.mxu0
      %v6925 = vadd.f32 %v6838, %v6924
      %v6926 = vpop.f32.mrf.mxu0
      %v6927 = vadd.f32 %v6838, %v6926
      %6928 = vmatmul.bf16.gmra.mxu0 %v6863
      %v6929 = vpop.f32.mrf.mxu0
      %v6930 = vadd.f32 %v6838, %v6929
      %v6931 = vpop.f32.mrf.mxu0
      %v6932 = vadd.f32 %v6838, %v6931
      %6933 = vmatmul.bf16.gmra.mxu0 %v6866
      %v6934 = vpop.f32.mrf.mxu0
      %v6935 = vadd.f32 %v6838, %v6934
      %v6936 = vpop.f32.mrf.mxu0
      %v6937 = vadd.f32 %v6838, %v6936
      %6938 = vmatmul.bf16.gmra.mxu0 %v6869
      %v6939 = vpop.f32.mrf.mxu0
      %v6940 = vadd.f32 %v6838, %v6939
      %v6941 = vpop.f32.mrf.mxu0
      %v6942 = vadd.f32 %v6838, %v6941
      %6943 = vmatmul.bf16.gmra.mxu0 %v6872
      %v6944 = vpop.f32.mrf.mxu0
      %v6945 = vadd.f32 %v6838, %v6944
      %v6946 = vpop.f32.mrf.mxu0
      %v6947 = vadd.f32 %v6838, %v6946
      %6948 = vmatmul.bf16.gmra.mxu0 %v6875
      %v6949 = vpop.f32.mrf.mxu0
      %v6950 = vadd.f32 %v6838, %v6949
      %v6951 = vpop.f32.mrf.mxu0
      %v6952 = vadd.f32 %v6838, %v6951
      %6953 = vmatmul.bf16.gmra.mxu0 %v6878
      %v6954 = vpop.f32.mrf.mxu0
      %v6955 = vadd.f32 %v6838, %v6954
      %v6956 = vpop.f32.mrf.mxu0
      %v6957 = vadd.f32 %v6838, %v6956
      %6958 = vmatmul.bf16.gmra.mxu0 %v6881
      %v6959 = vpop.f32.mrf.mxu0
      %v6960 = vadd.f32 %v6838, %v6959
      %v6961 = vpop.f32.mrf.mxu0
      %v6962 = vadd.f32 %v6838, %v6961
      %6963 = vmatmul.bf16.gmra.mxu0 %v6884
      %v6964 = vpop.f32.mrf.mxu0
      %v6965 = vadd.f32 %v6838, %v6964
      %v6966 = vpop.f32.mrf.mxu0
      %v6967 = vadd.f32 %v6838, %v6966
      %6968 = vmatmul.bf16.gmra.mxu0 %v6887
      %v6969 = vpop.f32.mrf.mxu0
      %v6970 = vadd.f32 %v6838, %v6969
      %v6971 = vpop.f32.mrf.mxu0
      %v6972 = vadd.f32 %v6838, %v6971
      %6973 = vmatmul.bf16.gmra.mxu0 %v6890
      %v6974 = vpop.f32.mrf.mxu0
      %v6975 = vadd.f32 %v6838, %v6974
      %v6976 = vpop.f32.mrf.mxu0
      %v6977 = vadd.f32 %v6838, %v6976
      %6978 = vmatmul.bf16.gmra.mxu0 %v6893
      %v6979 = vpop.f32.mrf.mxu0
      %v6980 = vadd.f32 %v6838, %v6979
      %v6981 = vpop.f32.mrf.mxu0
      %v6982 = vadd.f32 %v6838, %v6981
      %6983 = vdwg.mxu0
      %v6984 = vadd.f32 %v2654, %v6905
      %v6985 = vadd.f32 %v2655, %v6907
      %v6986 = vadd.f32 %v2656, %v6910
      %v6987 = vadd.f32 %v2657, %v6912
      %v6988 = vadd.f32 %v2658, %v6915
      %v6989 = vadd.f32 %v2659, %v6917
      %v6990 = vadd.f32 %v2660, %v6920
      %v6991 = vadd.f32 %v2661, %v6922
      %v6992 = vadd.f32 %v2662, %v6925
      %v6993 = vadd.f32 %v2663, %v6927
      %v6994 = vadd.f32 %v2664, %v6930
      %v6995 = vadd.f32 %v2665, %v6932
      %v6996 = vadd.f32 %v2666, %v6935
      %v6997 = vadd.f32 %v2667, %v6937
      %v6998 = vadd.f32 %v2668, %v6940
      %v6999 = vadd.f32 %v2669, %v6942
      %v7000 = vadd.f32 %v2670, %v6945
      %v7001 = vadd.f32 %v2671, %v6947
      %v7002 = vadd.f32 %v2672, %v6950
      %v7003 = vadd.f32 %v2673, %v6952
      %v7004 = vadd.f32 %v2674, %v6955
      %v7005 = vadd.f32 %v2675, %v6957
      %v7006 = vadd.f32 %v2676, %v6960
      %v7007 = vadd.f32 %v2677, %v6962
      %v7008 = vadd.f32 %v2678, %v6965
      %v7009 = vadd.f32 %v2679, %v6967
      %v7010 = vadd.f32 %v2680, %v6970
      %v7011 = vadd.f32 %v2681, %v6972
      %v7012 = vadd.f32 %v2682, %v6975
      %v7013 = vadd.f32 %v2683, %v6977
      %v7014 = vadd.f32 %v2684, %v6980
      %v7015 = vadd.f32 %v2685, %v6982
      %7016 = vst.msk [vmem:[%s307] sm:$0xff] %vm5114, %v6984
      %7017 = vst.msk [vmem:[%s307 + $0x8] sm:$0xff] %vm5114, %v6985
      %7018 = vst.msk [vmem:[%s307 + $0x10] sm:$0xff] %vm5114, %v6986
      %7019 = vst.msk [vmem:[%s307 + $0x18] sm:$0xff] %vm5114, %v6987
      %7020 = vst.msk [vmem:[%s307 + $0x20] sm:$0xff] %vm5114, %v6988
      %7021 = vst.msk [vmem:[%s307 + $0x28] sm:$0xff] %vm5114, %v6989
      %7022 = vst.msk [vmem:[%s307 + $0x30] sm:$0xff] %vm5114, %v6990
      %7023 = vst.msk [vmem:[%s307 + $0x38] sm:$0xff] %vm5114, %v6991
      %7024 = vst.msk [vmem:[%s307 + $0x40] sm:$0xff] %vm5114, %v6992
      %7025 = vst.msk [vmem:[%s307 + $0x48] sm:$0xff] %vm5114, %v6993
      %7026 = vst.msk [vmem:[%s307 + $0x50] sm:$0xff] %vm5114, %v6994
      %7027 = vst.msk [vmem:[%s307 + $0x58] sm:$0xff] %vm5114, %v6995
      %7028 = vst.msk [vmem:[%s307 + $0x60] sm:$0xff] %vm5114, %v6996
      %7029 = vst.msk [vmem:[%s307 + $0x68] sm:$0xff] %vm5114, %v6997
      %7030 = vst.msk [vmem:[%s307 + $0x70] sm:$0xff] %vm5114, %v6998
      %7031 = vst.msk [vmem:[%s307 + $0x78] sm:$0xff] %vm5114, %v6999
      %7032 = vst.msk [vmem:[%s307 + $0x80] sm:$0xff] %vm5114, %v7000
      %7033 = vst.msk [vmem:[%s307 + $0x88] sm:$0xff] %vm5114, %v7001
      %7034 = vst.msk [vmem:[%s307 + $0x90] sm:$0xff] %vm5114, %v7002
      %7035 = vst.msk [vmem:[%s307 + $0x98] sm:$0xff] %vm5114, %v7003
      %7036 = vst.msk [vmem:[%s307 + $0xa0] sm:$0xff] %vm5114, %v7004
      %7037 = vst.msk [vmem:[%s307 + $0xa8] sm:$0xff] %vm5114, %v7005
      %7038 = vst.msk [vmem:[%s307 + $0xb0] sm:$0xff] %vm5114, %v7006
      %7039 = vst.msk [vmem:[%s307 + $0xb8] sm:$0xff] %vm5114, %v7007
      %7040 = vst.msk [vmem:[%s307 + $0xc0] sm:$0xff] %vm5114, %v7008
      %7041 = vst.msk [vmem:[%s307 + $0xc8] sm:$0xff] %vm5114, %v7009
      %7042 = vst.msk [vmem:[%s307 + $0xd0] sm:$0xff] %vm5114, %v7010
      %7043 = vst.msk [vmem:[%s307 + $0xd8] sm:$0xff] %vm5114, %v7011
      %7044 = vst.msk [vmem:[%s307 + $0xe0] sm:$0xff] %vm5114, %v7012
      %7045 = vst.msk [vmem:[%s307 + $0xe8] sm:$0xff] %vm5114, %v7013
      %7046 = vst.msk [vmem:[%s307 + $0xf0] sm:$0xff] %vm5114, %v7014
      %7047 = vst.msk [vmem:[%s307 + $0xf8] sm:$0xff] %vm5114, %v7015
      %s7048 = smul.u32 32, %s23
      %p7049 = scmp.lt.s32.totalorder %s22, 1
      %s7050 = scalar_select %p7049, %s22, 1
      %p7051 = scmp.lt.s32.totalorder %s7048, 31
      %s7052 = scalar_select %p7051, %s7048, 31
      %s7053 = smul.addr %s7050, 32
      %s7054 = sadd.s32 %s7052, %s7053
      %s7055 = smul.addr %s7054, 8
      %s7056 = scalar_lea.vmem %s7, %s7055
      // Predicated region
      $region49: #{acl_v1_forward.1} parent=47 // pred_check
        %p7057 = pneg %p204
      $region50: #{acl_v1_forward.1} parent=47 // pred_check_branch
        %7059 = sbr.rel (%p7057) target = $region52
      $region51: #{acl_v1_forward.1} parent=47 // pred_region
        %s7060 = smul.u32 32, %s23
      $region52: #{acl_v1_forward.1} parent=47 // pred_fallthru
        _
    $region48: #{acl_v1_forward.1} parent=5 // pred_fallthru
      _
    %p7061 = scmp.le.s32.totalorder 2, %s13
    // Predicated region
    $region53: #{acl_v1_forward.1} parent=5 // pred_check
      %p7062 = pneg %p7061
    $region54: #{acl_v1_forward.1} parent=5 // pred_check_branch
      %7064 = sbr.rel (%p7062) target = $region56
    $region55: #{acl_v1_forward.1} parent=5 // pred_region
      %s7065 = ssub.s32 %s13, 2
      // Predicated region
      $region57: #{acl_v1_forward.1} parent=55 // pred_check
        %p7066 = pneg %p210
      $region58: #{acl_v1_forward.1} parent=55 // pred_check_branch
        %7068 = sbr.rel (%p7066) target = $region60
      $region59: #{acl_v1_forward.1} parent=55 // pred_region
        %s7069 = smul.u32 32, %s25
        %p7070 = scmp.lt.s32.totalorder %s24, 1
        %s7071 = scalar_select %p7070, %s24, 1
        %p7072 = scmp.lt.s32.totalorder %s7069, 31
        %s7073 = scalar_select %p7072, %s7069, 31
        %s7074 = smul.addr %s7071, 32
        %s7075 = sadd.s32 %s7073, %s7074
        %s7076 = smul.addr %s7075, 8
        %s7077 = scalar_lea.vmem %s7, %s7076
      $region60: #{acl_v1_forward.1} parent=55 // pred_fallthru
        _
    $region56: #{acl_v1_forward.1} parent=5 // pred_fallthru
      _
  $region6: #{acl_v1_forward.1} parent=0 // loop_footer
    %s17 = sadd.s32 1, %s13
  $region7: #{acl_v1_forward.1} parent=0 // loop_footer_branch
    %12 = sbr.rel target = $region3
  $region8: #{acl_v1_forward.1} parent=0 // loop_exit
    _

</llo_original>
